<compile_context>
chip_gen: v7x
topology: tpu7x:2x2x1
jax: 0.10.0
libtpu: 0.0.40
codegen_flags: <defaults>
</compile_context>

<pallas_src>
import functools

import numpy as np
import jax
import jax.numpy as jnp
from jax import lax
from jax.experimental import pallas as pl
from jax.experimental.pallas import tpu as pltpu


# ----------------------------------------------------------------------------
# Config (small synthetic VitsConfig)
# ----------------------------------------------------------------------------
CONFIG = dict(
    flow_size=8,                     # spectrogram bins fed to conv_pre
    upsample_initial_channel=32,
    upsample_rates=(2, 2),
    upsample_kernel_sizes=(4, 4),
    resblock_kernel_sizes=(3, 5),
    resblock_dilation_sizes=((1, 3), (1, 3)),
    leaky_relu_slope=0.1,
    speaker_embedding_size=4,
)


# ----------------------------------------------------------------------------
# In-kernel helpers.  All operate on (C, T) float32 VALUES (VMEM resident).
# Conv weights are kernel-ready (Cout, K*Cin); selection matrices are
# precomputed 0/1 constants passed as inputs.
# ----------------------------------------------------------------------------
def _leaky(x, slope):
    return jnp.where(x >= 0, x, slope * x)


def _conv(x, w_ref, b_ref, *, K, dilation=1, pad=0, pad_ref=None):
    """PyTorch Conv1d (stride 1) in (C, T) layout.

    Zero-padding is one matmul with a precomputed (T, T+2p) selection matrix
    (stays on the MXU, matrix built once in the wrapper).  The K taps are a
    single stacked matmul: w_ref is (Cout, K*Cin); the (K*Cin, T_out) window
    stack is a sublane-aligned concat of K lane-shifted slices, so the tap
    accumulation happens inside the MXU.
    """
    T = x.shape[1]
    t_out = T + 2 * pad - dilation * (K - 1)
    xp = x if pad == 0 else jnp.dot(x, pad_ref[...],
                                    preferred_element_type=jnp.float32)
    if K == 1:
        xs = xp[:, :t_out]
    else:
        xs = jnp.concatenate(
            [xp[:, k * dilation:k * dilation + t_out] for k in range(K)],
            axis=0)
    acc = jnp.dot(w_ref[...], xs, preferred_element_type=jnp.float32)
    if b_ref is not None:
        acc = acc + b_ref[...]                       # (Cout, 1) bcast over lanes
    return acc


def _conv_transpose(x, stuff_ref, w_ref, b_ref, *, K, stride, pad):
    """PyTorch ConvTranspose1d.

    Zero-stuffing + halo padding happen via one precomputed selection-matrix
    matmul (no strided scatter, no HBM temp); the K taps are then the same
    stacked matmul (weights pre-flipped / transposed / stacked in wrapper).
    """
    T = x.shape[1]
    t_out = (T - 1) * stride + K - 2 * pad
    xp = jnp.dot(x, stuff_ref[...], preferred_element_type=jnp.float32)
    xs = jnp.concatenate([xp[:, k:k + t_out] for k in range(K)], axis=0)
    return (jnp.dot(w_ref[...], xs, preferred_element_type=jnp.float32)
            + b_ref[...])


# ----------------------------------------------------------------------------
# The fused kernel: one batch element per grid step, everything in VMEM.
# ----------------------------------------------------------------------------
def _hifigan_kernel(*refs, cfg, has_cond, pad_keys):
    slope = cfg["leaky_relu_slope"]
    rk = cfg["resblock_kernel_sizes"]
    rd = cfg["resblock_dilation_sizes"]
    nk = len(rk)

    out_ref = refs[-1]
    it = iter(refs[:-1])
    spec_ref = next(it)
    cond_ref = next(it) if has_cond else None
    pad_refs = {key: next(it) for key in pad_keys}   # (length, pad) -> sel ref

    def conv(x, w, b, *, K, dilation=1, pad=0):
        pref = pad_refs[(x.shape[1], pad)] if pad > 0 else None
        return _conv(x, w, b, K=K, dilation=dilation, pad=pad, pad_ref=pref)

    x = spec_ref[0]                                   # (flow_size, T)

    # conv_pre: kernel 7, pad 3
    w, b = next(it), next(it)
    h = conv(x, w, b, K=7, pad=3)

    if has_cond:
        wc, bc = next(it), next(it)
        h = h + (jnp.dot(wc[...], cond_ref[0],
                         preferred_element_type=jnp.float32) + bc[...])

    for rate, ks in zip(cfg["upsample_rates"], cfg["upsample_kernel_sizes"]):
        stuff = next(it)                              # zero-stuff + halo matrix
        wu, bu = next(it), next(it)
        # leaky_relu hoisted: applied once to the value feeding the upsampler
        h = _conv_transpose(_leaky(h, slope), stuff, wu, bu,
                            K=ks, stride=rate, pad=(ks - rate) // 2)
        res = None
        for j in range(nk):
            K = rk[j]
            hb = h
            for d in rd[j]:
                w1, b1, w2, b2 = next(it), next(it), next(it), next(it)
                t = conv(_leaky(hb, slope), w1, b1, K=K, dilation=d,
                         pad=(K * d - d) // 2)
                t = conv(_leaky(t, slope), w2, b2, K=K, dilation=1,
                         pad=(K - 1) // 2)
                hb = hb + t                           # residual add (fused)
            res = hb if res is None else res + hb     # res-block sum (fused)
        h = res * (1.0 / nk)                          # mean over kernels (fused)

    # nn.functional.leaky_relu default slope 0.01; conv_post has no bias.
    w_post = next(it)
    h = conv(_leaky(h, 0.01), w_post, None, K=7, pad=3)
    out_ref[0] = jnp.tanh(h).astype(out_ref.dtype)    # lane-dense (1, T_out)


# ----------------------------------------------------------------------------
# Wrapper: weight re-layout + selection-matrix precompute + single pallas_call
# ----------------------------------------------------------------------------
def _prep_conv_w(w_oik):
    """PyTorch Conv1d weight (Cout, Cin, K) -> stacked (Cout, K*Cin)."""
    co, ci, k = w_oik.shape
    return jnp.transpose(w_oik, (0, 2, 1)).reshape(co, k * ci)


def _prep_convT_w(w_iok):
    """ConvTranspose1d weight (Cin, Cout, K) -> tap-flipped stacked (Cout, K*Cin)."""
    ci, co, k = w_iok.shape
    return jnp.transpose(w_iok[:, :, ::-1], (1, 2, 0)).reshape(co, k * ci)


def _make_sel(t_in, stride, offset):
    """0/1 selection matrix (t_in, L): zero-stuff by `stride`, pad by `offset`."""
    L = 2 * offset + (t_in - 1) * stride + 1
    m = np.zeros((t_in, L), np.float32)
    m[np.arange(t_in), offset + np.arange(t_in) * stride] = 1.0
    return jnp.asarray(m)


def vits_hifigan_forward(params, spectrogram_ncl, global_cond_ncl, cfg):
    """spectrogram: (B, flow_size, T); global_cond: (B, spk, 1) or None.
    Returns waveform (B, 1, num_frames), matching the PyTorch module."""
    B, n_spec, T = spectrogram_ncl.shape
    has_cond = (global_cond_ncl is not None
                and cfg["speaker_embedding_size"] != 0)
    rk = cfg["resblock_kernel_sizes"]
    rd = cfg["resblock_dilation_sizes"]
    nk = len(rk)

    # --- enumerate unique (length, pad) combos needed by the stride-1 convs
    pad_keys = []

    def _need(t_len, pad):
        if pad > 0 and (t_len, pad) not in pad_keys:
            pad_keys.append((t_len, pad))

    _need(T, 3)                                       # conv_pre
    t_cur = T
    for rate, ks in zip(cfg["upsample_rates"], cfg["upsample_kernel_sizes"]):
        p = (ks - rate) // 2
        t_cur = (t_cur - 1) * rate + ks - 2 * p       # ConvTranspose1d length
        for K, dils in zip(rk, rd):
            for d in dils:
                _need(t_cur, (K * d - d) // 2)        # conv1 (dilated)
                _need(t_cur, (K - 1) // 2)            # conv2
    _need(t_cur, 3)                                   # conv_post
    t_out = t_cur

    pad_mats = [_make_sel(t, 1, p) for (t, p) in pad_keys]

    # --- kernel-ready weights, flattened in exact kernel consumption order
    flat = []
    flat.append(_prep_conv_w(params["conv_pre_w"]))
    flat.append(params["conv_pre_b"].reshape(-1, 1))
    if has_cond:
        flat.append(_prep_conv_w(params["cond_w"]))
        flat.append(params["cond_b"].reshape(-1, 1))

    t_cur = T
    for i, (rate, ks) in enumerate(zip(cfg["upsample_rates"],
                                       cfg["upsample_kernel_sizes"])):
        p = (ks - rate) // 2
        flat.append(_make_sel(t_cur, rate, ks - 1 - p))   # zero-stuff + halo
        t_cur = (t_cur - 1) * rate + ks - 2 * p
        up = params["upsampler"][i]
        flat.append(_prep_convT_w(up["w"]))
        flat.append(up["b"].reshape(-1, 1))
        for j in range(nk):
            for layer in params["resblocks"][i * nk + j]:
                flat.append(_prep_conv_w(layer["w1"]))
                flat.append(layer["b1"].reshape(-1, 1))
                flat.append(_prep_conv_w(layer["w2"]))
                flat.append(layer["b2"].reshape(-1, 1))
    flat.append(_prep_conv_w(params["conv_post_w"]))

    inputs = [spectrogram_ncl]
    in_specs = [pl.BlockSpec((1, n_spec, T), lambda b: (b, 0, 0))]
    if has_cond:
        spk = global_cond_ncl.shape[1]
        inputs.append(global_cond_ncl)
        in_specs.append(pl.BlockSpec((1, spk, 1), lambda b: (b, 0, 0)))
    for w in pad_mats + flat:
        inputs.append(w)
        in_specs.append(
            pl.BlockSpec(w.shape, lambda b, n=w.ndim: (0,) * n))

    kernel = functools.partial(_hifigan_kernel, cfg=cfg, has_cond=has_cond,
                               pad_keys=tuple(pad_keys))
    return pl.pallas_call(
        kernel,
        out_shape=jax.ShapeDtypeStruct((B, 1, t_out), spectrogram_ncl.dtype),
        grid=(B,),
        in_specs=in_specs,
        out_specs=pl.BlockSpec((1, 1, t_out), lambda b: (b, 0, 0)),
        compiler_params=pltpu.CompilerParams(
            dimension_semantics=("parallel",)),
    )(*inputs)


# ----------------------------------------------------------------------------
# Deterministic synthetic parameters (PyTorch weight layouts)
# ----------------------------------------------------------------------------
def init_params(key, cfg):
    keys = iter(jax.random.split(key, 256))

    def rnd(shape, scale=0.1):
        return scale * jax.random.normal(next(keys), shape, jnp.float32)

    C0 = cfg["upsample_initial_channel"]
    params = {
        "conv_pre_w": rnd((C0, cfg["flow_size"], 7)),   # Conv1d (Cout, Cin, K)
        "conv_pre_b": rnd((C0,), 0.01),
        "upsampler": [],
        "resblocks": [],
    }
    if cfg["speaker_embedding_size"] != 0:
        params["cond_w"] = rnd((C0, cfg["speaker_embedding_size"], 1))
        params["cond_b"] = rnd((C0,), 0.01)

    ch = C0
    for i, ks in enumerate(cfg["upsample_kernel_sizes"]):
        cin, cout = C0 // 2 ** i, C0 // 2 ** (i + 1)
        # ConvTranspose1d weight layout (Cin, Cout, K), as in PyTorch
        params["upsampler"].append(dict(w=rnd((cin, cout, ks)),
                                        b=rnd((cout,), 0.01)))
        for K, dils in zip(cfg["resblock_kernel_sizes"],
                           cfg["resblock_dilation_sizes"]):
            block = []
            for d in dils:
                block.append(dict(w1=rnd((cout, cout, K)), b1=rnd((cout,), 0.01),
                                  dil=int(d),
                                  w2=rnd((cout, cout, K)), b2=rnd((cout,), 0.01)))
            params["resblocks"].append(block)
        ch = cout
    params["conv_post_w"] = rnd((1, ch, 7))
    return params


# ----------------------------------------------------------------------------
# Pure-JAX reference (lax.conv_general_dilated, f32 HIGHEST precision)
# ----------------------------------------------------------------------------
def _ref_conv1d(x_ncl, w_oik, b, dilation, pad):
    y = lax.conv_general_dilated(x_ncl, w_oik, window_strides=(1,),
                                 padding=[(pad, pad)], rhs_dilation=(dilation,),
                                 dimension_numbers=("NCH", "OIH", "NCH"),
                                 precision=lax.Precision.HIGHEST)
    if b is not None:
        y = y + b[None, :, None]
    return y


def _ref_conv_transpose1d(x_ncl, w_iok, b, stride, pad):
    K = w_iok.shape[2]
    w_oih = jnp.transpose(w_iok[:, :, ::-1], (1, 0, 2))   # (Cout, Cin, K)
    y = lax.conv_general_dilated(x_ncl, w_oih, window_strides=(1,),
                                 padding=[(K - 1 - pad, K - 1 - pad)],
                                 lhs_dilation=(stride,),
                                 dimension_numbers=("NCH", "OIH", "NCH"),
                                 precision=lax.Precision.HIGHEST)
    return y + b[None, :, None]


def _ref_leaky(x, s):
    return jnp.where(x >= 0, x, s * x)


def ref_forward(params, spec, cond, cfg):
    slope = cfg["leaky_relu_slope"]
    h = _ref_conv1d(spec, params["conv_pre_w"], params["conv_pre_b"], 1, 3)
    if cond is not None and cfg["speaker_embedding_size"] != 0:
        h = h + _ref_conv1d(cond, params["cond_w"], params["cond_b"], 1, 0)
    nk = len(cfg["resblock_kernel_sizes"])
    for i, (rate, ks) in enumerate(zip(cfg["upsample_rates"],
                                       cfg["upsample_kernel_sizes"])):
        h = _ref_leaky(h, slope)
        up = params["upsampler"][i]
        h = _ref_conv_transpose1d(h, up["w"], up["b"], rate, (ks - rate) // 2)
        res = None
        for j in range(nk):
            hb = h
            K = cfg["resblock_kernel_sizes"][j]
            for layer in params["resblocks"][i * nk + j]:
                d = layer["dil"]
                t = _ref_conv1d(_ref_leaky(hb, slope), layer["w1"],
                                layer["b1"], d, (K * d - d) // 2)
                t = _ref_conv1d(_ref_leaky(t, slope), layer["w2"],
                                layer["b2"], 1, (K - 1) // 2)
                hb = hb + t
            res = hb if res is None else res + hb
        h = res / nk
    h = _ref_leaky(h, 0.01)
    h = _ref_conv1d(h, params["conv_post_w"], None, 1, 3)
    return jnp.tanh(h)


# ----------------------------------------------------------------------------
if __name__ == "__main__":
    key = jax.random.PRNGKey(0)
    kp, ks, kc = jax.random.split(key, 3)
    params = init_params(kp, CONFIG)

    B, T = 2, 16
    spectrogram = jax.random.normal(ks, (B, CONFIG["flow_size"], T), jnp.float32)
    speaker_emb = jax.random.normal(
        kc, (B, CONFIG["speaker_embedding_size"], 1), jnp.float32)

    waveform = vits_hifigan_forward(params, spectrogram, speaker_emb, CONFIG)
    waveform = jax.block_until_ready(waveform)

    # total upsampling factor = prod(upsample_rates) = 4
    expected_len = T * 2 * 2
    assert waveform.shape == (B, 1, expected_len), waveform.shape
    assert bool(jnp.all(jnp.isfinite(waveform)))

    ref = ref_forward(params, spectrogram, speaker_emb, CONFIG)
    err = float(jnp.max(jnp.abs(waveform - ref)))
    assert err < 1e-3, f"mismatch vs reference: {err}"

    print("KERNEL_OK")
</pallas_src>

<mosaic_0001>
module attributes {stable_mosaic.version = 11 : i64} {
  func.func @_hifigan_kernel(%arg0: i32, %arg1: memref<1x8x16xf32, #tpu.memory_space<vmem>>, %arg2: memref<1x4x1xf32, #tpu.memory_space<vmem>>, %arg3: memref<16x22xf32, #tpu.memory_space<vmem>>, %arg4: memref<32x34xf32, #tpu.memory_space<vmem>>, %arg5: memref<32x38xf32, #tpu.memory_space<vmem>>, %arg6: memref<32x36xf32, #tpu.memory_space<vmem>>, %arg7: memref<32x44xf32, #tpu.memory_space<vmem>>, %arg8: memref<64x66xf32, #tpu.memory_space<vmem>>, %arg9: memref<64x70xf32, #tpu.memory_space<vmem>>, %arg10: memref<64x68xf32, #tpu.memory_space<vmem>>, %arg11: memref<64x76xf32, #tpu.memory_space<vmem>>, %arg12: memref<32x56xf32, #tpu.memory_space<vmem>>, %arg13: memref<32x1xf32, #tpu.memory_space<vmem>>, %arg14: memref<32x4xf32, #tpu.memory_space<vmem>>, %arg15: memref<32x1xf32, #tpu.memory_space<vmem>>, %arg16: memref<16x35xf32, #tpu.memory_space<vmem>>, %arg17: memref<16x128xf32, #tpu.memory_space<vmem>>, %arg18: memref<16x1xf32, #tpu.memory_space<vmem>>, %arg19: memref<16x48xf32, #tpu.memory_space<vmem>>, %arg20: memref<16x1xf32, #tpu.memory_space<vmem>>, %arg21: memref<16x48xf32, #tpu.memory_space<vmem>>, %arg22: memref<16x1xf32, #tpu.memory_space<vmem>>, %arg23: memref<16x48xf32, #tpu.memory_space<vmem>>, %arg24: memref<16x1xf32, #tpu.memory_space<vmem>>, %arg25: memref<16x48xf32, #tpu.memory_space<vmem>>, %arg26: memref<16x1xf32, #tpu.memory_space<vmem>>, %arg27: memref<16x80xf32, #tpu.memory_space<vmem>>, %arg28: memref<16x1xf32, #tpu.memory_space<vmem>>, %arg29: memref<16x80xf32, #tpu.memory_space<vmem>>, %arg30: memref<16x1xf32, #tpu.memory_space<vmem>>, %arg31: memref<16x80xf32, #tpu.memory_space<vmem>>, %arg32: memref<16x1xf32, #tpu.memory_space<vmem>>, %arg33: memref<16x80xf32, #tpu.memory_space<vmem>>, %arg34: memref<16x1xf32, #tpu.memory_space<vmem>>, %arg35: memref<32x67xf32, #tpu.memory_space<vmem>>, %arg36: memref<8x64xf32, #tpu.memory_space<vmem>>, %arg37: memref<8x1xf32, #tpu.memory_space<vmem>>, %arg38: memref<8x24xf32, #tpu.memory_space<vmem>>, %arg39: memref<8x1xf32, #tpu.memory_space<vmem>>, %arg40: memref<8x24xf32, #tpu.memory_space<vmem>>, %arg41: memref<8x1xf32, #tpu.memory_space<vmem>>, %arg42: memref<8x24xf32, #tpu.memory_space<vmem>>, %arg43: memref<8x1xf32, #tpu.memory_space<vmem>>, %arg44: memref<8x24xf32, #tpu.memory_space<vmem>>, %arg45: memref<8x1xf32, #tpu.memory_space<vmem>>, %arg46: memref<8x40xf32, #tpu.memory_space<vmem>>, %arg47: memref<8x1xf32, #tpu.memory_space<vmem>>, %arg48: memref<8x40xf32, #tpu.memory_space<vmem>>, %arg49: memref<8x1xf32, #tpu.memory_space<vmem>>, %arg50: memref<8x40xf32, #tpu.memory_space<vmem>>, %arg51: memref<8x1xf32, #tpu.memory_space<vmem>>, %arg52: memref<8x40xf32, #tpu.memory_space<vmem>>, %arg53: memref<8x1xf32, #tpu.memory_space<vmem>>, %arg54: memref<1x56xf32, #tpu.memory_space<vmem>>, %arg55: memref<1x1x64xf32, #tpu.memory_space<vmem>>) attributes {dimension_semantics = [#tpu.dimension_semantics<parallel>], iteration_bounds = array<i64: 2>, scalar_prefetch = 0 : i64, scratch_operands = 0 : i64, tpu.core_type = #tpu.core_type<tc>, window_params = [{transform_indices = @transform_0, window_bounds = array<i64: 1, 8, 16>}, {transform_indices = @transform_1, window_bounds = array<i64: 1, 4, 1>}, {pipeline_mode = #tpu.pipeline_mode<synchronous>, transform_indices = @transform_2, window_bounds = array<i64: 16, 22>}, {pipeline_mode = #tpu.pipeline_mode<synchronous>, transform_indices = @transform_3, window_bounds = array<i64: 32, 34>}, {pipeline_mode = #tpu.pipeline_mode<synchronous>, transform_indices = @transform_4, window_bounds = array<i64: 32, 38>}, {pipeline_mode = #tpu.pipeline_mode<synchronous>, transform_indices = @transform_5, window_bounds = array<i64: 32, 36>}, {pipeline_mode = #tpu.pipeline_mode<synchronous>, transform_indices = @transform_6, window_bounds = array<i64: 32, 44>}, {pipeline_mode = #tpu.pipeline_mode<synchronous>, transform_indices = @transform_7, window_bounds = array<i64: 64, 66>}, {pipeline_mode = #tpu.pipeline_mode<synchronous>, transform_indices = @transform_8, window_bounds = array<i64: 64, 70>}, {pipeline_mode = #tpu.pipeline_mode<synchronous>, transform_indices = @transform_9, window_bounds = array<i64: 64, 68>}, {pipeline_mode = #tpu.pipeline_mode<synchronous>, transform_indices = @transform_10, window_bounds = array<i64: 64, 76>}, {pipeline_mode = #tpu.pipeline_mode<synchronous>, transform_indices = @transform_11, window_bounds = array<i64: 32, 56>}, {pipeline_mode = #tpu.pipeline_mode<synchronous>, transform_indices = @transform_12, window_bounds = array<i64: 32, 1>}, {pipeline_mode = #tpu.pipeline_mode<synchronous>, transform_indices = @transform_13, window_bounds = array<i64: 32, 4>}, {pipeline_mode = #tpu.pipeline_mode<synchronous>, transform_indices = @transform_14, window_bounds = array<i64: 32, 1>}, {pipeline_mode = #tpu.pipeline_mode<synchronous>, transform_indices = @transform_15, window_bounds = array<i64: 16, 35>}, {pipeline_mode = #tpu.pipeline_mode<synchronous>, transform_indices = @transform_16, window_bounds = array<i64: 16, 128>}, {pipeline_mode = #tpu.pipeline_mode<synchronous>, transform_indices = @transform_17, window_bounds = array<i64: 16, 1>}, {pipeline_mode = #tpu.pipeline_mode<synchronous>, transform_indices = @transform_18, window_bounds = array<i64: 16, 48>}, {pipeline_mode = #tpu.pipeline_mode<synchronous>, transform_indices = @transform_19, window_bounds = array<i64: 16, 1>}, {pipeline_mode = #tpu.pipeline_mode<synchronous>, transform_indices = @transform_20, window_bounds = array<i64: 16, 48>}, {pipeline_mode = #tpu.pipeline_mode<synchronous>, transform_indices = @transform_21, window_bounds = array<i64: 16, 1>}, {pipeline_mode = #tpu.pipeline_mode<synchronous>, transform_indices = @transform_22, window_bounds = array<i64: 16, 48>}, {pipeline_mode = #tpu.pipeline_mode<synchronous>, transform_indices = @transform_23, window_bounds = array<i64: 16, 1>}, {pipeline_mode = #tpu.pipeline_mode<synchronous>, transform_indices = @transform_24, window_bounds = array<i64: 16, 48>}, {pipeline_mode = #tpu.pipeline_mode<synchronous>, transform_indices = @transform_25, window_bounds = array<i64: 16, 1>}, {pipeline_mode = #tpu.pipeline_mode<synchronous>, transform_indices = @transform_26, window_bounds = array<i64: 16, 80>}, {pipeline_mode = #tpu.pipeline_mode<synchronous>, transform_indices = @transform_27, window_bounds = array<i64: 16, 1>}, {pipeline_mode = #tpu.pipeline_mode<synchronous>, transform_indices = @transform_28, window_bounds = array<i64: 16, 80>}, {pipeline_mode = #tpu.pipeline_mode<synchronous>, transform_indices = @transform_29, window_bounds = array<i64: 16, 1>}, {pipeline_mode = #tpu.pipeline_mode<synchronous>, transform_indices = @transform_30, window_bounds = array<i64: 16, 80>}, {pipeline_mode = #tpu.pipeline_mode<synchronous>, transform_indices = @transform_31, window_bounds = array<i64: 16, 1>}, {pipeline_mode = #tpu.pipeline_mode<synchronous>, transform_indices = @transform_32, window_bounds = array<i64: 16, 80>}, {pipeline_mode = #tpu.pipeline_mode<synchronous>, transform_indices = @transform_33, window_bounds = array<i64: 16, 1>}, {pipeline_mode = #tpu.pipeline_mode<synchronous>, transform_indices = @transform_34, window_bounds = array<i64: 32, 67>}, {pipeline_mode = #tpu.pipeline_mode<synchronous>, transform_indices = @transform_35, window_bounds = array<i64: 8, 64>}, {pipeline_mode = #tpu.pipeline_mode<synchronous>, transform_indices = @transform_36, window_bounds = array<i64: 8, 1>}, {pipeline_mode = #tpu.pipeline_mode<synchronous>, transform_indices = @transform_37, window_bounds = array<i64: 8, 24>}, {pipeline_mode = #tpu.pipeline_mode<synchronous>, transform_indices = @transform_38, window_bounds = array<i64: 8, 1>}, {pipeline_mode = #tpu.pipeline_mode<synchronous>, transform_indices = @transform_39, window_bounds = array<i64: 8, 24>}, {pipeline_mode = #tpu.pipeline_mode<synchronous>, transform_indices = @transform_40, window_bounds = array<i64: 8, 1>}, {pipeline_mode = #tpu.pipeline_mode<synchronous>, transform_indices = @transform_41, window_bounds = array<i64: 8, 24>}, {pipeline_mode = #tpu.pipeline_mode<synchronous>, transform_indices = @transform_42, window_bounds = array<i64: 8, 1>}, {pipeline_mode = #tpu.pipeline_mode<synchronous>, transform_indices = @transform_43, window_bounds = array<i64: 8, 24>}, {pipeline_mode = #tpu.pipeline_mode<synchronous>, transform_indices = @transform_44, window_bounds = array<i64: 8, 1>}, {pipeline_mode = #tpu.pipeline_mode<synchronous>, transform_indices = @transform_45, window_bounds = array<i64: 8, 40>}, {pipeline_mode = #tpu.pipeline_mode<synchronous>, transform_indices = @transform_46, window_bounds = array<i64: 8, 1>}, {pipeline_mode = #tpu.pipeline_mode<synchronous>, transform_indices = @transform_47, window_bounds = array<i64: 8, 40>}, {pipeline_mode = #tpu.pipeline_mode<synchronous>, transform_indices = @transform_48, window_bounds = array<i64: 8, 1>}, {pipeline_mode = #tpu.pipeline_mode<synchronous>, transform_indices = @transform_49, window_bounds = array<i64: 8, 40>}, {pipeline_mode = #tpu.pipeline_mode<synchronous>, transform_indices = @transform_50, window_bounds = array<i64: 8, 1>}, {pipeline_mode = #tpu.pipeline_mode<synchronous>, transform_indices = @transform_51, window_bounds = array<i64: 8, 40>}, {pipeline_mode = #tpu.pipeline_mode<synchronous>, transform_indices = @transform_52, window_bounds = array<i64: 8, 1>}, {pipeline_mode = #tpu.pipeline_mode<synchronous>, transform_indices = @transform_53, window_bounds = array<i64: 1, 56>}, {transform_indices = @transform_54, window_bounds = array<i64: 1, 1, 64>}]} {
    %c0 = arith.constant 0 : index
    %c0_0 = arith.constant 0 : index
    %c0_1 = arith.constant 0 : index
    %0 = vector.load %arg1[%c0, %c0_0, %c0_1] : memref<1x8x16xf32, #tpu.memory_space<vmem>>, vector<1x8x16xf32>
    %1 = vector.shape_cast %0 : vector<1x8x16xf32> to vector<8x16xf32>
    %c0_2 = arith.constant 0 : index
    %c0_3 = arith.constant 0 : index
    %2 = vector.load %arg3[%c0_2, %c0_3] : memref<16x22xf32, #tpu.memory_space<vmem>>, vector<16x22xf32>
    %cst = arith.constant dense<0.000000e+00> : vector<8x22xf32>
    %3 = tpu.matmul %1, %2, %cst {dimension_numbers = #tpu.dot_dimension_numbers<[1], [0], [0], [1], [0, 0, 1, 1], [], []>} : vector<8x16xf32>, vector<16x22xf32>, vector<8x22xf32> -> vector<8x22xf32>
    %4 = vector.extract_strided_slice %3 {offsets = [0, 0], sizes = [8, 16], strides = [1, 1]} : vector<8x22xf32> to vector<8x16xf32>
    %5 = vector.extract_strided_slice %3 {offsets = [0, 1], sizes = [8, 16], strides = [1, 1]} : vector<8x22xf32> to vector<8x16xf32>
    %6 = vector.extract_strided_slice %3 {offsets = [0, 2], sizes = [8, 16], strides = [1, 1]} : vector<8x22xf32> to vector<8x16xf32>
    %7 = vector.extract_strided_slice %3 {offsets = [0, 3], sizes = [8, 16], strides = [1, 1]} : vector<8x22xf32> to vector<8x16xf32>
    %8 = vector.extract_strided_slice %3 {offsets = [0, 4], sizes = [8, 16], strides = [1, 1]} : vector<8x22xf32> to vector<8x16xf32>
    %9 = vector.extract_strided_slice %3 {offsets = [0, 5], sizes = [8, 16], strides = [1, 1]} : vector<8x22xf32> to vector<8x16xf32>
    %10 = vector.extract_strided_slice %3 {offsets = [0, 6], sizes = [8, 16], strides = [1, 1]} : vector<8x22xf32> to vector<8x16xf32>
    %11 = tpu.concatenate %4, %5, %6, %7, %8, %9, %10 in 0 : vector<8x16xf32>, vector<8x16xf32>, vector<8x16xf32>, vector<8x16xf32>, vector<8x16xf32>, vector<8x16xf32>, vector<8x16xf32> -> vector<56x16xf32>
    %c0_4 = arith.constant 0 : index
    %c0_5 = arith.constant 0 : index
    %12 = vector.load %arg12[%c0_4, %c0_5] : memref<32x56xf32, #tpu.memory_space<vmem>>, vector<32x56xf32>
    %cst_6 = arith.constant dense<0.000000e+00> : vector<32x16xf32>
    %13 = tpu.matmul %12, %11, %cst_6 {dimension_numbers = #tpu.dot_dimension_numbers<[1], [0], [0], [1], [0, 0, 1, 1], [], []>} : vector<32x56xf32>, vector<56x16xf32>, vector<32x16xf32> -> vector<32x16xf32>
    %c0_7 = arith.constant 0 : index
    %c0_8 = arith.constant 0 : index
    %14 = vector.load %arg13[%c0_7, %c0_8] : memref<32x1xf32, #tpu.memory_space<vmem>>, vector<32x1xf32>
    %15 = vector.broadcast %14 : vector<32x1xf32> to vector<32x16xf32>
    %16 = arith.addf %13, %15 : vector<32x16xf32>
    %c0_9 = arith.constant 0 : index
    %c0_10 = arith.constant 0 : index
    %17 = vector.load %arg14[%c0_9, %c0_10] : memref<32x4xf32, #tpu.memory_space<vmem>>, vector<32x4xf32>
    %c0_11 = arith.constant 0 : index
    %c0_12 = arith.constant 0 : index
    %c0_13 = arith.constant 0 : index
    %18 = vector.load %arg2[%c0_11, %c0_12, %c0_13] : memref<1x4x1xf32, #tpu.memory_space<vmem>>, vector<1x4x1xf32>
    %19 = vector.shape_cast %18 : vector<1x4x1xf32> to vector<4x1xf32>
    %cst_14 = arith.constant dense<0.000000e+00> : vector<32x1xf32>
    %20 = tpu.matmul %17, %19, %cst_14 {dimension_numbers = #tpu.dot_dimension_numbers<[1], [0], [0], [1], [0, 0, 1, 1], [], []>} : vector<32x4xf32>, vector<4x1xf32>, vector<32x1xf32> -> vector<32x1xf32>
    %c0_15 = arith.constant 0 : index
    %c0_16 = arith.constant 0 : index
    %21 = vector.load %arg15[%c0_15, %c0_16] : memref<32x1xf32, #tpu.memory_space<vmem>>, vector<32x1xf32>
    %22 = arith.addf %20, %21 : vector<32x1xf32>
    %23 = vector.broadcast %22 : vector<32x1xf32> to vector<32x16xf32>
    %24 = arith.addf %16, %23 : vector<32x16xf32>
    %cst_17 = arith.constant 0.000000e+00 : f32
    %25 = vector.broadcast %cst_17 : f32 to vector<32x16xf32>
    %26 = arith.cmpf oge, %24, %25 : vector<32x16xf32>
    %cst_18 = arith.constant 1.000000e-01 : f32
    %27 = vector.broadcast %cst_18 : f32 to vector<32x16xf32>
    %28 = arith.mulf %27, %24 : vector<32x16xf32>
    %29 = arith.select %26, %24, %28 : vector<32x16xi1>, vector<32x16xf32>
    %c0_19 = arith.constant 0 : index
    %c0_20 = arith.constant 0 : index
    %30 = vector.load %arg16[%c0_19, %c0_20] : memref<16x35xf32, #tpu.memory_space<vmem>>, vector<16x35xf32>
    %cst_21 = arith.constant dense<0.000000e+00> : vector<32x35xf32>
    %31 = tpu.matmul %29, %30, %cst_21 {dimension_numbers = #tpu.dot_dimension_numbers<[1], [0], [0], [1], [0, 0, 1, 1], [], []>} : vector<32x16xf32>, vector<16x35xf32>, vector<32x35xf32> -> vector<32x35xf32>
    %32 = vector.extract_strided_slice %31 {offsets = [0, 0], sizes = [32, 32], strides = [1, 1]} : vector<32x35xf32> to vector<32x32xf32>
    %33 = vector.extract_strided_slice %31 {offsets = [0, 1], sizes = [32, 32], strides = [1, 1]} : vector<32x35xf32> to vector<32x32xf32>
    %34 = vector.extract_strided_slice %31 {offsets = [0, 2], sizes = [32, 32], strides = [1, 1]} : vector<32x35xf32> to vector<32x32xf32>
    %35 = vector.extract_strided_slice %31 {offsets = [0, 3], sizes = [32, 32], strides = [1, 1]} : vector<32x35xf32> to vector<32x32xf32>
    %36 = tpu.concatenate %32, %33, %34, %35 in 0 : vector<32x32xf32>, vector<32x32xf32>, vector<32x32xf32>, vector<32x32xf32> -> vector<128x32xf32>
    %c0_22 = arith.constant 0 : index
    %c0_23 = arith.constant 0 : index
    %37 = vector.load %arg17[%c0_22, %c0_23] : memref<16x128xf32, #tpu.memory_space<vmem>>, vector<16x128xf32>
    %cst_24 = arith.constant dense<0.000000e+00> : vector<16x32xf32>
    %38 = tpu.matmul %37, %36, %cst_24 {dimension_numbers = #tpu.dot_dimension_numbers<[1], [0], [0], [1], [0, 0, 1, 1], [], []>} : vector<16x128xf32>, vector<128x32xf32>, vector<16x32xf32> -> vector<16x32xf32>
    %c0_25 = arith.constant 0 : index
    %c0_26 = arith.constant 0 : index
    %39 = vector.load %arg18[%c0_25, %c0_26] : memref<16x1xf32, #tpu.memory_space<vmem>>, vector<16x1xf32>
    %40 = vector.broadcast %39 : vector<16x1xf32> to vector<16x32xf32>
    %41 = arith.addf %38, %40 : vector<16x32xf32>
    %cst_27 = arith.constant 0.000000e+00 : f32
    %42 = vector.broadcast %cst_27 : f32 to vector<16x32xf32>
    %43 = arith.cmpf oge, %41, %42 : vector<16x32xf32>
    %cst_28 = arith.constant 1.000000e-01 : f32
    %44 = vector.broadcast %cst_28 : f32 to vector<16x32xf32>
    %45 = arith.mulf %44, %41 : vector<16x32xf32>
    %46 = arith.select %43, %41, %45 : vector<16x32xi1>, vector<16x32xf32>
    %c0_29 = arith.constant 0 : index
    %c0_30 = arith.constant 0 : index
    %47 = vector.load %arg4[%c0_29, %c0_30] : memref<32x34xf32, #tpu.memory_space<vmem>>, vector<32x34xf32>
    %cst_31 = arith.constant dense<0.000000e+00> : vector<16x34xf32>
    %48 = tpu.matmul %46, %47, %cst_31 {dimension_numbers = #tpu.dot_dimension_numbers<[1], [0], [0], [1], [0, 0, 1, 1], [], []>} : vector<16x32xf32>, vector<32x34xf32>, vector<16x34xf32> -> vector<16x34xf32>
    %49 = vector.extract_strided_slice %48 {offsets = [0, 0], sizes = [16, 32], strides = [1, 1]} : vector<16x34xf32> to vector<16x32xf32>
    %50 = vector.extract_strided_slice %48 {offsets = [0, 1], sizes = [16, 32], strides = [1, 1]} : vector<16x34xf32> to vector<16x32xf32>
    %51 = vector.extract_strided_slice %48 {offsets = [0, 2], sizes = [16, 32], strides = [1, 1]} : vector<16x34xf32> to vector<16x32xf32>
    %52 = tpu.concatenate %49, %50, %51 in 0 : vector<16x32xf32>, vector<16x32xf32>, vector<16x32xf32> -> vector<48x32xf32>
    %c0_32 = arith.constant 0 : index
    %c0_33 = arith.constant 0 : index
    %53 = vector.load %arg19[%c0_32, %c0_33] : memref<16x48xf32, #tpu.memory_space<vmem>>, vector<16x48xf32>
    %cst_34 = arith.constant dense<0.000000e+00> : vector<16x32xf32>
    %54 = tpu.matmul %53, %52, %cst_34 {dimension_numbers = #tpu.dot_dimension_numbers<[1], [0], [0], [1], [0, 0, 1, 1], [], []>} : vector<16x48xf32>, vector<48x32xf32>, vector<16x32xf32> -> vector<16x32xf32>
    %c0_35 = arith.constant 0 : index
    %c0_36 = arith.constant 0 : index
    %55 = vector.load %arg20[%c0_35, %c0_36] : memref<16x1xf32, #tpu.memory_space<vmem>>, vector<16x1xf32>
    %56 = vector.broadcast %55 : vector<16x1xf32> to vector<16x32xf32>
    %57 = arith.addf %54, %56 : vector<16x32xf32>
    %cst_37 = arith.constant 0.000000e+00 : f32
    %58 = vector.broadcast %cst_37 : f32 to vector<16x32xf32>
    %59 = arith.cmpf oge, %57, %58 : vector<16x32xf32>
    %cst_38 = arith.constant 1.000000e-01 : f32
    %60 = vector.broadcast %cst_38 : f32 to vector<16x32xf32>
    %61 = arith.mulf %60, %57 : vector<16x32xf32>
    %62 = arith.select %59, %57, %61 : vector<16x32xi1>, vector<16x32xf32>
    %c0_39 = arith.constant 0 : index
    %c0_40 = arith.constant 0 : index
    %63 = vector.load %arg4[%c0_39, %c0_40] : memref<32x34xf32, #tpu.memory_space<vmem>>, vector<32x34xf32>
    %cst_41 = arith.constant dense<0.000000e+00> : vector<16x34xf32>
    %64 = tpu.matmul %62, %63, %cst_41 {dimension_numbers = #tpu.dot_dimension_numbers<[1], [0], [0], [1], [0, 0, 1, 1], [], []>} : vector<16x32xf32>, vector<32x34xf32>, vector<16x34xf32> -> vector<16x34xf32>
    %65 = vector.extract_strided_slice %64 {offsets = [0, 0], sizes = [16, 32], strides = [1, 1]} : vector<16x34xf32> to vector<16x32xf32>
    %66 = vector.extract_strided_slice %64 {offsets = [0, 1], sizes = [16, 32], strides = [1, 1]} : vector<16x34xf32> to vector<16x32xf32>
    %67 = vector.extract_strided_slice %64 {offsets = [0, 2], sizes = [16, 32], strides = [1, 1]} : vector<16x34xf32> to vector<16x32xf32>
    %68 = tpu.concatenate %65, %66, %67 in 0 : vector<16x32xf32>, vector<16x32xf32>, vector<16x32xf32> -> vector<48x32xf32>
    %c0_42 = arith.constant 0 : index
    %c0_43 = arith.constant 0 : index
    %69 = vector.load %arg21[%c0_42, %c0_43] : memref<16x48xf32, #tpu.memory_space<vmem>>, vector<16x48xf32>
    %cst_44 = arith.constant dense<0.000000e+00> : vector<16x32xf32>
    %70 = tpu.matmul %69, %68, %cst_44 {dimension_numbers = #tpu.dot_dimension_numbers<[1], [0], [0], [1], [0, 0, 1, 1], [], []>} : vector<16x48xf32>, vector<48x32xf32>, vector<16x32xf32> -> vector<16x32xf32>
    %c0_45 = arith.constant 0 : index
    %c0_46 = arith.constant 0 : index
    %71 = vector.load %arg22[%c0_45, %c0_46] : memref<16x1xf32, #tpu.memory_space<vmem>>, vector<16x1xf32>
    %72 = vector.broadcast %71 : vector<16x1xf32> to vector<16x32xf32>
    %73 = arith.addf %70, %72 : vector<16x32xf32>
    %74 = arith.addf %41, %73 : vector<16x32xf32>
    %cst_47 = arith.constant 0.000000e+00 : f32
    %75 = vector.broadcast %cst_47 : f32 to vector<16x32xf32>
    %76 = arith.cmpf oge, %74, %75 : vector<16x32xf32>
    %cst_48 = arith.constant 1.000000e-01 : f32
    %77 = vector.broadcast %cst_48 : f32 to vector<16x32xf32>
    %78 = arith.mulf %77, %74 : vector<16x32xf32>
    %79 = arith.select %76, %74, %78 : vector<16x32xi1>, vector<16x32xf32>
    %c0_49 = arith.constant 0 : index
    %c0_50 = arith.constant 0 : index
    %80 = vector.load %arg5[%c0_49, %c0_50] : memref<32x38xf32, #tpu.memory_space<vmem>>, vector<32x38xf32>
    %cst_51 = arith.constant dense<0.000000e+00> : vector<16x38xf32>
    %81 = tpu.matmul %79, %80, %cst_51 {dimension_numbers = #tpu.dot_dimension_numbers<[1], [0], [0], [1], [0, 0, 1, 1], [], []>} : vector<16x32xf32>, vector<32x38xf32>, vector<16x38xf32> -> vector<16x38xf32>
    %82 = vector.extract_strided_slice %81 {offsets = [0, 0], sizes = [16, 32], strides = [1, 1]} : vector<16x38xf32> to vector<16x32xf32>
    %83 = vector.extract_strided_slice %81 {offsets = [0, 3], sizes = [16, 32], strides = [1, 1]} : vector<16x38xf32> to vector<16x32xf32>
    %84 = vector.extract_strided_slice %81 {offsets = [0, 6], sizes = [16, 32], strides = [1, 1]} : vector<16x38xf32> to vector<16x32xf32>
    %85 = tpu.concatenate %82, %83, %84 in 0 : vector<16x32xf32>, vector<16x32xf32>, vector<16x32xf32> -> vector<48x32xf32>
    %c0_52 = arith.constant 0 : index
    %c0_53 = arith.constant 0 : index
    %86 = vector.load %arg23[%c0_52, %c0_53] : memref<16x48xf32, #tpu.memory_space<vmem>>, vector<16x48xf32>
    %cst_54 = arith.constant dense<0.000000e+00> : vector<16x32xf32>
    %87 = tpu.matmul %86, %85, %cst_54 {dimension_numbers = #tpu.dot_dimension_numbers<[1], [0], [0], [1], [0, 0, 1, 1], [], []>} : vector<16x48xf32>, vector<48x32xf32>, vector<16x32xf32> -> vector<16x32xf32>
    %c0_55 = arith.constant 0 : index
    %c0_56 = arith.constant 0 : index
    %88 = vector.load %arg24[%c0_55, %c0_56] : memref<16x1xf32, #tpu.memory_space<vmem>>, vector<16x1xf32>
    %89 = vector.broadcast %88 : vector<16x1xf32> to vector<16x32xf32>
    %90 = arith.addf %87, %89 : vector<16x32xf32>
    %cst_57 = arith.constant 0.000000e+00 : f32
    %91 = vector.broadcast %cst_57 : f32 to vector<16x32xf32>
    %92 = arith.cmpf oge, %90, %91 : vector<16x32xf32>
    %cst_58 = arith.constant 1.000000e-01 : f32
    %93 = vector.broadcast %cst_58 : f32 to vector<16x32xf32>
    %94 = arith.mulf %93, %90 : vector<16x32xf32>
    %95 = arith.select %92, %90, %94 : vector<16x32xi1>, vector<16x32xf32>
    %c0_59 = arith.constant 0 : index
    %c0_60 = arith.constant 0 : index
    %96 = vector.load %arg4[%c0_59, %c0_60] : memref<32x34xf32, #tpu.memory_space<vmem>>, vector<32x34xf32>
    %cst_61 = arith.constant dense<0.000000e+00> : vector<16x34xf32>
    %97 = tpu.matmul %95, %96, %cst_61 {dimension_numbers = #tpu.dot_dimension_numbers<[1], [0], [0], [1], [0, 0, 1, 1], [], []>} : vector<16x32xf32>, vector<32x34xf32>, vector<16x34xf32> -> vector<16x34xf32>
    %98 = vector.extract_strided_slice %97 {offsets = [0, 0], sizes = [16, 32], strides = [1, 1]} : vector<16x34xf32> to vector<16x32xf32>
    %99 = vector.extract_strided_slice %97 {offsets = [0, 1], sizes = [16, 32], strides = [1, 1]} : vector<16x34xf32> to vector<16x32xf32>
    %100 = vector.extract_strided_slice %97 {offsets = [0, 2], sizes = [16, 32], strides = [1, 1]} : vector<16x34xf32> to vector<16x32xf32>
    %101 = tpu.concatenate %98, %99, %100 in 0 : vector<16x32xf32>, vector<16x32xf32>, vector<16x32xf32> -> vector<48x32xf32>
    %c0_62 = arith.constant 0 : index
    %c0_63 = arith.constant 0 : index
    %102 = vector.load %arg25[%c0_62, %c0_63] : memref<16x48xf32, #tpu.memory_space<vmem>>, vector<16x48xf32>
    %cst_64 = arith.constant dense<0.000000e+00> : vector<16x32xf32>
    %103 = tpu.matmul %102, %101, %cst_64 {dimension_numbers = #tpu.dot_dimension_numbers<[1], [0], [0], [1], [0, 0, 1, 1], [], []>} : vector<16x48xf32>, vector<48x32xf32>, vector<16x32xf32> -> vector<16x32xf32>
    %c0_65 = arith.constant 0 : index
    %c0_66 = arith.constant 0 : index
    %104 = vector.load %arg26[%c0_65, %c0_66] : memref<16x1xf32, #tpu.memory_space<vmem>>, vector<16x1xf32>
    %105 = vector.broadcast %104 : vector<16x1xf32> to vector<16x32xf32>
    %106 = arith.addf %103, %105 : vector<16x32xf32>
    %107 = arith.addf %74, %106 : vector<16x32xf32>
    %cst_67 = arith.constant 0.000000e+00 : f32
    %108 = vector.broadcast %cst_67 : f32 to vector<16x32xf32>
    %109 = arith.cmpf oge, %41, %108 : vector<16x32xf32>
    %cst_68 = arith.constant 1.000000e-01 : f32
    %110 = vector.broadcast %cst_68 : f32 to vector<16x32xf32>
    %111 = arith.mulf %110, %41 : vector<16x32xf32>
    %112 = arith.select %109, %41, %111 : vector<16x32xi1>, vector<16x32xf32>
    %c0_69 = arith.constant 0 : index
    %c0_70 = arith.constant 0 : index
    %113 = vector.load %arg6[%c0_69, %c0_70] : memref<32x36xf32, #tpu.memory_space<vmem>>, vector<32x36xf32>
    %cst_71 = arith.constant dense<0.000000e+00> : vector<16x36xf32>
    %114 = tpu.matmul %112, %113, %cst_71 {dimension_numbers = #tpu.dot_dimension_numbers<[1], [0], [0], [1], [0, 0, 1, 1], [], []>} : vector<16x32xf32>, vector<32x36xf32>, vector<16x36xf32> -> vector<16x36xf32>
    %115 = vector.extract_strided_slice %114 {offsets = [0, 0], sizes = [16, 32], strides = [1, 1]} : vector<16x36xf32> to vector<16x32xf32>
    %116 = vector.extract_strided_slice %114 {offsets = [0, 1], sizes = [16, 32], strides = [1, 1]} : vector<16x36xf32> to vector<16x32xf32>
    %117 = vector.extract_strided_slice %114 {offsets = [0, 2], sizes = [16, 32], strides = [1, 1]} : vector<16x36xf32> to vector<16x32xf32>
    %118 = vector.extract_strided_slice %114 {offsets = [0, 3], sizes = [16, 32], strides = [1, 1]} : vector<16x36xf32> to vector<16x32xf32>
    %119 = vector.extract_strided_slice %114 {offsets = [0, 4], sizes = [16, 32], strides = [1, 1]} : vector<16x36xf32> to vector<16x32xf32>
    %120 = tpu.concatenate %115, %116, %117, %118, %119 in 0 : vector<16x32xf32>, vector<16x32xf32>, vector<16x32xf32>, vector<16x32xf32>, vector<16x32xf32> -> vector<80x32xf32>
    %c0_72 = arith.constant 0 : index
    %c0_73 = arith.constant 0 : index
    %121 = vector.load %arg27[%c0_72, %c0_73] : memref<16x80xf32, #tpu.memory_space<vmem>>, vector<16x80xf32>
    %cst_74 = arith.constant dense<0.000000e+00> : vector<16x32xf32>
    %122 = tpu.matmul %121, %120, %cst_74 {dimension_numbers = #tpu.dot_dimension_numbers<[1], [0], [0], [1], [0, 0, 1, 1], [], []>} : vector<16x80xf32>, vector<80x32xf32>, vector<16x32xf32> -> vector<16x32xf32>
    %c0_75 = arith.constant 0 : index
    %c0_76 = arith.constant 0 : index
    %123 = vector.load %arg28[%c0_75, %c0_76] : memref<16x1xf32, #tpu.memory_space<vmem>>, vector<16x1xf32>
    %124 = vector.broadcast %123 : vector<16x1xf32> to vector<16x32xf32>
    %125 = arith.addf %122, %124 : vector<16x32xf32>
    %cst_77 = arith.constant 0.000000e+00 : f32
    %126 = vector.broadcast %cst_77 : f32 to vector<16x32xf32>
    %127 = arith.cmpf oge, %125, %126 : vector<16x32xf32>
    %cst_78 = arith.constant 1.000000e-01 : f32
    %128 = vector.broadcast %cst_78 : f32 to vector<16x32xf32>
    %129 = arith.mulf %128, %125 : vector<16x32xf32>
    %130 = arith.select %127, %125, %129 : vector<16x32xi1>, vector<16x32xf32>
    %c0_79 = arith.constant 0 : index
    %c0_80 = arith.constant 0 : index
    %131 = vector.load %arg6[%c0_79, %c0_80] : memref<32x36xf32, #tpu.memory_space<vmem>>, vector<32x36xf32>
    %cst_81 = arith.constant dense<0.000000e+00> : vector<16x36xf32>
    %132 = tpu.matmul %130, %131, %cst_81 {dimension_numbers = #tpu.dot_dimension_numbers<[1], [0], [0], [1], [0, 0, 1, 1], [], []>} : vector<16x32xf32>, vector<32x36xf32>, vector<16x36xf32> -> vector<16x36xf32>
    %133 = vector.extract_strided_slice %132 {offsets = [0, 0], sizes = [16, 32], strides = [1, 1]} : vector<16x36xf32> to vector<16x32xf32>
    %134 = vector.extract_strided_slice %132 {offsets = [0, 1], sizes = [16, 32], strides = [1, 1]} : vector<16x36xf32> to vector<16x32xf32>
    %135 = vector.extract_strided_slice %132 {offsets = [0, 2], sizes = [16, 32], strides = [1, 1]} : vector<16x36xf32> to vector<16x32xf32>
    %136 = vector.extract_strided_slice %132 {offsets = [0, 3], sizes = [16, 32], strides = [1, 1]} : vector<16x36xf32> to vector<16x32xf32>
    %137 = vector.extract_strided_slice %132 {offsets = [0, 4], sizes = [16, 32], strides = [1, 1]} : vector<16x36xf32> to vector<16x32xf32>
    %138 = tpu.concatenate %133, %134, %135, %136, %137 in 0 : vector<16x32xf32>, vector<16x32xf32>, vector<16x32xf32>, vector<16x32xf32>, vector<16x32xf32> -> vector<80x32xf32>
    %c0_82 = arith.constant 0 : index
    %c0_83 = arith.constant 0 : index
    %139 = vector.load %arg29[%c0_82, %c0_83] : memref<16x80xf32, #tpu.memory_space<vmem>>, vector<16x80xf32>
    %cst_84 = arith.constant dense<0.000000e+00> : vector<16x32xf32>
    %140 = tpu.matmul %139, %138, %cst_84 {dimension_numbers = #tpu.dot_dimension_numbers<[1], [0], [0], [1], [0, 0, 1, 1], [], []>} : vector<16x80xf32>, vector<80x32xf32>, vector<16x32xf32> -> vector<16x32xf32>
    %c0_85 = arith.constant 0 : index
    %c0_86 = arith.constant 0 : index
    %141 = vector.load %arg30[%c0_85, %c0_86] : memref<16x1xf32, #tpu.memory_space<vmem>>, vector<16x1xf32>
    %142 = vector.broadcast %141 : vector<16x1xf32> to vector<16x32xf32>
    %143 = arith.addf %140, %142 : vector<16x32xf32>
    %144 = arith.addf %41, %143 : vector<16x32xf32>
    %cst_87 = arith.constant 0.000000e+00 : f32
    %145 = vector.broadcast %cst_87 : f32 to vector<16x32xf32>
    %146 = arith.cmpf oge, %144, %145 : vector<16x32xf32>
    %cst_88 = arith.constant 1.000000e-01 : f32
    %147 = vector.broadcast %cst_88 : f32 to vector<16x32xf32>
    %148 = arith.mulf %147, %144 : vector<16x32xf32>
    %149 = arith.select %146, %144, %148 : vector<16x32xi1>, vector<16x32xf32>
    %c0_89 = arith.constant 0 : index
    %c0_90 = arith.constant 0 : index
    %150 = vector.load %arg7[%c0_89, %c0_90] : memref<32x44xf32, #tpu.memory_space<vmem>>, vector<32x44xf32>
    %cst_91 = arith.constant dense<0.000000e+00> : vector<16x44xf32>
    %151 = tpu.matmul %149, %150, %cst_91 {dimension_numbers = #tpu.dot_dimension_numbers<[1], [0], [0], [1], [0, 0, 1, 1], [], []>} : vector<16x32xf32>, vector<32x44xf32>, vector<16x44xf32> -> vector<16x44xf32>
    %152 = vector.extract_strided_slice %151 {offsets = [0, 0], sizes = [16, 32], strides = [1, 1]} : vector<16x44xf32> to vector<16x32xf32>
    %153 = vector.extract_strided_slice %151 {offsets = [0, 3], sizes = [16, 32], strides = [1, 1]} : vector<16x44xf32> to vector<16x32xf32>
    %154 = vector.extract_strided_slice %151 {offsets = [0, 6], sizes = [16, 32], strides = [1, 1]} : vector<16x44xf32> to vector<16x32xf32>
    %155 = vector.extract_strided_slice %151 {offsets = [0, 9], sizes = [16, 32], strides = [1, 1]} : vector<16x44xf32> to vector<16x32xf32>
    %156 = vector.extract_strided_slice %151 {offsets = [0, 12], sizes = [16, 32], strides = [1, 1]} : vector<16x44xf32> to vector<16x32xf32>
    %157 = tpu.concatenate %152, %153, %154, %155, %156 in 0 : vector<16x32xf32>, vector<16x32xf32>, vector<16x32xf32>, vector<16x32xf32>, vector<16x32xf32> -> vector<80x32xf32>
    %c0_92 = arith.constant 0 : index
    %c0_93 = arith.constant 0 : index
    %158 = vector.load %arg31[%c0_92, %c0_93] : memref<16x80xf32, #tpu.memory_space<vmem>>, vector<16x80xf32>
    %cst_94 = arith.constant dense<0.000000e+00> : vector<16x32xf32>
    %159 = tpu.matmul %158, %157, %cst_94 {dimension_numbers = #tpu.dot_dimension_numbers<[1], [0], [0], [1], [0, 0, 1, 1], [], []>} : vector<16x80xf32>, vector<80x32xf32>, vector<16x32xf32> -> vector<16x32xf32>
    %c0_95 = arith.constant 0 : index
    %c0_96 = arith.constant 0 : index
    %160 = vector.load %arg32[%c0_95, %c0_96] : memref<16x1xf32, #tpu.memory_space<vmem>>, vector<16x1xf32>
    %161 = vector.broadcast %160 : vector<16x1xf32> to vector<16x32xf32>
    %162 = arith.addf %159, %161 : vector<16x32xf32>
    %cst_97 = arith.constant 0.000000e+00 : f32
    %163 = vector.broadcast %cst_97 : f32 to vector<16x32xf32>
    %164 = arith.cmpf oge, %162, %163 : vector<16x32xf32>
    %cst_98 = arith.constant 1.000000e-01 : f32
    %165 = vector.broadcast %cst_98 : f32 to vector<16x32xf32>
    %166 = arith.mulf %165, %162 : vector<16x32xf32>
    %167 = arith.select %164, %162, %166 : vector<16x32xi1>, vector<16x32xf32>
    %c0_99 = arith.constant 0 : index
    %c0_100 = arith.constant 0 : index
    %168 = vector.load %arg6[%c0_99, %c0_100] : memref<32x36xf32, #tpu.memory_space<vmem>>, vector<32x36xf32>
    %cst_101 = arith.constant dense<0.000000e+00> : vector<16x36xf32>
    %169 = tpu.matmul %167, %168, %cst_101 {dimension_numbers = #tpu.dot_dimension_numbers<[1], [0], [0], [1], [0, 0, 1, 1], [], []>} : vector<16x32xf32>, vector<32x36xf32>, vector<16x36xf32> -> vector<16x36xf32>
    %170 = vector.extract_strided_slice %169 {offsets = [0, 0], sizes = [16, 32], strides = [1, 1]} : vector<16x36xf32> to vector<16x32xf32>
    %171 = vector.extract_strided_slice %169 {offsets = [0, 1], sizes = [16, 32], strides = [1, 1]} : vector<16x36xf32> to vector<16x32xf32>
    %172 = vector.extract_strided_slice %169 {offsets = [0, 2], sizes = [16, 32], strides = [1, 1]} : vector<16x36xf32> to vector<16x32xf32>
    %173 = vector.extract_strided_slice %169 {offsets = [0, 3], sizes = [16, 32], strides = [1, 1]} : vector<16x36xf32> to vector<16x32xf32>
    %174 = vector.extract_strided_slice %169 {offsets = [0, 4], sizes = [16, 32], strides = [1, 1]} : vector<16x36xf32> to vector<16x32xf32>
    %175 = tpu.concatenate %170, %171, %172, %173, %174 in 0 : vector<16x32xf32>, vector<16x32xf32>, vector<16x32xf32>, vector<16x32xf32>, vector<16x32xf32> -> vector<80x32xf32>
    %c0_102 = arith.constant 0 : index
    %c0_103 = arith.constant 0 : index
    %176 = vector.load %arg33[%c0_102, %c0_103] : memref<16x80xf32, #tpu.memory_space<vmem>>, vector<16x80xf32>
    %cst_104 = arith.constant dense<0.000000e+00> : vector<16x32xf32>
    %177 = tpu.matmul %176, %175, %cst_104 {dimension_numbers = #tpu.dot_dimension_numbers<[1], [0], [0], [1], [0, 0, 1, 1], [], []>} : vector<16x80xf32>, vector<80x32xf32>, vector<16x32xf32> -> vector<16x32xf32>
    %c0_105 = arith.constant 0 : index
    %c0_106 = arith.constant 0 : index
    %178 = vector.load %arg34[%c0_105, %c0_106] : memref<16x1xf32, #tpu.memory_space<vmem>>, vector<16x1xf32>
    %179 = vector.broadcast %178 : vector<16x1xf32> to vector<16x32xf32>
    %180 = arith.addf %177, %179 : vector<16x32xf32>
    %181 = arith.addf %144, %180 : vector<16x32xf32>
    %182 = arith.addf %107, %181 : vector<16x32xf32>
    %cst_107 = arith.constant 5.000000e-01 : f32
    %183 = vector.broadcast %cst_107 : f32 to vector<16x32xf32>
    %184 = arith.mulf %182, %183 : vector<16x32xf32>
    %cst_108 = arith.constant 0.000000e+00 : f32
    %185 = vector.broadcast %cst_108 : f32 to vector<16x32xf32>
    %186 = arith.cmpf oge, %184, %185 : vector<16x32xf32>
    %cst_109 = arith.constant 1.000000e-01 : f32
    %187 = vector.broadcast %cst_109 : f32 to vector<16x32xf32>
    %188 = arith.mulf %187, %184 : vector<16x32xf32>
    %189 = arith.select %186, %184, %188 : vector<16x32xi1>, vector<16x32xf32>
    %c0_110 = arith.constant 0 : index
    %c0_111 = arith.constant 0 : index
    %190 = vector.load %arg35[%c0_110, %c0_111] : memref<32x67xf32, #tpu.memory_space<vmem>>, vector<32x67xf32>
    %cst_112 = arith.constant dense<0.000000e+00> : vector<16x67xf32>
    %191 = tpu.matmul %189, %190, %cst_112 {dimension_numbers = #tpu.dot_dimension_numbers<[1], [0], [0], [1], [0, 0, 1, 1], [], []>} : vector<16x32xf32>, vector<32x67xf32>, vector<16x67xf32> -> vector<16x67xf32>
    %192 = vector.extract_strided_slice %191 {offsets = [0, 0], sizes = [16, 64], strides = [1, 1]} : vector<16x67xf32> to vector<16x64xf32>
    %193 = vector.extract_strided_slice %191 {offsets = [0, 1], sizes = [16, 64], strides = [1, 1]} : vector<16x67xf32> to vector<16x64xf32>
    %194 = vector.extract_strided_slice %191 {offsets = [0, 2], sizes = [16, 64], strides = [1, 1]} : vector<16x67xf32> to vector<16x64xf32>
    %195 = vector.extract_strided_slice %191 {offsets = [0, 3], sizes = [16, 64], strides = [1, 1]} : vector<16x67xf32> to vector<16x64xf32>
    %196 = tpu.concatenate %192, %193, %194, %195 in 0 : vector<16x64xf32>, vector<16x64xf32>, vector<16x64xf32>, vector<16x64xf32> -> vector<64x64xf32>
    %c0_113 = arith.constant 0 : index
    %c0_114 = arith.constant 0 : index
    %197 = vector.load %arg36[%c0_113, %c0_114] : memref<8x64xf32, #tpu.memory_space<vmem>>, vector<8x64xf32>
    %cst_115 = arith.constant dense<0.000000e+00> : vector<8x64xf32>
    %198 = tpu.matmul %197, %196, %cst_115 {dimension_numbers = #tpu.dot_dimension_numbers<[1], [0], [0], [1], [0, 0, 1, 1], [], []>} : vector<8x64xf32>, vector<64x64xf32>, vector<8x64xf32> -> vector<8x64xf32>
    %c0_116 = arith.constant 0 : index
    %c0_117 = arith.constant 0 : index
    %199 = vector.load %arg37[%c0_116, %c0_117] : memref<8x1xf32, #tpu.memory_space<vmem>>, vector<8x1xf32>
    %200 = vector.broadcast %199 : vector<8x1xf32> to vector<8x64xf32>
    %201 = arith.addf %198, %200 : vector<8x64xf32>
    %cst_118 = arith.constant 0.000000e+00 : f32
    %202 = vector.broadcast %cst_118 : f32 to vector<8x64xf32>
    %203 = arith.cmpf oge, %201, %202 : vector<8x64xf32>
    %cst_119 = arith.constant 1.000000e-01 : f32
    %204 = vector.broadcast %cst_119 : f32 to vector<8x64xf32>
    %205 = arith.mulf %204, %201 : vector<8x64xf32>
    %206 = arith.select %203, %201, %205 : vector<8x64xi1>, vector<8x64xf32>
    %c0_120 = arith.constant 0 : index
    %c0_121 = arith.constant 0 : index
    %207 = vector.load %arg8[%c0_120, %c0_121] : memref<64x66xf32, #tpu.memory_space<vmem>>, vector<64x66xf32>
    %cst_122 = arith.constant dense<0.000000e+00> : vector<8x66xf32>
    %208 = tpu.matmul %206, %207, %cst_122 {dimension_numbers = #tpu.dot_dimension_numbers<[1], [0], [0], [1], [0, 0, 1, 1], [], []>} : vector<8x64xf32>, vector<64x66xf32>, vector<8x66xf32> -> vector<8x66xf32>
    %209 = vector.extract_strided_slice %208 {offsets = [0, 0], sizes = [8, 64], strides = [1, 1]} : vector<8x66xf32> to vector<8x64xf32>
    %210 = vector.extract_strided_slice %208 {offsets = [0, 1], sizes = [8, 64], strides = [1, 1]} : vector<8x66xf32> to vector<8x64xf32>
    %211 = vector.extract_strided_slice %208 {offsets = [0, 2], sizes = [8, 64], strides = [1, 1]} : vector<8x66xf32> to vector<8x64xf32>
    %212 = tpu.concatenate %209, %210, %211 in 0 : vector<8x64xf32>, vector<8x64xf32>, vector<8x64xf32> -> vector<24x64xf32>
    %c0_123 = arith.constant 0 : index
    %c0_124 = arith.constant 0 : index
    %213 = vector.load %arg38[%c0_123, %c0_124] : memref<8x24xf32, #tpu.memory_space<vmem>>, vector<8x24xf32>
    %cst_125 = arith.constant dense<0.000000e+00> : vector<8x64xf32>
    %214 = tpu.matmul %213, %212, %cst_125 {dimension_numbers = #tpu.dot_dimension_numbers<[1], [0], [0], [1], [0, 0, 1, 1], [], []>} : vector<8x24xf32>, vector<24x64xf32>, vector<8x64xf32> -> vector<8x64xf32>
    %c0_126 = arith.constant 0 : index
    %c0_127 = arith.constant 0 : index
    %215 = vector.load %arg39[%c0_126, %c0_127] : memref<8x1xf32, #tpu.memory_space<vmem>>, vector<8x1xf32>
    %216 = vector.broadcast %215 : vector<8x1xf32> to vector<8x64xf32>
    %217 = arith.addf %214, %216 : vector<8x64xf32>
    %cst_128 = arith.constant 0.000000e+00 : f32
    %218 = vector.broadcast %cst_128 : f32 to vector<8x64xf32>
    %219 = arith.cmpf oge, %217, %218 : vector<8x64xf32>
    %cst_129 = arith.constant 1.000000e-01 : f32
    %220 = vector.broadcast %cst_129 : f32 to vector<8x64xf32>
    %221 = arith.mulf %220, %217 : vector<8x64xf32>
    %222 = arith.select %219, %217, %221 : vector<8x64xi1>, vector<8x64xf32>
    %c0_130 = arith.constant 0 : index
    %c0_131 = arith.constant 0 : index
    %223 = vector.load %arg8[%c0_130, %c0_131] : memref<64x66xf32, #tpu.memory_space<vmem>>, vector<64x66xf32>
    %cst_132 = arith.constant dense<0.000000e+00> : vector<8x66xf32>
    %224 = tpu.matmul %222, %223, %cst_132 {dimension_numbers = #tpu.dot_dimension_numbers<[1], [0], [0], [1], [0, 0, 1, 1], [], []>} : vector<8x64xf32>, vector<64x66xf32>, vector<8x66xf32> -> vector<8x66xf32>
    %225 = vector.extract_strided_slice %224 {offsets = [0, 0], sizes = [8, 64], strides = [1, 1]} : vector<8x66xf32> to vector<8x64xf32>
    %226 = vector.extract_strided_slice %224 {offsets = [0, 1], sizes = [8, 64], strides = [1, 1]} : vector<8x66xf32> to vector<8x64xf32>
    %227 = vector.extract_strided_slice %224 {offsets = [0, 2], sizes = [8, 64], strides = [1, 1]} : vector<8x66xf32> to vector<8x64xf32>
    %228 = tpu.concatenate %225, %226, %227 in 0 : vector<8x64xf32>, vector<8x64xf32>, vector<8x64xf32> -> vector<24x64xf32>
    %c0_133 = arith.constant 0 : index
    %c0_134 = arith.constant 0 : index
    %229 = vector.load %arg40[%c0_133, %c0_134] : memref<8x24xf32, #tpu.memory_space<vmem>>, vector<8x24xf32>
    %cst_135 = arith.constant dense<0.000000e+00> : vector<8x64xf32>
    %230 = tpu.matmul %229, %228, %cst_135 {dimension_numbers = #tpu.dot_dimension_numbers<[1], [0], [0], [1], [0, 0, 1, 1], [], []>} : vector<8x24xf32>, vector<24x64xf32>, vector<8x64xf32> -> vector<8x64xf32>
    %c0_136 = arith.constant 0 : index
    %c0_137 = arith.constant 0 : index
    %231 = vector.load %arg41[%c0_136, %c0_137] : memref<8x1xf32, #tpu.memory_space<vmem>>, vector<8x1xf32>
    %232 = vector.broadcast %231 : vector<8x1xf32> to vector<8x64xf32>
    %233 = arith.addf %230, %232 : vector<8x64xf32>
    %234 = arith.addf %201, %233 : vector<8x64xf32>
    %cst_138 = arith.constant 0.000000e+00 : f32
    %235 = vector.broadcast %cst_138 : f32 to vector<8x64xf32>
    %236 = arith.cmpf oge, %234, %235 : vector<8x64xf32>
    %cst_139 = arith.constant 1.000000e-01 : f32
    %237 = vector.broadcast %cst_139 : f32 to vector<8x64xf32>
    %238 = arith.mulf %237, %234 : vector<8x64xf32>
    %239 = arith.select %236, %234, %238 : vector<8x64xi1>, vector<8x64xf32>
    %c0_140 = arith.constant 0 : index
    %c0_141 = arith.constant 0 : index
    %240 = vector.load %arg9[%c0_140, %c0_141] : memref<64x70xf32, #tpu.memory_space<vmem>>, vector<64x70xf32>
    %cst_142 = arith.constant dense<0.000000e+00> : vector<8x70xf32>
    %241 = tpu.matmul %239, %240, %cst_142 {dimension_numbers = #tpu.dot_dimension_numbers<[1], [0], [0], [1], [0, 0, 1, 1], [], []>} : vector<8x64xf32>, vector<64x70xf32>, vector<8x70xf32> -> vector<8x70xf32>
    %242 = vector.extract_strided_slice %241 {offsets = [0, 0], sizes = [8, 64], strides = [1, 1]} : vector<8x70xf32> to vector<8x64xf32>
    %243 = vector.extract_strided_slice %241 {offsets = [0, 3], sizes = [8, 64], strides = [1, 1]} : vector<8x70xf32> to vector<8x64xf32>
    %244 = vector.extract_strided_slice %241 {offsets = [0, 6], sizes = [8, 64], strides = [1, 1]} : vector<8x70xf32> to vector<8x64xf32>
    %245 = tpu.concatenate %242, %243, %244 in 0 : vector<8x64xf32>, vector<8x64xf32>, vector<8x64xf32> -> vector<24x64xf32>
    %c0_143 = arith.constant 0 : index
    %c0_144 = arith.constant 0 : index
    %246 = vector.load %arg42[%c0_143, %c0_144] : memref<8x24xf32, #tpu.memory_space<vmem>>, vector<8x24xf32>
    %cst_145 = arith.constant dense<0.000000e+00> : vector<8x64xf32>
    %247 = tpu.matmul %246, %245, %cst_145 {dimension_numbers = #tpu.dot_dimension_numbers<[1], [0], [0], [1], [0, 0, 1, 1], [], []>} : vector<8x24xf32>, vector<24x64xf32>, vector<8x64xf32> -> vector<8x64xf32>
    %c0_146 = arith.constant 0 : index
    %c0_147 = arith.constant 0 : index
    %248 = vector.load %arg43[%c0_146, %c0_147] : memref<8x1xf32, #tpu.memory_space<vmem>>, vector<8x1xf32>
    %249 = vector.broadcast %248 : vector<8x1xf32> to vector<8x64xf32>
    %250 = arith.addf %247, %249 : vector<8x64xf32>
    %cst_148 = arith.constant 0.000000e+00 : f32
    %251 = vector.broadcast %cst_148 : f32 to vector<8x64xf32>
    %252 = arith.cmpf oge, %250, %251 : vector<8x64xf32>
    %cst_149 = arith.constant 1.000000e-01 : f32
    %253 = vector.broadcast %cst_149 : f32 to vector<8x64xf32>
    %254 = arith.mulf %253, %250 : vector<8x64xf32>
    %255 = arith.select %252, %250, %254 : vector<8x64xi1>, vector<8x64xf32>
    %c0_150 = arith.constant 0 : index
    %c0_151 = arith.constant 0 : index
    %256 = vector.load %arg8[%c0_150, %c0_151] : memref<64x66xf32, #tpu.memory_space<vmem>>, vector<64x66xf32>
    %cst_152 = arith.constant dense<0.000000e+00> : vector<8x66xf32>
    %257 = tpu.matmul %255, %256, %cst_152 {dimension_numbers = #tpu.dot_dimension_numbers<[1], [0], [0], [1], [0, 0, 1, 1], [], []>} : vector<8x64xf32>, vector<64x66xf32>, vector<8x66xf32> -> vector<8x66xf32>
    %258 = vector.extract_strided_slice %257 {offsets = [0, 0], sizes = [8, 64], strides = [1, 1]} : vector<8x66xf32> to vector<8x64xf32>
    %259 = vector.extract_strided_slice %257 {offsets = [0, 1], sizes = [8, 64], strides = [1, 1]} : vector<8x66xf32> to vector<8x64xf32>
    %260 = vector.extract_strided_slice %257 {offsets = [0, 2], sizes = [8, 64], strides = [1, 1]} : vector<8x66xf32> to vector<8x64xf32>
    %261 = tpu.concatenate %258, %259, %260 in 0 : vector<8x64xf32>, vector<8x64xf32>, vector<8x64xf32> -> vector<24x64xf32>
    %c0_153 = arith.constant 0 : index
    %c0_154 = arith.constant 0 : index
    %262 = vector.load %arg44[%c0_153, %c0_154] : memref<8x24xf32, #tpu.memory_space<vmem>>, vector<8x24xf32>
    %cst_155 = arith.constant dense<0.000000e+00> : vector<8x64xf32>
    %263 = tpu.matmul %262, %261, %cst_155 {dimension_numbers = #tpu.dot_dimension_numbers<[1], [0], [0], [1], [0, 0, 1, 1], [], []>} : vector<8x24xf32>, vector<24x64xf32>, vector<8x64xf32> -> vector<8x64xf32>
    %c0_156 = arith.constant 0 : index
    %c0_157 = arith.constant 0 : index
    %264 = vector.load %arg45[%c0_156, %c0_157] : memref<8x1xf32, #tpu.memory_space<vmem>>, vector<8x1xf32>
    %265 = vector.broadcast %264 : vector<8x1xf32> to vector<8x64xf32>
    %266 = arith.addf %263, %265 : vector<8x64xf32>
    %267 = arith.addf %234, %266 : vector<8x64xf32>
    %cst_158 = arith.constant 0.000000e+00 : f32
    %268 = vector.broadcast %cst_158 : f32 to vector<8x64xf32>
    %269 = arith.cmpf oge, %201, %268 : vector<8x64xf32>
    %cst_159 = arith.constant 1.000000e-01 : f32
    %270 = vector.broadcast %cst_159 : f32 to vector<8x64xf32>
    %271 = arith.mulf %270, %201 : vector<8x64xf32>
    %272 = arith.select %269, %201, %271 : vector<8x64xi1>, vector<8x64xf32>
    %c0_160 = arith.constant 0 : index
    %c0_161 = arith.constant 0 : index
    %273 = vector.load %arg10[%c0_160, %c0_161] : memref<64x68xf32, #tpu.memory_space<vmem>>, vector<64x68xf32>
    %cst_162 = arith.constant dense<0.000000e+00> : vector<8x68xf32>
    %274 = tpu.matmul %272, %273, %cst_162 {dimension_numbers = #tpu.dot_dimension_numbers<[1], [0], [0], [1], [0, 0, 1, 1], [], []>} : vector<8x64xf32>, vector<64x68xf32>, vector<8x68xf32> -> vector<8x68xf32>
    %275 = vector.extract_strided_slice %274 {offsets = [0, 0], sizes = [8, 64], strides = [1, 1]} : vector<8x68xf32> to vector<8x64xf32>
    %276 = vector.extract_strided_slice %274 {offsets = [0, 1], sizes = [8, 64], strides = [1, 1]} : vector<8x68xf32> to vector<8x64xf32>
    %277 = vector.extract_strided_slice %274 {offsets = [0, 2], sizes = [8, 64], strides = [1, 1]} : vector<8x68xf32> to vector<8x64xf32>
    %278 = vector.extract_strided_slice %274 {offsets = [0, 3], sizes = [8, 64], strides = [1, 1]} : vector<8x68xf32> to vector<8x64xf32>
    %279 = vector.extract_strided_slice %274 {offsets = [0, 4], sizes = [8, 64], strides = [1, 1]} : vector<8x68xf32> to vector<8x64xf32>
    %280 = tpu.concatenate %275, %276, %277, %278, %279 in 0 : vector<8x64xf32>, vector<8x64xf32>, vector<8x64xf32>, vector<8x64xf32>, vector<8x64xf32> -> vector<40x64xf32>
    %c0_163 = arith.constant 0 : index
    %c0_164 = arith.constant 0 : index
    %281 = vector.load %arg46[%c0_163, %c0_164] : memref<8x40xf32, #tpu.memory_space<vmem>>, vector<8x40xf32>
    %cst_165 = arith.constant dense<0.000000e+00> : vector<8x64xf32>
    %282 = tpu.matmul %281, %280, %cst_165 {dimension_numbers = #tpu.dot_dimension_numbers<[1], [0], [0], [1], [0, 0, 1, 1], [], []>} : vector<8x40xf32>, vector<40x64xf32>, vector<8x64xf32> -> vector<8x64xf32>
    %c0_166 = arith.constant 0 : index
    %c0_167 = arith.constant 0 : index
    %283 = vector.load %arg47[%c0_166, %c0_167] : memref<8x1xf32, #tpu.memory_space<vmem>>, vector<8x1xf32>
    %284 = vector.broadcast %283 : vector<8x1xf32> to vector<8x64xf32>
    %285 = arith.addf %282, %284 : vector<8x64xf32>
    %cst_168 = arith.constant 0.000000e+00 : f32
    %286 = vector.broadcast %cst_168 : f32 to vector<8x64xf32>
    %287 = arith.cmpf oge, %285, %286 : vector<8x64xf32>
    %cst_169 = arith.constant 1.000000e-01 : f32
    %288 = vector.broadcast %cst_169 : f32 to vector<8x64xf32>
    %289 = arith.mulf %288, %285 : vector<8x64xf32>
    %290 = arith.select %287, %285, %289 : vector<8x64xi1>, vector<8x64xf32>
    %c0_170 = arith.constant 0 : index
    %c0_171 = arith.constant 0 : index
    %291 = vector.load %arg10[%c0_170, %c0_171] : memref<64x68xf32, #tpu.memory_space<vmem>>, vector<64x68xf32>
    %cst_172 = arith.constant dense<0.000000e+00> : vector<8x68xf32>
    %292 = tpu.matmul %290, %291, %cst_172 {dimension_numbers = #tpu.dot_dimension_numbers<[1], [0], [0], [1], [0, 0, 1, 1], [], []>} : vector<8x64xf32>, vector<64x68xf32>, vector<8x68xf32> -> vector<8x68xf32>
    %293 = vector.extract_strided_slice %292 {offsets = [0, 0], sizes = [8, 64], strides = [1, 1]} : vector<8x68xf32> to vector<8x64xf32>
    %294 = vector.extract_strided_slice %292 {offsets = [0, 1], sizes = [8, 64], strides = [1, 1]} : vector<8x68xf32> to vector<8x64xf32>
    %295 = vector.extract_strided_slice %292 {offsets = [0, 2], sizes = [8, 64], strides = [1, 1]} : vector<8x68xf32> to vector<8x64xf32>
    %296 = vector.extract_strided_slice %292 {offsets = [0, 3], sizes = [8, 64], strides = [1, 1]} : vector<8x68xf32> to vector<8x64xf32>
    %297 = vector.extract_strided_slice %292 {offsets = [0, 4], sizes = [8, 64], strides = [1, 1]} : vector<8x68xf32> to vector<8x64xf32>
    %298 = tpu.concatenate %293, %294, %295, %296, %297 in 0 : vector<8x64xf32>, vector<8x64xf32>, vector<8x64xf32>, vector<8x64xf32>, vector<8x64xf32> -> vector<40x64xf32>
    %c0_173 = arith.constant 0 : index
    %c0_174 = arith.constant 0 : index
    %299 = vector.load %arg48[%c0_173, %c0_174] : memref<8x40xf32, #tpu.memory_space<vmem>>, vector<8x40xf32>
    %cst_175 = arith.constant dense<0.000000e+00> : vector<8x64xf32>
    %300 = tpu.matmul %299, %298, %cst_175 {dimension_numbers = #tpu.dot_dimension_numbers<[1], [0], [0], [1], [0, 0, 1, 1], [], []>} : vector<8x40xf32>, vector<40x64xf32>, vector<8x64xf32> -> vector<8x64xf32>
    %c0_176 = arith.constant 0 : index
    %c0_177 = arith.constant 0 : index
    %301 = vector.load %arg49[%c0_176, %c0_177] : memref<8x1xf32, #tpu.memory_space<vmem>>, vector<8x1xf32>
    %302 = vector.broadcast %301 : vector<8x1xf32> to vector<8x64xf32>
    %303 = arith.addf %300, %302 : vector<8x64xf32>
    %304 = arith.addf %201, %303 : vector<8x64xf32>
    %cst_178 = arith.constant 0.000000e+00 : f32
    %305 = vector.broadcast %cst_178 : f32 to vector<8x64xf32>
    %306 = arith.cmpf oge, %304, %305 : vector<8x64xf32>
    %cst_179 = arith.constant 1.000000e-01 : f32
    %307 = vector.broadcast %cst_179 : f32 to vector<8x64xf32>
    %308 = arith.mulf %307, %304 : vector<8x64xf32>
    %309 = arith.select %306, %304, %308 : vector<8x64xi1>, vector<8x64xf32>
    %c0_180 = arith.constant 0 : index
    %c0_181 = arith.constant 0 : index
    %310 = vector.load %arg11[%c0_180, %c0_181] : memref<64x76xf32, #tpu.memory_space<vmem>>, vector<64x76xf32>
    %cst_182 = arith.constant dense<0.000000e+00> : vector<8x76xf32>
    %311 = tpu.matmul %309, %310, %cst_182 {dimension_numbers = #tpu.dot_dimension_numbers<[1], [0], [0], [1], [0, 0, 1, 1], [], []>} : vector<8x64xf32>, vector<64x76xf32>, vector<8x76xf32> -> vector<8x76xf32>
    %312 = vector.extract_strided_slice %311 {offsets = [0, 0], sizes = [8, 64], strides = [1, 1]} : vector<8x76xf32> to vector<8x64xf32>
    %313 = vector.extract_strided_slice %311 {offsets = [0, 3], sizes = [8, 64], strides = [1, 1]} : vector<8x76xf32> to vector<8x64xf32>
    %314 = vector.extract_strided_slice %311 {offsets = [0, 6], sizes = [8, 64], strides = [1, 1]} : vector<8x76xf32> to vector<8x64xf32>
    %315 = vector.extract_strided_slice %311 {offsets = [0, 9], sizes = [8, 64], strides = [1, 1]} : vector<8x76xf32> to vector<8x64xf32>
    %316 = vector.extract_strided_slice %311 {offsets = [0, 12], sizes = [8, 64], strides = [1, 1]} : vector<8x76xf32> to vector<8x64xf32>
    %317 = tpu.concatenate %312, %313, %314, %315, %316 in 0 : vector<8x64xf32>, vector<8x64xf32>, vector<8x64xf32>, vector<8x64xf32>, vector<8x64xf32> -> vector<40x64xf32>
    %c0_183 = arith.constant 0 : index
    %c0_184 = arith.constant 0 : index
    %318 = vector.load %arg50[%c0_183, %c0_184] : memref<8x40xf32, #tpu.memory_space<vmem>>, vector<8x40xf32>
    %cst_185 = arith.constant dense<0.000000e+00> : vector<8x64xf32>
    %319 = tpu.matmul %318, %317, %cst_185 {dimension_numbers = #tpu.dot_dimension_numbers<[1], [0], [0], [1], [0, 0, 1, 1], [], []>} : vector<8x40xf32>, vector<40x64xf32>, vector<8x64xf32> -> vector<8x64xf32>
    %c0_186 = arith.constant 0 : index
    %c0_187 = arith.constant 0 : index
    %320 = vector.load %arg51[%c0_186, %c0_187] : memref<8x1xf32, #tpu.memory_space<vmem>>, vector<8x1xf32>
    %321 = vector.broadcast %320 : vector<8x1xf32> to vector<8x64xf32>
    %322 = arith.addf %319, %321 : vector<8x64xf32>
    %cst_188 = arith.constant 0.000000e+00 : f32
    %323 = vector.broadcast %cst_188 : f32 to vector<8x64xf32>
    %324 = arith.cmpf oge, %322, %323 : vector<8x64xf32>
    %cst_189 = arith.constant 1.000000e-01 : f32
    %325 = vector.broadcast %cst_189 : f32 to vector<8x64xf32>
    %326 = arith.mulf %325, %322 : vector<8x64xf32>
    %327 = arith.select %324, %322, %326 : vector<8x64xi1>, vector<8x64xf32>
    %c0_190 = arith.constant 0 : index
    %c0_191 = arith.constant 0 : index
    %328 = vector.load %arg10[%c0_190, %c0_191] : memref<64x68xf32, #tpu.memory_space<vmem>>, vector<64x68xf32>
    %cst_192 = arith.constant dense<0.000000e+00> : vector<8x68xf32>
    %329 = tpu.matmul %327, %328, %cst_192 {dimension_numbers = #tpu.dot_dimension_numbers<[1], [0], [0], [1], [0, 0, 1, 1], [], []>} : vector<8x64xf32>, vector<64x68xf32>, vector<8x68xf32> -> vector<8x68xf32>
    %330 = vector.extract_strided_slice %329 {offsets = [0, 0], sizes = [8, 64], strides = [1, 1]} : vector<8x68xf32> to vector<8x64xf32>
    %331 = vector.extract_strided_slice %329 {offsets = [0, 1], sizes = [8, 64], strides = [1, 1]} : vector<8x68xf32> to vector<8x64xf32>
    %332 = vector.extract_strided_slice %329 {offsets = [0, 2], sizes = [8, 64], strides = [1, 1]} : vector<8x68xf32> to vector<8x64xf32>
    %333 = vector.extract_strided_slice %329 {offsets = [0, 3], sizes = [8, 64], strides = [1, 1]} : vector<8x68xf32> to vector<8x64xf32>
    %334 = vector.extract_strided_slice %329 {offsets = [0, 4], sizes = [8, 64], strides = [1, 1]} : vector<8x68xf32> to vector<8x64xf32>
    %335 = tpu.concatenate %330, %331, %332, %333, %334 in 0 : vector<8x64xf32>, vector<8x64xf32>, vector<8x64xf32>, vector<8x64xf32>, vector<8x64xf32> -> vector<40x64xf32>
    %c0_193 = arith.constant 0 : index
    %c0_194 = arith.constant 0 : index
    %336 = vector.load %arg52[%c0_193, %c0_194] : memref<8x40xf32, #tpu.memory_space<vmem>>, vector<8x40xf32>
    %cst_195 = arith.constant dense<0.000000e+00> : vector<8x64xf32>
    %337 = tpu.matmul %336, %335, %cst_195 {dimension_numbers = #tpu.dot_dimension_numbers<[1], [0], [0], [1], [0, 0, 1, 1], [], []>} : vector<8x40xf32>, vector<40x64xf32>, vector<8x64xf32> -> vector<8x64xf32>
    %c0_196 = arith.constant 0 : index
    %c0_197 = arith.constant 0 : index
    %338 = vector.load %arg53[%c0_196, %c0_197] : memref<8x1xf32, #tpu.memory_space<vmem>>, vector<8x1xf32>
    %339 = vector.broadcast %338 : vector<8x1xf32> to vector<8x64xf32>
    %340 = arith.addf %337, %339 : vector<8x64xf32>
    %341 = arith.addf %304, %340 : vector<8x64xf32>
    %342 = arith.addf %267, %341 : vector<8x64xf32>
    %cst_198 = arith.constant 5.000000e-01 : f32
    %343 = vector.broadcast %cst_198 : f32 to vector<8x64xf32>
    %344 = arith.mulf %342, %343 : vector<8x64xf32>
    %cst_199 = arith.constant 0.000000e+00 : f32
    %345 = vector.broadcast %cst_199 : f32 to vector<8x64xf32>
    %346 = arith.cmpf oge, %344, %345 : vector<8x64xf32>
    %cst_200 = arith.constant 0.00999999977 : f32
    %347 = vector.broadcast %cst_200 : f32 to vector<8x64xf32>
    %348 = arith.mulf %347, %344 : vector<8x64xf32>
    %349 = arith.select %346, %344, %348 : vector<8x64xi1>, vector<8x64xf32>
    %c0_201 = arith.constant 0 : index
    %c0_202 = arith.constant 0 : index
    %350 = vector.load %arg9[%c0_201, %c0_202] : memref<64x70xf32, #tpu.memory_space<vmem>>, vector<64x70xf32>
    %cst_203 = arith.constant dense<0.000000e+00> : vector<8x70xf32>
    %351 = tpu.matmul %349, %350, %cst_203 {dimension_numbers = #tpu.dot_dimension_numbers<[1], [0], [0], [1], [0, 0, 1, 1], [], []>} : vector<8x64xf32>, vector<64x70xf32>, vector<8x70xf32> -> vector<8x70xf32>
    %352 = vector.extract_strided_slice %351 {offsets = [0, 0], sizes = [8, 64], strides = [1, 1]} : vector<8x70xf32> to vector<8x64xf32>
    %353 = vector.extract_strided_slice %351 {offsets = [0, 1], sizes = [8, 64], strides = [1, 1]} : vector<8x70xf32> to vector<8x64xf32>
    %354 = vector.extract_strided_slice %351 {offsets = [0, 2], sizes = [8, 64], strides = [1, 1]} : vector<8x70xf32> to vector<8x64xf32>
    %355 = vector.extract_strided_slice %351 {offsets = [0, 3], sizes = [8, 64], strides = [1, 1]} : vector<8x70xf32> to vector<8x64xf32>
    %356 = vector.extract_strided_slice %351 {offsets = [0, 4], sizes = [8, 64], strides = [1, 1]} : vector<8x70xf32> to vector<8x64xf32>
    %357 = vector.extract_strided_slice %351 {offsets = [0, 5], sizes = [8, 64], strides = [1, 1]} : vector<8x70xf32> to vector<8x64xf32>
    %358 = vector.extract_strided_slice %351 {offsets = [0, 6], sizes = [8, 64], strides = [1, 1]} : vector<8x70xf32> to vector<8x64xf32>
    %359 = tpu.concatenate %352, %353, %354, %355, %356, %357, %358 in 0 : vector<8x64xf32>, vector<8x64xf32>, vector<8x64xf32>, vector<8x64xf32>, vector<8x64xf32>, vector<8x64xf32>, vector<8x64xf32> -> vector<56x64xf32>
    %c0_204 = arith.constant 0 : index
    %c0_205 = arith.constant 0 : index
    %360 = vector.load %arg54[%c0_204, %c0_205] : memref<1x56xf32, #tpu.memory_space<vmem>>, vector<1x56xf32>
    %cst_206 = arith.constant dense<0.000000e+00> : vector<1x64xf32>
    %361 = tpu.matmul %360, %359, %cst_206 {dimension_numbers = #tpu.dot_dimension_numbers<[1], [0], [0], [1], [0, 0, 1, 1], [], []>} : vector<1x56xf32>, vector<56x64xf32>, vector<1x64xf32> -> vector<1x64xf32>
    %362 = math.tanh %361 : vector<1x64xf32>
    %c0_207 = arith.constant 0 : index
    %c0_208 = arith.constant 0 : index
    %c0_209 = arith.constant 0 : index
    %363 = vector.load %arg55[%c0_207, %c0_208, %c0_209] : memref<1x1x64xf32, #tpu.memory_space<vmem>>, vector<1x1x64xf32>
    %364 = vector.shape_cast %363 : vector<1x1x64xf32> to vector<1x64xf32>
    %365 = vector.shape_cast %362 : vector<1x64xf32> to vector<1x1x64xf32>
    tpu.vector_store %arg55[%c0_207, %c0_208, %c0_209], %365 {strides = array<i32>} : memref<1x1x64xf32, #tpu.memory_space<vmem>>, vector<1x1x64xf32>,
    return
  }
  func.func @transform_0(%arg0: i32) -> (i32, i32, i32) {
    %c0_i32 = arith.constant 0 : i32
    %c0_i32_0 = arith.constant 0 : i32
    %c0_i32_1 = arith.constant 0 : i32
    return %arg0, %c0_i32, %c0_i32_0 : i32, i32, i32
  }
  func.func @transform_1(%arg0: i32) -> (i32, i32, i32) {
    %c0_i32 = arith.constant 0 : i32
    %c0_i32_0 = arith.constant 0 : i32
    %c0_i32_1 = arith.constant 0 : i32
    return %arg0, %c0_i32, %c0_i32_0 : i32, i32, i32
  }
  func.func @transform_2(%arg0: i32) -> (i32, i32) {
    %c0_i32 = arith.constant 0 : i32
    %c0_i32_0 = arith.constant 0 : i32
    %c0_i32_1 = arith.constant 0 : i32
    return %c0_i32, %c0_i32_0 : i32, i32
  }
  func.func @transform_3(%arg0: i32) -> (i32, i32) {
    %c0_i32 = arith.constant 0 : i32
    %c0_i32_0 = arith.constant 0 : i32
    %c0_i32_1 = arith.constant 0 : i32
    return %c0_i32, %c0_i32_0 : i32, i32
  }
  func.func @transform_4(%arg0: i32) -> (i32, i32) {
    %c0_i32 = arith.constant 0 : i32
    %c0_i32_0 = arith.constant 0 : i32
    %c0_i32_1 = arith.constant 0 : i32
    return %c0_i32, %c0_i32_0 : i32, i32
  }
  func.func @transform_5(%arg0: i32) -> (i32, i32) {
    %c0_i32 = arith.constant 0 : i32
    %c0_i32_0 = arith.constant 0 : i32
    %c0_i32_1 = arith.constant 0 : i32
    return %c0_i32, %c0_i32_0 : i32, i32
  }
  func.func @transform_6(%arg0: i32) -> (i32, i32) {
    %c0_i32 = arith.constant 0 : i32
    %c0_i32_0 = arith.constant 0 : i32
    %c0_i32_1 = arith.constant 0 : i32
    return %c0_i32, %c0_i32_0 : i32, i32
  }
  func.func @transform_7(%arg0: i32) -> (i32, i32) {
    %c0_i32 = arith.constant 0 : i32
    %c0_i32_0 = arith.constant 0 : i32
    %c0_i32_1 = arith.constant 0 : i32
    return %c0_i32, %c0_i32_0 : i32, i32
  }
  func.func @transform_8(%arg0: i32) -> (i32, i32) {
    %c0_i32 = arith.constant 0 : i32
    %c0_i32_0 = arith.constant 0 : i32
    %c0_i32_1 = arith.constant 0 : i32
    return %c0_i32, %c0_i32_0 : i32, i32
  }
  func.func @transform_9(%arg0: i32) -> (i32, i32) {
    %c0_i32 = arith.constant 0 : i32
    %c0_i32_0 = arith.constant 0 : i32
    %c0_i32_1 = arith.constant 0 : i32
    return %c0_i32, %c0_i32_0 : i32, i32
  }
  func.func @transform_10(%arg0: i32) -> (i32, i32) {
    %c0_i32 = arith.constant 0 : i32
    %c0_i32_0 = arith.constant 0 : i32
    %c0_i32_1 = arith.constant 0 : i32
    return %c0_i32, %c0_i32_0 : i32, i32
  }
  func.func @transform_11(%arg0: i32) -> (i32, i32) {
    %c0_i32 = arith.constant 0 : i32
    %c0_i32_0 = arith.constant 0 : i32
    %c0_i32_1 = arith.constant 0 : i32
    return %c0_i32, %c0_i32_0 : i32, i32
  }
  func.func @transform_12(%arg0: i32) -> (i32, i32) {
    %c0_i32 = arith.constant 0 : i32
    %c0_i32_0 = arith.constant 0 : i32
    %c0_i32_1 = arith.constant 0 : i32
    return %c0_i32, %c0_i32_0 : i32, i32
  }
  func.func @transform_13(%arg0: i32) -> (i32, i32) {
    %c0_i32 = arith.constant 0 : i32
    %c0_i32_0 = arith.constant 0 : i32
    %c0_i32_1 = arith.constant 0 : i32
    return %c0_i32, %c0_i32_0 : i32, i32
  }
  func.func @transform_14(%arg0: i32) -> (i32, i32) {
    %c0_i32 = arith.constant 0 : i32
    %c0_i32_0 = arith.constant 0 : i32
    %c0_i32_1 = arith.constant 0 : i32
    return %c0_i32, %c0_i32_0 : i32, i32
  }
  func.func @transform_15(%arg0: i32) -> (i32, i32) {
    %c0_i32 = arith.constant 0 : i32
    %c0_i32_0 = arith.constant 0 : i32
    %c0_i32_1 = arith.constant 0 : i32
    return %c0_i32, %c0_i32_0 : i32, i32
  }
  func.func @transform_16(%arg0: i32) -> (i32, i32) {
    %c0_i32 = arith.constant 0 : i32
    %c0_i32_0 = arith.constant 0 : i32
    %c0_i32_1 = arith.constant 0 : i32
    return %c0_i32, %c0_i32_0 : i32, i32
  }
  func.func @transform_17(%arg0: i32) -> (i32, i32) {
    %c0_i32 = arith.constant 0 : i32
    %c0_i32_0 = arith.constant 0 : i32
    %c0_i32_1 = arith.constant 0 : i32
    return %c0_i32, %c0_i32_0 : i32, i32
  }
  func.func @transform_18(%arg0: i32) -> (i32, i32) {
    %c0_i32 = arith.constant 0 : i32
    %c0_i32_0 = arith.constant 0 : i32
    %c0_i32_1 = arith.constant 0 : i32
    return %c0_i32, %c0_i32_0 : i32, i32
  }
  func.func @transform_19(%arg0: i32) -> (i32, i32) {
    %c0_i32 = arith.constant 0 : i32
    %c0_i32_0 = arith.constant 0 : i32
    %c0_i32_1 = arith.constant 0 : i32
    return %c0_i32, %c0_i32_0 : i32, i32
  }
  func.func @transform_20(%arg0: i32) -> (i32, i32) {
    %c0_i32 = arith.constant 0 : i32
    %c0_i32_0 = arith.constant 0 : i32
    %c0_i32_1 = arith.constant 0 : i32
    return %c0_i32, %c0_i32_0 : i32, i32
  }
  func.func @transform_21(%arg0: i32) -> (i32, i32) {
    %c0_i32 = arith.constant 0 : i32
    %c0_i32_0 = arith.constant 0 : i32
    %c0_i32_1 = arith.constant 0 : i32
    return %c0_i32, %c0_i32_0 : i32, i32
  }
  func.func @transform_22(%arg0: i32) -> (i32, i32) {
    %c0_i32 = arith.constant 0 : i32
    %c0_i32_0 = arith.constant 0 : i32
    %c0_i32_1 = arith.constant 0 : i32
    return %c0_i32, %c0_i32_0 : i32, i32
  }
  func.func @transform_23(%arg0: i32) -> (i32, i32) {
    %c0_i32 = arith.constant 0 : i32
    %c0_i32_0 = arith.constant 0 : i32
    %c0_i32_1 = arith.constant 0 : i32
    return %c0_i32, %c0_i32_0 : i32, i32
  }
  func.func @transform_24(%arg0: i32) -> (i32, i32) {
    %c0_i32 = arith.constant 0 : i32
    %c0_i32_0 = arith.constant 0 : i32
    %c0_i32_1 = arith.constant 0 : i32
    return %c0_i32, %c0_i32_0 : i32, i32
  }
  func.func @transform_25(%arg0: i32) -> (i32, i32) {
    %c0_i32 = arith.constant 0 : i32
    %c0_i32_0 = arith.constant 0 : i32
    %c0_i32_1 = arith.constant 0 : i32
    return %c0_i32, %c0_i32_0 : i32, i32
  }
  func.func @transform_26(%arg0: i32) -> (i32, i32) {
    %c0_i32 = arith.constant 0 : i32
    %c0_i32_0 = arith.constant 0 : i32
    %c0_i32_1 = arith.constant 0 : i32
    return %c0_i32, %c0_i32_0 : i32, i32
  }
  func.func @transform_27(%arg0: i32) -> (i32, i32) {
    %c0_i32 = arith.constant 0 : i32
    %c0_i32_0 = arith.constant 0 : i32
    %c0_i32_1 = arith.constant 0 : i32
    return %c0_i32, %c0_i32_0 : i32, i32
  }
  func.func @transform_28(%arg0: i32) -> (i32, i32) {
    %c0_i32 = arith.constant 0 : i32
    %c0_i32_0 = arith.constant 0 : i32
    %c0_i32_1 = arith.constant 0 : i32
    return %c0_i32, %c0_i32_0 : i32, i32
  }
  func.func @transform_29(%arg0: i32) -> (i32, i32) {
    %c0_i32 = arith.constant 0 : i32
    %c0_i32_0 = arith.constant 0 : i32
    %c0_i32_1 = arith.constant 0 : i32
    return %c0_i32, %c0_i32_0 : i32, i32
  }
  func.func @transform_30(%arg0: i32) -> (i32, i32) {
    %c0_i32 = arith.constant 0 : i32
    %c0_i32_0 = arith.constant 0 : i32
    %c0_i32_1 = arith.constant 0 : i32
    return %c0_i32, %c0_i32_0 : i32, i32
  }
  func.func @transform_31(%arg0: i32) -> (i32, i32) {
    %c0_i32 = arith.constant 0 : i32
    %c0_i32_0 = arith.constant 0 : i32
    %c0_i32_1 = arith.constant 0 : i32
    return %c0_i32, %c0_i32_0 : i32, i32
  }
  func.func @transform_32(%arg0: i32) -> (i32, i32) {
    %c0_i32 = arith.constant 0 : i32
    %c0_i32_0 = arith.constant 0 : i32
    %c0_i32_1 = arith.constant 0 : i32
    return %c0_i32, %c0_i32_0 : i32, i32
  }
  func.func @transform_33(%arg0: i32) -> (i32, i32) {
    %c0_i32 = arith.constant 0 : i32
    %c0_i32_0 = arith.constant 0 : i32
    %c0_i32_1 = arith.constant 0 : i32
    return %c0_i32, %c0_i32_0 : i32, i32
  }
  func.func @transform_34(%arg0: i32) -> (i32, i32) {
    %c0_i32 = arith.constant 0 : i32
    %c0_i32_0 = arith.constant 0 : i32
    %c0_i32_1 = arith.constant 0 : i32
    return %c0_i32, %c0_i32_0 : i32, i32
  }
  func.func @transform_35(%arg0: i32) -> (i32, i32) {
    %c0_i32 = arith.constant 0 : i32
    %c0_i32_0 = arith.constant 0 : i32
    %c0_i32_1 = arith.constant 0 : i32
    return %c0_i32, %c0_i32_0 : i32, i32
  }
  func.func @transform_36(%arg0: i32) -> (i32, i32) {
    %c0_i32 = arith.constant 0 : i32
    %c0_i32_0 = arith.constant 0 : i32
    %c0_i32_1 = arith.constant 0 : i32
    return %c0_i32, %c0_i32_0 : i32, i32
  }
  func.func @transform_37(%arg0: i32) -> (i32, i32) {
    %c0_i32 = arith.constant 0 : i32
    %c0_i32_0 = arith.constant 0 : i32
    %c0_i32_1 = arith.constant 0 : i32
    return %c0_i32, %c0_i32_0 : i32, i32
  }
  func.func @transform_38(%arg0: i32) -> (i32, i32) {
    %c0_i32 = arith.constant 0 : i32
    %c0_i32_0 = arith.constant 0 : i32
    %c0_i32_1 = arith.constant 0 : i32
    return %c0_i32, %c0_i32_0 : i32, i32
  }
  func.func @transform_39(%arg0: i32) -> (i32, i32) {
    %c0_i32 = arith.constant 0 : i32
    %c0_i32_0 = arith.constant 0 : i32
    %c0_i32_1 = arith.constant 0 : i32
    return %c0_i32, %c0_i32_0 : i32, i32
  }
  func.func @transform_40(%arg0: i32) -> (i32, i32) {
    %c0_i32 = arith.constant 0 : i32
    %c0_i32_0 = arith.constant 0 : i32
    %c0_i32_1 = arith.constant 0 : i32
    return %c0_i32, %c0_i32_0 : i32, i32
  }
  func.func @transform_41(%arg0: i32) -> (i32, i32) {
    %c0_i32 = arith.constant 0 : i32
    %c0_i32_0 = arith.constant 0 : i32
    %c0_i32_1 = arith.constant 0 : i32
    return %c0_i32, %c0_i32_0 : i32, i32
  }
  func.func @transform_42(%arg0: i32) -> (i32, i32) {
    %c0_i32 = arith.constant 0 : i32
    %c0_i32_0 = arith.constant 0 : i32
    %c0_i32_1 = arith.constant 0 : i32
    return %c0_i32, %c0_i32_0 : i32, i32
  }
  func.func @transform_43(%arg0: i32) -> (i32, i32) {
    %c0_i32 = arith.constant 0 : i32
    %c0_i32_0 = arith.constant 0 : i32
    %c0_i32_1 = arith.constant 0 : i32
    return %c0_i32, %c0_i32_0 : i32, i32
  }
  func.func @transform_44(%arg0: i32) -> (i32, i32) {
    %c0_i32 = arith.constant 0 : i32
    %c0_i32_0 = arith.constant 0 : i32
    %c0_i32_1 = arith.constant 0 : i32
    return %c0_i32, %c0_i32_0 : i32, i32
  }
  func.func @transform_45(%arg0: i32) -> (i32, i32) {
    %c0_i32 = arith.constant 0 : i32
    %c0_i32_0 = arith.constant 0 : i32
    %c0_i32_1 = arith.constant 0 : i32
    return %c0_i32, %c0_i32_0 : i32, i32
  }
  func.func @transform_46(%arg0: i32) -> (i32, i32) {
    %c0_i32 = arith.constant 0 : i32
    %c0_i32_0 = arith.constant 0 : i32
    %c0_i32_1 = arith.constant 0 : i32
    return %c0_i32, %c0_i32_0 : i32, i32
  }
  func.func @transform_47(%arg0: i32) -> (i32, i32) {
    %c0_i32 = arith.constant 0 : i32
    %c0_i32_0 = arith.constant 0 : i32
    %c0_i32_1 = arith.constant 0 : i32
    return %c0_i32, %c0_i32_0 : i32, i32
  }
  func.func @transform_48(%arg0: i32) -> (i32, i32) {
    %c0_i32 = arith.constant 0 : i32
    %c0_i32_0 = arith.constant 0 : i32
    %c0_i32_1 = arith.constant 0 : i32
    return %c0_i32, %c0_i32_0 : i32, i32
  }
  func.func @transform_49(%arg0: i32) -> (i32, i32) {
    %c0_i32 = arith.constant 0 : i32
    %c0_i32_0 = arith.constant 0 : i32
    %c0_i32_1 = arith.constant 0 : i32
    return %c0_i32, %c0_i32_0 : i32, i32
  }
  func.func @transform_50(%arg0: i32) -> (i32, i32) {
    %c0_i32 = arith.constant 0 : i32
    %c0_i32_0 = arith.constant 0 : i32
    %c0_i32_1 = arith.constant 0 : i32
    return %c0_i32, %c0_i32_0 : i32, i32
  }
  func.func @transform_51(%arg0: i32) -> (i32, i32) {
    %c0_i32 = arith.constant 0 : i32
    %c0_i32_0 = arith.constant 0 : i32
    %c0_i32_1 = arith.constant 0 : i32
    return %c0_i32, %c0_i32_0 : i32, i32
  }
  func.func @transform_52(%arg0: i32) -> (i32, i32) {
    %c0_i32 = arith.constant 0 : i32
    %c0_i32_0 = arith.constant 0 : i32
    %c0_i32_1 = arith.constant 0 : i32
    return %c0_i32, %c0_i32_0 : i32, i32
  }
  func.func @transform_53(%arg0: i32) -> (i32, i32) {
    %c0_i32 = arith.constant 0 : i32
    %c0_i32_0 = arith.constant 0 : i32
    %c0_i32_1 = arith.constant 0 : i32
    return %c0_i32, %c0_i32_0 : i32, i32
  }
  func.func @transform_54(%arg0: i32) -> (i32, i32, i32) {
    %c0_i32 = arith.constant 0 : i32
    %c0_i32_0 = arith.constant 0 : i32
    %c0_i32_1 = arith.constant 0 : i32
    return %arg0, %c0_i32, %c0_i32_0 : i32, i32, i32
  }
}

</mosaic_0001>

<llo_original>
// kernel: tpu_custom_call.1
$region0: #{tpu_custom_call.1}
  #allocation0 [shape = 'u32[]', space=smem, size = 0x4, offset = 0x4, fixed_abs, tag = 'smem constant byte address 0x4 - core index']
  #allocation1 [shape = 'u32[144,128]{1,0:T(1,128)}', space=vmem, size = 0x12000, scoped, tag = 'internal scratch']
  %s0 = inlined_call_operand.smem [shape: u32[55], index: -1, kind: input, shape index: {}]
  %s1 = sld [smem:[%s0]]
  %s2 = scalar_lea.smem %s0, 1
  %s3 = sld [smem:[%s2]]
  %s4 = scalar_lea.smem %s0, 2
  %s5 = sld [smem:[%s4]]
  %s6 = scalar_lea.smem %s0, 3
  %s7 = sld [smem:[%s6]]
  %s8 = scalar_lea.smem %s0, 4
  %s9 = sld [smem:[%s8]]
  %s10 = scalar_lea.smem %s0, 5
  %s11 = sld [smem:[%s10]]
  %s12 = scalar_lea.smem %s0, 6
  %s13 = sld [smem:[%s12]]
  %s14 = scalar_lea.smem %s0, 7
  %s15 = sld [smem:[%s14]]
  %s16 = scalar_lea.smem %s0, 8
  %s17 = sld [smem:[%s16]]
  %s18 = scalar_lea.smem %s0, 9
  %s19 = sld [smem:[%s18]]
  %s20 = scalar_lea.smem %s0, 10
  %s21 = sld [smem:[%s20]]
  %s22 = scalar_lea.smem %s0, 11
  %s23 = sld [smem:[%s22]]
  %s24 = scalar_lea.smem %s0, 12
  %s25 = sld [smem:[%s24]]
  %s26 = scalar_lea.smem %s0, 13
  %s27 = sld [smem:[%s26]]
  %s28 = scalar_lea.smem %s0, 14
  %s29 = sld [smem:[%s28]]
  %s30 = scalar_lea.smem %s0, 15
  %s31 = sld [smem:[%s30]]
  %s32 = scalar_lea.smem %s0, 16
  %s33 = sld [smem:[%s32]]
  %s34 = scalar_lea.smem %s0, 17
  %s35 = sld [smem:[%s34]]
  %s36 = scalar_lea.smem %s0, 18
  %s37 = sld [smem:[%s36]]
  %s38 = scalar_lea.smem %s0, 19
  %s39 = sld [smem:[%s38]]
  %s40 = scalar_lea.smem %s0, 20
  %s41 = sld [smem:[%s40]]
  %s42 = scalar_lea.smem %s0, 21
  %s43 = sld [smem:[%s42]]
  %s44 = scalar_lea.smem %s0, 22
  %s45 = sld [smem:[%s44]]
  %s46 = scalar_lea.smem %s0, 23
  %s47 = sld [smem:[%s46]]
  %s48 = scalar_lea.smem %s0, 24
  %s49 = sld [smem:[%s48]]
  %s50 = scalar_lea.smem %s0, 25
  %s51 = sld [smem:[%s50]]
  %s52 = scalar_lea.smem %s0, 26
  %s53 = sld [smem:[%s52]]
  %s54 = scalar_lea.smem %s0, 27
  %s55 = sld [smem:[%s54]]
  %s56 = scalar_lea.smem %s0, 28
  %s57 = sld [smem:[%s56]]
  %s58 = scalar_lea.smem %s0, 29
  %s59 = sld [smem:[%s58]]
  %s60 = scalar_lea.smem %s0, 30
  %s61 = sld [smem:[%s60]]
  %s62 = scalar_lea.smem %s0, 31
  %s63 = sld [smem:[%s62]]
  %s64 = scalar_lea.smem %s0, 32
  %s65 = sld [smem:[%s64]]
  %s66 = scalar_lea.smem %s0, 33
  %s67 = sld [smem:[%s66]]
  %s68 = scalar_lea.smem %s0, 34
  %s69 = sld [smem:[%s68]]
  %s70 = scalar_lea.smem %s0, 35
  %s71 = sld [smem:[%s70]]
  %s72 = scalar_lea.smem %s0, 36
  %s73 = sld [smem:[%s72]]
  %s74 = scalar_lea.smem %s0, 37
  %s75 = sld [smem:[%s74]]
  %s76 = scalar_lea.smem %s0, 38
  %s77 = sld [smem:[%s76]]
  %s78 = scalar_lea.smem %s0, 39
  %s79 = sld [smem:[%s78]]
  %s80 = scalar_lea.smem %s0, 40
  %s81 = sld [smem:[%s80]]
  %s82 = scalar_lea.smem %s0, 41
  %s83 = sld [smem:[%s82]]
  %s84 = scalar_lea.smem %s0, 42
  %s85 = sld [smem:[%s84]]
  %s86 = scalar_lea.smem %s0, 43
  %s87 = sld [smem:[%s86]]
  %s88 = scalar_lea.smem %s0, 44
  %s89 = sld [smem:[%s88]]
  %s90 = scalar_lea.smem %s0, 45
  %s91 = sld [smem:[%s90]]
  %s92 = scalar_lea.smem %s0, 46
  %s93 = sld [smem:[%s92]]
  %s94 = scalar_lea.smem %s0, 47
  %s95 = sld [smem:[%s94]]
  %s96 = scalar_lea.smem %s0, 48
  %s97 = sld [smem:[%s96]]
  %s98 = scalar_lea.smem %s0, 49
  %s99 = sld [smem:[%s98]]
  %s100 = scalar_lea.smem %s0, 50
  %s101 = sld [smem:[%s100]]
  %s102 = scalar_lea.smem %s0, 51
  %s103 = sld [smem:[%s102]]
  %s104 = scalar_lea.smem %s0, 52
  %s105 = sld [smem:[%s104]]
  %s106 = scalar_lea.smem %s0, 53
  %s107 = sld [smem:[%s106]]
  %s108 = scalar_lea.smem %s0, 54
  %s109 = sld [smem:[%s108]]
  %s110 = sld [smem:[#allocation0]]
  $region289: #{tpu_custom_call.1} parent=0
    _
  %s112 = ssub.s32 1, %s110
  %s113 = scalar_select 0, %s112, %s110
  $region1: #{tpu_custom_call.1} parent=0
    #allocation2 [shape = 'u8[8192]{0}', space=vmem, size = 0x2000, scoped, tag = 'input window, operand 0']
    #allocation3 [shape = 's32[2]{0}', space=sflag, size = 0x8, scoped, tag = 'scoped memory for tpu_custom_call.1']
    #allocation4 [shape = 's32[2]{0}', space=sflag, size = 0x8, scoped, tag = 'scoped memory for tpu_custom_call.1']
    #allocation5 [shape = 'u8[8192]{0}', space=vmem, size = 0x2000, scoped, tag = 'input window, operand 2, single buffered']
    #allocation6 [shape = 's32[1]{0}', space=sflag, size = 0x4, scoped, tag = 'scoped memory for tpu_custom_call.1']
    #allocation7 [shape = 'u8[16384]{0}', space=vmem, size = 0x4000, scoped, tag = 'input window, operand 6, single buffered']
    #allocation8 [shape = 'u8[16384]{0}', space=vmem, size = 0x4000, scoped, tag = 'input window, operand 11, single buffered']
    #allocation9 [shape = 's32[1]{0}', space=sflag, size = 0x4, scoped, tag = 'scoped memory for tpu_custom_call.1']
    #allocation10 [shape = 'u8[8192]{0}', space=vmem, size = 0x2000, scoped, tag = 'input window, operand 15, single buffered']
    #allocation11 [shape = 'u8[8192]{0}', space=vmem, size = 0x2000, scoped, tag = 'input window, operand 18, single buffered']
    #allocation12 [shape = 's32[1]{0}', space=sflag, size = 0x4, scoped, tag = 'scoped memory for tpu_custom_call.1']
    #allocation13 [shape = 'u8[8192]{0}', space=vmem, size = 0x2000, scoped, tag = 'input window, operand 22, single buffered']
    #allocation14 [shape = 'u8[8192]{0}', space=vmem, size = 0x2000, scoped, tag = 'input window, operand 26, single buffered']
    #allocation15 [shape = 's32[1]{0}', space=sflag, size = 0x4, scoped, tag = 'scoped memory for tpu_custom_call.1']
    #allocation16 [shape = 'u8[8192]{0}', space=vmem, size = 0x2000, scoped, tag = 'input window, operand 30, single buffered']
    #allocation17 [shape = 'u8[4096]{0}', space=vmem, size = 0x1000, scoped, tag = 'input window, operand 49, single buffered']
    #allocation18 [shape = 's32[1]{0}', space=sflag, size = 0x4, scoped, tag = 'scoped memory for tpu_custom_call.1']
    #allocation19 [shape = 'u8[1024]{0}', space=vmem, size = 0x400, scoped, tag = 'output window, operand 0']
    %114 = vsyncpa [#allocation3], 0
    %s115 = scalar_lea.sflag [#allocation3], 1
    %116 = vsyncpa %s115, 0
    %117 = vsyncpa [#allocation6], 0
    %118 = vsyncpa [#allocation9], 0
    %119 = vsyncpa [#allocation12], 0
    %120 = vsyncpa [#allocation15], 0
    %121 = vsyncpa [#allocation18], 0
    %122 = vsyncpa [#allocation4], 0
    %s123 = scalar_lea.sflag [#allocation4], 1
    %124 = vsyncpa %s123, 0
    loop: start=0, step=1, limit=4
    $region2: #{tpu_custom_call.1} parent=1 // loop_pre_header
      _
    $region3: #{tpu_custom_call.1} parent=1 // loop_header
      %s126 = sphi 0, %s130
      %p127 = scmp.ge.s32.totalorder %s126, 4
      %s136 = sphi 0, %s138
      %s139 = sphi 0, %s136
      %s140 = sphi 0, %s139
      %s156 = sphi 0, %s140
      %s162 = sphi 0, %s164
      %s165 = sphi 0, %s162
      %s166 = sphi 0, %s165
      %s182 = sphi 0, %s166
      %s186 = sphi 0, %s186
      %s188 = sphi 0, %s186
      %s189 = sphi 0, %s188
      %s203 = sphi 0, %s189
      %s207 = sphi 0, %s207
      %s209 = sphi 0, %s207
      %s210 = sphi 0, %s209
      %s224 = sphi 0, %s210
      %s228 = sphi 0, %s228
      %s230 = sphi 0, %s228
      %s231 = sphi 0, %s230
      %s245 = sphi 0, %s231
      %s249 = sphi 0, %s249
      %s251 = sphi 0, %s249
      %s252 = sphi 0, %s251
      %s266 = sphi 0, %s252
      %s270 = sphi 0, %s270
      %s272 = sphi 0, %s270
      %s273 = sphi 0, %s272
      %s287 = sphi 0, %s273
      %s291 = sphi 0, %s291
      %s293 = sphi 0, %s291
      %s294 = sphi 0, %s293
      %s308 = sphi 0, %s294
      %s312 = sphi 0, %s312
      %s314 = sphi 0, %s312
      %s315 = sphi 0, %s314
      %s329 = sphi 0, %s315
      %s333 = sphi 0, %s333
      %s335 = sphi 0, %s333
      %s336 = sphi 0, %s335
      %s350 = sphi 0, %s336
      %s354 = sphi 0, %s354
      %s356 = sphi 0, %s354
      %s357 = sphi 0, %s356
      %s371 = sphi 0, %s357
      %s375 = sphi 0, %s375
      %s377 = sphi 0, %s375
      %s378 = sphi 0, %s377
      %s392 = sphi 0, %s378
      %s396 = sphi 0, %s396
      %s398 = sphi 0, %s396
      %s399 = sphi 0, %s398
      %s413 = sphi 0, %s399
      %s417 = sphi 0, %s417
      %s419 = sphi 0, %s417
      %s420 = sphi 0, %s419
      %s434 = sphi 0, %s420
      %s438 = sphi 0, %s438
      %s440 = sphi 0, %s438
      %s441 = sphi 0, %s440
      %s455 = sphi 0, %s441
      %s459 = sphi 0, %s459
      %s461 = sphi 0, %s459
      %s462 = sphi 0, %s461
      %s476 = sphi 0, %s462
      %s480 = sphi 0, %s480
      %s482 = sphi 0, %s480
      %s483 = sphi 0, %s482
      %s497 = sphi 0, %s483
      %s501 = sphi 0, %s501
      %s503 = sphi 0, %s501
      %s504 = sphi 0, %s503
      %s518 = sphi 0, %s504
      %s522 = sphi 0, %s522
      %s524 = sphi 0, %s522
      %s525 = sphi 0, %s524
      %s539 = sphi 0, %s525
      %s543 = sphi 0, %s543
      %s545 = sphi 0, %s543
      %s546 = sphi 0, %s545
      %s560 = sphi 0, %s546
      %s564 = sphi 0, %s564
      %s566 = sphi 0, %s564
      %s567 = sphi 0, %s566
      %s581 = sphi 0, %s567
      %s585 = sphi 0, %s585
      %s587 = sphi 0, %s585
      %s588 = sphi 0, %s587
      %s602 = sphi 0, %s588
      %s606 = sphi 0, %s606
      %s608 = sphi 0, %s606
      %s609 = sphi 0, %s608
      %s623 = sphi 0, %s609
      %s627 = sphi 0, %s627
      %s629 = sphi 0, %s627
      %s630 = sphi 0, %s629
      %s644 = sphi 0, %s630
      %s648 = sphi 0, %s648
      %s650 = sphi 0, %s648
      %s651 = sphi 0, %s650
      %s665 = sphi 0, %s651
      %s669 = sphi 0, %s669
      %s671 = sphi 0, %s669
      %s672 = sphi 0, %s671
      %s686 = sphi 0, %s672
      %s690 = sphi 0, %s690
      %s692 = sphi 0, %s690
      %s693 = sphi 0, %s692
      %s707 = sphi 0, %s693
      %s711 = sphi 0, %s711
      %s713 = sphi 0, %s711
      %s714 = sphi 0, %s713
      %s728 = sphi 0, %s714
      %s732 = sphi 0, %s732
      %s734 = sphi 0, %s732
      %s735 = sphi 0, %s734
      %s749 = sphi 0, %s735
      %s753 = sphi 0, %s753
      %s755 = sphi 0, %s753
      %s756 = sphi 0, %s755
      %s770 = sphi 0, %s756
      %s774 = sphi 0, %s774
      %s776 = sphi 0, %s774
      %s777 = sphi 0, %s776
      %s791 = sphi 0, %s777
      %s795 = sphi 0, %s795
      %s797 = sphi 0, %s795
      %s798 = sphi 0, %s797
      %s812 = sphi 0, %s798
      %s816 = sphi 0, %s816
      %s818 = sphi 0, %s816
      %s819 = sphi 0, %s818
      %s833 = sphi 0, %s819
      %s837 = sphi 0, %s837
      %s839 = sphi 0, %s837
      %s840 = sphi 0, %s839
      %s854 = sphi 0, %s840
      %s858 = sphi 0, %s858
      %s860 = sphi 0, %s858
      %s861 = sphi 0, %s860
      %s875 = sphi 0, %s861
      %s879 = sphi 0, %s879
      %s881 = sphi 0, %s879
      %s882 = sphi 0, %s881
      %s896 = sphi 0, %s882
      %s900 = sphi 0, %s900
      %s902 = sphi 0, %s900
      %s903 = sphi 0, %s902
      %s917 = sphi 0, %s903
      %s921 = sphi 0, %s921
      %s923 = sphi 0, %s921
      %s924 = sphi 0, %s923
      %s938 = sphi 0, %s924
      %s942 = sphi 0, %s942
      %s944 = sphi 0, %s942
      %s945 = sphi 0, %s944
      %s959 = sphi 0, %s945
      %s963 = sphi 0, %s963
      %s965 = sphi 0, %s963
      %s966 = sphi 0, %s965
      %s980 = sphi 0, %s966
      %s984 = sphi 0, %s984
      %s986 = sphi 0, %s984
      %s987 = sphi 0, %s986
      %s1001 = sphi 0, %s987
      %s1005 = sphi 0, %s1005
      %s1007 = sphi 0, %s1005
      %s1008 = sphi 0, %s1007
      %s1022 = sphi 0, %s1008
      %s1026 = sphi 0, %s1026
      %s1028 = sphi 0, %s1026
      %s1029 = sphi 0, %s1028
      %s1043 = sphi 0, %s1029
      %s1047 = sphi 0, %s1047
      %s1049 = sphi 0, %s1047
      %s1050 = sphi 0, %s1049
      %s1064 = sphi 0, %s1050
      %s1068 = sphi 0, %s1068
      %s1070 = sphi 0, %s1068
      %s1071 = sphi 0, %s1070
      %s1085 = sphi 0, %s1071
      %s1089 = sphi 0, %s1089
      %s1091 = sphi 0, %s1089
      %s1092 = sphi 0, %s1091
      %s1106 = sphi 0, %s1092
      %s1110 = sphi 0, %s1110
      %s1112 = sphi 0, %s1110
      %s1113 = sphi 0, %s1112
      %s1127 = sphi 0, %s1113
      %s1131 = sphi 0, %s1131
      %s1133 = sphi 0, %s1131
      %s1134 = sphi 0, %s1133
      %s1148 = sphi 0, %s1134
      %s1152 = sphi 0, %s1152
      %s1154 = sphi 0, %s1152
      %s1155 = sphi 0, %s1154
      %s1169 = sphi 0, %s1155
      %s1173 = sphi 0, %s1173
      %s1175 = sphi 0, %s1173
      %s1176 = sphi 0, %s1175
      %s1190 = sphi 0, %s1176
      %s1194 = sphi 0, %s1194
      %s1196 = sphi 0, %s1194
      %s1197 = sphi 0, %s1196
      %s1211 = sphi 0, %s1197
      %s1215 = sphi 0, %s1215
      %s1217 = sphi 0, %s1215
      %s1218 = sphi 0, %s1217
      %s1232 = sphi 0, %s1218
      %s1236 = sphi 0, %s1236
      %s1238 = sphi 0, %s1236
      %s1239 = sphi 0, %s1238
      %s1253 = sphi 0, %s1239
      %s1257 = sphi 0, %s1257
      %s1259 = sphi 0, %s1257
      %s1260 = sphi 0, %s1259
      %s1274 = sphi 0, %s1260
      %s1280 = sphi 0, %s1282
      %s1283 = sphi 0, %s1280
      %s1284 = sphi 0, %s1283
      %s1300 = sphi 0, %s1284
    $region4: #{tpu_custom_call.1} parent=1 // loop_header_branch
      %129 = sbr.rel (%p127) target = $region8
    $region5: #{tpu_custom_call.1} parent=1 // loop_body
      %s131 = ssub.s32 %s126, 1
      %s132 = ssub.s32 %s126, 2
      %s133 = sadd.s32 %s126, 1
      %s134 = ssub.s32 %s126, %s133
      %p135 = scmp.eq.s32.totalorder %s134, 0
      %s137 = sadd.s32 %s136, 1
      %s138 = scalar_select %p135, %s136, %s137
      %p141 = pneg %p135
      %p142 = scmp.eq.s32.totalorder %s126, 1
      %p143 = por %p141, %p142
      %p144 = scmp.ne.s32.totalorder %s136, %s139
      %p145 = scmp.eq.s32.totalorder %s126, 0
      %p146 = por %p144, %p145
      %p147 = scmp.ne.s32.totalorder %s136, %s139
      %p148 = scmp.eq.s32.totalorder %s131, 1
      %p149 = por %p147, %p148
      %p150 = scmp.ne.s32.totalorder %s139, %s140
      %p151 = scmp.eq.s32.totalorder %s131, 0
      %p152 = por %p150, %p151
      %p153 = scmp.ne.s32.totalorder %s139, %s140
      %p154 = scmp.eq.s32.totalorder %s132, 1
      %p155 = por %p153, %p154
      %p157 = scmp.ne.s32.totalorder %s140, %s156
      %p158 = scmp.eq.s32.totalorder %s132, 0
      %p159 = por %p157, %p158
      %s160 = ssub.s32 %s126, %s133
      %p161 = scmp.eq.s32.totalorder %s160, 0
      %s163 = sadd.s32 %s162, 1
      %s164 = scalar_select %p161, %s162, %s163
      %p167 = pneg %p161
      %p168 = scmp.eq.s32.totalorder %s126, 1
      %p169 = por %p167, %p168
      %p170 = scmp.ne.s32.totalorder %s162, %s165
      %p171 = scmp.eq.s32.totalorder %s126, 0
      %p172 = por %p170, %p171
      %p173 = scmp.ne.s32.totalorder %s162, %s165
      %p174 = scmp.eq.s32.totalorder %s131, 1
      %p175 = por %p173, %p174
      %p176 = scmp.ne.s32.totalorder %s165, %s166
      %p177 = scmp.eq.s32.totalorder %s131, 0
      %p178 = por %p176, %p177
      %p179 = scmp.ne.s32.totalorder %s165, %s166
      %p180 = scmp.eq.s32.totalorder %s132, 1
      %p181 = por %p179, %p180
      %p183 = scmp.ne.s32.totalorder %s166, %s182
      %p184 = scmp.eq.s32.totalorder %s132, 0
      %p185 = por %p183, %p184
      %s187 = sadd.s32 %s186, 1
      %p190 = scmp.eq.s32.totalorder %s126, 1
      %p191 = scmp.ne.s32.totalorder %s186, %s188
      %p192 = scmp.eq.s32.totalorder %s126, 0
      %p193 = por %p191, %p192
      %p194 = scmp.ne.s32.totalorder %s186, %s188
      %p195 = scmp.eq.s32.totalorder %s131, 1
      %p196 = por %p194, %p195
      %p197 = scmp.ne.s32.totalorder %s188, %s189
      %p198 = scmp.eq.s32.totalorder %s131, 0
      %p199 = por %p197, %p198
      %p200 = scmp.ne.s32.totalorder %s188, %s189
      %p201 = scmp.eq.s32.totalorder %s132, 1
      %p202 = por %p200, %p201
      %p204 = scmp.ne.s32.totalorder %s189, %s203
      %p205 = scmp.eq.s32.totalorder %s132, 0
      %p206 = por %p204, %p205
      %s208 = sadd.s32 %s207, 1
      %p211 = scmp.eq.s32.totalorder %s126, 1
      %p212 = scmp.ne.s32.totalorder %s207, %s209
      %p213 = scmp.eq.s32.totalorder %s126, 0
      %p214 = por %p212, %p213
      %p215 = scmp.ne.s32.totalorder %s207, %s209
      %p216 = scmp.eq.s32.totalorder %s131, 1
      %p217 = por %p215, %p216
      %p218 = scmp.ne.s32.totalorder %s209, %s210
      %p219 = scmp.eq.s32.totalorder %s131, 0
      %p220 = por %p218, %p219
      %p221 = scmp.ne.s32.totalorder %s209, %s210
      %p222 = scmp.eq.s32.totalorder %s132, 1
      %p223 = por %p221, %p222
      %p225 = scmp.ne.s32.totalorder %s210, %s224
      %p226 = scmp.eq.s32.totalorder %s132, 0
      %p227 = por %p225, %p226
      %s229 = sadd.s32 %s228, 1
      %p232 = scmp.eq.s32.totalorder %s126, 1
      %p233 = scmp.ne.s32.totalorder %s228, %s230
      %p234 = scmp.eq.s32.totalorder %s126, 0
      %p235 = por %p233, %p234
      %p236 = scmp.ne.s32.totalorder %s228, %s230
      %p237 = scmp.eq.s32.totalorder %s131, 1
      %p238 = por %p236, %p237
      %p239 = scmp.ne.s32.totalorder %s230, %s231
      %p240 = scmp.eq.s32.totalorder %s131, 0
      %p241 = por %p239, %p240
      %p242 = scmp.ne.s32.totalorder %s230, %s231
      %p243 = scmp.eq.s32.totalorder %s132, 1
      %p244 = por %p242, %p243
      %p246 = scmp.ne.s32.totalorder %s231, %s245
      %p247 = scmp.eq.s32.totalorder %s132, 0
      %p248 = por %p246, %p247
      %s250 = sadd.s32 %s249, 1
      %p253 = scmp.eq.s32.totalorder %s126, 1
      %p254 = scmp.ne.s32.totalorder %s249, %s251
      %p255 = scmp.eq.s32.totalorder %s126, 0
      %p256 = por %p254, %p255
      %p257 = scmp.ne.s32.totalorder %s249, %s251
      %p258 = scmp.eq.s32.totalorder %s131, 1
      %p259 = por %p257, %p258
      %p260 = scmp.ne.s32.totalorder %s251, %s252
      %p261 = scmp.eq.s32.totalorder %s131, 0
      %p262 = por %p260, %p261
      %p263 = scmp.ne.s32.totalorder %s251, %s252
      %p264 = scmp.eq.s32.totalorder %s132, 1
      %p265 = por %p263, %p264
      %p267 = scmp.ne.s32.totalorder %s252, %s266
      %p268 = scmp.eq.s32.totalorder %s132, 0
      %p269 = por %p267, %p268
      %s271 = sadd.s32 %s270, 1
      %p274 = scmp.eq.s32.totalorder %s126, 1
      %p275 = scmp.ne.s32.totalorder %s270, %s272
      %p276 = scmp.eq.s32.totalorder %s126, 0
      %p277 = por %p275, %p276
      %p278 = scmp.ne.s32.totalorder %s270, %s272
      %p279 = scmp.eq.s32.totalorder %s131, 1
      %p280 = por %p278, %p279
      %p281 = scmp.ne.s32.totalorder %s272, %s273
      %p282 = scmp.eq.s32.totalorder %s131, 0
      %p283 = por %p281, %p282
      %p284 = scmp.ne.s32.totalorder %s272, %s273
      %p285 = scmp.eq.s32.totalorder %s132, 1
      %p286 = por %p284, %p285
      %p288 = scmp.ne.s32.totalorder %s273, %s287
      %p289 = scmp.eq.s32.totalorder %s132, 0
      %p290 = por %p288, %p289
      %s292 = sadd.s32 %s291, 1
      %p295 = scmp.eq.s32.totalorder %s126, 1
      %p296 = scmp.ne.s32.totalorder %s291, %s293
      %p297 = scmp.eq.s32.totalorder %s126, 0
      %p298 = por %p296, %p297
      %p299 = scmp.ne.s32.totalorder %s291, %s293
      %p300 = scmp.eq.s32.totalorder %s131, 1
      %p301 = por %p299, %p300
      %p302 = scmp.ne.s32.totalorder %s293, %s294
      %p303 = scmp.eq.s32.totalorder %s131, 0
      %p304 = por %p302, %p303
      %p305 = scmp.ne.s32.totalorder %s293, %s294
      %p306 = scmp.eq.s32.totalorder %s132, 1
      %p307 = por %p305, %p306
      %p309 = scmp.ne.s32.totalorder %s294, %s308
      %p310 = scmp.eq.s32.totalorder %s132, 0
      %p311 = por %p309, %p310
      %s313 = sadd.s32 %s312, 1
      %p316 = scmp.eq.s32.totalorder %s126, 1
      %p317 = scmp.ne.s32.totalorder %s312, %s314
      %p318 = scmp.eq.s32.totalorder %s126, 0
      %p319 = por %p317, %p318
      %p320 = scmp.ne.s32.totalorder %s312, %s314
      %p321 = scmp.eq.s32.totalorder %s131, 1
      %p322 = por %p320, %p321
      %p323 = scmp.ne.s32.totalorder %s314, %s315
      %p324 = scmp.eq.s32.totalorder %s131, 0
      %p325 = por %p323, %p324
      %p326 = scmp.ne.s32.totalorder %s314, %s315
      %p327 = scmp.eq.s32.totalorder %s132, 1
      %p328 = por %p326, %p327
      %p330 = scmp.ne.s32.totalorder %s315, %s329
      %p331 = scmp.eq.s32.totalorder %s132, 0
      %p332 = por %p330, %p331
      %s334 = sadd.s32 %s333, 1
      %p337 = scmp.eq.s32.totalorder %s126, 1
      %p338 = scmp.ne.s32.totalorder %s333, %s335
      %p339 = scmp.eq.s32.totalorder %s126, 0
      %p340 = por %p338, %p339
      %p341 = scmp.ne.s32.totalorder %s333, %s335
      %p342 = scmp.eq.s32.totalorder %s131, 1
      %p343 = por %p341, %p342
      %p344 = scmp.ne.s32.totalorder %s335, %s336
      %p345 = scmp.eq.s32.totalorder %s131, 0
      %p346 = por %p344, %p345
      %p347 = scmp.ne.s32.totalorder %s335, %s336
      %p348 = scmp.eq.s32.totalorder %s132, 1
      %p349 = por %p347, %p348
      %p351 = scmp.ne.s32.totalorder %s336, %s350
      %p352 = scmp.eq.s32.totalorder %s132, 0
      %p353 = por %p351, %p352
      %s355 = sadd.s32 %s354, 1
      %p358 = scmp.eq.s32.totalorder %s126, 1
      %p359 = scmp.ne.s32.totalorder %s354, %s356
      %p360 = scmp.eq.s32.totalorder %s126, 0
      %p361 = por %p359, %p360
      %p362 = scmp.ne.s32.totalorder %s354, %s356
      %p363 = scmp.eq.s32.totalorder %s131, 1
      %p364 = por %p362, %p363
      %p365 = scmp.ne.s32.totalorder %s356, %s357
      %p366 = scmp.eq.s32.totalorder %s131, 0
      %p367 = por %p365, %p366
      %p368 = scmp.ne.s32.totalorder %s356, %s357
      %p369 = scmp.eq.s32.totalorder %s132, 1
      %p370 = por %p368, %p369
      %p372 = scmp.ne.s32.totalorder %s357, %s371
      %p373 = scmp.eq.s32.totalorder %s132, 0
      %p374 = por %p372, %p373
      %s376 = sadd.s32 %s375, 1
      %p379 = scmp.eq.s32.totalorder %s126, 1
      %p380 = scmp.ne.s32.totalorder %s375, %s377
      %p381 = scmp.eq.s32.totalorder %s126, 0
      %p382 = por %p380, %p381
      %p383 = scmp.ne.s32.totalorder %s375, %s377
      %p384 = scmp.eq.s32.totalorder %s131, 1
      %p385 = por %p383, %p384
      %p386 = scmp.ne.s32.totalorder %s377, %s378
      %p387 = scmp.eq.s32.totalorder %s131, 0
      %p388 = por %p386, %p387
      %p389 = scmp.ne.s32.totalorder %s377, %s378
      %p390 = scmp.eq.s32.totalorder %s132, 1
      %p391 = por %p389, %p390
      %p393 = scmp.ne.s32.totalorder %s378, %s392
      %p394 = scmp.eq.s32.totalorder %s132, 0
      %p395 = por %p393, %p394
      %s397 = sadd.s32 %s396, 1
      %p400 = scmp.eq.s32.totalorder %s126, 1
      %p401 = scmp.ne.s32.totalorder %s396, %s398
      %p402 = scmp.eq.s32.totalorder %s126, 0
      %p403 = por %p401, %p402
      %p404 = scmp.ne.s32.totalorder %s396, %s398
      %p405 = scmp.eq.s32.totalorder %s131, 1
      %p406 = por %p404, %p405
      %p407 = scmp.ne.s32.totalorder %s398, %s399
      %p408 = scmp.eq.s32.totalorder %s131, 0
      %p409 = por %p407, %p408
      %p410 = scmp.ne.s32.totalorder %s398, %s399
      %p411 = scmp.eq.s32.totalorder %s132, 1
      %p412 = por %p410, %p411
      %p414 = scmp.ne.s32.totalorder %s399, %s413
      %p415 = scmp.eq.s32.totalorder %s132, 0
      %p416 = por %p414, %p415
      %s418 = sadd.s32 %s417, 1
      %p421 = scmp.eq.s32.totalorder %s126, 1
      %p422 = scmp.ne.s32.totalorder %s417, %s419
      %p423 = scmp.eq.s32.totalorder %s126, 0
      %p424 = por %p422, %p423
      %p425 = scmp.ne.s32.totalorder %s417, %s419
      %p426 = scmp.eq.s32.totalorder %s131, 1
      %p427 = por %p425, %p426
      %p428 = scmp.ne.s32.totalorder %s419, %s420
      %p429 = scmp.eq.s32.totalorder %s131, 0
      %p430 = por %p428, %p429
      %p431 = scmp.ne.s32.totalorder %s419, %s420
      %p432 = scmp.eq.s32.totalorder %s132, 1
      %p433 = por %p431, %p432
      %p435 = scmp.ne.s32.totalorder %s420, %s434
      %p436 = scmp.eq.s32.totalorder %s132, 0
      %p437 = por %p435, %p436
      %s439 = sadd.s32 %s438, 1
      %p442 = scmp.eq.s32.totalorder %s126, 1
      %p443 = scmp.ne.s32.totalorder %s438, %s440
      %p444 = scmp.eq.s32.totalorder %s126, 0
      %p445 = por %p443, %p444
      %p446 = scmp.ne.s32.totalorder %s438, %s440
      %p447 = scmp.eq.s32.totalorder %s131, 1
      %p448 = por %p446, %p447
      %p449 = scmp.ne.s32.totalorder %s440, %s441
      %p450 = scmp.eq.s32.totalorder %s131, 0
      %p451 = por %p449, %p450
      %p452 = scmp.ne.s32.totalorder %s440, %s441
      %p453 = scmp.eq.s32.totalorder %s132, 1
      %p454 = por %p452, %p453
      %p456 = scmp.ne.s32.totalorder %s441, %s455
      %p457 = scmp.eq.s32.totalorder %s132, 0
      %p458 = por %p456, %p457
      %s460 = sadd.s32 %s459, 1
      %p463 = scmp.eq.s32.totalorder %s126, 1
      %p464 = scmp.ne.s32.totalorder %s459, %s461
      %p465 = scmp.eq.s32.totalorder %s126, 0
      %p466 = por %p464, %p465
      %p467 = scmp.ne.s32.totalorder %s459, %s461
      %p468 = scmp.eq.s32.totalorder %s131, 1
      %p469 = por %p467, %p468
      %p470 = scmp.ne.s32.totalorder %s461, %s462
      %p471 = scmp.eq.s32.totalorder %s131, 0
      %p472 = por %p470, %p471
      %p473 = scmp.ne.s32.totalorder %s461, %s462
      %p474 = scmp.eq.s32.totalorder %s132, 1
      %p475 = por %p473, %p474
      %p477 = scmp.ne.s32.totalorder %s462, %s476
      %p478 = scmp.eq.s32.totalorder %s132, 0
      %p479 = por %p477, %p478
      %s481 = sadd.s32 %s480, 1
      %p484 = scmp.eq.s32.totalorder %s126, 1
      %p485 = scmp.ne.s32.totalorder %s480, %s482
      %p486 = scmp.eq.s32.totalorder %s126, 0
      %p487 = por %p485, %p486
      %p488 = scmp.ne.s32.totalorder %s480, %s482
      %p489 = scmp.eq.s32.totalorder %s131, 1
      %p490 = por %p488, %p489
      %p491 = scmp.ne.s32.totalorder %s482, %s483
      %p492 = scmp.eq.s32.totalorder %s131, 0
      %p493 = por %p491, %p492
      %p494 = scmp.ne.s32.totalorder %s482, %s483
      %p495 = scmp.eq.s32.totalorder %s132, 1
      %p496 = por %p494, %p495
      %p498 = scmp.ne.s32.totalorder %s483, %s497
      %p499 = scmp.eq.s32.totalorder %s132, 0
      %p500 = por %p498, %p499
      %s502 = sadd.s32 %s501, 1
      %p505 = scmp.eq.s32.totalorder %s126, 1
      %p506 = scmp.ne.s32.totalorder %s501, %s503
      %p507 = scmp.eq.s32.totalorder %s126, 0
      %p508 = por %p506, %p507
      %p509 = scmp.ne.s32.totalorder %s501, %s503
      %p510 = scmp.eq.s32.totalorder %s131, 1
      %p511 = por %p509, %p510
      %p512 = scmp.ne.s32.totalorder %s503, %s504
      %p513 = scmp.eq.s32.totalorder %s131, 0
      %p514 = por %p512, %p513
      %p515 = scmp.ne.s32.totalorder %s503, %s504
      %p516 = scmp.eq.s32.totalorder %s132, 1
      %p517 = por %p515, %p516
      %p519 = scmp.ne.s32.totalorder %s504, %s518
      %p520 = scmp.eq.s32.totalorder %s132, 0
      %p521 = por %p519, %p520
      %s523 = sadd.s32 %s522, 1
      %p526 = scmp.eq.s32.totalorder %s126, 1
      %p527 = scmp.ne.s32.totalorder %s522, %s524
      %p528 = scmp.eq.s32.totalorder %s126, 0
      %p529 = por %p527, %p528
      %p530 = scmp.ne.s32.totalorder %s522, %s524
      %p531 = scmp.eq.s32.totalorder %s131, 1
      %p532 = por %p530, %p531
      %p533 = scmp.ne.s32.totalorder %s524, %s525
      %p534 = scmp.eq.s32.totalorder %s131, 0
      %p535 = por %p533, %p534
      %p536 = scmp.ne.s32.totalorder %s524, %s525
      %p537 = scmp.eq.s32.totalorder %s132, 1
      %p538 = por %p536, %p537
      %p540 = scmp.ne.s32.totalorder %s525, %s539
      %p541 = scmp.eq.s32.totalorder %s132, 0
      %p542 = por %p540, %p541
      %s544 = sadd.s32 %s543, 1
      %p547 = scmp.eq.s32.totalorder %s126, 1
      %p548 = scmp.ne.s32.totalorder %s543, %s545
      %p549 = scmp.eq.s32.totalorder %s126, 0
      %p550 = por %p548, %p549
      %p551 = scmp.ne.s32.totalorder %s543, %s545
      %p552 = scmp.eq.s32.totalorder %s131, 1
      %p553 = por %p551, %p552
      %p554 = scmp.ne.s32.totalorder %s545, %s546
      %p555 = scmp.eq.s32.totalorder %s131, 0
      %p556 = por %p554, %p555
      %p557 = scmp.ne.s32.totalorder %s545, %s546
      %p558 = scmp.eq.s32.totalorder %s132, 1
      %p559 = por %p557, %p558
      %p561 = scmp.ne.s32.totalorder %s546, %s560
      %p562 = scmp.eq.s32.totalorder %s132, 0
      %p563 = por %p561, %p562
      %s565 = sadd.s32 %s564, 1
      %p568 = scmp.eq.s32.totalorder %s126, 1
      %p569 = scmp.ne.s32.totalorder %s564, %s566
      %p570 = scmp.eq.s32.totalorder %s126, 0
      %p571 = por %p569, %p570
      %p572 = scmp.ne.s32.totalorder %s564, %s566
      %p573 = scmp.eq.s32.totalorder %s131, 1
      %p574 = por %p572, %p573
      %p575 = scmp.ne.s32.totalorder %s566, %s567
      %p576 = scmp.eq.s32.totalorder %s131, 0
      %p577 = por %p575, %p576
      %p578 = scmp.ne.s32.totalorder %s566, %s567
      %p579 = scmp.eq.s32.totalorder %s132, 1
      %p580 = por %p578, %p579
      %p582 = scmp.ne.s32.totalorder %s567, %s581
      %p583 = scmp.eq.s32.totalorder %s132, 0
      %p584 = por %p582, %p583
      %s586 = sadd.s32 %s585, 1
      %p589 = scmp.eq.s32.totalorder %s126, 1
      %p590 = scmp.ne.s32.totalorder %s585, %s587
      %p591 = scmp.eq.s32.totalorder %s126, 0
      %p592 = por %p590, %p591
      %p593 = scmp.ne.s32.totalorder %s585, %s587
      %p594 = scmp.eq.s32.totalorder %s131, 1
      %p595 = por %p593, %p594
      %p596 = scmp.ne.s32.totalorder %s587, %s588
      %p597 = scmp.eq.s32.totalorder %s131, 0
      %p598 = por %p596, %p597
      %p599 = scmp.ne.s32.totalorder %s587, %s588
      %p600 = scmp.eq.s32.totalorder %s132, 1
      %p601 = por %p599, %p600
      %p603 = scmp.ne.s32.totalorder %s588, %s602
      %p604 = scmp.eq.s32.totalorder %s132, 0
      %p605 = por %p603, %p604
      %s607 = sadd.s32 %s606, 1
      %p610 = scmp.eq.s32.totalorder %s126, 1
      %p611 = scmp.ne.s32.totalorder %s606, %s608
      %p612 = scmp.eq.s32.totalorder %s126, 0
      %p613 = por %p611, %p612
      %p614 = scmp.ne.s32.totalorder %s606, %s608
      %p615 = scmp.eq.s32.totalorder %s131, 1
      %p616 = por %p614, %p615
      %p617 = scmp.ne.s32.totalorder %s608, %s609
      %p618 = scmp.eq.s32.totalorder %s131, 0
      %p619 = por %p617, %p618
      %p620 = scmp.ne.s32.totalorder %s608, %s609
      %p621 = scmp.eq.s32.totalorder %s132, 1
      %p622 = por %p620, %p621
      %p624 = scmp.ne.s32.totalorder %s609, %s623
      %p625 = scmp.eq.s32.totalorder %s132, 0
      %p626 = por %p624, %p625
      %s628 = sadd.s32 %s627, 1
      %p631 = scmp.eq.s32.totalorder %s126, 1
      %p632 = scmp.ne.s32.totalorder %s627, %s629
      %p633 = scmp.eq.s32.totalorder %s126, 0
      %p634 = por %p632, %p633
      %p635 = scmp.ne.s32.totalorder %s627, %s629
      %p636 = scmp.eq.s32.totalorder %s131, 1
      %p637 = por %p635, %p636
      %p638 = scmp.ne.s32.totalorder %s629, %s630
      %p639 = scmp.eq.s32.totalorder %s131, 0
      %p640 = por %p638, %p639
      %p641 = scmp.ne.s32.totalorder %s629, %s630
      %p642 = scmp.eq.s32.totalorder %s132, 1
      %p643 = por %p641, %p642
      %p645 = scmp.ne.s32.totalorder %s630, %s644
      %p646 = scmp.eq.s32.totalorder %s132, 0
      %p647 = por %p645, %p646
      %s649 = sadd.s32 %s648, 1
      %p652 = scmp.eq.s32.totalorder %s126, 1
      %p653 = scmp.ne.s32.totalorder %s648, %s650
      %p654 = scmp.eq.s32.totalorder %s126, 0
      %p655 = por %p653, %p654
      %p656 = scmp.ne.s32.totalorder %s648, %s650
      %p657 = scmp.eq.s32.totalorder %s131, 1
      %p658 = por %p656, %p657
      %p659 = scmp.ne.s32.totalorder %s650, %s651
      %p660 = scmp.eq.s32.totalorder %s131, 0
      %p661 = por %p659, %p660
      %p662 = scmp.ne.s32.totalorder %s650, %s651
      %p663 = scmp.eq.s32.totalorder %s132, 1
      %p664 = por %p662, %p663
      %p666 = scmp.ne.s32.totalorder %s651, %s665
      %p667 = scmp.eq.s32.totalorder %s132, 0
      %p668 = por %p666, %p667
      %s670 = sadd.s32 %s669, 1
      %p673 = scmp.eq.s32.totalorder %s126, 1
      %p674 = scmp.ne.s32.totalorder %s669, %s671
      %p675 = scmp.eq.s32.totalorder %s126, 0
      %p676 = por %p674, %p675
      %p677 = scmp.ne.s32.totalorder %s669, %s671
      %p678 = scmp.eq.s32.totalorder %s131, 1
      %p679 = por %p677, %p678
      %p680 = scmp.ne.s32.totalorder %s671, %s672
      %p681 = scmp.eq.s32.totalorder %s131, 0
      %p682 = por %p680, %p681
      %p683 = scmp.ne.s32.totalorder %s671, %s672
      %p684 = scmp.eq.s32.totalorder %s132, 1
      %p685 = por %p683, %p684
      %p687 = scmp.ne.s32.totalorder %s672, %s686
      %p688 = scmp.eq.s32.totalorder %s132, 0
      %p689 = por %p687, %p688
      %s691 = sadd.s32 %s690, 1
      %p694 = scmp.eq.s32.totalorder %s126, 1
      %p695 = scmp.ne.s32.totalorder %s690, %s692
      %p696 = scmp.eq.s32.totalorder %s126, 0
      %p697 = por %p695, %p696
      %p698 = scmp.ne.s32.totalorder %s690, %s692
      %p699 = scmp.eq.s32.totalorder %s131, 1
      %p700 = por %p698, %p699
      %p701 = scmp.ne.s32.totalorder %s692, %s693
      %p702 = scmp.eq.s32.totalorder %s131, 0
      %p703 = por %p701, %p702
      %p704 = scmp.ne.s32.totalorder %s692, %s693
      %p705 = scmp.eq.s32.totalorder %s132, 1
      %p706 = por %p704, %p705
      %p708 = scmp.ne.s32.totalorder %s693, %s707
      %p709 = scmp.eq.s32.totalorder %s132, 0
      %p710 = por %p708, %p709
      %s712 = sadd.s32 %s711, 1
      %p715 = scmp.eq.s32.totalorder %s126, 1
      %p716 = scmp.ne.s32.totalorder %s711, %s713
      %p717 = scmp.eq.s32.totalorder %s126, 0
      %p718 = por %p716, %p717
      %p719 = scmp.ne.s32.totalorder %s711, %s713
      %p720 = scmp.eq.s32.totalorder %s131, 1
      %p721 = por %p719, %p720
      %p722 = scmp.ne.s32.totalorder %s713, %s714
      %p723 = scmp.eq.s32.totalorder %s131, 0
      %p724 = por %p722, %p723
      %p725 = scmp.ne.s32.totalorder %s713, %s714
      %p726 = scmp.eq.s32.totalorder %s132, 1
      %p727 = por %p725, %p726
      %p729 = scmp.ne.s32.totalorder %s714, %s728
      %p730 = scmp.eq.s32.totalorder %s132, 0
      %p731 = por %p729, %p730
      %s733 = sadd.s32 %s732, 1
      %p736 = scmp.eq.s32.totalorder %s126, 1
      %p737 = scmp.ne.s32.totalorder %s732, %s734
      %p738 = scmp.eq.s32.totalorder %s126, 0
      %p739 = por %p737, %p738
      %p740 = scmp.ne.s32.totalorder %s732, %s734
      %p741 = scmp.eq.s32.totalorder %s131, 1
      %p742 = por %p740, %p741
      %p743 = scmp.ne.s32.totalorder %s734, %s735
      %p744 = scmp.eq.s32.totalorder %s131, 0
      %p745 = por %p743, %p744
      %p746 = scmp.ne.s32.totalorder %s734, %s735
      %p747 = scmp.eq.s32.totalorder %s132, 1
      %p748 = por %p746, %p747
      %p750 = scmp.ne.s32.totalorder %s735, %s749
      %p751 = scmp.eq.s32.totalorder %s132, 0
      %p752 = por %p750, %p751
      %s754 = sadd.s32 %s753, 1
      %p757 = scmp.eq.s32.totalorder %s126, 1
      %p758 = scmp.ne.s32.totalorder %s753, %s755
      %p759 = scmp.eq.s32.totalorder %s126, 0
      %p760 = por %p758, %p759
      %p761 = scmp.ne.s32.totalorder %s753, %s755
      %p762 = scmp.eq.s32.totalorder %s131, 1
      %p763 = por %p761, %p762
      %p764 = scmp.ne.s32.totalorder %s755, %s756
      %p765 = scmp.eq.s32.totalorder %s131, 0
      %p766 = por %p764, %p765
      %p767 = scmp.ne.s32.totalorder %s755, %s756
      %p768 = scmp.eq.s32.totalorder %s132, 1
      %p769 = por %p767, %p768
      %p771 = scmp.ne.s32.totalorder %s756, %s770
      %p772 = scmp.eq.s32.totalorder %s132, 0
      %p773 = por %p771, %p772
      %s775 = sadd.s32 %s774, 1
      %p778 = scmp.eq.s32.totalorder %s126, 1
      %p779 = scmp.ne.s32.totalorder %s774, %s776
      %p780 = scmp.eq.s32.totalorder %s126, 0
      %p781 = por %p779, %p780
      %p782 = scmp.ne.s32.totalorder %s774, %s776
      %p783 = scmp.eq.s32.totalorder %s131, 1
      %p784 = por %p782, %p783
      %p785 = scmp.ne.s32.totalorder %s776, %s777
      %p786 = scmp.eq.s32.totalorder %s131, 0
      %p787 = por %p785, %p786
      %p788 = scmp.ne.s32.totalorder %s776, %s777
      %p789 = scmp.eq.s32.totalorder %s132, 1
      %p790 = por %p788, %p789
      %p792 = scmp.ne.s32.totalorder %s777, %s791
      %p793 = scmp.eq.s32.totalorder %s132, 0
      %p794 = por %p792, %p793
      %s796 = sadd.s32 %s795, 1
      %p799 = scmp.eq.s32.totalorder %s126, 1
      %p800 = scmp.ne.s32.totalorder %s795, %s797
      %p801 = scmp.eq.s32.totalorder %s126, 0
      %p802 = por %p800, %p801
      %p803 = scmp.ne.s32.totalorder %s795, %s797
      %p804 = scmp.eq.s32.totalorder %s131, 1
      %p805 = por %p803, %p804
      %p806 = scmp.ne.s32.totalorder %s797, %s798
      %p807 = scmp.eq.s32.totalorder %s131, 0
      %p808 = por %p806, %p807
      %p809 = scmp.ne.s32.totalorder %s797, %s798
      %p810 = scmp.eq.s32.totalorder %s132, 1
      %p811 = por %p809, %p810
      %p813 = scmp.ne.s32.totalorder %s798, %s812
      %p814 = scmp.eq.s32.totalorder %s132, 0
      %p815 = por %p813, %p814
      %s817 = sadd.s32 %s816, 1
      %p820 = scmp.eq.s32.totalorder %s126, 1
      %p821 = scmp.ne.s32.totalorder %s816, %s818
      %p822 = scmp.eq.s32.totalorder %s126, 0
      %p823 = por %p821, %p822
      %p824 = scmp.ne.s32.totalorder %s816, %s818
      %p825 = scmp.eq.s32.totalorder %s131, 1
      %p826 = por %p824, %p825
      %p827 = scmp.ne.s32.totalorder %s818, %s819
      %p828 = scmp.eq.s32.totalorder %s131, 0
      %p829 = por %p827, %p828
      %p830 = scmp.ne.s32.totalorder %s818, %s819
      %p831 = scmp.eq.s32.totalorder %s132, 1
      %p832 = por %p830, %p831
      %p834 = scmp.ne.s32.totalorder %s819, %s833
      %p835 = scmp.eq.s32.totalorder %s132, 0
      %p836 = por %p834, %p835
      %s838 = sadd.s32 %s837, 1
      %p841 = scmp.eq.s32.totalorder %s126, 1
      %p842 = scmp.ne.s32.totalorder %s837, %s839
      %p843 = scmp.eq.s32.totalorder %s126, 0
      %p844 = por %p842, %p843
      %p845 = scmp.ne.s32.totalorder %s837, %s839
      %p846 = scmp.eq.s32.totalorder %s131, 1
      %p847 = por %p845, %p846
      %p848 = scmp.ne.s32.totalorder %s839, %s840
      %p849 = scmp.eq.s32.totalorder %s131, 0
      %p850 = por %p848, %p849
      %p851 = scmp.ne.s32.totalorder %s839, %s840
      %p852 = scmp.eq.s32.totalorder %s132, 1
      %p853 = por %p851, %p852
      %p855 = scmp.ne.s32.totalorder %s840, %s854
      %p856 = scmp.eq.s32.totalorder %s132, 0
      %p857 = por %p855, %p856
      %s859 = sadd.s32 %s858, 1
      %p862 = scmp.eq.s32.totalorder %s126, 1
      %p863 = scmp.ne.s32.totalorder %s858, %s860
      %p864 = scmp.eq.s32.totalorder %s126, 0
      %p865 = por %p863, %p864
      %p866 = scmp.ne.s32.totalorder %s858, %s860
      %p867 = scmp.eq.s32.totalorder %s131, 1
      %p868 = por %p866, %p867
      %p869 = scmp.ne.s32.totalorder %s860, %s861
      %p870 = scmp.eq.s32.totalorder %s131, 0
      %p871 = por %p869, %p870
      %p872 = scmp.ne.s32.totalorder %s860, %s861
      %p873 = scmp.eq.s32.totalorder %s132, 1
      %p874 = por %p872, %p873
      %p876 = scmp.ne.s32.totalorder %s861, %s875
      %p877 = scmp.eq.s32.totalorder %s132, 0
      %p878 = por %p876, %p877
      %s880 = sadd.s32 %s879, 1
      %p883 = scmp.eq.s32.totalorder %s126, 1
      %p884 = scmp.ne.s32.totalorder %s879, %s881
      %p885 = scmp.eq.s32.totalorder %s126, 0
      %p886 = por %p884, %p885
      %p887 = scmp.ne.s32.totalorder %s879, %s881
      %p888 = scmp.eq.s32.totalorder %s131, 1
      %p889 = por %p887, %p888
      %p890 = scmp.ne.s32.totalorder %s881, %s882
      %p891 = scmp.eq.s32.totalorder %s131, 0
      %p892 = por %p890, %p891
      %p893 = scmp.ne.s32.totalorder %s881, %s882
      %p894 = scmp.eq.s32.totalorder %s132, 1
      %p895 = por %p893, %p894
      %p897 = scmp.ne.s32.totalorder %s882, %s896
      %p898 = scmp.eq.s32.totalorder %s132, 0
      %p899 = por %p897, %p898
      %s901 = sadd.s32 %s900, 1
      %p904 = scmp.eq.s32.totalorder %s126, 1
      %p905 = scmp.ne.s32.totalorder %s900, %s902
      %p906 = scmp.eq.s32.totalorder %s126, 0
      %p907 = por %p905, %p906
      %p908 = scmp.ne.s32.totalorder %s900, %s902
      %p909 = scmp.eq.s32.totalorder %s131, 1
      %p910 = por %p908, %p909
      %p911 = scmp.ne.s32.totalorder %s902, %s903
      %p912 = scmp.eq.s32.totalorder %s131, 0
      %p913 = por %p911, %p912
      %p914 = scmp.ne.s32.totalorder %s902, %s903
      %p915 = scmp.eq.s32.totalorder %s132, 1
      %p916 = por %p914, %p915
      %p918 = scmp.ne.s32.totalorder %s903, %s917
      %p919 = scmp.eq.s32.totalorder %s132, 0
      %p920 = por %p918, %p919
      %s922 = sadd.s32 %s921, 1
      %p925 = scmp.eq.s32.totalorder %s126, 1
      %p926 = scmp.ne.s32.totalorder %s921, %s923
      %p927 = scmp.eq.s32.totalorder %s126, 0
      %p928 = por %p926, %p927
      %p929 = scmp.ne.s32.totalorder %s921, %s923
      %p930 = scmp.eq.s32.totalorder %s131, 1
      %p931 = por %p929, %p930
      %p932 = scmp.ne.s32.totalorder %s923, %s924
      %p933 = scmp.eq.s32.totalorder %s131, 0
      %p934 = por %p932, %p933
      %p935 = scmp.ne.s32.totalorder %s923, %s924
      %p936 = scmp.eq.s32.totalorder %s132, 1
      %p937 = por %p935, %p936
      %p939 = scmp.ne.s32.totalorder %s924, %s938
      %p940 = scmp.eq.s32.totalorder %s132, 0
      %p941 = por %p939, %p940
      %s943 = sadd.s32 %s942, 1
      %p946 = scmp.eq.s32.totalorder %s126, 1
      %p947 = scmp.ne.s32.totalorder %s942, %s944
      %p948 = scmp.eq.s32.totalorder %s126, 0
      %p949 = por %p947, %p948
      %p950 = scmp.ne.s32.totalorder %s942, %s944
      %p951 = scmp.eq.s32.totalorder %s131, 1
      %p952 = por %p950, %p951
      %p953 = scmp.ne.s32.totalorder %s944, %s945
      %p954 = scmp.eq.s32.totalorder %s131, 0
      %p955 = por %p953, %p954
      %p956 = scmp.ne.s32.totalorder %s944, %s945
      %p957 = scmp.eq.s32.totalorder %s132, 1
      %p958 = por %p956, %p957
      %p960 = scmp.ne.s32.totalorder %s945, %s959
      %p961 = scmp.eq.s32.totalorder %s132, 0
      %p962 = por %p960, %p961
      %s964 = sadd.s32 %s963, 1
      %p967 = scmp.eq.s32.totalorder %s126, 1
      %p968 = scmp.ne.s32.totalorder %s963, %s965
      %p969 = scmp.eq.s32.totalorder %s126, 0
      %p970 = por %p968, %p969
      %p971 = scmp.ne.s32.totalorder %s963, %s965
      %p972 = scmp.eq.s32.totalorder %s131, 1
      %p973 = por %p971, %p972
      %p974 = scmp.ne.s32.totalorder %s965, %s966
      %p975 = scmp.eq.s32.totalorder %s131, 0
      %p976 = por %p974, %p975
      %p977 = scmp.ne.s32.totalorder %s965, %s966
      %p978 = scmp.eq.s32.totalorder %s132, 1
      %p979 = por %p977, %p978
      %p981 = scmp.ne.s32.totalorder %s966, %s980
      %p982 = scmp.eq.s32.totalorder %s132, 0
      %p983 = por %p981, %p982
      %s985 = sadd.s32 %s984, 1
      %p988 = scmp.eq.s32.totalorder %s126, 1
      %p989 = scmp.ne.s32.totalorder %s984, %s986
      %p990 = scmp.eq.s32.totalorder %s126, 0
      %p991 = por %p989, %p990
      %p992 = scmp.ne.s32.totalorder %s984, %s986
      %p993 = scmp.eq.s32.totalorder %s131, 1
      %p994 = por %p992, %p993
      %p995 = scmp.ne.s32.totalorder %s986, %s987
      %p996 = scmp.eq.s32.totalorder %s131, 0
      %p997 = por %p995, %p996
      %p998 = scmp.ne.s32.totalorder %s986, %s987
      %p999 = scmp.eq.s32.totalorder %s132, 1
      %p1000 = por %p998, %p999
      %p1002 = scmp.ne.s32.totalorder %s987, %s1001
      %p1003 = scmp.eq.s32.totalorder %s132, 0
      %p1004 = por %p1002, %p1003
      %s1006 = sadd.s32 %s1005, 1
      %p1009 = scmp.eq.s32.totalorder %s126, 1
      %p1010 = scmp.ne.s32.totalorder %s1005, %s1007
      %p1011 = scmp.eq.s32.totalorder %s126, 0
      %p1012 = por %p1010, %p1011
      %p1013 = scmp.ne.s32.totalorder %s1005, %s1007
      %p1014 = scmp.eq.s32.totalorder %s131, 1
      %p1015 = por %p1013, %p1014
      %p1016 = scmp.ne.s32.totalorder %s1007, %s1008
      %p1017 = scmp.eq.s32.totalorder %s131, 0
      %p1018 = por %p1016, %p1017
      %p1019 = scmp.ne.s32.totalorder %s1007, %s1008
      %p1020 = scmp.eq.s32.totalorder %s132, 1
      %p1021 = por %p1019, %p1020
      %p1023 = scmp.ne.s32.totalorder %s1008, %s1022
      %p1024 = scmp.eq.s32.totalorder %s132, 0
      %p1025 = por %p1023, %p1024
      %s1027 = sadd.s32 %s1026, 1
      %p1030 = scmp.eq.s32.totalorder %s126, 1
      %p1031 = scmp.ne.s32.totalorder %s1026, %s1028
      %p1032 = scmp.eq.s32.totalorder %s126, 0
      %p1033 = por %p1031, %p1032
      %p1034 = scmp.ne.s32.totalorder %s1026, %s1028
      %p1035 = scmp.eq.s32.totalorder %s131, 1
      %p1036 = por %p1034, %p1035
      %p1037 = scmp.ne.s32.totalorder %s1028, %s1029
      %p1038 = scmp.eq.s32.totalorder %s131, 0
      %p1039 = por %p1037, %p1038
      %p1040 = scmp.ne.s32.totalorder %s1028, %s1029
      %p1041 = scmp.eq.s32.totalorder %s132, 1
      %p1042 = por %p1040, %p1041
      %p1044 = scmp.ne.s32.totalorder %s1029, %s1043
      %p1045 = scmp.eq.s32.totalorder %s132, 0
      %p1046 = por %p1044, %p1045
      %s1048 = sadd.s32 %s1047, 1
      %p1051 = scmp.eq.s32.totalorder %s126, 1
      %p1052 = scmp.ne.s32.totalorder %s1047, %s1049
      %p1053 = scmp.eq.s32.totalorder %s126, 0
      %p1054 = por %p1052, %p1053
      %p1055 = scmp.ne.s32.totalorder %s1047, %s1049
      %p1056 = scmp.eq.s32.totalorder %s131, 1
      %p1057 = por %p1055, %p1056
      %p1058 = scmp.ne.s32.totalorder %s1049, %s1050
      %p1059 = scmp.eq.s32.totalorder %s131, 0
      %p1060 = por %p1058, %p1059
      %p1061 = scmp.ne.s32.totalorder %s1049, %s1050
      %p1062 = scmp.eq.s32.totalorder %s132, 1
      %p1063 = por %p1061, %p1062
      %p1065 = scmp.ne.s32.totalorder %s1050, %s1064
      %p1066 = scmp.eq.s32.totalorder %s132, 0
      %p1067 = por %p1065, %p1066
      %s1069 = sadd.s32 %s1068, 1
      %p1072 = scmp.eq.s32.totalorder %s126, 1
      %p1073 = scmp.ne.s32.totalorder %s1068, %s1070
      %p1074 = scmp.eq.s32.totalorder %s126, 0
      %p1075 = por %p1073, %p1074
      %p1076 = scmp.ne.s32.totalorder %s1068, %s1070
      %p1077 = scmp.eq.s32.totalorder %s131, 1
      %p1078 = por %p1076, %p1077
      %p1079 = scmp.ne.s32.totalorder %s1070, %s1071
      %p1080 = scmp.eq.s32.totalorder %s131, 0
      %p1081 = por %p1079, %p1080
      %p1082 = scmp.ne.s32.totalorder %s1070, %s1071
      %p1083 = scmp.eq.s32.totalorder %s132, 1
      %p1084 = por %p1082, %p1083
      %p1086 = scmp.ne.s32.totalorder %s1071, %s1085
      %p1087 = scmp.eq.s32.totalorder %s132, 0
      %p1088 = por %p1086, %p1087
      %s1090 = sadd.s32 %s1089, 1
      %p1093 = scmp.eq.s32.totalorder %s126, 1
      %p1094 = scmp.ne.s32.totalorder %s1089, %s1091
      %p1095 = scmp.eq.s32.totalorder %s126, 0
      %p1096 = por %p1094, %p1095
      %p1097 = scmp.ne.s32.totalorder %s1089, %s1091
      %p1098 = scmp.eq.s32.totalorder %s131, 1
      %p1099 = por %p1097, %p1098
      %p1100 = scmp.ne.s32.totalorder %s1091, %s1092
      %p1101 = scmp.eq.s32.totalorder %s131, 0
      %p1102 = por %p1100, %p1101
      %p1103 = scmp.ne.s32.totalorder %s1091, %s1092
      %p1104 = scmp.eq.s32.totalorder %s132, 1
      %p1105 = por %p1103, %p1104
      %p1107 = scmp.ne.s32.totalorder %s1092, %s1106
      %p1108 = scmp.eq.s32.totalorder %s132, 0
      %p1109 = por %p1107, %p1108
      %s1111 = sadd.s32 %s1110, 1
      %p1114 = scmp.eq.s32.totalorder %s126, 1
      %p1115 = scmp.ne.s32.totalorder %s1110, %s1112
      %p1116 = scmp.eq.s32.totalorder %s126, 0
      %p1117 = por %p1115, %p1116
      %p1118 = scmp.ne.s32.totalorder %s1110, %s1112
      %p1119 = scmp.eq.s32.totalorder %s131, 1
      %p1120 = por %p1118, %p1119
      %p1121 = scmp.ne.s32.totalorder %s1112, %s1113
      %p1122 = scmp.eq.s32.totalorder %s131, 0
      %p1123 = por %p1121, %p1122
      %p1124 = scmp.ne.s32.totalorder %s1112, %s1113
      %p1125 = scmp.eq.s32.totalorder %s132, 1
      %p1126 = por %p1124, %p1125
      %p1128 = scmp.ne.s32.totalorder %s1113, %s1127
      %p1129 = scmp.eq.s32.totalorder %s132, 0
      %p1130 = por %p1128, %p1129
      %s1132 = sadd.s32 %s1131, 1
      %p1135 = scmp.eq.s32.totalorder %s126, 1
      %p1136 = scmp.ne.s32.totalorder %s1131, %s1133
      %p1137 = scmp.eq.s32.totalorder %s126, 0
      %p1138 = por %p1136, %p1137
      %p1139 = scmp.ne.s32.totalorder %s1131, %s1133
      %p1140 = scmp.eq.s32.totalorder %s131, 1
      %p1141 = por %p1139, %p1140
      %p1142 = scmp.ne.s32.totalorder %s1133, %s1134
      %p1143 = scmp.eq.s32.totalorder %s131, 0
      %p1144 = por %p1142, %p1143
      %p1145 = scmp.ne.s32.totalorder %s1133, %s1134
      %p1146 = scmp.eq.s32.totalorder %s132, 1
      %p1147 = por %p1145, %p1146
      %p1149 = scmp.ne.s32.totalorder %s1134, %s1148
      %p1150 = scmp.eq.s32.totalorder %s132, 0
      %p1151 = por %p1149, %p1150
      %s1153 = sadd.s32 %s1152, 1
      %p1156 = scmp.eq.s32.totalorder %s126, 1
      %p1157 = scmp.ne.s32.totalorder %s1152, %s1154
      %p1158 = scmp.eq.s32.totalorder %s126, 0
      %p1159 = por %p1157, %p1158
      %p1160 = scmp.ne.s32.totalorder %s1152, %s1154
      %p1161 = scmp.eq.s32.totalorder %s131, 1
      %p1162 = por %p1160, %p1161
      %p1163 = scmp.ne.s32.totalorder %s1154, %s1155
      %p1164 = scmp.eq.s32.totalorder %s131, 0
      %p1165 = por %p1163, %p1164
      %p1166 = scmp.ne.s32.totalorder %s1154, %s1155
      %p1167 = scmp.eq.s32.totalorder %s132, 1
      %p1168 = por %p1166, %p1167
      %p1170 = scmp.ne.s32.totalorder %s1155, %s1169
      %p1171 = scmp.eq.s32.totalorder %s132, 0
      %p1172 = por %p1170, %p1171
      %s1174 = sadd.s32 %s1173, 1
      %p1177 = scmp.eq.s32.totalorder %s126, 1
      %p1178 = scmp.ne.s32.totalorder %s1173, %s1175
      %p1179 = scmp.eq.s32.totalorder %s126, 0
      %p1180 = por %p1178, %p1179
      %p1181 = scmp.ne.s32.totalorder %s1173, %s1175
      %p1182 = scmp.eq.s32.totalorder %s131, 1
      %p1183 = por %p1181, %p1182
      %p1184 = scmp.ne.s32.totalorder %s1175, %s1176
      %p1185 = scmp.eq.s32.totalorder %s131, 0
      %p1186 = por %p1184, %p1185
      %p1187 = scmp.ne.s32.totalorder %s1175, %s1176
      %p1188 = scmp.eq.s32.totalorder %s132, 1
      %p1189 = por %p1187, %p1188
      %p1191 = scmp.ne.s32.totalorder %s1176, %s1190
      %p1192 = scmp.eq.s32.totalorder %s132, 0
      %p1193 = por %p1191, %p1192
      %s1195 = sadd.s32 %s1194, 1
      %p1198 = scmp.eq.s32.totalorder %s126, 1
      %p1199 = scmp.ne.s32.totalorder %s1194, %s1196
      %p1200 = scmp.eq.s32.totalorder %s126, 0
      %p1201 = por %p1199, %p1200
      %p1202 = scmp.ne.s32.totalorder %s1194, %s1196
      %p1203 = scmp.eq.s32.totalorder %s131, 1
      %p1204 = por %p1202, %p1203
      %p1205 = scmp.ne.s32.totalorder %s1196, %s1197
      %p1206 = scmp.eq.s32.totalorder %s131, 0
      %p1207 = por %p1205, %p1206
      %p1208 = scmp.ne.s32.totalorder %s1196, %s1197
      %p1209 = scmp.eq.s32.totalorder %s132, 1
      %p1210 = por %p1208, %p1209
      %p1212 = scmp.ne.s32.totalorder %s1197, %s1211
      %p1213 = scmp.eq.s32.totalorder %s132, 0
      %p1214 = por %p1212, %p1213
      %s1216 = sadd.s32 %s1215, 1
      %p1219 = scmp.eq.s32.totalorder %s126, 1
      %p1220 = scmp.ne.s32.totalorder %s1215, %s1217
      %p1221 = scmp.eq.s32.totalorder %s126, 0
      %p1222 = por %p1220, %p1221
      %p1223 = scmp.ne.s32.totalorder %s1215, %s1217
      %p1224 = scmp.eq.s32.totalorder %s131, 1
      %p1225 = por %p1223, %p1224
      %p1226 = scmp.ne.s32.totalorder %s1217, %s1218
      %p1227 = scmp.eq.s32.totalorder %s131, 0
      %p1228 = por %p1226, %p1227
      %p1229 = scmp.ne.s32.totalorder %s1217, %s1218
      %p1230 = scmp.eq.s32.totalorder %s132, 1
      %p1231 = por %p1229, %p1230
      %p1233 = scmp.ne.s32.totalorder %s1218, %s1232
      %p1234 = scmp.eq.s32.totalorder %s132, 0
      %p1235 = por %p1233, %p1234
      %s1237 = sadd.s32 %s1236, 1
      %p1240 = scmp.eq.s32.totalorder %s126, 1
      %p1241 = scmp.ne.s32.totalorder %s1236, %s1238
      %p1242 = scmp.eq.s32.totalorder %s126, 0
      %p1243 = por %p1241, %p1242
      %p1244 = scmp.ne.s32.totalorder %s1236, %s1238
      %p1245 = scmp.eq.s32.totalorder %s131, 1
      %p1246 = por %p1244, %p1245
      %p1247 = scmp.ne.s32.totalorder %s1238, %s1239
      %p1248 = scmp.eq.s32.totalorder %s131, 0
      %p1249 = por %p1247, %p1248
      %p1250 = scmp.ne.s32.totalorder %s1238, %s1239
      %p1251 = scmp.eq.s32.totalorder %s132, 1
      %p1252 = por %p1250, %p1251
      %p1254 = scmp.ne.s32.totalorder %s1239, %s1253
      %p1255 = scmp.eq.s32.totalorder %s132, 0
      %p1256 = por %p1254, %p1255
      %s1258 = sadd.s32 %s1257, 1
      %p1261 = scmp.eq.s32.totalorder %s126, 1
      %p1262 = scmp.ne.s32.totalorder %s1257, %s1259
      %p1263 = scmp.eq.s32.totalorder %s126, 0
      %p1264 = por %p1262, %p1263
      %p1265 = scmp.ne.s32.totalorder %s1257, %s1259
      %p1266 = scmp.eq.s32.totalorder %s131, 1
      %p1267 = por %p1265, %p1266
      %p1268 = scmp.ne.s32.totalorder %s1259, %s1260
      %p1269 = scmp.eq.s32.totalorder %s131, 0
      %p1270 = por %p1268, %p1269
      %p1271 = scmp.ne.s32.totalorder %s1259, %s1260
      %p1272 = scmp.eq.s32.totalorder %s132, 1
      %p1273 = por %p1271, %p1272
      %p1275 = scmp.ne.s32.totalorder %s1260, %s1274
      %p1276 = scmp.eq.s32.totalorder %s132, 0
      %p1277 = por %p1275, %p1276
      %s1278 = ssub.s32 %s126, %s133
      %p1279 = scmp.eq.s32.totalorder %s1278, 0
      %s1281 = sadd.s32 %s1280, 1
      %s1282 = scalar_select %p1279, %s1280, %s1281
      %p1285 = pneg %p1279
      %p1286 = scmp.eq.s32.totalorder %s126, 1
      %p1287 = por %p1285, %p1286
      %p1288 = scmp.ne.s32.totalorder %s1280, %s1283
      %p1289 = scmp.eq.s32.totalorder %s126, 0
      %p1290 = por %p1288, %p1289
      %p1291 = scmp.ne.s32.totalorder %s1280, %s1283
      %p1292 = scmp.eq.s32.totalorder %s131, 1
      %p1293 = por %p1291, %p1292
      %p1294 = scmp.ne.s32.totalorder %s1283, %s1284
      %p1295 = scmp.eq.s32.totalorder %s131, 0
      %p1296 = por %p1294, %p1295
      %p1297 = scmp.ne.s32.totalorder %s1283, %s1284
      %p1298 = scmp.eq.s32.totalorder %s132, 1
      %p1299 = por %p1297, %p1298
      %p1301 = scmp.ne.s32.totalorder %s1284, %s1300
      %p1302 = scmp.eq.s32.totalorder %s132, 0
      %p1303 = por %p1301, %p1302
      %p1304 = scmp.le.s32.totalorder 1, %s126
      %p1305 = scmp.lt.s32.totalorder %s126, 3
      %p1306 = pnand %p1304, %p1305
      %p1307 = pneg %p1306
      // Predicated region
      $region9: #{tpu_custom_call.1} parent=5 // pred_check
        _
      $region10: #{tpu_custom_call.1} parent=5 // pred_check_branch
        %1309 = sbr.rel (%p1306) target = $region12
      $region11: #{tpu_custom_call.1} parent=5 // pred_region
        %s1310 = ssub.s32 %s126, 1
        // Predicated region
        $region13: #{tpu_custom_call.1} parent=11 // pred_check
          %p1311 = pneg %p199
        $region14: #{tpu_custom_call.1} parent=11 // pred_check_branch
          %1313 = sbr.rel (%p1311) target = $region16
        $region15: #{tpu_custom_call.1} parent=11 // pred_region
          %s1315 = ssub.s32 256, 256
          %1316 = vsyncadd [#allocation6], %s1315
          %s1317 = sshll.u32 [#allocation5], 4
          %s1318 = int_to_ptr.vmem [resolvable:$true] %s1317
          %1323 = dma.hbm_to_vmem [thread:$0]  %s5, 256, %s1318, [#allocation6], 128, 128, 8
        $region16: #{tpu_custom_call.1} parent=11 // pred_fallthru
          _
        // Predicated region
        $region17: #{tpu_custom_call.1} parent=11 // pred_check
          %p1324 = pneg %p220
        $region18: #{tpu_custom_call.1} parent=11 // pred_check_branch
          %1326 = sbr.rel (%p1324) target = $region20
        $region19: #{tpu_custom_call.1} parent=11 // pred_region
          _
        $region20: #{tpu_custom_call.1} parent=11 // pred_fallthru
          _
        // Predicated region
        $region21: #{tpu_custom_call.1} parent=11 // pred_check
          %p1327 = pneg %p241
        $region22: #{tpu_custom_call.1} parent=11 // pred_check_branch
          %1329 = sbr.rel (%p1327) target = $region24
        $region23: #{tpu_custom_call.1} parent=11 // pred_region
          _
        $region24: #{tpu_custom_call.1} parent=11 // pred_fallthru
          _
        // Predicated region
        $region25: #{tpu_custom_call.1} parent=11 // pred_check
          %p1330 = pneg %p262
        $region26: #{tpu_custom_call.1} parent=11 // pred_check_branch
          %1332 = sbr.rel (%p1330) target = $region28
        $region27: #{tpu_custom_call.1} parent=11 // pred_region
          _
        $region28: #{tpu_custom_call.1} parent=11 // pred_fallthru
          _
        // Predicated region
        $region29: #{tpu_custom_call.1} parent=11 // pred_check
          %p1333 = pneg %p283
        $region30: #{tpu_custom_call.1} parent=11 // pred_check_branch
          %1335 = sbr.rel (%p1333) target = $region32
        $region31: #{tpu_custom_call.1} parent=11 // pred_region
          %s1337 = ssub.s32 512, 512
          %1338 = vsyncadd [#allocation6], %s1337
          %s1339 = sshll.u32 [#allocation7], 4
          %s1340 = int_to_ptr.vmem [resolvable:$true] %s1339
          %1345 = dma.hbm_to_vmem [thread:$0]  %s13, 512, %s1340, [#allocation6], 128, 128, 8
        $region32: #{tpu_custom_call.1} parent=11 // pred_fallthru
          _
        // Predicated region
        $region33: #{tpu_custom_call.1} parent=11 // pred_check
          %p1346 = pneg %p304
        $region34: #{tpu_custom_call.1} parent=11 // pred_check_branch
          %1348 = sbr.rel (%p1346) target = $region36
        $region35: #{tpu_custom_call.1} parent=11 // pred_region
          _
        $region36: #{tpu_custom_call.1} parent=11 // pred_fallthru
          _
        // Predicated region
        $region37: #{tpu_custom_call.1} parent=11 // pred_check
          %p1349 = pneg %p325
        $region38: #{tpu_custom_call.1} parent=11 // pred_check_branch
          %1351 = sbr.rel (%p1349) target = $region40
        $region39: #{tpu_custom_call.1} parent=11 // pred_region
          _
        $region40: #{tpu_custom_call.1} parent=11 // pred_fallthru
          _
        // Predicated region
        $region41: #{tpu_custom_call.1} parent=11 // pred_check
          %p1352 = pneg %p346
        $region42: #{tpu_custom_call.1} parent=11 // pred_check_branch
          %1354 = sbr.rel (%p1352) target = $region44
        $region43: #{tpu_custom_call.1} parent=11 // pred_region
          _
        $region44: #{tpu_custom_call.1} parent=11 // pred_fallthru
          _
        // Predicated region
        $region45: #{tpu_custom_call.1} parent=11 // pred_check
          %p1355 = pneg %p367
        $region46: #{tpu_custom_call.1} parent=11 // pred_check_branch
          %1357 = sbr.rel (%p1355) target = $region48
        $region47: #{tpu_custom_call.1} parent=11 // pred_region
          _
        $region48: #{tpu_custom_call.1} parent=11 // pred_fallthru
          _
        // Predicated region
        $region49: #{tpu_custom_call.1} parent=11 // pred_check
          %p1358 = pneg %p388
        $region50: #{tpu_custom_call.1} parent=11 // pred_check_branch
          %1360 = sbr.rel (%p1358) target = $region52
        $region51: #{tpu_custom_call.1} parent=11 // pred_region
          %s1362 = ssub.s32 512, 512
          %1363 = vsyncadd [#allocation9], %s1362
          %s1364 = sshll.u32 [#allocation8], 4
          %s1365 = int_to_ptr.vmem [resolvable:$true] %s1364
          %1370 = dma.hbm_to_vmem [thread:$0]  %s23, 512, %s1365, [#allocation9], 128, 128, 8
        $region52: #{tpu_custom_call.1} parent=11 // pred_fallthru
          _
        // Predicated region
        $region53: #{tpu_custom_call.1} parent=11 // pred_check
          %p1371 = pneg %p409
        $region54: #{tpu_custom_call.1} parent=11 // pred_check_branch
          %1373 = sbr.rel (%p1371) target = $region56
        $region55: #{tpu_custom_call.1} parent=11 // pred_region
          _
        $region56: #{tpu_custom_call.1} parent=11 // pred_fallthru
          _
        // Predicated region
        $region57: #{tpu_custom_call.1} parent=11 // pred_check
          %p1374 = pneg %p430
        $region58: #{tpu_custom_call.1} parent=11 // pred_check_branch
          %1376 = sbr.rel (%p1374) target = $region60
        $region59: #{tpu_custom_call.1} parent=11 // pred_region
          _
        $region60: #{tpu_custom_call.1} parent=11 // pred_fallthru
          _
        // Predicated region
        $region61: #{tpu_custom_call.1} parent=11 // pred_check
          %p1377 = pneg %p451
        $region62: #{tpu_custom_call.1} parent=11 // pred_check_branch
          %1379 = sbr.rel (%p1377) target = $region64
        $region63: #{tpu_custom_call.1} parent=11 // pred_region
          _
        $region64: #{tpu_custom_call.1} parent=11 // pred_fallthru
          _
        // Predicated region
        $region65: #{tpu_custom_call.1} parent=11 // pred_check
          %p1380 = pneg %p472
        $region66: #{tpu_custom_call.1} parent=11 // pred_check_branch
          %1382 = sbr.rel (%p1380) target = $region68
        $region67: #{tpu_custom_call.1} parent=11 // pred_region
          %s1384 = ssub.s32 256, 256
          %1385 = vsyncadd [#allocation9], %s1384
          %s1386 = sshll.u32 [#allocation10], 4
          %s1387 = int_to_ptr.vmem [resolvable:$true] %s1386
          %1392 = dma.hbm_to_vmem [thread:$0]  %s31, 256, %s1387, [#allocation9], 128, 128, 8
        $region68: #{tpu_custom_call.1} parent=11 // pred_fallthru
          _
        // Predicated region
        $region69: #{tpu_custom_call.1} parent=11 // pred_check
          %p1393 = pneg %p493
        $region70: #{tpu_custom_call.1} parent=11 // pred_check_branch
          %1395 = sbr.rel (%p1393) target = $region72
        $region71: #{tpu_custom_call.1} parent=11 // pred_region
          _
        $region72: #{tpu_custom_call.1} parent=11 // pred_fallthru
          _
        // Predicated region
        $region73: #{tpu_custom_call.1} parent=11 // pred_check
          %p1396 = pneg %p514
        $region74: #{tpu_custom_call.1} parent=11 // pred_check_branch
          %1398 = sbr.rel (%p1396) target = $region76
        $region75: #{tpu_custom_call.1} parent=11 // pred_region
          _
        $region76: #{tpu_custom_call.1} parent=11 // pred_fallthru
          _
        // Predicated region
        $region77: #{tpu_custom_call.1} parent=11 // pred_check
          %p1399 = pneg %p535
        $region78: #{tpu_custom_call.1} parent=11 // pred_check_branch
          %1401 = sbr.rel (%p1399) target = $region80
        $region79: #{tpu_custom_call.1} parent=11 // pred_region
          %s1403 = ssub.s32 256, 256
          %1404 = vsyncadd [#allocation12], %s1403
          %s1405 = sshll.u32 [#allocation11], 4
          %s1406 = int_to_ptr.vmem [resolvable:$true] %s1405
          %1411 = dma.hbm_to_vmem [thread:$0]  %s37, 256, %s1406, [#allocation12], 128, 128, 8
        $region80: #{tpu_custom_call.1} parent=11 // pred_fallthru
          _
        // Predicated region
        $region81: #{tpu_custom_call.1} parent=11 // pred_check
          %p1412 = pneg %p556
        $region82: #{tpu_custom_call.1} parent=11 // pred_check_branch
          %1414 = sbr.rel (%p1412) target = $region84
        $region83: #{tpu_custom_call.1} parent=11 // pred_region
          _
        $region84: #{tpu_custom_call.1} parent=11 // pred_fallthru
          _
        // Predicated region
        $region85: #{tpu_custom_call.1} parent=11 // pred_check
          %p1415 = pneg %p577
        $region86: #{tpu_custom_call.1} parent=11 // pred_check_branch
          %1417 = sbr.rel (%p1415) target = $region88
        $region87: #{tpu_custom_call.1} parent=11 // pred_region
          _
        $region88: #{tpu_custom_call.1} parent=11 // pred_fallthru
          _
        // Predicated region
        $region89: #{tpu_custom_call.1} parent=11 // pred_check
          %p1418 = pneg %p598
        $region90: #{tpu_custom_call.1} parent=11 // pred_check_branch
          %1420 = sbr.rel (%p1418) target = $region92
        $region91: #{tpu_custom_call.1} parent=11 // pred_region
          _
        $region92: #{tpu_custom_call.1} parent=11 // pred_fallthru
          _
        // Predicated region
        $region93: #{tpu_custom_call.1} parent=11 // pred_check
          %p1421 = pneg %p619
        $region94: #{tpu_custom_call.1} parent=11 // pred_check_branch
          %1423 = sbr.rel (%p1421) target = $region96
        $region95: #{tpu_custom_call.1} parent=11 // pred_region
          %s1425 = ssub.s32 256, 256
          %1426 = vsyncadd [#allocation12], %s1425
          %s1427 = sshll.u32 [#allocation13], 4
          %s1428 = int_to_ptr.vmem [resolvable:$true] %s1427
          %1433 = dma.hbm_to_vmem [thread:$0]  %s45, 256, %s1428, [#allocation12], 128, 128, 8
        $region96: #{tpu_custom_call.1} parent=11 // pred_fallthru
          _
        // Predicated region
        $region97: #{tpu_custom_call.1} parent=11 // pred_check
          %p1434 = pneg %p640
        $region98: #{tpu_custom_call.1} parent=11 // pred_check_branch
          %1436 = sbr.rel (%p1434) target = $region100
        $region99: #{tpu_custom_call.1} parent=11 // pred_region
          _
        $region100: #{tpu_custom_call.1} parent=11 // pred_fallthru
          _
        // Predicated region
        $region101: #{tpu_custom_call.1} parent=11 // pred_check
          %p1437 = pneg %p661
        $region102: #{tpu_custom_call.1} parent=11 // pred_check_branch
          %1439 = sbr.rel (%p1437) target = $region104
        $region103: #{tpu_custom_call.1} parent=11 // pred_region
          _
        $region104: #{tpu_custom_call.1} parent=11 // pred_fallthru
          _
        // Predicated region
        $region105: #{tpu_custom_call.1} parent=11 // pred_check
          %p1440 = pneg %p682
        $region106: #{tpu_custom_call.1} parent=11 // pred_check_branch
          %1442 = sbr.rel (%p1440) target = $region108
        $region107: #{tpu_custom_call.1} parent=11 // pred_region
          _
        $region108: #{tpu_custom_call.1} parent=11 // pred_fallthru
          _
        // Predicated region
        $region109: #{tpu_custom_call.1} parent=11 // pred_check
          %p1443 = pneg %p703
        $region110: #{tpu_custom_call.1} parent=11 // pred_check_branch
          %1445 = sbr.rel (%p1443) target = $region112
        $region111: #{tpu_custom_call.1} parent=11 // pred_region
          %s1447 = ssub.s32 256, 256
          %1448 = vsyncadd [#allocation15], %s1447
          %s1449 = sshll.u32 [#allocation14], 4
          %s1450 = int_to_ptr.vmem [resolvable:$true] %s1449
          %1455 = dma.hbm_to_vmem [thread:$0]  %s53, 256, %s1450, [#allocation15], 128, 128, 8
        $region112: #{tpu_custom_call.1} parent=11 // pred_fallthru
          _
        // Predicated region
        $region113: #{tpu_custom_call.1} parent=11 // pred_check
          %p1456 = pneg %p724
        $region114: #{tpu_custom_call.1} parent=11 // pred_check_branch
          %1458 = sbr.rel (%p1456) target = $region116
        $region115: #{tpu_custom_call.1} parent=11 // pred_region
          _
        $region116: #{tpu_custom_call.1} parent=11 // pred_fallthru
          _
        // Predicated region
        $region117: #{tpu_custom_call.1} parent=11 // pred_check
          %p1459 = pneg %p745
        $region118: #{tpu_custom_call.1} parent=11 // pred_check_branch
          %1461 = sbr.rel (%p1459) target = $region120
        $region119: #{tpu_custom_call.1} parent=11 // pred_region
          _
        $region120: #{tpu_custom_call.1} parent=11 // pred_fallthru
          _
        // Predicated region
        $region121: #{tpu_custom_call.1} parent=11 // pred_check
          %p1462 = pneg %p766
        $region122: #{tpu_custom_call.1} parent=11 // pred_check_branch
          %1464 = sbr.rel (%p1462) target = $region124
        $region123: #{tpu_custom_call.1} parent=11 // pred_region
          _
        $region124: #{tpu_custom_call.1} parent=11 // pred_fallthru
          _
        // Predicated region
        $region125: #{tpu_custom_call.1} parent=11 // pred_check
          %p1465 = pneg %p787
        $region126: #{tpu_custom_call.1} parent=11 // pred_check_branch
          %1467 = sbr.rel (%p1465) target = $region128
        $region127: #{tpu_custom_call.1} parent=11 // pred_region
          %s1469 = ssub.s32 256, 256
          %1470 = vsyncadd [#allocation15], %s1469
          %s1471 = sshll.u32 [#allocation16], 4
          %s1472 = int_to_ptr.vmem [resolvable:$true] %s1471
          %1477 = dma.hbm_to_vmem [thread:$0]  %s61, 256, %s1472, [#allocation15], 128, 128, 8
        $region128: #{tpu_custom_call.1} parent=11 // pred_fallthru
          _
        // Predicated region
        $region129: #{tpu_custom_call.1} parent=11 // pred_check
          %p1478 = pneg %p808
        $region130: #{tpu_custom_call.1} parent=11 // pred_check_branch
          %1480 = sbr.rel (%p1478) target = $region132
        $region131: #{tpu_custom_call.1} parent=11 // pred_region
          _
        $region132: #{tpu_custom_call.1} parent=11 // pred_fallthru
          _
        // Predicated region
        $region133: #{tpu_custom_call.1} parent=11 // pred_check
          %p1481 = pneg %p829
        $region134: #{tpu_custom_call.1} parent=11 // pred_check_branch
          %1483 = sbr.rel (%p1481) target = $region136
        $region135: #{tpu_custom_call.1} parent=11 // pred_region
          _
        $region136: #{tpu_custom_call.1} parent=11 // pred_fallthru
          _
        // Predicated region
        $region137: #{tpu_custom_call.1} parent=11 // pred_check
          %p1484 = pneg %p850
        $region138: #{tpu_custom_call.1} parent=11 // pred_check_branch
          %1486 = sbr.rel (%p1484) target = $region140
        $region139: #{tpu_custom_call.1} parent=11 // pred_region
          _
        $region140: #{tpu_custom_call.1} parent=11 // pred_fallthru
          _
        // Predicated region
        $region141: #{tpu_custom_call.1} parent=11 // pred_check
          %p1487 = pneg %p871
        $region142: #{tpu_custom_call.1} parent=11 // pred_check_branch
          %1489 = sbr.rel (%p1487) target = $region144
        $region143: #{tpu_custom_call.1} parent=11 // pred_region
          _
        $region144: #{tpu_custom_call.1} parent=11 // pred_fallthru
          _
        // Predicated region
        $region145: #{tpu_custom_call.1} parent=11 // pred_check
          %p1490 = pneg %p892
        $region146: #{tpu_custom_call.1} parent=11 // pred_check_branch
          %1492 = sbr.rel (%p1490) target = $region148
        $region147: #{tpu_custom_call.1} parent=11 // pred_region
          _
        $region148: #{tpu_custom_call.1} parent=11 // pred_fallthru
          _
        // Predicated region
        $region149: #{tpu_custom_call.1} parent=11 // pred_check
          %p1493 = pneg %p913
        $region150: #{tpu_custom_call.1} parent=11 // pred_check_branch
          %1495 = sbr.rel (%p1493) target = $region152
        $region151: #{tpu_custom_call.1} parent=11 // pred_region
          _
        $region152: #{tpu_custom_call.1} parent=11 // pred_fallthru
          _
        // Predicated region
        $region153: #{tpu_custom_call.1} parent=11 // pred_check
          %p1496 = pneg %p934
        $region154: #{tpu_custom_call.1} parent=11 // pred_check_branch
          %1498 = sbr.rel (%p1496) target = $region156
        $region155: #{tpu_custom_call.1} parent=11 // pred_region
          _
        $region156: #{tpu_custom_call.1} parent=11 // pred_fallthru
          _
        // Predicated region
        $region157: #{tpu_custom_call.1} parent=11 // pred_check
          %p1499 = pneg %p955
        $region158: #{tpu_custom_call.1} parent=11 // pred_check_branch
          %1501 = sbr.rel (%p1499) target = $region160
        $region159: #{tpu_custom_call.1} parent=11 // pred_region
          _
        $region160: #{tpu_custom_call.1} parent=11 // pred_fallthru
          _
        // Predicated region
        $region161: #{tpu_custom_call.1} parent=11 // pred_check
          %p1502 = pneg %p976
        $region162: #{tpu_custom_call.1} parent=11 // pred_check_branch
          %1504 = sbr.rel (%p1502) target = $region164
        $region163: #{tpu_custom_call.1} parent=11 // pred_region
          _
        $region164: #{tpu_custom_call.1} parent=11 // pred_fallthru
          _
        // Predicated region
        $region165: #{tpu_custom_call.1} parent=11 // pred_check
          %p1505 = pneg %p997
        $region166: #{tpu_custom_call.1} parent=11 // pred_check_branch
          %1507 = sbr.rel (%p1505) target = $region168
        $region167: #{tpu_custom_call.1} parent=11 // pred_region
          _
        $region168: #{tpu_custom_call.1} parent=11 // pred_fallthru
          _
        // Predicated region
        $region169: #{tpu_custom_call.1} parent=11 // pred_check
          %p1508 = pneg %p1018
        $region170: #{tpu_custom_call.1} parent=11 // pred_check_branch
          %1510 = sbr.rel (%p1508) target = $region172
        $region171: #{tpu_custom_call.1} parent=11 // pred_region
          _
        $region172: #{tpu_custom_call.1} parent=11 // pred_fallthru
          _
        // Predicated region
        $region173: #{tpu_custom_call.1} parent=11 // pred_check
          %p1511 = pneg %p1039
        $region174: #{tpu_custom_call.1} parent=11 // pred_check_branch
          %1513 = sbr.rel (%p1511) target = $region176
        $region175: #{tpu_custom_call.1} parent=11 // pred_region
          _
        $region176: #{tpu_custom_call.1} parent=11 // pred_fallthru
          _
        // Predicated region
        $region177: #{tpu_custom_call.1} parent=11 // pred_check
          %p1514 = pneg %p1060
        $region178: #{tpu_custom_call.1} parent=11 // pred_check_branch
          %1516 = sbr.rel (%p1514) target = $region180
        $region179: #{tpu_custom_call.1} parent=11 // pred_region
          _
        $region180: #{tpu_custom_call.1} parent=11 // pred_fallthru
          _
        // Predicated region
        $region181: #{tpu_custom_call.1} parent=11 // pred_check
          %p1517 = pneg %p1081
        $region182: #{tpu_custom_call.1} parent=11 // pred_check_branch
          %1519 = sbr.rel (%p1517) target = $region184
        $region183: #{tpu_custom_call.1} parent=11 // pred_region
          _
        $region184: #{tpu_custom_call.1} parent=11 // pred_fallthru
          _
        // Predicated region
        $region185: #{tpu_custom_call.1} parent=11 // pred_check
          %p1520 = pneg %p1102
        $region186: #{tpu_custom_call.1} parent=11 // pred_check_branch
          %1522 = sbr.rel (%p1520) target = $region188
        $region187: #{tpu_custom_call.1} parent=11 // pred_region
          _
        $region188: #{tpu_custom_call.1} parent=11 // pred_fallthru
          _
        // Predicated region
        $region189: #{tpu_custom_call.1} parent=11 // pred_check
          %p1523 = pneg %p1123
        $region190: #{tpu_custom_call.1} parent=11 // pred_check_branch
          %1525 = sbr.rel (%p1523) target = $region192
        $region191: #{tpu_custom_call.1} parent=11 // pred_region
          _
        $region192: #{tpu_custom_call.1} parent=11 // pred_fallthru
          _
        // Predicated region
        $region193: #{tpu_custom_call.1} parent=11 // pred_check
          %p1526 = pneg %p1144
        $region194: #{tpu_custom_call.1} parent=11 // pred_check_branch
          %1528 = sbr.rel (%p1526) target = $region196
        $region195: #{tpu_custom_call.1} parent=11 // pred_region
          _
        $region196: #{tpu_custom_call.1} parent=11 // pred_fallthru
          _
        // Predicated region
        $region197: #{tpu_custom_call.1} parent=11 // pred_check
          %p1529 = pneg %p1165
        $region198: #{tpu_custom_call.1} parent=11 // pred_check_branch
          %1531 = sbr.rel (%p1529) target = $region200
        $region199: #{tpu_custom_call.1} parent=11 // pred_region
          _
        $region200: #{tpu_custom_call.1} parent=11 // pred_fallthru
          _
        // Predicated region
        $region201: #{tpu_custom_call.1} parent=11 // pred_check
          %p1532 = pneg %p1186
        $region202: #{tpu_custom_call.1} parent=11 // pred_check_branch
          %1534 = sbr.rel (%p1532) target = $region204
        $region203: #{tpu_custom_call.1} parent=11 // pred_region
          %s1536 = ssub.s32 128, 128
          %1537 = vsyncadd [#allocation18], %s1536
          %s1539 = sshll.u32 [#allocation17], 4
          %s1540 = int_to_ptr.vmem [resolvable:$true] %s1539
          %1542 = dma.hbm_to_vmem [thread:$0]  %s99, 128, %s1540, [#allocation18]
        $region204: #{tpu_custom_call.1} parent=11 // pred_fallthru
          _
        // Predicated region
        $region205: #{tpu_custom_call.1} parent=11 // pred_check
          %p1543 = pneg %p1207
        $region206: #{tpu_custom_call.1} parent=11 // pred_check_branch
          %1545 = sbr.rel (%p1543) target = $region208
        $region207: #{tpu_custom_call.1} parent=11 // pred_region
          _
        $region208: #{tpu_custom_call.1} parent=11 // pred_fallthru
          _
        // Predicated region
        $region209: #{tpu_custom_call.1} parent=11 // pred_check
          %p1546 = pneg %p1228
        $region210: #{tpu_custom_call.1} parent=11 // pred_check_branch
          %1548 = sbr.rel (%p1546) target = $region212
        $region211: #{tpu_custom_call.1} parent=11 // pred_region
          _
        $region212: #{tpu_custom_call.1} parent=11 // pred_fallthru
          _
        // Predicated region
        $region213: #{tpu_custom_call.1} parent=11 // pred_check
          %p1549 = pneg %p1249
        $region214: #{tpu_custom_call.1} parent=11 // pred_check_branch
          %1551 = sbr.rel (%p1549) target = $region216
        $region215: #{tpu_custom_call.1} parent=11 // pred_region
          _
        $region216: #{tpu_custom_call.1} parent=11 // pred_fallthru
          _
        // Predicated region
        $region217: #{tpu_custom_call.1} parent=11 // pred_check
          %p1552 = pneg %p1270
        $region218: #{tpu_custom_call.1} parent=11 // pred_check_branch
          %1554 = sbr.rel (%p1552) target = $region220
        $region219: #{tpu_custom_call.1} parent=11 // pred_region
          _
        $region220: #{tpu_custom_call.1} parent=11 // pred_fallthru
          _
      $region12: #{tpu_custom_call.1} parent=5 // pred_fallthru
        _
      %p1555 = scmp.lt.s32.totalorder %s126, 2
      // Predicated region
      $region221: #{tpu_custom_call.1} parent=5 // pred_check
        %p1556 = pneg %p1555
      $region222: #{tpu_custom_call.1} parent=5 // pred_check_branch
        %1558 = sbr.rel (%p1556) target = $region224
      $region223: #{tpu_custom_call.1} parent=5 // pred_region
        // Predicated region
        $region225: #{tpu_custom_call.1} parent=223 // pred_check
          %p1559 = pneg %p146
        $region226: #{tpu_custom_call.1} parent=223 // pred_check_branch
          %1561 = sbr.rel (%p1559) target = $region228
        $region227: #{tpu_custom_call.1} parent=223 // pred_region
          %s1562 = sand.u32 %s136, 1
          %s1563 = scalar_lea.sflag [#allocation3], %s1562
          %s1564 = sand.u32 %s136, 1
          %s1565 = smul.addr %s1564, 8
          %s1566 = scalar_lea.vmem [#allocation2], %s1565
          %s1568 = ssub.s32 128, 128
          %1569 = vsyncadd %s1563, %s1568
          %s1570 = smul.addr %s126, 128
          %s1571 = scalar_lea.hbm %s1, %s1570
          %s1573 = sshll.u32 %s1566, 4
          %s1574 = int_to_ptr.vmem [resolvable:$true] %s1573
          %1576 = dma.hbm_to_vmem [thread:$0]  %s1571, 128, %s1574, %s1563
        $region228: #{tpu_custom_call.1} parent=223 // pred_fallthru
          _
        // Predicated region
        $region229: #{tpu_custom_call.1} parent=223 // pred_check
          %p1577 = pneg %p172
        $region230: #{tpu_custom_call.1} parent=223 // pred_check_branch
          %1579 = sbr.rel (%p1577) target = $region232
        $region231: #{tpu_custom_call.1} parent=223 // pred_region
          %p1580 = scmp.lt.s32.totalorder %s126, 1
          %s1581 = scalar_select %p1580, %s126, 1
          %s1582 = smul.addr %s1581, 4
          %s1583 = scalar_lea.vmem %s3, %s1582
        $region232: #{tpu_custom_call.1} parent=223 // pred_fallthru
          _
      $region224: #{tpu_custom_call.1} parent=5 // pred_fallthru
        _
      %p1584 = scmp.le.s32.totalorder 1, %s126
      %p1585 = scmp.lt.s32.totalorder %s126, 3
      %p1586 = pnand %p1584, %p1585
      %p1587 = pneg %p1586
      // Predicated region
      $region233: #{tpu_custom_call.1} parent=5 // pred_check
        _
      $region234: #{tpu_custom_call.1} parent=5 // pred_check_branch
        %1589 = sbr.rel (%p1586) target = $region236
      $region235: #{tpu_custom_call.1} parent=5 // pred_region
        %s1590 = ssub.s32 %s126, 1
        %s1591 = sand.u32 %s139, 1
        %s1592 = scalar_lea.sflag [#allocation3], %s1591
        %s1593 = sand.u32 %s139, 1
        %s1594 = smul.addr %s1593, 8
        %s1595 = scalar_lea.vmem [#allocation2], %s1594
        // Predicated region
        $region237: #{tpu_custom_call.1} parent=235 // pred_check
          %p1596 = pneg %p152
        $region238: #{tpu_custom_call.1} parent=235 // pred_check_branch
          %1598 = sbr.rel (%p1596) target = $region240
        $region239: #{tpu_custom_call.1} parent=235 // pred_region
          %1599 = dma.done %s1592, 128
        $region240: #{tpu_custom_call.1} parent=235 // pred_fallthru
          _
        // Predicated region
        $region241: #{tpu_custom_call.1} parent=235 // pred_check
          %p1600 = pneg %p199
        $region242: #{tpu_custom_call.1} parent=235 // pred_check_branch
          %1602 = sbr.rel (%p1600) target = $region244
        $region243: #{tpu_custom_call.1} parent=235 // pred_region
          %1603 = dma.done [#allocation6], 256
        $region244: #{tpu_custom_call.1} parent=235 // pred_fallthru
          _
        // Predicated region
        $region245: #{tpu_custom_call.1} parent=235 // pred_check
          %p1604 = pneg %p283
        $region246: #{tpu_custom_call.1} parent=235 // pred_check_branch
          %1606 = sbr.rel (%p1604) target = $region248
        $region247: #{tpu_custom_call.1} parent=235 // pred_region
          %1607 = dma.done [#allocation6], 512
        $region248: #{tpu_custom_call.1} parent=235 // pred_fallthru
          _
        // Predicated region
        $region249: #{tpu_custom_call.1} parent=235 // pred_check
          %p1608 = pneg %p388
        $region250: #{tpu_custom_call.1} parent=235 // pred_check_branch
          %1610 = sbr.rel (%p1608) target = $region252
        $region251: #{tpu_custom_call.1} parent=235 // pred_region
          %1611 = dma.done [#allocation9], 512
        $region252: #{tpu_custom_call.1} parent=235 // pred_fallthru
          _
        // Predicated region
        $region253: #{tpu_custom_call.1} parent=235 // pred_check
          %p1612 = pneg %p472
        $region254: #{tpu_custom_call.1} parent=235 // pred_check_branch
          %1614 = sbr.rel (%p1612) target = $region256
        $region255: #{tpu_custom_call.1} parent=235 // pred_region
          %1615 = dma.done [#allocation9], 256
        $region256: #{tpu_custom_call.1} parent=235 // pred_fallthru
          _
        // Predicated region
        $region257: #{tpu_custom_call.1} parent=235 // pred_check
          %p1616 = pneg %p535
        $region258: #{tpu_custom_call.1} parent=235 // pred_check_branch
          %1618 = sbr.rel (%p1616) target = $region260
        $region259: #{tpu_custom_call.1} parent=235 // pred_region
          %1619 = dma.done [#allocation12], 256
        $region260: #{tpu_custom_call.1} parent=235 // pred_fallthru
          _
        // Predicated region
        $region261: #{tpu_custom_call.1} parent=235 // pred_check
          %p1620 = pneg %p619
        $region262: #{tpu_custom_call.1} parent=235 // pred_check_branch
          %1622 = sbr.rel (%p1620) target = $region264
        $region263: #{tpu_custom_call.1} parent=235 // pred_region
          %1623 = dma.done [#allocation12], 256
        $region264: #{tpu_custom_call.1} parent=235 // pred_fallthru
          _
        // Predicated region
        $region265: #{tpu_custom_call.1} parent=235 // pred_check
          %p1624 = pneg %p703
        $region266: #{tpu_custom_call.1} parent=235 // pred_check_branch
          %1626 = sbr.rel (%p1624) target = $region268
        $region267: #{tpu_custom_call.1} parent=235 // pred_region
          %1627 = dma.done [#allocation15], 256
        $region268: #{tpu_custom_call.1} parent=235 // pred_fallthru
          _
        // Predicated region
        $region269: #{tpu_custom_call.1} parent=235 // pred_check
          %p1628 = pneg %p787
        $region270: #{tpu_custom_call.1} parent=235 // pred_check_branch
          %1630 = sbr.rel (%p1628) target = $region272
        $region271: #{tpu_custom_call.1} parent=235 // pred_region
          %1631 = dma.done [#allocation15], 256
        $region272: #{tpu_custom_call.1} parent=235 // pred_fallthru
          _
        // Predicated region
        $region273: #{tpu_custom_call.1} parent=235 // pred_check
          %p1632 = pneg %p1186
        $region274: #{tpu_custom_call.1} parent=235 // pred_check_branch
          %1634 = sbr.rel (%p1632) target = $region276
        $region275: #{tpu_custom_call.1} parent=235 // pred_region
          %1635 = dma.done [#allocation18], 128
        $region276: #{tpu_custom_call.1} parent=235 // pred_fallthru
          _
        %s1636 = sand.u32 %s139, 1
        %s1637 = scalar_lea.sflag [#allocation3], %s1636
        %s1638 = sand.u32 %s139, 1
        %s1639 = smul.addr %s1638, 8
        %s1640 = scalar_lea.vmem [#allocation2], %s1639
        %p1641 = pneg %p152
        %p1642 = pneg %p149
        %p1643 = scmp.lt.s32.totalorder %s131, 1
        %s1644 = scalar_select %p1643, %s131, 1
        %s1645 = smul.addr %s1644, 4
        %s1646 = scalar_lea.vmem %s3, %s1645
        %p1647 = pneg %p178
        %p1648 = pneg %p175
        %p1649 = pneg %p199
        %p1650 = pneg %p196
        %p1651 = pneg %p220
        %p1652 = pneg %p217
        %p1653 = pneg %p241
        %p1654 = pneg %p238
        %p1655 = pneg %p262
        %p1656 = pneg %p259
        %p1657 = pneg %p283
        %p1658 = pneg %p280
        %p1659 = pneg %p304
        %p1660 = pneg %p301
        %p1661 = pneg %p325
        %p1662 = pneg %p322
        %p1663 = pneg %p346
        %p1664 = pneg %p343
        %p1665 = pneg %p367
        %p1666 = pneg %p364
        %p1667 = pneg %p388
        %p1668 = pneg %p385
        %p1669 = pneg %p409
        %p1670 = pneg %p406
        %p1671 = pneg %p430
        %p1672 = pneg %p427
        %p1673 = pneg %p451
        %p1674 = pneg %p448
        %p1675 = pneg %p472
        %p1676 = pneg %p469
        %p1677 = pneg %p493
        %p1678 = pneg %p490
        %p1679 = pneg %p514
        %p1680 = pneg %p511
        %p1681 = pneg %p535
        %p1682 = pneg %p532
        %p1683 = pneg %p556
        %p1684 = pneg %p553
        %p1685 = pneg %p577
        %p1686 = pneg %p574
        %p1687 = pneg %p598
        %p1688 = pneg %p595
        %p1689 = pneg %p619
        %p1690 = pneg %p616
        %p1691 = pneg %p640
        %p1692 = pneg %p637
        %p1693 = pneg %p661
        %p1694 = pneg %p658
        %p1695 = pneg %p682
        %p1696 = pneg %p679
        %p1697 = pneg %p703
        %p1698 = pneg %p700
        %p1699 = pneg %p724
        %p1700 = pneg %p721
        %p1701 = pneg %p745
        %p1702 = pneg %p742
        %p1703 = pneg %p766
        %p1704 = pneg %p763
        %p1705 = pneg %p787
        %p1706 = pneg %p784
        %p1707 = pneg %p808
        %p1708 = pneg %p805
        %p1709 = pneg %p829
        %p1710 = pneg %p826
        %p1711 = pneg %p850
        %p1712 = pneg %p847
        %p1713 = pneg %p871
        %p1714 = pneg %p868
        %p1715 = pneg %p892
        %p1716 = pneg %p889
        %p1717 = pneg %p913
        %p1718 = pneg %p910
        %p1719 = pneg %p934
        %p1720 = pneg %p931
        %p1721 = pneg %p955
        %p1722 = pneg %p952
        %p1723 = pneg %p976
        %p1724 = pneg %p973
        %p1725 = pneg %p997
        %p1726 = pneg %p994
        %p1727 = pneg %p1018
        %p1728 = pneg %p1015
        %p1729 = pneg %p1039
        %p1730 = pneg %p1036
        %p1731 = pneg %p1060
        %p1732 = pneg %p1057
        %p1733 = pneg %p1081
        %p1734 = pneg %p1078
        %p1735 = pneg %p1102
        %p1736 = pneg %p1099
        %p1737 = pneg %p1123
        %p1738 = pneg %p1120
        %p1739 = pneg %p1144
        %p1740 = pneg %p1141
        %p1741 = pneg %p1165
        %p1742 = pneg %p1162
        %p1743 = pneg %p1186
        %p1744 = pneg %p1183
        %p1745 = pneg %p1207
        %p1746 = pneg %p1204
        %p1747 = pneg %p1228
        %p1748 = pneg %p1225
        %p1749 = pneg %p1249
        %p1750 = pneg %p1246
        %p1751 = pneg %p1270
        %p1752 = pneg %p1267
        %p1753 = pneg %p1296
        %p1754 = pneg %p1293
        %s1755 = sand.u32 %s1283, 1
        %s1756 = scalar_lea.sflag [#allocation4], %s1755
        %s1757 = sand.u32 %s1283, 1
        %s1758 = scalar_lea.vmem [#allocation19], %s1757
        %p1759 = scmp.lt.s32.totalorder %s131, 1
        %s1760 = scalar_select %p1759, %s131, 1
        %s1761 = smul.addr %s1760, 4
        %s1762 = scalar_lea.vmem %s3, %s1761
        %v1763 = vld [vmem:[%s1595] sm:$0xff]
        %v1764 = vld [vmem:[#allocation5] sm:$0xff]
        %v1765 = vld [vmem:[#allocation5 + $0x8] sm:$0xff]
        %vm1766 = vcmask 130048
        %v1768 = vsel %vm1766, %v1763, 0
        %1770 = vmatprep.subr.mxu0 0.0
        %1771 = vmatpush1.msra.mxu0 %v1764
        %1772 = vmatprep.subr.mxu0 0.0
        %1773 = vmatpush1.msra.mxu0 %v1765
        %1774 = vmatprep.subr.mxu0 0.0
        %1775 = vmatpush1.msra.mxu0 0.0
        %1776 = vmatprep.subr.mxu0 0.0
        %1777 = vmatpush1.msra.mxu0 0.0
        %1778 = vmatprep.subr.mxu0 0.0
        %1779 = vmatpush1.msra.mxu0 0.0
        %1780 = vmatprep.subr.mxu0 0.0
        %1781 = vmatpush1.msra.mxu0 0.0
        %1782 = vmatprep.subr.mxu0 0.0
        %1783 = vmatpush1.msra.mxu0 0.0
        %1784 = vmatprep.subr.mxu0 0.0
        %1785 = vmatpush1.msra.mxu0 0.0
        %1786 = vmatprep.subr.mxu0 0.0
        %1787 = vmatpush1.msra.mxu0 0.0
        %1788 = vmatprep.subr.mxu0 0.0
        %1789 = vmatpush1.msra.mxu0 0.0
        %1790 = vmatprep.subr.mxu0 0.0
        %1791 = vmatpush1.msra.mxu0 0.0
        %1792 = vmatprep.subr.mxu0 0.0
        %1793 = vmatpush1.msra.mxu0 0.0
        %1794 = vmatprep.subr.mxu0 0.0
        %1795 = vmatpush1.msra.mxu0 0.0
        %1796 = vmatprep.subr.mxu0 0.0
        %1797 = vmatpush1.msra.mxu0 0.0
        %1798 = vmatprep.subr.mxu0 0.0
        %1799 = vmatpush1.msra.mxu0 0.0
        %1800 = vmatprep.subr.mxu0 0.0
        %1801 = vmatpush1.msra.mxu0 0.0
        %1802 = vmatprep.subr.mxu0 0.0
        %1803 = vmatpush1.msra.mxu0 0.0
        %1804 = vmatprep.subr.mxu0 0.0
        %1805 = vmatpush1.msra.mxu0 0.0
        %1806 = vmatprep.subr.mxu0 0.0
        %1807 = vmatpush1.msra.mxu0 0.0
        %1808 = vmatprep.subr.mxu0 0.0
        %1809 = vmatpush1.msra.mxu0 0.0
        %1810 = vmatprep.subr.mxu0 0.0
        %1811 = vmatpush1.msra.mxu0 0.0
        %1812 = vmatprep.subr.mxu0 0.0
        %1813 = vmatpush1.msra.mxu0 0.0
        %1814 = vmatprep.subr.mxu0 0.0
        %1815 = vmatpush1.msra.mxu0 0.0
        %1816 = vmatprep.subr.mxu0 0.0
        %1817 = vmatpush1.msra.mxu0 0.0
        %1818 = vmatprep.subr.mxu0 0.0
        %1819 = vmatpush1.msra.mxu0 0.0
        %1820 = vmatprep.subr.mxu0 0.0
        %1821 = vmatpush1.msra.mxu0 0.0
        %1822 = vmatprep.subr.mxu0 0.0
        %1823 = vmatpush1.msra.mxu0 0.0
        %1824 = vmatprep.subr.mxu0 0.0
        %1825 = vmatpush1.msra.mxu0 0.0
        %1826 = vmatprep.subr.mxu0 0.0
        %1827 = vmatpush1.msra.mxu0 0.0
        %1828 = vmatprep.subr.mxu0 0.0
        %1829 = vmatpush1.msra.mxu0 0.0
        %1830 = vmatprep.subr.mxu0 0.0
        %1831 = vmatpush1.msra.mxu0 0.0
        %1832 = vmatprep.subr.mxu0 0.0
        %1833 = vmatpush1.msra.mxu0 0.0
        %1834 = vmatprep.mubr.f32.mxu0 0.0
        %1835 = vmatmul.mubr.f32.gmra.mrb[0].mxu0 %v1768
        %v1836 = vpop.f32.mrb[0].mxu0
        %v1837 = vadd.f32 0.0, %v1836
        %v1838 = vpop.f32.mrb[0].mxu0
        %1839 = vdwg.mxu0
        %1841 = vrot.lane.b32.xlu0 %v1837, 127
        %v1842 = vpop.permute.xlu0 %1841
        %1844 = vrot.lane.b32.xlu0 %v1837, 126
        %v1845 = vpop.permute.xlu0 %1844
        %1847 = vrot.lane.b32.xlu0 %v1837, 125
        %v1848 = vpop.permute.xlu0 %1847
        %1850 = vrot.lane.b32.xlu0 %v1837, 124
        %v1851 = vpop.permute.xlu0 %1850
        %1853 = vrot.lane.b32.xlu0 %v1837, 123
        %v1854 = vpop.permute.xlu0 %1853
        %1856 = vrot.lane.b32.xlu0 %v1837, 122
        %v1857 = vpop.permute.xlu0 %1856
        %v1859 = vld [vmem:[#allocation8] sm:$0xff]
        %v1860 = vld [vmem:[#allocation8 + $0x8] sm:$0xff]
        %v1861 = vld [vmem:[#allocation8 + $0x10] sm:$0xff]
        %v1862 = vld [vmem:[#allocation8 + $0x18] sm:$0xff]
        %v1863 = vld [vmem:[%s25] sm:$0xff]
        %v1864 = vld [vmem:[%s25 + $0x8] sm:$0xff]
        %v1865 = vld [vmem:[%s25 + $0x10] sm:$0xff]
        %v1866 = vld [vmem:[%s25 + $0x18] sm:$0xff]
        %1868 = vset.pattern.permute.xlu0 0
        %1869 = vperm.xlu0 %1868, %v1863
        %v1870 = vpop.permute.xlu0 %1869
        %1873 = vset.pattern.permute.xlu0 0
        %1874 = vperm.xlu0 %1873, %v1864
        %v1875 = vpop.permute.xlu0 %1874
        %1878 = vset.pattern.permute.xlu0 0
        %1879 = vperm.xlu0 %1878, %v1865
        %v1880 = vpop.permute.xlu0 %1879
        %1883 = vset.pattern.permute.xlu0 0
        %1884 = vperm.xlu0 %1883, %v1866
        %v1885 = vpop.permute.xlu0 %1884
        %vm1887 = vcmask 457728
        %v1889 = vsel %vm1887, %v1859, 0
        %v1892 = vsel %vm1887, %v1860, 0
        %v1895 = vsel %vm1887, %v1861, 0
        %v1898 = vsel %vm1887, %v1862, 0
        %1900 = vmatprep.subr.mxu0 0.0
        %1901 = vmatpush1.msra.mxu0 %v1837
        %1902 = vmatprep.subr.mxu0 0.0
        %1903 = vmatpush1.msra.mxu0 %v1842
        %1904 = vmatprep.subr.mxu0 0.0
        %1905 = vmatpush1.msra.mxu0 %v1845
        %1906 = vmatprep.subr.mxu0 0.0
        %1907 = vmatpush1.msra.mxu0 %v1848
        %1908 = vmatprep.subr.mxu0 0.0
        %1909 = vmatpush1.msra.mxu0 %v1851
        %1910 = vmatprep.subr.mxu0 0.0
        %1911 = vmatpush1.msra.mxu0 %v1854
        %1912 = vmatprep.subr.mxu0 0.0
        %1913 = vmatpush1.msra.mxu0 %v1857
        %1914 = vmatprep.subr.mxu0 0.0
        %1915 = vmatpush1.msra.mxu0 0.0
        %1916 = vmatprep.subr.mxu0 0.0
        %1917 = vmatpush1.msra.mxu0 0.0
        %1918 = vmatprep.subr.mxu0 0.0
        %1919 = vmatpush1.msra.mxu0 0.0
        %1920 = vmatprep.subr.mxu0 0.0
        %1921 = vmatpush1.msra.mxu0 0.0
        %1922 = vmatprep.subr.mxu0 0.0
        %1923 = vmatpush1.msra.mxu0 0.0
        %1924 = vmatprep.subr.mxu0 0.0
        %1925 = vmatpush1.msra.mxu0 0.0
        %1926 = vmatprep.subr.mxu0 0.0
        %1927 = vmatpush1.msra.mxu0 0.0
        %1928 = vmatprep.subr.mxu0 0.0
        %1929 = vmatpush1.msra.mxu0 0.0
        %1930 = vmatprep.subr.mxu0 0.0
        %1931 = vmatpush1.msra.mxu0 0.0
        %1932 = vmatprep.subr.mxu0 0.0
        %1933 = vmatpush1.msra.mxu0 0.0
        %1934 = vmatprep.subr.mxu0 0.0
        %1935 = vmatpush1.msra.mxu0 0.0
        %1936 = vmatprep.subr.mxu0 0.0
        %1937 = vmatpush1.msra.mxu0 0.0
        %1938 = vmatprep.subr.mxu0 0.0
        %1939 = vmatpush1.msra.mxu0 0.0
        %1940 = vmatprep.subr.mxu0 0.0
        %1941 = vmatpush1.msra.mxu0 0.0
        %1942 = vmatprep.subr.mxu0 0.0
        %1943 = vmatpush1.msra.mxu0 0.0
        %1944 = vmatprep.subr.mxu0 0.0
        %1945 = vmatpush1.msra.mxu0 0.0
        %1946 = vmatprep.subr.mxu0 0.0
        %1947 = vmatpush1.msra.mxu0 0.0
        %1948 = vmatprep.subr.mxu0 0.0
        %1949 = vmatpush1.msra.mxu0 0.0
        %1950 = vmatprep.subr.mxu0 0.0
        %1951 = vmatpush1.msra.mxu0 0.0
        %1952 = vmatprep.subr.mxu0 0.0
        %1953 = vmatpush1.msra.mxu0 0.0
        %1954 = vmatprep.subr.mxu0 0.0
        %1955 = vmatpush1.msra.mxu0 0.0
        %1956 = vmatprep.subr.mxu0 0.0
        %1957 = vmatpush1.msra.mxu0 0.0
        %1958 = vmatprep.subr.mxu0 0.0
        %1959 = vmatpush1.msra.mxu0 0.0
        %1960 = vmatprep.subr.mxu0 0.0
        %1961 = vmatpush1.msra.mxu0 0.0
        %1962 = vmatprep.subr.mxu0 0.0
        %1963 = vmatpush1.msra.mxu0 0.0
        %1964 = vmatprep.mubr.f32.mxu0 0.0
        %1965 = vmatmul.mubr.f32.gmra.mrb[0].mxu0 %v1889
        %v1966 = vpop.f32.mrb[0].mxu0
        %v1967 = vadd.f32 %v1870, %v1966
        %v1968 = vpop.f32.mrb[0].mxu0
        %1969 = vmatprep.mubr.f32.mxu0 0.0
        %1970 = vmatmul.mubr.f32.gmra.mrb[0].mxu0 %v1892
        %v1971 = vpop.f32.mrb[0].mxu0
        %v1972 = vadd.f32 %v1875, %v1971
        %v1973 = vpop.f32.mrb[0].mxu0
        %1974 = vmatprep.mubr.f32.mxu0 0.0
        %1975 = vmatmul.mubr.f32.gmra.mrb[0].mxu0 %v1895
        %v1976 = vpop.f32.mrb[0].mxu0
        %v1977 = vadd.f32 %v1880, %v1976
        %v1978 = vpop.f32.mrb[0].mxu0
        %1979 = vmatprep.mubr.f32.mxu0 0.0
        %1980 = vmatmul.mubr.f32.gmra.mrb[0].mxu0 %v1898
        %v1981 = vpop.f32.mrb[0].mxu0
        %v1982 = vadd.f32 %v1885, %v1981
        %v1983 = vpop.f32.mrb[0].mxu0
        %1984 = vdwg.mxu0
        %v1985 = vld [vmem:[%s27] sm:$0xff]
        %v1986 = vld [vmem:[%s27 + $0x8] sm:$0xff]
        %v1987 = vld [vmem:[%s27 + $0x10] sm:$0xff]
        %v1988 = vld [vmem:[%s27 + $0x18] sm:$0xff]
        %v1989 = vld [vmem:[%s1762] sm:$0xf]
        %v1990 = vld [vmem:[%s29] sm:$0xff]
        %v1991 = vld [vmem:[%s29 + $0x8] sm:$0xff]
        %v1992 = vld [vmem:[%s29 + $0x10] sm:$0xff]
        %v1993 = vld [vmem:[%s29 + $0x18] sm:$0xff]
        %vm1994 = vcmask 31744
        %v1996 = vsel %vm1994, %v1985, 0
        %v1999 = vsel %vm1994, %v1986, 0
        %v2002 = vsel %vm1994, %v1987, 0
        %v2005 = vsel %vm1994, %v1988, 0
        %vm2007 = vcmask 1043456
        %v2009 = vsel %vm2007, %v1989, 0
        %2011 = vmatprep.subr.mxu0 0.0
        %2012 = vmatpush1.msra.mxu0 %v2009
        %2013 = vmatprep.subr.mxu0 0.0
        %2014 = vmatpush1.msra.mxu0 0.0
        %2015 = vmatprep.subr.mxu0 0.0
        %2016 = vmatpush1.msra.mxu0 0.0
        %2017 = vmatprep.subr.mxu0 0.0
        %2018 = vmatpush1.msra.mxu0 0.0
        %2019 = vmatprep.subr.mxu0 0.0
        %2020 = vmatpush1.msra.mxu0 0.0
        %2021 = vmatprep.subr.mxu0 0.0
        %2022 = vmatpush1.msra.mxu0 0.0
        %2023 = vmatprep.subr.mxu0 0.0
        %2024 = vmatpush1.msra.mxu0 0.0
        %2025 = vmatprep.subr.mxu0 0.0
        %2026 = vmatpush1.msra.mxu0 0.0
        %2027 = vmatprep.subr.mxu0 0.0
        %2028 = vmatpush1.msra.mxu0 0.0
        %2029 = vmatprep.subr.mxu0 0.0
        %2030 = vmatpush1.msra.mxu0 0.0
        %2031 = vmatprep.subr.mxu0 0.0
        %2032 = vmatpush1.msra.mxu0 0.0
        %2033 = vmatprep.subr.mxu0 0.0
        %2034 = vmatpush1.msra.mxu0 0.0
        %2035 = vmatprep.subr.mxu0 0.0
        %2036 = vmatpush1.msra.mxu0 0.0
        %2037 = vmatprep.subr.mxu0 0.0
        %2038 = vmatpush1.msra.mxu0 0.0
        %2039 = vmatprep.subr.mxu0 0.0
        %2040 = vmatpush1.msra.mxu0 0.0
        %2041 = vmatprep.subr.mxu0 0.0
        %2042 = vmatpush1.msra.mxu0 0.0
        %2043 = vmatprep.subr.mxu0 0.0
        %2044 = vmatpush1.msra.mxu0 0.0
        %2045 = vmatprep.subr.mxu0 0.0
        %2046 = vmatpush1.msra.mxu0 0.0
        %2047 = vmatprep.subr.mxu0 0.0
        %2048 = vmatpush1.msra.mxu0 0.0
        %2049 = vmatprep.subr.mxu0 0.0
        %2050 = vmatpush1.msra.mxu0 0.0
        %2051 = vmatprep.subr.mxu0 0.0
        %2052 = vmatpush1.msra.mxu0 0.0
        %2053 = vmatprep.subr.mxu0 0.0
        %2054 = vmatpush1.msra.mxu0 0.0
        %2055 = vmatprep.subr.mxu0 0.0
        %2056 = vmatpush1.msra.mxu0 0.0
        %2057 = vmatprep.subr.mxu0 0.0
        %2058 = vmatpush1.msra.mxu0 0.0
        %2059 = vmatprep.subr.mxu0 0.0
        %2060 = vmatpush1.msra.mxu0 0.0
        %2061 = vmatprep.subr.mxu0 0.0
        %2062 = vmatpush1.msra.mxu0 0.0
        %2063 = vmatprep.subr.mxu0 0.0
        %2064 = vmatpush1.msra.mxu0 0.0
        %2065 = vmatprep.subr.mxu0 0.0
        %2066 = vmatpush1.msra.mxu0 0.0
        %2067 = vmatprep.subr.mxu0 0.0
        %2068 = vmatpush1.msra.mxu0 0.0
        %2069 = vmatprep.subr.mxu0 0.0
        %2070 = vmatpush1.msra.mxu0 0.0
        %2071 = vmatprep.subr.mxu0 0.0
        %2072 = vmatpush1.msra.mxu0 0.0
        %2073 = vmatprep.subr.mxu0 0.0
        %2074 = vmatpush1.msra.mxu0 0.0
        %2075 = vmatprep.mubr.f32.mxu0 0.0
        %2076 = vmatmul.mubr.f32.gmra.mrb[0].mxu0 %v1996
        %v2077 = vpop.f32.mrb[0].mxu0
        %v2078 = vadd.f32 %v1990, %v2077
        %v2079 = vpop.f32.mrb[0].mxu0
        %2080 = vmatprep.mubr.f32.mxu0 0.0
        %2081 = vmatmul.mubr.f32.gmra.mrb[0].mxu0 %v1999
        %v2082 = vpop.f32.mrb[0].mxu0
        %v2083 = vadd.f32 %v1991, %v2082
        %v2084 = vpop.f32.mrb[0].mxu0
        %2085 = vmatprep.mubr.f32.mxu0 0.0
        %2086 = vmatmul.mubr.f32.gmra.mrb[0].mxu0 %v2002
        %v2087 = vpop.f32.mrb[0].mxu0
        %v2088 = vadd.f32 %v1992, %v2087
        %v2089 = vpop.f32.mrb[0].mxu0
        %2090 = vmatprep.mubr.f32.mxu0 0.0
        %2091 = vmatmul.mubr.f32.gmra.mrb[0].mxu0 %v2005
        %v2092 = vpop.f32.mrb[0].mxu0
        %v2093 = vadd.f32 %v1993, %v2092
        %v2094 = vpop.f32.mrb[0].mxu0
        %2095 = vdwg.mxu0
        %2097 = vset.pattern.permute.xlu0 0
        %2098 = vperm.xlu0 %2097, %v2078
        %v2099 = vpop.permute.xlu0 %2098
        %2102 = vset.pattern.permute.xlu0 0
        %2103 = vperm.xlu0 %2102, %v2083
        %v2104 = vpop.permute.xlu0 %2103
        %2107 = vset.pattern.permute.xlu0 0
        %2108 = vperm.xlu0 %2107, %v2088
        %v2109 = vpop.permute.xlu0 %2108
        %2112 = vset.pattern.permute.xlu0 0
        %2113 = vperm.xlu0 %2112, %v2093
        %v2114 = vpop.permute.xlu0 %2113
        %v2116 = vadd.f32 %v1967, %v2099
        %v2117 = vadd.f32 %v1972, %v2104
        %v2118 = vadd.f32 %v1977, %v2109
        %v2119 = vadd.f32 %v1982, %v2114
        %vm2120 = vcmp.ge.f32.partialorder %v2116, 0.0
        %vm2121 = vcmp.ge.f32.partialorder %v2117, 0.0
        %vm2122 = vcmp.ge.f32.partialorder %v2118, 0.0
        %vm2123 = vcmp.ge.f32.partialorder %v2119, 0.0
        %v2124 = vmul.f32 %v2116, 0.1
        %v2125 = vmul.f32 %v2117, 0.1
        %v2126 = vmul.f32 %v2118, 0.1
        %v2127 = vmul.f32 %v2119, 0.1
        %v2128 = vsel %vm2120, %v2116, %v2124
        %v2129 = vsel %vm2121, %v2117, %v2125
        %v2130 = vsel %vm2122, %v2118, %v2126
        %v2131 = vsel %vm2123, %v2119, %v2127
        %v2132 = vld [vmem:[#allocation10] sm:$0xff]
        %v2133 = vld [vmem:[#allocation10 + $0x8] sm:$0xff]
        %v2135 = vsel %vm1766, %v2128, 0
        %v2138 = vsel %vm1766, %v2129, 0
        %v2141 = vsel %vm1766, %v2130, 0
        %v2144 = vsel %vm1766, %v2131, 0
        %2146 = vmatprep.subr.mxu0 0.0
        %2147 = vmatpush1.msra.mxu0 %v2132
        %2148 = vmatprep.subr.mxu0 0.0
        %2149 = vmatpush1.msra.mxu0 %v2133
        %2150 = vmatprep.subr.mxu0 0.0
        %2151 = vmatpush1.msra.mxu0 0.0
        %2152 = vmatprep.subr.mxu0 0.0
        %2153 = vmatpush1.msra.mxu0 0.0
        %2154 = vmatprep.subr.mxu0 0.0
        %2155 = vmatpush1.msra.mxu0 0.0
        %2156 = vmatprep.subr.mxu0 0.0
        %2157 = vmatpush1.msra.mxu0 0.0
        %2158 = vmatprep.subr.mxu0 0.0
        %2159 = vmatpush1.msra.mxu0 0.0
        %2160 = vmatprep.subr.mxu0 0.0
        %2161 = vmatpush1.msra.mxu0 0.0
        %2162 = vmatprep.subr.mxu0 0.0
        %2163 = vmatpush1.msra.mxu0 0.0
        %2164 = vmatprep.subr.mxu0 0.0
        %2165 = vmatpush1.msra.mxu0 0.0
        %2166 = vmatprep.subr.mxu0 0.0
        %2167 = vmatpush1.msra.mxu0 0.0
        %2168 = vmatprep.subr.mxu0 0.0
        %2169 = vmatpush1.msra.mxu0 0.0
        %2170 = vmatprep.subr.mxu0 0.0
        %2171 = vmatpush1.msra.mxu0 0.0
        %2172 = vmatprep.subr.mxu0 0.0
        %2173 = vmatpush1.msra.mxu0 0.0
        %2174 = vmatprep.subr.mxu0 0.0
        %2175 = vmatpush1.msra.mxu0 0.0
        %2176 = vmatprep.subr.mxu0 0.0
        %2177 = vmatpush1.msra.mxu0 0.0
        %2178 = vmatprep.subr.mxu0 0.0
        %2179 = vmatpush1.msra.mxu0 0.0
        %2180 = vmatprep.subr.mxu0 0.0
        %2181 = vmatpush1.msra.mxu0 0.0
        %2182 = vmatprep.subr.mxu0 0.0
        %2183 = vmatpush1.msra.mxu0 0.0
        %2184 = vmatprep.subr.mxu0 0.0
        %2185 = vmatpush1.msra.mxu0 0.0
        %2186 = vmatprep.subr.mxu0 0.0
        %2187 = vmatpush1.msra.mxu0 0.0
        %2188 = vmatprep.subr.mxu0 0.0
        %2189 = vmatpush1.msra.mxu0 0.0
        %2190 = vmatprep.subr.mxu0 0.0
        %2191 = vmatpush1.msra.mxu0 0.0
        %2192 = vmatprep.subr.mxu0 0.0
        %2193 = vmatpush1.msra.mxu0 0.0
        %2194 = vmatprep.subr.mxu0 0.0
        %2195 = vmatpush1.msra.mxu0 0.0
        %2196 = vmatprep.subr.mxu0 0.0
        %2197 = vmatpush1.msra.mxu0 0.0
        %2198 = vmatprep.subr.mxu0 0.0
        %2199 = vmatpush1.msra.mxu0 0.0
        %2200 = vmatprep.subr.mxu0 0.0
        %2201 = vmatpush1.msra.mxu0 0.0
        %2202 = vmatprep.subr.mxu0 0.0
        %2203 = vmatpush1.msra.mxu0 0.0
        %2204 = vmatprep.subr.mxu0 0.0
        %2205 = vmatpush1.msra.mxu0 0.0
        %2206 = vmatprep.subr.mxu0 0.0
        %2207 = vmatpush1.msra.mxu0 0.0
        %2208 = vmatprep.subr.mxu0 0.0
        %2209 = vmatpush1.msra.mxu0 0.0
        %2210 = vmatprep.mubr.f32.mxu0 0.0
        %2211 = vmatmul.mubr.f32.gmra.mrb[0].mxu0 %v2135
        %v2212 = vpop.f32.mrb[0].mxu0
        %v2213 = vadd.f32 0.0, %v2212
        %v2214 = vpop.f32.mrb[0].mxu0
        %2215 = vmatprep.mubr.f32.mxu0 0.0
        %2216 = vmatmul.mubr.f32.gmra.mrb[0].mxu0 %v2138
        %v2217 = vpop.f32.mrb[0].mxu0
        %v2218 = vadd.f32 0.0, %v2217
        %v2219 = vpop.f32.mrb[0].mxu0
        %2220 = vmatprep.mubr.f32.mxu0 0.0
        %2221 = vmatmul.mubr.f32.gmra.mrb[0].mxu0 %v2141
        %v2222 = vpop.f32.mrb[0].mxu0
        %v2223 = vadd.f32 0.0, %v2222
        %v2224 = vpop.f32.mrb[0].mxu0
        %2225 = vmatprep.mubr.f32.mxu0 0.0
        %2226 = vmatmul.mubr.f32.gmra.mrb[0].mxu0 %v2144
        %v2227 = vpop.f32.mrb[0].mxu0
        %v2228 = vadd.f32 0.0, %v2227
        %v2229 = vpop.f32.mrb[0].mxu0
        %2230 = vdwg.mxu0
        %2235 = vrot.lane.b32.xlu0 %v2213, 127
        %v2236 = vpop.permute.xlu0 %2235
        %2237 = vrot.lane.b32.xlu0 %v2218, 127
        %v2238 = vpop.permute.xlu0 %2237
        %2239 = vrot.lane.b32.xlu0 %v2223, 127
        %v2240 = vpop.permute.xlu0 %2239
        %2241 = vrot.lane.b32.xlu0 %v2228, 127
        %v2242 = vpop.permute.xlu0 %2241
        %2247 = vrot.lane.b32.xlu0 %v2213, 126
        %v2248 = vpop.permute.xlu0 %2247
        %2249 = vrot.lane.b32.xlu0 %v2218, 126
        %v2250 = vpop.permute.xlu0 %2249
        %2251 = vrot.lane.b32.xlu0 %v2223, 126
        %v2252 = vpop.permute.xlu0 %2251
        %2253 = vrot.lane.b32.xlu0 %v2228, 126
        %v2254 = vpop.permute.xlu0 %2253
        %2259 = vrot.lane.b32.xlu0 %v2213, 125
        %v2260 = vpop.permute.xlu0 %2259
        %2261 = vrot.lane.b32.xlu0 %v2218, 125
        %v2262 = vpop.permute.xlu0 %2261
        %2263 = vrot.lane.b32.xlu0 %v2223, 125
        %v2264 = vpop.permute.xlu0 %2263
        %2265 = vrot.lane.b32.xlu0 %v2228, 125
        %v2266 = vpop.permute.xlu0 %2265
        %v2271 = vld [vmem:[%s33] sm:$0xff]
        %v2272 = vld [vmem:[%s33 + $0x8] sm:$0xff]
        %v2273 = vld [vmem:[%s35] sm:$0xff]
        %v2274 = vld [vmem:[%s35 + $0x8] sm:$0xff]
        %2276 = vset.pattern.permute.xlu0 0
        %2277 = vperm.xlu0 %2276, %v2273
        %v2278 = vpop.permute.xlu0 %2277
        %2281 = vset.pattern.permute.xlu0 0
        %2282 = vperm.xlu0 %2281, %v2274
        %v2283 = vpop.permute.xlu0 %2282
        %2285 = vmatprep.subr.mxu0 0.0
        %2286 = vmatpush1.msra.mxu0 %v2213
        %2287 = vmatprep.subr.mxu0 0.0
        %2288 = vmatpush1.msra.mxu0 %v2218
        %2289 = vmatprep.subr.mxu0 0.0
        %2290 = vmatpush1.msra.mxu0 %v2223
        %2291 = vmatprep.subr.mxu0 0.0
        %2292 = vmatpush1.msra.mxu0 %v2228
        %2293 = vmatprep.subr.mxu0 0.0
        %2294 = vmatpush1.msra.mxu0 %v2236
        %2295 = vmatprep.subr.mxu0 0.0
        %2296 = vmatpush1.msra.mxu0 %v2238
        %2297 = vmatprep.subr.mxu0 0.0
        %2298 = vmatpush1.msra.mxu0 %v2240
        %2299 = vmatprep.subr.mxu0 0.0
        %2300 = vmatpush1.msra.mxu0 %v2242
        %2301 = vmatprep.subr.mxu0 0.0
        %2302 = vmatpush1.msra.mxu0 %v2248
        %2303 = vmatprep.subr.mxu0 0.0
        %2304 = vmatpush1.msra.mxu0 %v2250
        %2305 = vmatprep.subr.mxu0 0.0
        %2306 = vmatpush1.msra.mxu0 %v2252
        %2307 = vmatprep.subr.mxu0 0.0
        %2308 = vmatpush1.msra.mxu0 %v2254
        %2309 = vmatprep.subr.mxu0 0.0
        %2310 = vmatpush1.msra.mxu0 %v2260
        %2311 = vmatprep.subr.mxu0 0.0
        %2312 = vmatpush1.msra.mxu0 %v2262
        %2313 = vmatprep.subr.mxu0 0.0
        %2314 = vmatpush1.msra.mxu0 %v2264
        %2315 = vmatprep.subr.mxu0 0.0
        %2316 = vmatpush1.msra.mxu0 %v2266
        %2317 = vmatprep.subr.mxu0 0.0
        %2318 = vmatpush1.msra.mxu0 0.0
        %2319 = vmatprep.subr.mxu0 0.0
        %2320 = vmatpush1.msra.mxu0 0.0
        %2321 = vmatprep.subr.mxu0 0.0
        %2322 = vmatpush1.msra.mxu0 0.0
        %2323 = vmatprep.subr.mxu0 0.0
        %2324 = vmatpush1.msra.mxu0 0.0
        %2325 = vmatprep.subr.mxu0 0.0
        %2326 = vmatpush1.msra.mxu0 0.0
        %2327 = vmatprep.subr.mxu0 0.0
        %2328 = vmatpush1.msra.mxu0 0.0
        %2329 = vmatprep.subr.mxu0 0.0
        %2330 = vmatpush1.msra.mxu0 0.0
        %2331 = vmatprep.subr.mxu0 0.0
        %2332 = vmatpush1.msra.mxu0 0.0
        %2333 = vmatprep.subr.mxu0 0.0
        %2334 = vmatpush1.msra.mxu0 0.0
        %2335 = vmatprep.subr.mxu0 0.0
        %2336 = vmatpush1.msra.mxu0 0.0
        %2337 = vmatprep.subr.mxu0 0.0
        %2338 = vmatpush1.msra.mxu0 0.0
        %2339 = vmatprep.subr.mxu0 0.0
        %2340 = vmatpush1.msra.mxu0 0.0
        %2341 = vmatprep.subr.mxu0 0.0
        %2342 = vmatpush1.msra.mxu0 0.0
        %2343 = vmatprep.subr.mxu0 0.0
        %2344 = vmatpush1.msra.mxu0 0.0
        %2345 = vmatprep.subr.mxu0 0.0
        %2346 = vmatpush1.msra.mxu0 0.0
        %2347 = vmatprep.subr.mxu0 0.0
        %2348 = vmatpush1.msra.mxu0 0.0
        %2349 = vmatprep.mubr.f32.mxu0 0.0
        %2350 = vmatmul.mubr.f32.gmra.mrb[0].mxu0 %v2271
        %v2351 = vpop.f32.mrb[0].mxu0
        %v2352 = vadd.f32 %v2278, %v2351
        %v2353 = vpop.f32.mrb[0].mxu0
        %2354 = vmatprep.mubr.f32.mxu0 0.0
        %2355 = vmatmul.mubr.f32.gmra.mrb[0].mxu0 %v2272
        %v2356 = vpop.f32.mrb[0].mxu0
        %v2357 = vadd.f32 %v2283, %v2356
        %v2358 = vpop.f32.mrb[0].mxu0
        %2359 = vdwg.mxu0
        %vm2360 = vcmp.ge.f32.partialorder %v2352, 0.0
        %vm2361 = vcmp.ge.f32.partialorder %v2357, 0.0
        %v2362 = vmul.f32 %v2352, 0.1
        %v2363 = vmul.f32 %v2357, 0.1
        %v2364 = vsel %vm2360, %v2352, %v2362
        %v2365 = vsel %vm2361, %v2357, %v2363
        %v2366 = vld [vmem:[%s7] sm:$0xff]
        %v2367 = vld [vmem:[%s7 + $0x8] sm:$0xff]
        %v2368 = vld [vmem:[%s7 + $0x10] sm:$0xff]
        %v2369 = vld [vmem:[%s7 + $0x18] sm:$0xff]
        %vm2370 = vcmask 261120
        %v2372 = vsel %vm2370, %v2364, 0
        %v2375 = vsel %vm2370, %v2365, 0
        %2377 = vmatprep.subr.mxu0 0.0
        %2378 = vmatpush1.msra.mxu0 %v2366
        %2379 = vmatprep.subr.mxu0 0.0
        %2380 = vmatpush1.msra.mxu0 %v2367
        %2381 = vmatprep.subr.mxu0 0.0
        %2382 = vmatpush1.msra.mxu0 %v2368
        %2383 = vmatprep.subr.mxu0 0.0
        %2384 = vmatpush1.msra.mxu0 %v2369
        %2385 = vmatprep.subr.mxu0 0.0
        %2386 = vmatpush1.msra.mxu0 0.0
        %2387 = vmatprep.subr.mxu0 0.0
        %2388 = vmatpush1.msra.mxu0 0.0
        %2389 = vmatprep.subr.mxu0 0.0
        %2390 = vmatpush1.msra.mxu0 0.0
        %2391 = vmatprep.subr.mxu0 0.0
        %2392 = vmatpush1.msra.mxu0 0.0
        %2393 = vmatprep.subr.mxu0 0.0
        %2394 = vmatpush1.msra.mxu0 0.0
        %2395 = vmatprep.subr.mxu0 0.0
        %2396 = vmatpush1.msra.mxu0 0.0
        %2397 = vmatprep.subr.mxu0 0.0
        %2398 = vmatpush1.msra.mxu0 0.0
        %2399 = vmatprep.subr.mxu0 0.0
        %2400 = vmatpush1.msra.mxu0 0.0
        %2401 = vmatprep.subr.mxu0 0.0
        %2402 = vmatpush1.msra.mxu0 0.0
        %2403 = vmatprep.subr.mxu0 0.0
        %2404 = vmatpush1.msra.mxu0 0.0
        %2405 = vmatprep.subr.mxu0 0.0
        %2406 = vmatpush1.msra.mxu0 0.0
        %2407 = vmatprep.subr.mxu0 0.0
        %2408 = vmatpush1.msra.mxu0 0.0
        %2409 = vmatprep.subr.mxu0 0.0
        %2410 = vmatpush1.msra.mxu0 0.0
        %2411 = vmatprep.subr.mxu0 0.0
        %2412 = vmatpush1.msra.mxu0 0.0
        %2413 = vmatprep.subr.mxu0 0.0
        %2414 = vmatpush1.msra.mxu0 0.0
        %2415 = vmatprep.subr.mxu0 0.0
        %2416 = vmatpush1.msra.mxu0 0.0
        %2417 = vmatprep.subr.mxu0 0.0
        %2418 = vmatpush1.msra.mxu0 0.0
        %2419 = vmatprep.subr.mxu0 0.0
        %2420 = vmatpush1.msra.mxu0 0.0
        %2421 = vmatprep.subr.mxu0 0.0
        %2422 = vmatpush1.msra.mxu0 0.0
        %2423 = vmatprep.subr.mxu0 0.0
        %2424 = vmatpush1.msra.mxu0 0.0
        %2425 = vmatprep.subr.mxu0 0.0
        %2426 = vmatpush1.msra.mxu0 0.0
        %2427 = vmatprep.subr.mxu0 0.0
        %2428 = vmatpush1.msra.mxu0 0.0
        %2429 = vmatprep.subr.mxu0 0.0
        %2430 = vmatpush1.msra.mxu0 0.0
        %2431 = vmatprep.subr.mxu0 0.0
        %2432 = vmatpush1.msra.mxu0 0.0
        %2433 = vmatprep.subr.mxu0 0.0
        %2434 = vmatpush1.msra.mxu0 0.0
        %2435 = vmatprep.subr.mxu0 0.0
        %2436 = vmatpush1.msra.mxu0 0.0
        %2437 = vmatprep.subr.mxu0 0.0
        %2438 = vmatpush1.msra.mxu0 0.0
        %2439 = vmatprep.subr.mxu0 0.0
        %2440 = vmatpush1.msra.mxu0 0.0
        %2441 = vmatprep.mubr.f32.mxu0 0.0
        %2442 = vmatmul.mubr.f32.gmra.mrb[0].mxu0 %v2372
        %v2443 = vpop.f32.mrb[0].mxu0
        %v2444 = vadd.f32 0.0, %v2443
        %v2445 = vpop.f32.mrb[0].mxu0
        %2446 = vmatprep.mubr.f32.mxu0 0.0
        %2447 = vmatmul.mubr.f32.gmra.mrb[0].mxu0 %v2375
        %v2448 = vpop.f32.mrb[0].mxu0
        %v2449 = vadd.f32 0.0, %v2448
        %v2450 = vpop.f32.mrb[0].mxu0
        %2451 = vdwg.mxu0
        %2454 = vrot.lane.b32.xlu0 %v2444, 127
        %v2455 = vpop.permute.xlu0 %2454
        %2456 = vrot.lane.b32.xlu0 %v2449, 127
        %v2457 = vpop.permute.xlu0 %2456
        %2460 = vrot.lane.b32.xlu0 %v2444, 126
        %v2461 = vpop.permute.xlu0 %2460
        %2462 = vrot.lane.b32.xlu0 %v2449, 126
        %v2463 = vpop.permute.xlu0 %2462
        %v2466 = vld [vmem:[#allocation11] sm:$0xff]
        %v2467 = vld [vmem:[#allocation11 + $0x8] sm:$0xff]
        %v2468 = vld [vmem:[%s39] sm:$0xff]
        %v2469 = vld [vmem:[%s39 + $0x8] sm:$0xff]
        %2471 = vset.pattern.permute.xlu0 0
        %2472 = vperm.xlu0 %2471, %v2468
        %v2473 = vpop.permute.xlu0 %2472
        %2476 = vset.pattern.permute.xlu0 0
        %2477 = vperm.xlu0 %2476, %v2469
        %v2478 = vpop.permute.xlu0 %2477
        %vm2480 = vcmask 392192
        %v2482 = vsel %vm2480, %v2466, 0
        %v2485 = vsel %vm2480, %v2467, 0
        %2487 = vmatprep.subr.mxu0 0.0
        %2488 = vmatpush1.msra.mxu0 %v2444
        %2489 = vmatprep.subr.mxu0 0.0
        %2490 = vmatpush1.msra.mxu0 %v2449
        %2491 = vmatprep.subr.mxu0 0.0
        %2492 = vmatpush1.msra.mxu0 %v2455
        %2493 = vmatprep.subr.mxu0 0.0
        %2494 = vmatpush1.msra.mxu0 %v2457
        %2495 = vmatprep.subr.mxu0 0.0
        %2496 = vmatpush1.msra.mxu0 %v2461
        %2497 = vmatprep.subr.mxu0 0.0
        %2498 = vmatpush1.msra.mxu0 %v2463
        %2499 = vmatprep.subr.mxu0 0.0
        %2500 = vmatpush1.msra.mxu0 0.0
        %2501 = vmatprep.subr.mxu0 0.0
        %2502 = vmatpush1.msra.mxu0 0.0
        %2503 = vmatprep.subr.mxu0 0.0
        %2504 = vmatpush1.msra.mxu0 0.0
        %2505 = vmatprep.subr.mxu0 0.0
        %2506 = vmatpush1.msra.mxu0 0.0
        %2507 = vmatprep.subr.mxu0 0.0
        %2508 = vmatpush1.msra.mxu0 0.0
        %2509 = vmatprep.subr.mxu0 0.0
        %2510 = vmatpush1.msra.mxu0 0.0
        %2511 = vmatprep.subr.mxu0 0.0
        %2512 = vmatpush1.msra.mxu0 0.0
        %2513 = vmatprep.subr.mxu0 0.0
        %2514 = vmatpush1.msra.mxu0 0.0
        %2515 = vmatprep.subr.mxu0 0.0
        %2516 = vmatpush1.msra.mxu0 0.0
        %2517 = vmatprep.subr.mxu0 0.0
        %2518 = vmatpush1.msra.mxu0 0.0
        %2519 = vmatprep.subr.mxu0 0.0
        %2520 = vmatpush1.msra.mxu0 0.0
        %2521 = vmatprep.subr.mxu0 0.0
        %2522 = vmatpush1.msra.mxu0 0.0
        %2523 = vmatprep.subr.mxu0 0.0
        %2524 = vmatpush1.msra.mxu0 0.0
        %2525 = vmatprep.subr.mxu0 0.0
        %2526 = vmatpush1.msra.mxu0 0.0
        %2527 = vmatprep.subr.mxu0 0.0
        %2528 = vmatpush1.msra.mxu0 0.0
        %2529 = vmatprep.subr.mxu0 0.0
        %2530 = vmatpush1.msra.mxu0 0.0
        %2531 = vmatprep.subr.mxu0 0.0
        %2532 = vmatpush1.msra.mxu0 0.0
        %2533 = vmatprep.subr.mxu0 0.0
        %2534 = vmatpush1.msra.mxu0 0.0
        %2535 = vmatprep.subr.mxu0 0.0
        %2536 = vmatpush1.msra.mxu0 0.0
        %2537 = vmatprep.subr.mxu0 0.0
        %2538 = vmatpush1.msra.mxu0 0.0
        %2539 = vmatprep.subr.mxu0 0.0
        %2540 = vmatpush1.msra.mxu0 0.0
        %2541 = vmatprep.subr.mxu0 0.0
        %2542 = vmatpush1.msra.mxu0 0.0
        %2543 = vmatprep.subr.mxu0 0.0
        %2544 = vmatpush1.msra.mxu0 0.0
        %2545 = vmatprep.subr.mxu0 0.0
        %2546 = vmatpush1.msra.mxu0 0.0
        %2547 = vmatprep.subr.mxu0 0.0
        %2548 = vmatpush1.msra.mxu0 0.0
        %2549 = vmatprep.subr.mxu0 0.0
        %2550 = vmatpush1.msra.mxu0 0.0
        %2551 = vmatprep.mubr.f32.mxu0 0.0
        %2552 = vmatmul.mubr.f32.gmra.mrb[0].mxu0 %v2482
        %v2553 = vpop.f32.mrb[0].mxu0
        %v2554 = vadd.f32 %v2473, %v2553
        %v2555 = vpop.f32.mrb[0].mxu0
        %2556 = vmatprep.mubr.f32.mxu0 0.0
        %2557 = vmatmul.mubr.f32.gmra.mrb[0].mxu0 %v2485
        %v2558 = vpop.f32.mrb[0].mxu0
        %v2559 = vadd.f32 %v2478, %v2558
        %v2560 = vpop.f32.mrb[0].mxu0
        %2561 = vdwg.mxu0
        %vm2562 = vcmp.ge.f32.partialorder %v2554, 0.0
        %vm2563 = vcmp.ge.f32.partialorder %v2559, 0.0
        %v2564 = vmul.f32 %v2554, 0.1
        %v2565 = vmul.f32 %v2559, 0.1
        %v2566 = vsel %vm2562, %v2554, %v2564
        %v2567 = vsel %vm2563, %v2559, %v2565
        %v2569 = vsel %vm2370, %v2566, 0
        %v2572 = vsel %vm2370, %v2567, 0
        %2574 = vmatprep.subr.mxu0 0.0
        %2575 = vmatpush1.msra.mxu0 %v2366
        %2576 = vmatprep.subr.mxu0 0.0
        %2577 = vmatpush1.msra.mxu0 %v2367
        %2578 = vmatprep.subr.mxu0 0.0
        %2579 = vmatpush1.msra.mxu0 %v2368
        %2580 = vmatprep.subr.mxu0 0.0
        %2581 = vmatpush1.msra.mxu0 %v2369
        %2582 = vmatprep.subr.mxu0 0.0
        %2583 = vmatpush1.msra.mxu0 0.0
        %2584 = vmatprep.subr.mxu0 0.0
        %2585 = vmatpush1.msra.mxu0 0.0
        %2586 = vmatprep.subr.mxu0 0.0
        %2587 = vmatpush1.msra.mxu0 0.0
        %2588 = vmatprep.subr.mxu0 0.0
        %2589 = vmatpush1.msra.mxu0 0.0
        %2590 = vmatprep.subr.mxu0 0.0
        %2591 = vmatpush1.msra.mxu0 0.0
        %2592 = vmatprep.subr.mxu0 0.0
        %2593 = vmatpush1.msra.mxu0 0.0
        %2594 = vmatprep.subr.mxu0 0.0
        %2595 = vmatpush1.msra.mxu0 0.0
        %2596 = vmatprep.subr.mxu0 0.0
        %2597 = vmatpush1.msra.mxu0 0.0
        %2598 = vmatprep.subr.mxu0 0.0
        %2599 = vmatpush1.msra.mxu0 0.0
        %2600 = vmatprep.subr.mxu0 0.0
        %2601 = vmatpush1.msra.mxu0 0.0
        %2602 = vmatprep.subr.mxu0 0.0
        %2603 = vmatpush1.msra.mxu0 0.0
        %2604 = vmatprep.subr.mxu0 0.0
        %2605 = vmatpush1.msra.mxu0 0.0
        %2606 = vmatprep.subr.mxu0 0.0
        %2607 = vmatpush1.msra.mxu0 0.0
        %2608 = vmatprep.subr.mxu0 0.0
        %2609 = vmatpush1.msra.mxu0 0.0
        %2610 = vmatprep.subr.mxu0 0.0
        %2611 = vmatpush1.msra.mxu0 0.0
        %2612 = vmatprep.subr.mxu0 0.0
        %2613 = vmatpush1.msra.mxu0 0.0
        %2614 = vmatprep.subr.mxu0 0.0
        %2615 = vmatpush1.msra.mxu0 0.0
        %2616 = vmatprep.subr.mxu0 0.0
        %2617 = vmatpush1.msra.mxu0 0.0
        %2618 = vmatprep.subr.mxu0 0.0
        %2619 = vmatpush1.msra.mxu0 0.0
        %2620 = vmatprep.subr.mxu0 0.0
        %2621 = vmatpush1.msra.mxu0 0.0
        %2622 = vmatprep.subr.mxu0 0.0
        %2623 = vmatpush1.msra.mxu0 0.0
        %2624 = vmatprep.subr.mxu0 0.0
        %2625 = vmatpush1.msra.mxu0 0.0
        %2626 = vmatprep.subr.mxu0 0.0
        %2627 = vmatpush1.msra.mxu0 0.0
        %2628 = vmatprep.subr.mxu0 0.0
        %2629 = vmatpush1.msra.mxu0 0.0
        %2630 = vmatprep.subr.mxu0 0.0
        %2631 = vmatpush1.msra.mxu0 0.0
        %2632 = vmatprep.subr.mxu0 0.0
        %2633 = vmatpush1.msra.mxu0 0.0
        %2634 = vmatprep.subr.mxu0 0.0
        %2635 = vmatpush1.msra.mxu0 0.0
        %2636 = vmatprep.subr.mxu0 0.0
        %2637 = vmatpush1.msra.mxu0 0.0
        %2638 = vmatprep.mubr.f32.mxu0 0.0
        %2639 = vmatmul.mubr.f32.gmra.mrb[0].mxu0 %v2569
        %v2640 = vpop.f32.mrb[0].mxu0
        %v2641 = vadd.f32 0.0, %v2640
        %v2642 = vpop.f32.mrb[0].mxu0
        %2643 = vmatprep.mubr.f32.mxu0 0.0
        %2644 = vmatmul.mubr.f32.gmra.mrb[0].mxu0 %v2572
        %v2645 = vpop.f32.mrb[0].mxu0
        %v2646 = vadd.f32 0.0, %v2645
        %v2647 = vpop.f32.mrb[0].mxu0
        %2648 = vdwg.mxu0
        %2651 = vrot.lane.b32.xlu0 %v2641, 127
        %v2652 = vpop.permute.xlu0 %2651
        %2653 = vrot.lane.b32.xlu0 %v2646, 127
        %v2654 = vpop.permute.xlu0 %2653
        %2657 = vrot.lane.b32.xlu0 %v2641, 126
        %v2658 = vpop.permute.xlu0 %2657
        %2659 = vrot.lane.b32.xlu0 %v2646, 126
        %v2660 = vpop.permute.xlu0 %2659
        %v2663 = vld [vmem:[%s41] sm:$0xff]
        %v2664 = vld [vmem:[%s41 + $0x8] sm:$0xff]
        %v2665 = vld [vmem:[%s43] sm:$0xff]
        %v2666 = vld [vmem:[%s43 + $0x8] sm:$0xff]
        %2668 = vset.pattern.permute.xlu0 0
        %2669 = vperm.xlu0 %2668, %v2665
        %v2670 = vpop.permute.xlu0 %2669
        %2673 = vset.pattern.permute.xlu0 0
        %2674 = vperm.xlu0 %2673, %v2666
        %v2675 = vpop.permute.xlu0 %2674
        %v2678 = vsel %vm2480, %v2663, 0
        %v2681 = vsel %vm2480, %v2664, 0
        %2683 = vmatprep.subr.mxu0 0.0
        %2684 = vmatpush1.msra.mxu0 %v2641
        %2685 = vmatprep.subr.mxu0 0.0
        %2686 = vmatpush1.msra.mxu0 %v2646
        %2687 = vmatprep.subr.mxu0 0.0
        %2688 = vmatpush1.msra.mxu0 %v2652
        %2689 = vmatprep.subr.mxu0 0.0
        %2690 = vmatpush1.msra.mxu0 %v2654
        %2691 = vmatprep.subr.mxu0 0.0
        %2692 = vmatpush1.msra.mxu0 %v2658
        %2693 = vmatprep.subr.mxu0 0.0
        %2694 = vmatpush1.msra.mxu0 %v2660
        %2695 = vmatprep.subr.mxu0 0.0
        %2696 = vmatpush1.msra.mxu0 0.0
        %2697 = vmatprep.subr.mxu0 0.0
        %2698 = vmatpush1.msra.mxu0 0.0
        %2699 = vmatprep.subr.mxu0 0.0
        %2700 = vmatpush1.msra.mxu0 0.0
        %2701 = vmatprep.subr.mxu0 0.0
        %2702 = vmatpush1.msra.mxu0 0.0
        %2703 = vmatprep.subr.mxu0 0.0
        %2704 = vmatpush1.msra.mxu0 0.0
        %2705 = vmatprep.subr.mxu0 0.0
        %2706 = vmatpush1.msra.mxu0 0.0
        %2707 = vmatprep.subr.mxu0 0.0
        %2708 = vmatpush1.msra.mxu0 0.0
        %2709 = vmatprep.subr.mxu0 0.0
        %2710 = vmatpush1.msra.mxu0 0.0
        %2711 = vmatprep.subr.mxu0 0.0
        %2712 = vmatpush1.msra.mxu0 0.0
        %2713 = vmatprep.subr.mxu0 0.0
        %2714 = vmatpush1.msra.mxu0 0.0
        %2715 = vmatprep.subr.mxu0 0.0
        %2716 = vmatpush1.msra.mxu0 0.0
        %2717 = vmatprep.subr.mxu0 0.0
        %2718 = vmatpush1.msra.mxu0 0.0
        %2719 = vmatprep.subr.mxu0 0.0
        %2720 = vmatpush1.msra.mxu0 0.0
        %2721 = vmatprep.subr.mxu0 0.0
        %2722 = vmatpush1.msra.mxu0 0.0
        %2723 = vmatprep.subr.mxu0 0.0
        %2724 = vmatpush1.msra.mxu0 0.0
        %2725 = vmatprep.subr.mxu0 0.0
        %2726 = vmatpush1.msra.mxu0 0.0
        %2727 = vmatprep.subr.mxu0 0.0
        %2728 = vmatpush1.msra.mxu0 0.0
        %2729 = vmatprep.subr.mxu0 0.0
        %2730 = vmatpush1.msra.mxu0 0.0
        %2731 = vmatprep.subr.mxu0 0.0
        %2732 = vmatpush1.msra.mxu0 0.0
        %2733 = vmatprep.subr.mxu0 0.0
        %2734 = vmatpush1.msra.mxu0 0.0
        %2735 = vmatprep.subr.mxu0 0.0
        %2736 = vmatpush1.msra.mxu0 0.0
        %2737 = vmatprep.subr.mxu0 0.0
        %2738 = vmatpush1.msra.mxu0 0.0
        %2739 = vmatprep.subr.mxu0 0.0
        %2740 = vmatpush1.msra.mxu0 0.0
        %2741 = vmatprep.subr.mxu0 0.0
        %2742 = vmatpush1.msra.mxu0 0.0
        %2743 = vmatprep.subr.mxu0 0.0
        %2744 = vmatpush1.msra.mxu0 0.0
        %2745 = vmatprep.subr.mxu0 0.0
        %2746 = vmatpush1.msra.mxu0 0.0
        %2747 = vmatprep.mubr.f32.mxu0 0.0
        %2748 = vmatmul.mubr.f32.gmra.mrb[0].mxu0 %v2678
        %v2749 = vpop.f32.mrb[0].mxu0
        %v2750 = vadd.f32 %v2670, %v2749
        %v2751 = vpop.f32.mrb[0].mxu0
        %2752 = vmatprep.mubr.f32.mxu0 0.0
        %2753 = vmatmul.mubr.f32.gmra.mrb[0].mxu0 %v2681
        %v2754 = vpop.f32.mrb[0].mxu0
        %v2755 = vadd.f32 %v2675, %v2754
        %v2756 = vpop.f32.mrb[0].mxu0
        %2757 = vdwg.mxu0
        %v2758 = vadd.f32 %v2352, %v2750
        %v2759 = vadd.f32 %v2357, %v2755
        %vm2760 = vcmp.ge.f32.partialorder %v2758, 0.0
        %vm2761 = vcmp.ge.f32.partialorder %v2759, 0.0
        %v2762 = vmul.f32 %v2758, 0.1
        %v2763 = vmul.f32 %v2759, 0.1
        %v2764 = vsel %vm2760, %v2758, %v2762
        %v2765 = vsel %vm2761, %v2759, %v2763
        %v2766 = vld [vmem:[%s9] sm:$0xff]
        %v2767 = vld [vmem:[%s9 + $0x8] sm:$0xff]
        %v2768 = vld [vmem:[%s9 + $0x10] sm:$0xff]
        %v2769 = vld [vmem:[%s9 + $0x18] sm:$0xff]
        %v2771 = vsel %vm2370, %v2764, 0
        %v2774 = vsel %vm2370, %v2765, 0
        %2776 = vmatprep.subr.mxu0 0.0
        %2777 = vmatpush1.msra.mxu0 %v2766
        %2778 = vmatprep.subr.mxu0 0.0
        %2779 = vmatpush1.msra.mxu0 %v2767
        %2780 = vmatprep.subr.mxu0 0.0
        %2781 = vmatpush1.msra.mxu0 %v2768
        %2782 = vmatprep.subr.mxu0 0.0
        %2783 = vmatpush1.msra.mxu0 %v2769
        %2784 = vmatprep.subr.mxu0 0.0
        %2785 = vmatpush1.msra.mxu0 0.0
        %2786 = vmatprep.subr.mxu0 0.0
        %2787 = vmatpush1.msra.mxu0 0.0
        %2788 = vmatprep.subr.mxu0 0.0
        %2789 = vmatpush1.msra.mxu0 0.0
        %2790 = vmatprep.subr.mxu0 0.0
        %2791 = vmatpush1.msra.mxu0 0.0
        %2792 = vmatprep.subr.mxu0 0.0
        %2793 = vmatpush1.msra.mxu0 0.0
        %2794 = vmatprep.subr.mxu0 0.0
        %2795 = vmatpush1.msra.mxu0 0.0
        %2796 = vmatprep.subr.mxu0 0.0
        %2797 = vmatpush1.msra.mxu0 0.0
        %2798 = vmatprep.subr.mxu0 0.0
        %2799 = vmatpush1.msra.mxu0 0.0
        %2800 = vmatprep.subr.mxu0 0.0
        %2801 = vmatpush1.msra.mxu0 0.0
        %2802 = vmatprep.subr.mxu0 0.0
        %2803 = vmatpush1.msra.mxu0 0.0
        %2804 = vmatprep.subr.mxu0 0.0
        %2805 = vmatpush1.msra.mxu0 0.0
        %2806 = vmatprep.subr.mxu0 0.0
        %2807 = vmatpush1.msra.mxu0 0.0
        %2808 = vmatprep.subr.mxu0 0.0
        %2809 = vmatpush1.msra.mxu0 0.0
        %2810 = vmatprep.subr.mxu0 0.0
        %2811 = vmatpush1.msra.mxu0 0.0
        %2812 = vmatprep.subr.mxu0 0.0
        %2813 = vmatpush1.msra.mxu0 0.0
        %2814 = vmatprep.subr.mxu0 0.0
        %2815 = vmatpush1.msra.mxu0 0.0
        %2816 = vmatprep.subr.mxu0 0.0
        %2817 = vmatpush1.msra.mxu0 0.0
        %2818 = vmatprep.subr.mxu0 0.0
        %2819 = vmatpush1.msra.mxu0 0.0
        %2820 = vmatprep.subr.mxu0 0.0
        %2821 = vmatpush1.msra.mxu0 0.0
        %2822 = vmatprep.subr.mxu0 0.0
        %2823 = vmatpush1.msra.mxu0 0.0
        %2824 = vmatprep.subr.mxu0 0.0
        %2825 = vmatpush1.msra.mxu0 0.0
        %2826 = vmatprep.subr.mxu0 0.0
        %2827 = vmatpush1.msra.mxu0 0.0
        %2828 = vmatprep.subr.mxu0 0.0
        %2829 = vmatpush1.msra.mxu0 0.0
        %2830 = vmatprep.subr.mxu0 0.0
        %2831 = vmatpush1.msra.mxu0 0.0
        %2832 = vmatprep.subr.mxu0 0.0
        %2833 = vmatpush1.msra.mxu0 0.0
        %2834 = vmatprep.subr.mxu0 0.0
        %2835 = vmatpush1.msra.mxu0 0.0
        %2836 = vmatprep.subr.mxu0 0.0
        %2837 = vmatpush1.msra.mxu0 0.0
        %2838 = vmatprep.subr.mxu0 0.0
        %2839 = vmatpush1.msra.mxu0 0.0
        %2840 = vmatprep.mubr.f32.mxu0 0.0
        %2841 = vmatmul.mubr.f32.gmra.mrb[0].mxu0 %v2771
        %v2842 = vpop.f32.mrb[0].mxu0
        %v2843 = vadd.f32 0.0, %v2842
        %v2844 = vpop.f32.mrb[0].mxu0
        %2845 = vmatprep.mubr.f32.mxu0 0.0
        %2846 = vmatmul.mubr.f32.gmra.mrb[0].mxu0 %v2774
        %v2847 = vpop.f32.mrb[0].mxu0
        %v2848 = vadd.f32 0.0, %v2847
        %v2849 = vpop.f32.mrb[0].mxu0
        %2850 = vdwg.mxu0
        %2853 = vrot.lane.b32.xlu0 %v2843, 125
        %v2854 = vpop.permute.xlu0 %2853
        %2855 = vrot.lane.b32.xlu0 %v2848, 125
        %v2856 = vpop.permute.xlu0 %2855
        %2859 = vrot.lane.b32.xlu0 %v2843, 122
        %v2860 = vpop.permute.xlu0 %2859
        %2861 = vrot.lane.b32.xlu0 %v2848, 122
        %v2862 = vpop.permute.xlu0 %2861
        %v2865 = vld [vmem:[#allocation13] sm:$0xff]
        %v2866 = vld [vmem:[#allocation13 + $0x8] sm:$0xff]
        %v2867 = vld [vmem:[%s47] sm:$0xff]
        %v2868 = vld [vmem:[%s47 + $0x8] sm:$0xff]
        %2870 = vset.pattern.permute.xlu0 0
        %2871 = vperm.xlu0 %2870, %v2867
        %v2872 = vpop.permute.xlu0 %2871
        %2875 = vset.pattern.permute.xlu0 0
        %2876 = vperm.xlu0 %2875, %v2868
        %v2877 = vpop.permute.xlu0 %2876
        %v2880 = vsel %vm2480, %v2865, 0
        %v2883 = vsel %vm2480, %v2866, 0
        %2885 = vmatprep.subr.mxu0 0.0
        %2886 = vmatpush1.msra.mxu0 %v2843
        %2887 = vmatprep.subr.mxu0 0.0
        %2888 = vmatpush1.msra.mxu0 %v2848
        %2889 = vmatprep.subr.mxu0 0.0
        %2890 = vmatpush1.msra.mxu0 %v2854
        %2891 = vmatprep.subr.mxu0 0.0
        %2892 = vmatpush1.msra.mxu0 %v2856
        %2893 = vmatprep.subr.mxu0 0.0
        %2894 = vmatpush1.msra.mxu0 %v2860
        %2895 = vmatprep.subr.mxu0 0.0
        %2896 = vmatpush1.msra.mxu0 %v2862
        %2897 = vmatprep.subr.mxu0 0.0
        %2898 = vmatpush1.msra.mxu0 0.0
        %2899 = vmatprep.subr.mxu0 0.0
        %2900 = vmatpush1.msra.mxu0 0.0
        %2901 = vmatprep.subr.mxu0 0.0
        %2902 = vmatpush1.msra.mxu0 0.0
        %2903 = vmatprep.subr.mxu0 0.0
        %2904 = vmatpush1.msra.mxu0 0.0
        %2905 = vmatprep.subr.mxu0 0.0
        %2906 = vmatpush1.msra.mxu0 0.0
        %2907 = vmatprep.subr.mxu0 0.0
        %2908 = vmatpush1.msra.mxu0 0.0
        %2909 = vmatprep.subr.mxu0 0.0
        %2910 = vmatpush1.msra.mxu0 0.0
        %2911 = vmatprep.subr.mxu0 0.0
        %2912 = vmatpush1.msra.mxu0 0.0
        %2913 = vmatprep.subr.mxu0 0.0
        %2914 = vmatpush1.msra.mxu0 0.0
        %2915 = vmatprep.subr.mxu0 0.0
        %2916 = vmatpush1.msra.mxu0 0.0
        %2917 = vmatprep.subr.mxu0 0.0
        %2918 = vmatpush1.msra.mxu0 0.0
        %2919 = vmatprep.subr.mxu0 0.0
        %2920 = vmatpush1.msra.mxu0 0.0
        %2921 = vmatprep.subr.mxu0 0.0
        %2922 = vmatpush1.msra.mxu0 0.0
        %2923 = vmatprep.subr.mxu0 0.0
        %2924 = vmatpush1.msra.mxu0 0.0
        %2925 = vmatprep.subr.mxu0 0.0
        %2926 = vmatpush1.msra.mxu0 0.0
        %2927 = vmatprep.subr.mxu0 0.0
        %2928 = vmatpush1.msra.mxu0 0.0
        %2929 = vmatprep.subr.mxu0 0.0
        %2930 = vmatpush1.msra.mxu0 0.0
        %2931 = vmatprep.subr.mxu0 0.0
        %2932 = vmatpush1.msra.mxu0 0.0
        %2933 = vmatprep.subr.mxu0 0.0
        %2934 = vmatpush1.msra.mxu0 0.0
        %2935 = vmatprep.subr.mxu0 0.0
        %2936 = vmatpush1.msra.mxu0 0.0
        %2937 = vmatprep.subr.mxu0 0.0
        %2938 = vmatpush1.msra.mxu0 0.0
        %2939 = vmatprep.subr.mxu0 0.0
        %2940 = vmatpush1.msra.mxu0 0.0
        %2941 = vmatprep.subr.mxu0 0.0
        %2942 = vmatpush1.msra.mxu0 0.0
        %2943 = vmatprep.subr.mxu0 0.0
        %2944 = vmatpush1.msra.mxu0 0.0
        %2945 = vmatprep.subr.mxu0 0.0
        %2946 = vmatpush1.msra.mxu0 0.0
        %2947 = vmatprep.subr.mxu0 0.0
        %2948 = vmatpush1.msra.mxu0 0.0
        %2949 = vmatprep.mubr.f32.mxu0 0.0
        %2950 = vmatmul.mubr.f32.gmra.mrb[0].mxu0 %v2880
        %v2951 = vpop.f32.mrb[0].mxu0
        %v2952 = vadd.f32 %v2872, %v2951
        %v2953 = vpop.f32.mrb[0].mxu0
        %2954 = vmatprep.mubr.f32.mxu0 0.0
        %2955 = vmatmul.mubr.f32.gmra.mrb[0].mxu0 %v2883
        %v2956 = vpop.f32.mrb[0].mxu0
        %v2957 = vadd.f32 %v2877, %v2956
        %v2958 = vpop.f32.mrb[0].mxu0
        %2959 = vdwg.mxu0
        %vm2960 = vcmp.ge.f32.partialorder %v2952, 0.0
        %vm2961 = vcmp.ge.f32.partialorder %v2957, 0.0
        %v2962 = vmul.f32 %v2952, 0.1
        %v2963 = vmul.f32 %v2957, 0.1
        %v2964 = vsel %vm2960, %v2952, %v2962
        %v2965 = vsel %vm2961, %v2957, %v2963
        %v2967 = vsel %vm2370, %v2964, 0
        %v2970 = vsel %vm2370, %v2965, 0
        %2972 = vmatprep.subr.mxu0 0.0
        %2973 = vmatpush1.msra.mxu0 %v2366
        %2974 = vmatprep.subr.mxu0 0.0
        %2975 = vmatpush1.msra.mxu0 %v2367
        %2976 = vmatprep.subr.mxu0 0.0
        %2977 = vmatpush1.msra.mxu0 %v2368
        %2978 = vmatprep.subr.mxu0 0.0
        %2979 = vmatpush1.msra.mxu0 %v2369
        %2980 = vmatprep.subr.mxu0 0.0
        %2981 = vmatpush1.msra.mxu0 0.0
        %2982 = vmatprep.subr.mxu0 0.0
        %2983 = vmatpush1.msra.mxu0 0.0
        %2984 = vmatprep.subr.mxu0 0.0
        %2985 = vmatpush1.msra.mxu0 0.0
        %2986 = vmatprep.subr.mxu0 0.0
        %2987 = vmatpush1.msra.mxu0 0.0
        %2988 = vmatprep.subr.mxu0 0.0
        %2989 = vmatpush1.msra.mxu0 0.0
        %2990 = vmatprep.subr.mxu0 0.0
        %2991 = vmatpush1.msra.mxu0 0.0
        %2992 = vmatprep.subr.mxu0 0.0
        %2993 = vmatpush1.msra.mxu0 0.0
        %2994 = vmatprep.subr.mxu0 0.0
        %2995 = vmatpush1.msra.mxu0 0.0
        %2996 = vmatprep.subr.mxu0 0.0
        %2997 = vmatpush1.msra.mxu0 0.0
        %2998 = vmatprep.subr.mxu0 0.0
        %2999 = vmatpush1.msra.mxu0 0.0
        %3000 = vmatprep.subr.mxu0 0.0
        %3001 = vmatpush1.msra.mxu0 0.0
        %3002 = vmatprep.subr.mxu0 0.0
        %3003 = vmatpush1.msra.mxu0 0.0
        %3004 = vmatprep.subr.mxu0 0.0
        %3005 = vmatpush1.msra.mxu0 0.0
        %3006 = vmatprep.subr.mxu0 0.0
        %3007 = vmatpush1.msra.mxu0 0.0
        %3008 = vmatprep.subr.mxu0 0.0
        %3009 = vmatpush1.msra.mxu0 0.0
        %3010 = vmatprep.subr.mxu0 0.0
        %3011 = vmatpush1.msra.mxu0 0.0
        %3012 = vmatprep.subr.mxu0 0.0
        %3013 = vmatpush1.msra.mxu0 0.0
        %3014 = vmatprep.subr.mxu0 0.0
        %3015 = vmatpush1.msra.mxu0 0.0
        %3016 = vmatprep.subr.mxu0 0.0
        %3017 = vmatpush1.msra.mxu0 0.0
        %3018 = vmatprep.subr.mxu0 0.0
        %3019 = vmatpush1.msra.mxu0 0.0
        %3020 = vmatprep.subr.mxu0 0.0
        %3021 = vmatpush1.msra.mxu0 0.0
        %3022 = vmatprep.subr.mxu0 0.0
        %3023 = vmatpush1.msra.mxu0 0.0
        %3024 = vmatprep.subr.mxu0 0.0
        %3025 = vmatpush1.msra.mxu0 0.0
        %3026 = vmatprep.subr.mxu0 0.0
        %3027 = vmatpush1.msra.mxu0 0.0
        %3028 = vmatprep.subr.mxu0 0.0
        %3029 = vmatpush1.msra.mxu0 0.0
        %3030 = vmatprep.subr.mxu0 0.0
        %3031 = vmatpush1.msra.mxu0 0.0
        %3032 = vmatprep.subr.mxu0 0.0
        %3033 = vmatpush1.msra.mxu0 0.0
        %3034 = vmatprep.subr.mxu0 0.0
        %3035 = vmatpush1.msra.mxu0 0.0
        %3036 = vmatprep.mubr.f32.mxu0 0.0
        %3037 = vmatmul.mubr.f32.gmra.mrb[0].mxu0 %v2967
        %v3038 = vpop.f32.mrb[0].mxu0
        %v3039 = vadd.f32 0.0, %v3038
        %v3040 = vpop.f32.mrb[0].mxu0
        %3041 = vmatprep.mubr.f32.mxu0 0.0
        %3042 = vmatmul.mubr.f32.gmra.mrb[0].mxu0 %v2970
        %v3043 = vpop.f32.mrb[0].mxu0
        %v3044 = vadd.f32 0.0, %v3043
        %v3045 = vpop.f32.mrb[0].mxu0
        %3046 = vdwg.mxu0
        %3049 = vrot.lane.b32.xlu0 %v3039, 127
        %v3050 = vpop.permute.xlu0 %3049
        %3051 = vrot.lane.b32.xlu0 %v3044, 127
        %v3052 = vpop.permute.xlu0 %3051
        %3055 = vrot.lane.b32.xlu0 %v3039, 126
        %v3056 = vpop.permute.xlu0 %3055
        %3057 = vrot.lane.b32.xlu0 %v3044, 126
        %v3058 = vpop.permute.xlu0 %3057
        %v3061 = vld [vmem:[%s49] sm:$0xff]
        %v3062 = vld [vmem:[%s49 + $0x8] sm:$0xff]
        %v3063 = vld [vmem:[%s51] sm:$0xff]
        %v3064 = vld [vmem:[%s51 + $0x8] sm:$0xff]
        %3066 = vset.pattern.permute.xlu0 0
        %3067 = vperm.xlu0 %3066, %v3063
        %v3068 = vpop.permute.xlu0 %3067
        %3071 = vset.pattern.permute.xlu0 0
        %3072 = vperm.xlu0 %3071, %v3064
        %v3073 = vpop.permute.xlu0 %3072
        %v3076 = vsel %vm2480, %v3061, 0
        %v3079 = vsel %vm2480, %v3062, 0
        %3081 = vmatprep.subr.mxu0 0.0
        %3082 = vmatpush1.msra.mxu0 %v3039
        %3083 = vmatprep.subr.mxu0 0.0
        %3084 = vmatpush1.msra.mxu0 %v3044
        %3085 = vmatprep.subr.mxu0 0.0
        %3086 = vmatpush1.msra.mxu0 %v3050
        %3087 = vmatprep.subr.mxu0 0.0
        %3088 = vmatpush1.msra.mxu0 %v3052
        %3089 = vmatprep.subr.mxu0 0.0
        %3090 = vmatpush1.msra.mxu0 %v3056
        %3091 = vmatprep.subr.mxu0 0.0
        %3092 = vmatpush1.msra.mxu0 %v3058
        %3093 = vmatprep.subr.mxu0 0.0
        %3094 = vmatpush1.msra.mxu0 0.0
        %3095 = vmatprep.subr.mxu0 0.0
        %3096 = vmatpush1.msra.mxu0 0.0
        %3097 = vmatprep.subr.mxu0 0.0
        %3098 = vmatpush1.msra.mxu0 0.0
        %3099 = vmatprep.subr.mxu0 0.0
        %3100 = vmatpush1.msra.mxu0 0.0
        %3101 = vmatprep.subr.mxu0 0.0
        %3102 = vmatpush1.msra.mxu0 0.0
        %3103 = vmatprep.subr.mxu0 0.0
        %3104 = vmatpush1.msra.mxu0 0.0
        %3105 = vmatprep.subr.mxu0 0.0
        %3106 = vmatpush1.msra.mxu0 0.0
        %3107 = vmatprep.subr.mxu0 0.0
        %3108 = vmatpush1.msra.mxu0 0.0
        %3109 = vmatprep.subr.mxu0 0.0
        %3110 = vmatpush1.msra.mxu0 0.0
        %3111 = vmatprep.subr.mxu0 0.0
        %3112 = vmatpush1.msra.mxu0 0.0
        %3113 = vmatprep.subr.mxu0 0.0
        %3114 = vmatpush1.msra.mxu0 0.0
        %3115 = vmatprep.subr.mxu0 0.0
        %3116 = vmatpush1.msra.mxu0 0.0
        %3117 = vmatprep.subr.mxu0 0.0
        %3118 = vmatpush1.msra.mxu0 0.0
        %3119 = vmatprep.subr.mxu0 0.0
        %3120 = vmatpush1.msra.mxu0 0.0
        %3121 = vmatprep.subr.mxu0 0.0
        %3122 = vmatpush1.msra.mxu0 0.0
        %3123 = vmatprep.subr.mxu0 0.0
        %3124 = vmatpush1.msra.mxu0 0.0
        %3125 = vmatprep.subr.mxu0 0.0
        %3126 = vmatpush1.msra.mxu0 0.0
        %3127 = vmatprep.subr.mxu0 0.0
        %3128 = vmatpush1.msra.mxu0 0.0
        %3129 = vmatprep.subr.mxu0 0.0
        %3130 = vmatpush1.msra.mxu0 0.0
        %3131 = vmatprep.subr.mxu0 0.0
        %3132 = vmatpush1.msra.mxu0 0.0
        %3133 = vmatprep.subr.mxu0 0.0
        %3134 = vmatpush1.msra.mxu0 0.0
        %3135 = vmatprep.subr.mxu0 0.0
        %3136 = vmatpush1.msra.mxu0 0.0
        %3137 = vmatprep.subr.mxu0 0.0
        %3138 = vmatpush1.msra.mxu0 0.0
        %3139 = vmatprep.subr.mxu0 0.0
        %3140 = vmatpush1.msra.mxu0 0.0
        %3141 = vmatprep.subr.mxu0 0.0
        %3142 = vmatpush1.msra.mxu0 0.0
        %3143 = vmatprep.subr.mxu0 0.0
        %3144 = vmatpush1.msra.mxu0 0.0
        %3145 = vmatprep.mubr.f32.mxu0 0.0
        %3146 = vmatmul.mubr.f32.gmra.mrb[0].mxu0 %v3076
        %v3147 = vpop.f32.mrb[0].mxu0
        %v3148 = vadd.f32 %v3068, %v3147
        %v3149 = vpop.f32.mrb[0].mxu0
        %3150 = vmatprep.mubr.f32.mxu0 0.0
        %3151 = vmatmul.mubr.f32.gmra.mrb[0].mxu0 %v3079
        %v3152 = vpop.f32.mrb[0].mxu0
        %v3153 = vadd.f32 %v3073, %v3152
        %v3154 = vpop.f32.mrb[0].mxu0
        %3155 = vdwg.mxu0
        %v3156 = vadd.f32 %v2758, %v3148
        %v3157 = vadd.f32 %v2759, %v3153
        %v3158 = vld [vmem:[%s11] sm:$0xff]
        %v3159 = vld [vmem:[%s11 + $0x8] sm:$0xff]
        %v3160 = vld [vmem:[%s11 + $0x10] sm:$0xff]
        %v3161 = vld [vmem:[%s11 + $0x18] sm:$0xff]
        %3162 = vmatprep.subr.mxu0 0.0
        %3163 = vmatpush1.msra.mxu0 %v3158
        %3164 = vmatprep.subr.mxu0 0.0
        %3165 = vmatpush1.msra.mxu0 %v3159
        %3166 = vmatprep.subr.mxu0 0.0
        %3167 = vmatpush1.msra.mxu0 %v3160
        %3168 = vmatprep.subr.mxu0 0.0
        %3169 = vmatpush1.msra.mxu0 %v3161
        %3170 = vmatprep.subr.mxu0 0.0
        %3171 = vmatpush1.msra.mxu0 0.0
        %3172 = vmatprep.subr.mxu0 0.0
        %3173 = vmatpush1.msra.mxu0 0.0
        %3174 = vmatprep.subr.mxu0 0.0
        %3175 = vmatpush1.msra.mxu0 0.0
        %3176 = vmatprep.subr.mxu0 0.0
        %3177 = vmatpush1.msra.mxu0 0.0
        %3178 = vmatprep.subr.mxu0 0.0
        %3179 = vmatpush1.msra.mxu0 0.0
        %3180 = vmatprep.subr.mxu0 0.0
        %3181 = vmatpush1.msra.mxu0 0.0
        %3182 = vmatprep.subr.mxu0 0.0
        %3183 = vmatpush1.msra.mxu0 0.0
        %3184 = vmatprep.subr.mxu0 0.0
        %3185 = vmatpush1.msra.mxu0 0.0
        %3186 = vmatprep.subr.mxu0 0.0
        %3187 = vmatpush1.msra.mxu0 0.0
        %3188 = vmatprep.subr.mxu0 0.0
        %3189 = vmatpush1.msra.mxu0 0.0
        %3190 = vmatprep.subr.mxu0 0.0
        %3191 = vmatpush1.msra.mxu0 0.0
        %3192 = vmatprep.subr.mxu0 0.0
        %3193 = vmatpush1.msra.mxu0 0.0
        %3194 = vmatprep.subr.mxu0 0.0
        %3195 = vmatpush1.msra.mxu0 0.0
        %3196 = vmatprep.subr.mxu0 0.0
        %3197 = vmatpush1.msra.mxu0 0.0
        %3198 = vmatprep.subr.mxu0 0.0
        %3199 = vmatpush1.msra.mxu0 0.0
        %3200 = vmatprep.subr.mxu0 0.0
        %3201 = vmatpush1.msra.mxu0 0.0
        %3202 = vmatprep.subr.mxu0 0.0
        %3203 = vmatpush1.msra.mxu0 0.0
        %3204 = vmatprep.subr.mxu0 0.0
        %3205 = vmatpush1.msra.mxu0 0.0
        %3206 = vmatprep.subr.mxu0 0.0
        %3207 = vmatpush1.msra.mxu0 0.0
        %3208 = vmatprep.subr.mxu0 0.0
        %3209 = vmatpush1.msra.mxu0 0.0
        %3210 = vmatprep.subr.mxu0 0.0
        %3211 = vmatpush1.msra.mxu0 0.0
        %3212 = vmatprep.subr.mxu0 0.0
        %3213 = vmatpush1.msra.mxu0 0.0
        %3214 = vmatprep.subr.mxu0 0.0
        %3215 = vmatpush1.msra.mxu0 0.0
        %3216 = vmatprep.subr.mxu0 0.0
        %3217 = vmatpush1.msra.mxu0 0.0
        %3218 = vmatprep.subr.mxu0 0.0
        %3219 = vmatpush1.msra.mxu0 0.0
        %3220 = vmatprep.subr.mxu0 0.0
        %3221 = vmatpush1.msra.mxu0 0.0
        %3222 = vmatprep.subr.mxu0 0.0
        %3223 = vmatpush1.msra.mxu0 0.0
        %3224 = vmatprep.subr.mxu0 0.0
        %3225 = vmatpush1.msra.mxu0 0.0
        %3226 = vmatprep.mubr.f32.mxu0 0.0
        %3227 = vmatmul.mubr.f32.gmra.mrb[0].mxu0 %v2372
        %v3228 = vpop.f32.mrb[0].mxu0
        %v3229 = vadd.f32 0.0, %v3228
        %v3230 = vpop.f32.mrb[0].mxu0
        %3231 = vmatprep.mubr.f32.mxu0 0.0
        %3232 = vmatmul.mubr.f32.gmra.mrb[0].mxu0 %v2375
        %v3233 = vpop.f32.mrb[0].mxu0
        %v3234 = vadd.f32 0.0, %v3233
        %v3235 = vpop.f32.mrb[0].mxu0
        %3236 = vdwg.mxu0
        %3239 = vrot.lane.b32.xlu0 %v3229, 127
        %v3240 = vpop.permute.xlu0 %3239
        %3241 = vrot.lane.b32.xlu0 %v3234, 127
        %v3242 = vpop.permute.xlu0 %3241
        %3245 = vrot.lane.b32.xlu0 %v3229, 126
        %v3246 = vpop.permute.xlu0 %3245
        %3247 = vrot.lane.b32.xlu0 %v3234, 126
        %v3248 = vpop.permute.xlu0 %3247
        %3251 = vrot.lane.b32.xlu0 %v3229, 125
        %v3252 = vpop.permute.xlu0 %3251
        %3253 = vrot.lane.b32.xlu0 %v3234, 125
        %v3254 = vpop.permute.xlu0 %3253
        %3257 = vrot.lane.b32.xlu0 %v3229, 124
        %v3258 = vpop.permute.xlu0 %3257
        %3259 = vrot.lane.b32.xlu0 %v3234, 124
        %v3260 = vpop.permute.xlu0 %3259
        %v3263 = vld [vmem:[#allocation14] sm:$0xff]
        %v3264 = vld [vmem:[#allocation14 + $0x8] sm:$0xff]
        %v3265 = vld [vmem:[%s55] sm:$0xff]
        %v3266 = vld [vmem:[%s55 + $0x8] sm:$0xff]
        %3268 = vset.pattern.permute.xlu0 0
        %3269 = vperm.xlu0 %3268, %v3265
        %v3270 = vpop.permute.xlu0 %3269
        %3273 = vset.pattern.permute.xlu0 0
        %3274 = vperm.xlu0 %3273, %v3266
        %v3275 = vpop.permute.xlu0 %3274
        %vm3277 = vcmask 654336
        %v3279 = vsel %vm3277, %v3263, 0
        %v3282 = vsel %vm3277, %v3264, 0
        %3284 = vmatprep.subr.mxu0 0.0
        %3285 = vmatpush1.msra.mxu0 %v3229
        %3286 = vmatprep.subr.mxu0 0.0
        %3287 = vmatpush1.msra.mxu0 %v3234
        %3288 = vmatprep.subr.mxu0 0.0
        %3289 = vmatpush1.msra.mxu0 %v3240
        %3290 = vmatprep.subr.mxu0 0.0
        %3291 = vmatpush1.msra.mxu0 %v3242
        %3292 = vmatprep.subr.mxu0 0.0
        %3293 = vmatpush1.msra.mxu0 %v3246
        %3294 = vmatprep.subr.mxu0 0.0
        %3295 = vmatpush1.msra.mxu0 %v3248
        %3296 = vmatprep.subr.mxu0 0.0
        %3297 = vmatpush1.msra.mxu0 %v3252
        %3298 = vmatprep.subr.mxu0 0.0
        %3299 = vmatpush1.msra.mxu0 %v3254
        %3300 = vmatprep.subr.mxu0 0.0
        %3301 = vmatpush1.msra.mxu0 %v3258
        %3302 = vmatprep.subr.mxu0 0.0
        %3303 = vmatpush1.msra.mxu0 %v3260
        %3304 = vmatprep.subr.mxu0 0.0
        %3305 = vmatpush1.msra.mxu0 0.0
        %3306 = vmatprep.subr.mxu0 0.0
        %3307 = vmatpush1.msra.mxu0 0.0
        %3308 = vmatprep.subr.mxu0 0.0
        %3309 = vmatpush1.msra.mxu0 0.0
        %3310 = vmatprep.subr.mxu0 0.0
        %3311 = vmatpush1.msra.mxu0 0.0
        %3312 = vmatprep.subr.mxu0 0.0
        %3313 = vmatpush1.msra.mxu0 0.0
        %3314 = vmatprep.subr.mxu0 0.0
        %3315 = vmatpush1.msra.mxu0 0.0
        %3316 = vmatprep.subr.mxu0 0.0
        %3317 = vmatpush1.msra.mxu0 0.0
        %3318 = vmatprep.subr.mxu0 0.0
        %3319 = vmatpush1.msra.mxu0 0.0
        %3320 = vmatprep.subr.mxu0 0.0
        %3321 = vmatpush1.msra.mxu0 0.0
        %3322 = vmatprep.subr.mxu0 0.0
        %3323 = vmatpush1.msra.mxu0 0.0
        %3324 = vmatprep.subr.mxu0 0.0
        %3325 = vmatpush1.msra.mxu0 0.0
        %3326 = vmatprep.subr.mxu0 0.0
        %3327 = vmatpush1.msra.mxu0 0.0
        %3328 = vmatprep.subr.mxu0 0.0
        %3329 = vmatpush1.msra.mxu0 0.0
        %3330 = vmatprep.subr.mxu0 0.0
        %3331 = vmatpush1.msra.mxu0 0.0
        %3332 = vmatprep.subr.mxu0 0.0
        %3333 = vmatpush1.msra.mxu0 0.0
        %3334 = vmatprep.subr.mxu0 0.0
        %3335 = vmatpush1.msra.mxu0 0.0
        %3336 = vmatprep.subr.mxu0 0.0
        %3337 = vmatpush1.msra.mxu0 0.0
        %3338 = vmatprep.subr.mxu0 0.0
        %3339 = vmatpush1.msra.mxu0 0.0
        %3340 = vmatprep.subr.mxu0 0.0
        %3341 = vmatpush1.msra.mxu0 0.0
        %3342 = vmatprep.subr.mxu0 0.0
        %3343 = vmatpush1.msra.mxu0 0.0
        %3344 = vmatprep.subr.mxu0 0.0
        %3345 = vmatpush1.msra.mxu0 0.0
        %3346 = vmatprep.subr.mxu0 0.0
        %3347 = vmatpush1.msra.mxu0 0.0
        %3348 = vmatprep.mubr.f32.mxu0 0.0
        %3349 = vmatmul.mubr.f32.gmra.mrb[0].mxu0 %v3279
        %v3350 = vpop.f32.mrb[0].mxu0
        %v3351 = vadd.f32 %v3270, %v3350
        %v3352 = vpop.f32.mrb[0].mxu0
        %3353 = vmatprep.mubr.f32.mxu0 0.0
        %3354 = vmatmul.mubr.f32.gmra.mrb[0].mxu0 %v3282
        %v3355 = vpop.f32.mrb[0].mxu0
        %v3356 = vadd.f32 %v3275, %v3355
        %v3357 = vpop.f32.mrb[0].mxu0
        %3358 = vdwg.mxu0
        %vm3359 = vcmp.ge.f32.partialorder %v3351, 0.0
        %vm3360 = vcmp.ge.f32.partialorder %v3356, 0.0
        %v3361 = vmul.f32 %v3351, 0.1
        %v3362 = vmul.f32 %v3356, 0.1
        %v3363 = vsel %vm3359, %v3351, %v3361
        %v3364 = vsel %vm3360, %v3356, %v3362
        %v3366 = vsel %vm2370, %v3363, 0
        %v3369 = vsel %vm2370, %v3364, 0
        %3371 = vmatprep.subr.mxu0 0.0
        %3372 = vmatpush1.msra.mxu0 %v3158
        %3373 = vmatprep.subr.mxu0 0.0
        %3374 = vmatpush1.msra.mxu0 %v3159
        %3375 = vmatprep.subr.mxu0 0.0
        %3376 = vmatpush1.msra.mxu0 %v3160
        %3377 = vmatprep.subr.mxu0 0.0
        %3378 = vmatpush1.msra.mxu0 %v3161
        %3379 = vmatprep.subr.mxu0 0.0
        %3380 = vmatpush1.msra.mxu0 0.0
        %3381 = vmatprep.subr.mxu0 0.0
        %3382 = vmatpush1.msra.mxu0 0.0
        %3383 = vmatprep.subr.mxu0 0.0
        %3384 = vmatpush1.msra.mxu0 0.0
        %3385 = vmatprep.subr.mxu0 0.0
        %3386 = vmatpush1.msra.mxu0 0.0
        %3387 = vmatprep.subr.mxu0 0.0
        %3388 = vmatpush1.msra.mxu0 0.0
        %3389 = vmatprep.subr.mxu0 0.0
        %3390 = vmatpush1.msra.mxu0 0.0
        %3391 = vmatprep.subr.mxu0 0.0
        %3392 = vmatpush1.msra.mxu0 0.0
        %3393 = vmatprep.subr.mxu0 0.0
        %3394 = vmatpush1.msra.mxu0 0.0
        %3395 = vmatprep.subr.mxu0 0.0
        %3396 = vmatpush1.msra.mxu0 0.0
        %3397 = vmatprep.subr.mxu0 0.0
        %3398 = vmatpush1.msra.mxu0 0.0
        %3399 = vmatprep.subr.mxu0 0.0
        %3400 = vmatpush1.msra.mxu0 0.0
        %3401 = vmatprep.subr.mxu0 0.0
        %3402 = vmatpush1.msra.mxu0 0.0
        %3403 = vmatprep.subr.mxu0 0.0
        %3404 = vmatpush1.msra.mxu0 0.0
        %3405 = vmatprep.subr.mxu0 0.0
        %3406 = vmatpush1.msra.mxu0 0.0
        %3407 = vmatprep.subr.mxu0 0.0
        %3408 = vmatpush1.msra.mxu0 0.0
        %3409 = vmatprep.subr.mxu0 0.0
        %3410 = vmatpush1.msra.mxu0 0.0
        %3411 = vmatprep.subr.mxu0 0.0
        %3412 = vmatpush1.msra.mxu0 0.0
        %3413 = vmatprep.subr.mxu0 0.0
        %3414 = vmatpush1.msra.mxu0 0.0
        %3415 = vmatprep.subr.mxu0 0.0
        %3416 = vmatpush1.msra.mxu0 0.0
        %3417 = vmatprep.subr.mxu0 0.0
        %3418 = vmatpush1.msra.mxu0 0.0
        %3419 = vmatprep.subr.mxu0 0.0
        %3420 = vmatpush1.msra.mxu0 0.0
        %3421 = vmatprep.subr.mxu0 0.0
        %3422 = vmatpush1.msra.mxu0 0.0
        %3423 = vmatprep.subr.mxu0 0.0
        %3424 = vmatpush1.msra.mxu0 0.0
        %3425 = vmatprep.subr.mxu0 0.0
        %3426 = vmatpush1.msra.mxu0 0.0
        %3427 = vmatprep.subr.mxu0 0.0
        %3428 = vmatpush1.msra.mxu0 0.0
        %3429 = vmatprep.subr.mxu0 0.0
        %3430 = vmatpush1.msra.mxu0 0.0
        %3431 = vmatprep.subr.mxu0 0.0
        %3432 = vmatpush1.msra.mxu0 0.0
        %3433 = vmatprep.subr.mxu0 0.0
        %3434 = vmatpush1.msra.mxu0 0.0
        %3435 = vmatprep.mubr.f32.mxu0 0.0
        %3436 = vmatmul.mubr.f32.gmra.mrb[0].mxu0 %v3366
        %v3437 = vpop.f32.mrb[0].mxu0
        %v3438 = vadd.f32 0.0, %v3437
        %v3439 = vpop.f32.mrb[0].mxu0
        %3440 = vmatprep.mubr.f32.mxu0 0.0
        %3441 = vmatmul.mubr.f32.gmra.mrb[0].mxu0 %v3369
        %v3442 = vpop.f32.mrb[0].mxu0
        %v3443 = vadd.f32 0.0, %v3442
        %v3444 = vpop.f32.mrb[0].mxu0
        %3445 = vdwg.mxu0
        %3448 = vrot.lane.b32.xlu0 %v3438, 127
        %v3449 = vpop.permute.xlu0 %3448
        %3450 = vrot.lane.b32.xlu0 %v3443, 127
        %v3451 = vpop.permute.xlu0 %3450
        %3454 = vrot.lane.b32.xlu0 %v3438, 126
        %v3455 = vpop.permute.xlu0 %3454
        %3456 = vrot.lane.b32.xlu0 %v3443, 126
        %v3457 = vpop.permute.xlu0 %3456
        %3460 = vrot.lane.b32.xlu0 %v3438, 125
        %v3461 = vpop.permute.xlu0 %3460
        %3462 = vrot.lane.b32.xlu0 %v3443, 125
        %v3463 = vpop.permute.xlu0 %3462
        %3466 = vrot.lane.b32.xlu0 %v3438, 124
        %v3467 = vpop.permute.xlu0 %3466
        %3468 = vrot.lane.b32.xlu0 %v3443, 124
        %v3469 = vpop.permute.xlu0 %3468
        %v3472 = vld [vmem:[%s57] sm:$0xff]
        %v3473 = vld [vmem:[%s57 + $0x8] sm:$0xff]
        %v3474 = vld [vmem:[%s59] sm:$0xff]
        %v3475 = vld [vmem:[%s59 + $0x8] sm:$0xff]
        %3477 = vset.pattern.permute.xlu0 0
        %3478 = vperm.xlu0 %3477, %v3474
        %v3479 = vpop.permute.xlu0 %3478
        %3482 = vset.pattern.permute.xlu0 0
        %3483 = vperm.xlu0 %3482, %v3475
        %v3484 = vpop.permute.xlu0 %3483
        %v3487 = vsel %vm3277, %v3472, 0
        %v3490 = vsel %vm3277, %v3473, 0
        %3492 = vmatprep.subr.mxu0 0.0
        %3493 = vmatpush1.msra.mxu0 %v3438
        %3494 = vmatprep.subr.mxu0 0.0
        %3495 = vmatpush1.msra.mxu0 %v3443
        %3496 = vmatprep.subr.mxu0 0.0
        %3497 = vmatpush1.msra.mxu0 %v3449
        %3498 = vmatprep.subr.mxu0 0.0
        %3499 = vmatpush1.msra.mxu0 %v3451
        %3500 = vmatprep.subr.mxu0 0.0
        %3501 = vmatpush1.msra.mxu0 %v3455
        %3502 = vmatprep.subr.mxu0 0.0
        %3503 = vmatpush1.msra.mxu0 %v3457
        %3504 = vmatprep.subr.mxu0 0.0
        %3505 = vmatpush1.msra.mxu0 %v3461
        %3506 = vmatprep.subr.mxu0 0.0
        %3507 = vmatpush1.msra.mxu0 %v3463
        %3508 = vmatprep.subr.mxu0 0.0
        %3509 = vmatpush1.msra.mxu0 %v3467
        %3510 = vmatprep.subr.mxu0 0.0
        %3511 = vmatpush1.msra.mxu0 %v3469
        %3512 = vmatprep.subr.mxu0 0.0
        %3513 = vmatpush1.msra.mxu0 0.0
        %3514 = vmatprep.subr.mxu0 0.0
        %3515 = vmatpush1.msra.mxu0 0.0
        %3516 = vmatprep.subr.mxu0 0.0
        %3517 = vmatpush1.msra.mxu0 0.0
        %3518 = vmatprep.subr.mxu0 0.0
        %3519 = vmatpush1.msra.mxu0 0.0
        %3520 = vmatprep.subr.mxu0 0.0
        %3521 = vmatpush1.msra.mxu0 0.0
        %3522 = vmatprep.subr.mxu0 0.0
        %3523 = vmatpush1.msra.mxu0 0.0
        %3524 = vmatprep.subr.mxu0 0.0
        %3525 = vmatpush1.msra.mxu0 0.0
        %3526 = vmatprep.subr.mxu0 0.0
        %3527 = vmatpush1.msra.mxu0 0.0
        %3528 = vmatprep.subr.mxu0 0.0
        %3529 = vmatpush1.msra.mxu0 0.0
        %3530 = vmatprep.subr.mxu0 0.0
        %3531 = vmatpush1.msra.mxu0 0.0
        %3532 = vmatprep.subr.mxu0 0.0
        %3533 = vmatpush1.msra.mxu0 0.0
        %3534 = vmatprep.subr.mxu0 0.0
        %3535 = vmatpush1.msra.mxu0 0.0
        %3536 = vmatprep.subr.mxu0 0.0
        %3537 = vmatpush1.msra.mxu0 0.0
        %3538 = vmatprep.subr.mxu0 0.0
        %3539 = vmatpush1.msra.mxu0 0.0
        %3540 = vmatprep.subr.mxu0 0.0
        %3541 = vmatpush1.msra.mxu0 0.0
        %3542 = vmatprep.subr.mxu0 0.0
        %3543 = vmatpush1.msra.mxu0 0.0
        %3544 = vmatprep.subr.mxu0 0.0
        %3545 = vmatpush1.msra.mxu0 0.0
        %3546 = vmatprep.subr.mxu0 0.0
        %3547 = vmatpush1.msra.mxu0 0.0
        %3548 = vmatprep.subr.mxu0 0.0
        %3549 = vmatpush1.msra.mxu0 0.0
        %3550 = vmatprep.subr.mxu0 0.0
        %3551 = vmatpush1.msra.mxu0 0.0
        %3552 = vmatprep.subr.mxu0 0.0
        %3553 = vmatpush1.msra.mxu0 0.0
        %3554 = vmatprep.subr.mxu0 0.0
        %3555 = vmatpush1.msra.mxu0 0.0
        %3556 = vmatprep.mubr.f32.mxu0 0.0
        %3557 = vmatmul.mubr.f32.gmra.mrb[0].mxu0 %v3487
        %v3558 = vpop.f32.mrb[0].mxu0
        %v3559 = vadd.f32 %v3479, %v3558
        %v3560 = vpop.f32.mrb[0].mxu0
        %3561 = vmatprep.mubr.f32.mxu0 0.0
        %3562 = vmatmul.mubr.f32.gmra.mrb[0].mxu0 %v3490
        %v3563 = vpop.f32.mrb[0].mxu0
        %v3564 = vadd.f32 %v3484, %v3563
        %v3565 = vpop.f32.mrb[0].mxu0
        %3566 = vdwg.mxu0
        %v3567 = vadd.f32 %v2352, %v3559
        %v3568 = vadd.f32 %v2357, %v3564
        %vm3569 = vcmp.ge.f32.partialorder %v3567, 0.0
        %vm3570 = vcmp.ge.f32.partialorder %v3568, 0.0
        %v3571 = vmul.f32 %v3567, 0.1
        %v3572 = vmul.f32 %v3568, 0.1
        %v3573 = vsel %vm3569, %v3567, %v3571
        %v3574 = vsel %vm3570, %v3568, %v3572
        %v3575 = vld [vmem:[#allocation7] sm:$0xff]
        %v3576 = vld [vmem:[#allocation7 + $0x8] sm:$0xff]
        %v3577 = vld [vmem:[#allocation7 + $0x10] sm:$0xff]
        %v3578 = vld [vmem:[#allocation7 + $0x18] sm:$0xff]
        %v3580 = vsel %vm2370, %v3573, 0
        %v3583 = vsel %vm2370, %v3574, 0
        %3585 = vmatprep.subr.mxu0 0.0
        %3586 = vmatpush1.msra.mxu0 %v3575
        %3587 = vmatprep.subr.mxu0 0.0
        %3588 = vmatpush1.msra.mxu0 %v3576
        %3589 = vmatprep.subr.mxu0 0.0
        %3590 = vmatpush1.msra.mxu0 %v3577
        %3591 = vmatprep.subr.mxu0 0.0
        %3592 = vmatpush1.msra.mxu0 %v3578
        %3593 = vmatprep.subr.mxu0 0.0
        %3594 = vmatpush1.msra.mxu0 0.0
        %3595 = vmatprep.subr.mxu0 0.0
        %3596 = vmatpush1.msra.mxu0 0.0
        %3597 = vmatprep.subr.mxu0 0.0
        %3598 = vmatpush1.msra.mxu0 0.0
        %3599 = vmatprep.subr.mxu0 0.0
        %3600 = vmatpush1.msra.mxu0 0.0
        %3601 = vmatprep.subr.mxu0 0.0
        %3602 = vmatpush1.msra.mxu0 0.0
        %3603 = vmatprep.subr.mxu0 0.0
        %3604 = vmatpush1.msra.mxu0 0.0
        %3605 = vmatprep.subr.mxu0 0.0
        %3606 = vmatpush1.msra.mxu0 0.0
        %3607 = vmatprep.subr.mxu0 0.0
        %3608 = vmatpush1.msra.mxu0 0.0
        %3609 = vmatprep.subr.mxu0 0.0
        %3610 = vmatpush1.msra.mxu0 0.0
        %3611 = vmatprep.subr.mxu0 0.0
        %3612 = vmatpush1.msra.mxu0 0.0
        %3613 = vmatprep.subr.mxu0 0.0
        %3614 = vmatpush1.msra.mxu0 0.0
        %3615 = vmatprep.subr.mxu0 0.0
        %3616 = vmatpush1.msra.mxu0 0.0
        %3617 = vmatprep.subr.mxu0 0.0
        %3618 = vmatpush1.msra.mxu0 0.0
        %3619 = vmatprep.subr.mxu0 0.0
        %3620 = vmatpush1.msra.mxu0 0.0
        %3621 = vmatprep.subr.mxu0 0.0
        %3622 = vmatpush1.msra.mxu0 0.0
        %3623 = vmatprep.subr.mxu0 0.0
        %3624 = vmatpush1.msra.mxu0 0.0
        %3625 = vmatprep.subr.mxu0 0.0
        %3626 = vmatpush1.msra.mxu0 0.0
        %3627 = vmatprep.subr.mxu0 0.0
        %3628 = vmatpush1.msra.mxu0 0.0
        %3629 = vmatprep.subr.mxu0 0.0
        %3630 = vmatpush1.msra.mxu0 0.0
        %3631 = vmatprep.subr.mxu0 0.0
        %3632 = vmatpush1.msra.mxu0 0.0
        %3633 = vmatprep.subr.mxu0 0.0
        %3634 = vmatpush1.msra.mxu0 0.0
        %3635 = vmatprep.subr.mxu0 0.0
        %3636 = vmatpush1.msra.mxu0 0.0
        %3637 = vmatprep.subr.mxu0 0.0
        %3638 = vmatpush1.msra.mxu0 0.0
        %3639 = vmatprep.subr.mxu0 0.0
        %3640 = vmatpush1.msra.mxu0 0.0
        %3641 = vmatprep.subr.mxu0 0.0
        %3642 = vmatpush1.msra.mxu0 0.0
        %3643 = vmatprep.subr.mxu0 0.0
        %3644 = vmatpush1.msra.mxu0 0.0
        %3645 = vmatprep.subr.mxu0 0.0
        %3646 = vmatpush1.msra.mxu0 0.0
        %3647 = vmatprep.subr.mxu0 0.0
        %3648 = vmatpush1.msra.mxu0 0.0
        %3649 = vmatprep.mubr.f32.mxu0 0.0
        %3650 = vmatmul.mubr.f32.gmra.mrb[0].mxu0 %v3580
        %v3651 = vpop.f32.mrb[0].mxu0
        %v3652 = vadd.f32 0.0, %v3651
        %v3653 = vpop.f32.mrb[0].mxu0
        %3654 = vmatprep.mubr.f32.mxu0 0.0
        %3655 = vmatmul.mubr.f32.gmra.mrb[0].mxu0 %v3583
        %v3656 = vpop.f32.mrb[0].mxu0
        %v3657 = vadd.f32 0.0, %v3656
        %v3658 = vpop.f32.mrb[0].mxu0
        %3659 = vdwg.mxu0
        %3662 = vrot.lane.b32.xlu0 %v3652, 125
        %v3663 = vpop.permute.xlu0 %3662
        %3664 = vrot.lane.b32.xlu0 %v3657, 125
        %v3665 = vpop.permute.xlu0 %3664
        %3668 = vrot.lane.b32.xlu0 %v3652, 122
        %v3669 = vpop.permute.xlu0 %3668
        %3670 = vrot.lane.b32.xlu0 %v3657, 122
        %v3671 = vpop.permute.xlu0 %3670
        %3674 = vrot.lane.b32.xlu0 %v3652, 119
        %v3675 = vpop.permute.xlu0 %3674
        %3676 = vrot.lane.b32.xlu0 %v3657, 119
        %v3677 = vpop.permute.xlu0 %3676
        %3680 = vrot.lane.b32.xlu0 %v3652, 116
        %v3681 = vpop.permute.xlu0 %3680
        %3682 = vrot.lane.b32.xlu0 %v3657, 116
        %v3683 = vpop.permute.xlu0 %3682
        %v3686 = vld [vmem:[#allocation16] sm:$0xff]
        %v3687 = vld [vmem:[#allocation16 + $0x8] sm:$0xff]
        %v3688 = vld [vmem:[%s63] sm:$0xff]
        %v3689 = vld [vmem:[%s63 + $0x8] sm:$0xff]
        %3691 = vset.pattern.permute.xlu0 0
        %3692 = vperm.xlu0 %3691, %v3688
        %v3693 = vpop.permute.xlu0 %3692
        %3696 = vset.pattern.permute.xlu0 0
        %3697 = vperm.xlu0 %3696, %v3689
        %v3698 = vpop.permute.xlu0 %3697
        %v3701 = vsel %vm3277, %v3686, 0
        %v3704 = vsel %vm3277, %v3687, 0
        %3706 = vmatprep.subr.mxu0 0.0
        %3707 = vmatpush1.msra.mxu0 %v3652
        %3708 = vmatprep.subr.mxu0 0.0
        %3709 = vmatpush1.msra.mxu0 %v3657
        %3710 = vmatprep.subr.mxu0 0.0
        %3711 = vmatpush1.msra.mxu0 %v3663
        %3712 = vmatprep.subr.mxu0 0.0
        %3713 = vmatpush1.msra.mxu0 %v3665
        %3714 = vmatprep.subr.mxu0 0.0
        %3715 = vmatpush1.msra.mxu0 %v3669
        %3716 = vmatprep.subr.mxu0 0.0
        %3717 = vmatpush1.msra.mxu0 %v3671
        %3718 = vmatprep.subr.mxu0 0.0
        %3719 = vmatpush1.msra.mxu0 %v3675
        %3720 = vmatprep.subr.mxu0 0.0
        %3721 = vmatpush1.msra.mxu0 %v3677
        %3722 = vmatprep.subr.mxu0 0.0
        %3723 = vmatpush1.msra.mxu0 %v3681
        %3724 = vmatprep.subr.mxu0 0.0
        %3725 = vmatpush1.msra.mxu0 %v3683
        %3726 = vmatprep.subr.mxu0 0.0
        %3727 = vmatpush1.msra.mxu0 0.0
        %3728 = vmatprep.subr.mxu0 0.0
        %3729 = vmatpush1.msra.mxu0 0.0
        %3730 = vmatprep.subr.mxu0 0.0
        %3731 = vmatpush1.msra.mxu0 0.0
        %3732 = vmatprep.subr.mxu0 0.0
        %3733 = vmatpush1.msra.mxu0 0.0
        %3734 = vmatprep.subr.mxu0 0.0
        %3735 = vmatpush1.msra.mxu0 0.0
        %3736 = vmatprep.subr.mxu0 0.0
        %3737 = vmatpush1.msra.mxu0 0.0
        %3738 = vmatprep.subr.mxu0 0.0
        %3739 = vmatpush1.msra.mxu0 0.0
        %3740 = vmatprep.subr.mxu0 0.0
        %3741 = vmatpush1.msra.mxu0 0.0
        %3742 = vmatprep.subr.mxu0 0.0
        %3743 = vmatpush1.msra.mxu0 0.0
        %3744 = vmatprep.subr.mxu0 0.0
        %3745 = vmatpush1.msra.mxu0 0.0
        %3746 = vmatprep.subr.mxu0 0.0
        %3747 = vmatpush1.msra.mxu0 0.0
        %3748 = vmatprep.subr.mxu0 0.0
        %3749 = vmatpush1.msra.mxu0 0.0
        %3750 = vmatprep.subr.mxu0 0.0
        %3751 = vmatpush1.msra.mxu0 0.0
        %3752 = vmatprep.subr.mxu0 0.0
        %3753 = vmatpush1.msra.mxu0 0.0
        %3754 = vmatprep.subr.mxu0 0.0
        %3755 = vmatpush1.msra.mxu0 0.0
        %3756 = vmatprep.subr.mxu0 0.0
        %3757 = vmatpush1.msra.mxu0 0.0
        %3758 = vmatprep.subr.mxu0 0.0
        %3759 = vmatpush1.msra.mxu0 0.0
        %3760 = vmatprep.subr.mxu0 0.0
        %3761 = vmatpush1.msra.mxu0 0.0
        %3762 = vmatprep.subr.mxu0 0.0
        %3763 = vmatpush1.msra.mxu0 0.0
        %3764 = vmatprep.subr.mxu0 0.0
        %3765 = vmatpush1.msra.mxu0 0.0
        %3766 = vmatprep.subr.mxu0 0.0
        %3767 = vmatpush1.msra.mxu0 0.0
        %3768 = vmatprep.subr.mxu0 0.0
        %3769 = vmatpush1.msra.mxu0 0.0
        %3770 = vmatprep.mubr.f32.mxu0 0.0
        %3771 = vmatmul.mubr.f32.gmra.mrb[0].mxu0 %v3701
        %v3772 = vpop.f32.mrb[0].mxu0
        %v3773 = vadd.f32 %v3693, %v3772
        %v3774 = vpop.f32.mrb[0].mxu0
        %3775 = vmatprep.mubr.f32.mxu0 0.0
        %3776 = vmatmul.mubr.f32.gmra.mrb[0].mxu0 %v3704
        %v3777 = vpop.f32.mrb[0].mxu0
        %v3778 = vadd.f32 %v3698, %v3777
        %v3779 = vpop.f32.mrb[0].mxu0
        %3780 = vdwg.mxu0
        %vm3781 = vcmp.ge.f32.partialorder %v3773, 0.0
        %vm3782 = vcmp.ge.f32.partialorder %v3778, 0.0
        %v3783 = vmul.f32 %v3773, 0.1
        %v3784 = vmul.f32 %v3778, 0.1
        %v3785 = vsel %vm3781, %v3773, %v3783
        %v3786 = vsel %vm3782, %v3778, %v3784
        %v3788 = vsel %vm2370, %v3785, 0
        %v3791 = vsel %vm2370, %v3786, 0
        %3793 = vmatprep.subr.mxu0 0.0
        %3794 = vmatpush1.msra.mxu0 %v3158
        %3795 = vmatprep.subr.mxu0 0.0
        %3796 = vmatpush1.msra.mxu0 %v3159
        %3797 = vmatprep.subr.mxu0 0.0
        %3798 = vmatpush1.msra.mxu0 %v3160
        %3799 = vmatprep.subr.mxu0 0.0
        %3800 = vmatpush1.msra.mxu0 %v3161
        %3801 = vmatprep.subr.mxu0 0.0
        %3802 = vmatpush1.msra.mxu0 0.0
        %3803 = vmatprep.subr.mxu0 0.0
        %3804 = vmatpush1.msra.mxu0 0.0
        %3805 = vmatprep.subr.mxu0 0.0
        %3806 = vmatpush1.msra.mxu0 0.0
        %3807 = vmatprep.subr.mxu0 0.0
        %3808 = vmatpush1.msra.mxu0 0.0
        %3809 = vmatprep.subr.mxu0 0.0
        %3810 = vmatpush1.msra.mxu0 0.0
        %3811 = vmatprep.subr.mxu0 0.0
        %3812 = vmatpush1.msra.mxu0 0.0
        %3813 = vmatprep.subr.mxu0 0.0
        %3814 = vmatpush1.msra.mxu0 0.0
        %3815 = vmatprep.subr.mxu0 0.0
        %3816 = vmatpush1.msra.mxu0 0.0
        %3817 = vmatprep.subr.mxu0 0.0
        %3818 = vmatpush1.msra.mxu0 0.0
        %3819 = vmatprep.subr.mxu0 0.0
        %3820 = vmatpush1.msra.mxu0 0.0
        %3821 = vmatprep.subr.mxu0 0.0
        %3822 = vmatpush1.msra.mxu0 0.0
        %3823 = vmatprep.subr.mxu0 0.0
        %3824 = vmatpush1.msra.mxu0 0.0
        %3825 = vmatprep.subr.mxu0 0.0
        %3826 = vmatpush1.msra.mxu0 0.0
        %3827 = vmatprep.subr.mxu0 0.0
        %3828 = vmatpush1.msra.mxu0 0.0
        %3829 = vmatprep.subr.mxu0 0.0
        %3830 = vmatpush1.msra.mxu0 0.0
        %3831 = vmatprep.subr.mxu0 0.0
        %3832 = vmatpush1.msra.mxu0 0.0
        %3833 = vmatprep.subr.mxu0 0.0
        %3834 = vmatpush1.msra.mxu0 0.0
        %3835 = vmatprep.subr.mxu0 0.0
        %3836 = vmatpush1.msra.mxu0 0.0
        %3837 = vmatprep.subr.mxu0 0.0
        %3838 = vmatpush1.msra.mxu0 0.0
        %3839 = vmatprep.subr.mxu0 0.0
        %3840 = vmatpush1.msra.mxu0 0.0
        %3841 = vmatprep.subr.mxu0 0.0
        %3842 = vmatpush1.msra.mxu0 0.0
        %3843 = vmatprep.subr.mxu0 0.0
        %3844 = vmatpush1.msra.mxu0 0.0
        %3845 = vmatprep.subr.mxu0 0.0
        %3846 = vmatpush1.msra.mxu0 0.0
        %3847 = vmatprep.subr.mxu0 0.0
        %3848 = vmatpush1.msra.mxu0 0.0
        %3849 = vmatprep.subr.mxu0 0.0
        %3850 = vmatpush1.msra.mxu0 0.0
        %3851 = vmatprep.subr.mxu0 0.0
        %3852 = vmatpush1.msra.mxu0 0.0
        %3853 = vmatprep.subr.mxu0 0.0
        %3854 = vmatpush1.msra.mxu0 0.0
        %3855 = vmatprep.subr.mxu0 0.0
        %3856 = vmatpush1.msra.mxu0 0.0
        %3857 = vmatprep.mubr.f32.mxu0 0.0
        %3858 = vmatmul.mubr.f32.gmra.mrb[0].mxu0 %v3788
        %v3859 = vpop.f32.mrb[0].mxu0
        %v3860 = vadd.f32 0.0, %v3859
        %v3861 = vpop.f32.mrb[0].mxu0
        %3862 = vmatprep.mubr.f32.mxu0 0.0
        %3863 = vmatmul.mubr.f32.gmra.mrb[0].mxu0 %v3791
        %v3864 = vpop.f32.mrb[0].mxu0
        %v3865 = vadd.f32 0.0, %v3864
        %v3866 = vpop.f32.mrb[0].mxu0
        %3867 = vdwg.mxu0
        %3870 = vrot.lane.b32.xlu0 %v3860, 127
        %v3871 = vpop.permute.xlu0 %3870
        %3872 = vrot.lane.b32.xlu0 %v3865, 127
        %v3873 = vpop.permute.xlu0 %3872
        %3876 = vrot.lane.b32.xlu0 %v3860, 126
        %v3877 = vpop.permute.xlu0 %3876
        %3878 = vrot.lane.b32.xlu0 %v3865, 126
        %v3879 = vpop.permute.xlu0 %3878
        %3882 = vrot.lane.b32.xlu0 %v3860, 125
        %v3883 = vpop.permute.xlu0 %3882
        %3884 = vrot.lane.b32.xlu0 %v3865, 125
        %v3885 = vpop.permute.xlu0 %3884
        %3888 = vrot.lane.b32.xlu0 %v3860, 124
        %v3889 = vpop.permute.xlu0 %3888
        %3890 = vrot.lane.b32.xlu0 %v3865, 124
        %v3891 = vpop.permute.xlu0 %3890
        %v3894 = vld [vmem:[%s65] sm:$0xff]
        %v3895 = vld [vmem:[%s65 + $0x8] sm:$0xff]
        %v3896 = vld [vmem:[%s67] sm:$0xff]
        %v3897 = vld [vmem:[%s67 + $0x8] sm:$0xff]
        %3899 = vset.pattern.permute.xlu0 0
        %3900 = vperm.xlu0 %3899, %v3896
        %v3901 = vpop.permute.xlu0 %3900
        %3904 = vset.pattern.permute.xlu0 0
        %3905 = vperm.xlu0 %3904, %v3897
        %v3906 = vpop.permute.xlu0 %3905
        %v3909 = vsel %vm3277, %v3894, 0
        %v3912 = vsel %vm3277, %v3895, 0
        %3914 = vmatprep.subr.mxu0 0.0
        %3915 = vmatpush1.msra.mxu0 %v3860
        %3916 = vmatprep.subr.mxu0 0.0
        %3917 = vmatpush1.msra.mxu0 %v3865
        %3918 = vmatprep.subr.mxu0 0.0
        %3919 = vmatpush1.msra.mxu0 %v3871
        %3920 = vmatprep.subr.mxu0 0.0
        %3921 = vmatpush1.msra.mxu0 %v3873
        %3922 = vmatprep.subr.mxu0 0.0
        %3923 = vmatpush1.msra.mxu0 %v3877
        %3924 = vmatprep.subr.mxu0 0.0
        %3925 = vmatpush1.msra.mxu0 %v3879
        %3926 = vmatprep.subr.mxu0 0.0
        %3927 = vmatpush1.msra.mxu0 %v3883
        %3928 = vmatprep.subr.mxu0 0.0
        %3929 = vmatpush1.msra.mxu0 %v3885
        %3930 = vmatprep.subr.mxu0 0.0
        %3931 = vmatpush1.msra.mxu0 %v3889
        %3932 = vmatprep.subr.mxu0 0.0
        %3933 = vmatpush1.msra.mxu0 %v3891
        %3934 = vmatprep.subr.mxu0 0.0
        %3935 = vmatpush1.msra.mxu0 0.0
        %3936 = vmatprep.subr.mxu0 0.0
        %3937 = vmatpush1.msra.mxu0 0.0
        %3938 = vmatprep.subr.mxu0 0.0
        %3939 = vmatpush1.msra.mxu0 0.0
        %3940 = vmatprep.subr.mxu0 0.0
        %3941 = vmatpush1.msra.mxu0 0.0
        %3942 = vmatprep.subr.mxu0 0.0
        %3943 = vmatpush1.msra.mxu0 0.0
        %3944 = vmatprep.subr.mxu0 0.0
        %3945 = vmatpush1.msra.mxu0 0.0
        %3946 = vmatprep.subr.mxu0 0.0
        %3947 = vmatpush1.msra.mxu0 0.0
        %3948 = vmatprep.subr.mxu0 0.0
        %3949 = vmatpush1.msra.mxu0 0.0
        %3950 = vmatprep.subr.mxu0 0.0
        %3951 = vmatpush1.msra.mxu0 0.0
        %3952 = vmatprep.subr.mxu0 0.0
        %3953 = vmatpush1.msra.mxu0 0.0
        %3954 = vmatprep.subr.mxu0 0.0
        %3955 = vmatpush1.msra.mxu0 0.0
        %3956 = vmatprep.subr.mxu0 0.0
        %3957 = vmatpush1.msra.mxu0 0.0
        %3958 = vmatprep.subr.mxu0 0.0
        %3959 = vmatpush1.msra.mxu0 0.0
        %3960 = vmatprep.subr.mxu0 0.0
        %3961 = vmatpush1.msra.mxu0 0.0
        %3962 = vmatprep.subr.mxu0 0.0
        %3963 = vmatpush1.msra.mxu0 0.0
        %3964 = vmatprep.subr.mxu0 0.0
        %3965 = vmatpush1.msra.mxu0 0.0
        %3966 = vmatprep.subr.mxu0 0.0
        %3967 = vmatpush1.msra.mxu0 0.0
        %3968 = vmatprep.subr.mxu0 0.0
        %3969 = vmatpush1.msra.mxu0 0.0
        %3970 = vmatprep.subr.mxu0 0.0
        %3971 = vmatpush1.msra.mxu0 0.0
        %3972 = vmatprep.subr.mxu0 0.0
        %3973 = vmatpush1.msra.mxu0 0.0
        %3974 = vmatprep.subr.mxu0 0.0
        %3975 = vmatpush1.msra.mxu0 0.0
        %3976 = vmatprep.subr.mxu0 0.0
        %3977 = vmatpush1.msra.mxu0 0.0
        %3978 = vmatprep.mubr.f32.mxu0 0.0
        %3979 = vmatmul.mubr.f32.gmra.mrb[0].mxu0 %v3909
        %v3980 = vpop.f32.mrb[0].mxu0
        %v3981 = vadd.f32 %v3901, %v3980
        %v3982 = vpop.f32.mrb[0].mxu0
        %3983 = vmatprep.mubr.f32.mxu0 0.0
        %3984 = vmatmul.mubr.f32.gmra.mrb[0].mxu0 %v3912
        %v3985 = vpop.f32.mrb[0].mxu0
        %v3986 = vadd.f32 %v3906, %v3985
        %v3987 = vpop.f32.mrb[0].mxu0
        %3988 = vdwg.mxu0
        %v3989 = vadd.f32 %v3567, %v3981
        %v3990 = vadd.f32 %v3568, %v3986
        %v3991 = vadd.f32 %v3156, %v3989
        %v3992 = vadd.f32 %v3157, %v3990
        %v3993 = vmul.f32 %v3991, 0.5
        %v3994 = vmul.f32 %v3992, 0.5
        %vm3995 = vcmp.ge.f32.partialorder %v3993, 0.0
        %vm3996 = vcmp.ge.f32.partialorder %v3994, 0.0
        %v3997 = vmul.f32 %v3993, 0.1
        %v3998 = vmul.f32 %v3994, 0.1
        %v3999 = vsel %vm3995, %v3993, %v3997
        %v4000 = vsel %vm3996, %v3994, %v3998
        %v4001 = vld [vmem:[%s69] sm:$0xff]
        %v4002 = vld [vmem:[%s69 + $0x8] sm:$0xff]
        %v4003 = vld [vmem:[%s69 + $0x10] sm:$0xff]
        %v4004 = vld [vmem:[%s69 + $0x18] sm:$0xff]
        %v4006 = vsel %vm2370, %v3999, 0
        %v4009 = vsel %vm2370, %v4000, 0
        %4011 = vmatprep.subr.mxu0 0.0
        %4012 = vmatpush1.msra.mxu0 %v4001
        %4013 = vmatprep.subr.mxu0 0.0
        %4014 = vmatpush1.msra.mxu0 %v4002
        %4015 = vmatprep.subr.mxu0 0.0
        %4016 = vmatpush1.msra.mxu0 %v4003
        %4017 = vmatprep.subr.mxu0 0.0
        %4018 = vmatpush1.msra.mxu0 %v4004
        %4019 = vmatprep.subr.mxu0 0.0
        %4020 = vmatpush1.msra.mxu0 0.0
        %4021 = vmatprep.subr.mxu0 0.0
        %4022 = vmatpush1.msra.mxu0 0.0
        %4023 = vmatprep.subr.mxu0 0.0
        %4024 = vmatpush1.msra.mxu0 0.0
        %4025 = vmatprep.subr.mxu0 0.0
        %4026 = vmatpush1.msra.mxu0 0.0
        %4027 = vmatprep.subr.mxu0 0.0
        %4028 = vmatpush1.msra.mxu0 0.0
        %4029 = vmatprep.subr.mxu0 0.0
        %4030 = vmatpush1.msra.mxu0 0.0
        %4031 = vmatprep.subr.mxu0 0.0
        %4032 = vmatpush1.msra.mxu0 0.0
        %4033 = vmatprep.subr.mxu0 0.0
        %4034 = vmatpush1.msra.mxu0 0.0
        %4035 = vmatprep.subr.mxu0 0.0
        %4036 = vmatpush1.msra.mxu0 0.0
        %4037 = vmatprep.subr.mxu0 0.0
        %4038 = vmatpush1.msra.mxu0 0.0
        %4039 = vmatprep.subr.mxu0 0.0
        %4040 = vmatpush1.msra.mxu0 0.0
        %4041 = vmatprep.subr.mxu0 0.0
        %4042 = vmatpush1.msra.mxu0 0.0
        %4043 = vmatprep.subr.mxu0 0.0
        %4044 = vmatpush1.msra.mxu0 0.0
        %4045 = vmatprep.subr.mxu0 0.0
        %4046 = vmatpush1.msra.mxu0 0.0
        %4047 = vmatprep.subr.mxu0 0.0
        %4048 = vmatpush1.msra.mxu0 0.0
        %4049 = vmatprep.subr.mxu0 0.0
        %4050 = vmatpush1.msra.mxu0 0.0
        %4051 = vmatprep.subr.mxu0 0.0
        %4052 = vmatpush1.msra.mxu0 0.0
        %4053 = vmatprep.subr.mxu0 0.0
        %4054 = vmatpush1.msra.mxu0 0.0
        %4055 = vmatprep.subr.mxu0 0.0
        %4056 = vmatpush1.msra.mxu0 0.0
        %4057 = vmatprep.subr.mxu0 0.0
        %4058 = vmatpush1.msra.mxu0 0.0
        %4059 = vmatprep.subr.mxu0 0.0
        %4060 = vmatpush1.msra.mxu0 0.0
        %4061 = vmatprep.subr.mxu0 0.0
        %4062 = vmatpush1.msra.mxu0 0.0
        %4063 = vmatprep.subr.mxu0 0.0
        %4064 = vmatpush1.msra.mxu0 0.0
        %4065 = vmatprep.subr.mxu0 0.0
        %4066 = vmatpush1.msra.mxu0 0.0
        %4067 = vmatprep.subr.mxu0 0.0
        %4068 = vmatpush1.msra.mxu0 0.0
        %4069 = vmatprep.subr.mxu0 0.0
        %4070 = vmatpush1.msra.mxu0 0.0
        %4071 = vmatprep.subr.mxu0 0.0
        %4072 = vmatpush1.msra.mxu0 0.0
        %4073 = vmatprep.subr.mxu0 0.0
        %4074 = vmatpush1.msra.mxu0 0.0
        %4075 = vmatprep.mubr.f32.mxu0 0.0
        %4076 = vmatmul.mubr.f32.gmra.mrb[0].mxu0 %v4006
        %v4077 = vpop.f32.mrb[0].mxu0
        %v4078 = vadd.f32 0.0, %v4077
        %v4079 = vpop.f32.mrb[0].mxu0
        %4080 = vmatprep.mubr.f32.mxu0 0.0
        %4081 = vmatmul.mubr.f32.gmra.mrb[0].mxu0 %v4009
        %v4082 = vpop.f32.mrb[0].mxu0
        %v4083 = vadd.f32 0.0, %v4082
        %v4084 = vpop.f32.mrb[0].mxu0
        %4085 = vdwg.mxu0
        %4088 = vrot.lane.b32.xlu0 %v4078, 127
        %v4089 = vpop.permute.xlu0 %4088
        %4090 = vrot.lane.b32.xlu0 %v4083, 127
        %v4091 = vpop.permute.xlu0 %4090
        %4094 = vrot.lane.b32.xlu0 %v4078, 126
        %v4095 = vpop.permute.xlu0 %4094
        %4096 = vrot.lane.b32.xlu0 %v4083, 126
        %v4097 = vpop.permute.xlu0 %4096
        %4100 = vrot.lane.b32.xlu0 %v4078, 125
        %v4101 = vpop.permute.xlu0 %4100
        %4102 = vrot.lane.b32.xlu0 %v4083, 125
        %v4103 = vpop.permute.xlu0 %4102
        %v4106 = vld [vmem:[%s71] sm:$0xff]
        %v4107 = vld [vmem:[%s73] sm:$0xff]
        %4109 = vset.pattern.permute.xlu0 0
        %4110 = vperm.xlu0 %4109, %v4107
        %v4111 = vpop.permute.xlu0 %4110
        %vm4113 = vcmask 523264
        %v4115 = vsel %vm4113, %v4106, 0
        %4117 = vmatprep.subr.mxu0 0.0
        %4118 = vmatpush1.msra.mxu0 %v4078
        %4119 = vmatprep.subr.mxu0 0.0
        %4120 = vmatpush1.msra.mxu0 %v4083
        %4121 = vmatprep.subr.mxu0 0.0
        %4122 = vmatpush1.msra.mxu0 %v4089
        %4123 = vmatprep.subr.mxu0 0.0
        %4124 = vmatpush1.msra.mxu0 %v4091
        %4125 = vmatprep.subr.mxu0 0.0
        %4126 = vmatpush1.msra.mxu0 %v4095
        %4127 = vmatprep.subr.mxu0 0.0
        %4128 = vmatpush1.msra.mxu0 %v4097
        %4129 = vmatprep.subr.mxu0 0.0
        %4130 = vmatpush1.msra.mxu0 %v4101
        %4131 = vmatprep.subr.mxu0 0.0
        %4132 = vmatpush1.msra.mxu0 %v4103
        %4133 = vmatprep.subr.mxu0 0.0
        %4134 = vmatpush1.msra.mxu0 0.0
        %4135 = vmatprep.subr.mxu0 0.0
        %4136 = vmatpush1.msra.mxu0 0.0
        %4137 = vmatprep.subr.mxu0 0.0
        %4138 = vmatpush1.msra.mxu0 0.0
        %4139 = vmatprep.subr.mxu0 0.0
        %4140 = vmatpush1.msra.mxu0 0.0
        %4141 = vmatprep.subr.mxu0 0.0
        %4142 = vmatpush1.msra.mxu0 0.0
        %4143 = vmatprep.subr.mxu0 0.0
        %4144 = vmatpush1.msra.mxu0 0.0
        %4145 = vmatprep.subr.mxu0 0.0
        %4146 = vmatpush1.msra.mxu0 0.0
        %4147 = vmatprep.subr.mxu0 0.0
        %4148 = vmatpush1.msra.mxu0 0.0
        %4149 = vmatprep.subr.mxu0 0.0
        %4150 = vmatpush1.msra.mxu0 0.0
        %4151 = vmatprep.subr.mxu0 0.0
        %4152 = vmatpush1.msra.mxu0 0.0
        %4153 = vmatprep.subr.mxu0 0.0
        %4154 = vmatpush1.msra.mxu0 0.0
        %4155 = vmatprep.subr.mxu0 0.0
        %4156 = vmatpush1.msra.mxu0 0.0
        %4157 = vmatprep.subr.mxu0 0.0
        %4158 = vmatpush1.msra.mxu0 0.0
        %4159 = vmatprep.subr.mxu0 0.0
        %4160 = vmatpush1.msra.mxu0 0.0
        %4161 = vmatprep.subr.mxu0 0.0
        %4162 = vmatpush1.msra.mxu0 0.0
        %4163 = vmatprep.subr.mxu0 0.0
        %4164 = vmatpush1.msra.mxu0 0.0
        %4165 = vmatprep.subr.mxu0 0.0
        %4166 = vmatpush1.msra.mxu0 0.0
        %4167 = vmatprep.subr.mxu0 0.0
        %4168 = vmatpush1.msra.mxu0 0.0
        %4169 = vmatprep.subr.mxu0 0.0
        %4170 = vmatpush1.msra.mxu0 0.0
        %4171 = vmatprep.subr.mxu0 0.0
        %4172 = vmatpush1.msra.mxu0 0.0
        %4173 = vmatprep.subr.mxu0 0.0
        %4174 = vmatpush1.msra.mxu0 0.0
        %4175 = vmatprep.subr.mxu0 0.0
        %4176 = vmatpush1.msra.mxu0 0.0
        %4177 = vmatprep.subr.mxu0 0.0
        %4178 = vmatpush1.msra.mxu0 0.0
        %4179 = vmatprep.subr.mxu0 0.0
        %4180 = vmatpush1.msra.mxu0 0.0
        %4181 = vmatprep.mubr.f32.mxu0 0.0
        %4182 = vmatmul.mubr.f32.gmra.mrb[0].mxu0 %v4115
        %v4183 = vpop.f32.mrb[0].mxu0
        %v4184 = vadd.f32 %v4111, %v4183
        %v4185 = vpop.f32.mrb[0].mxu0
        %4186 = vdwg.mxu0
        %vm4187 = vcmp.ge.f32.partialorder %v4184, 0.0
        %v4188 = vmul.f32 %v4184, 0.1
        %v4189 = vsel %vm4187, %v4184, %v4188
        %v4190 = vld [vmem:[%s15] sm:$0xff]
        %v4191 = vld [vmem:[%s15 + $0x8] sm:$0xff]
        %v4192 = vld [vmem:[%s15 + $0x10] sm:$0xff]
        %v4193 = vld [vmem:[%s15 + $0x18] sm:$0xff]
        %v4194 = vld [vmem:[%s15 + $0x20] sm:$0xff]
        %v4195 = vld [vmem:[%s15 + $0x28] sm:$0xff]
        %v4196 = vld [vmem:[%s15 + $0x30] sm:$0xff]
        %v4197 = vld [vmem:[%s15 + $0x38] sm:$0xff]
        %v4199 = vsel %vm4113, %v4189, 0
        %4201 = vmatprep.subr.mxu0 0.0
        %4202 = vmatpush1.msra.mxu0 %v4190
        %4203 = vmatprep.subr.mxu0 0.0
        %4204 = vmatpush1.msra.mxu0 %v4191
        %4205 = vmatprep.subr.mxu0 0.0
        %4206 = vmatpush1.msra.mxu0 %v4192
        %4207 = vmatprep.subr.mxu0 0.0
        %4208 = vmatpush1.msra.mxu0 %v4193
        %4209 = vmatprep.subr.mxu0 0.0
        %4210 = vmatpush1.msra.mxu0 %v4194
        %4211 = vmatprep.subr.mxu0 0.0
        %4212 = vmatpush1.msra.mxu0 %v4195
        %4213 = vmatprep.subr.mxu0 0.0
        %4214 = vmatpush1.msra.mxu0 %v4196
        %4215 = vmatprep.subr.mxu0 0.0
        %4216 = vmatpush1.msra.mxu0 %v4197
        %4217 = vmatprep.subr.mxu0 0.0
        %4218 = vmatpush1.msra.mxu0 0.0
        %4219 = vmatprep.subr.mxu0 0.0
        %4220 = vmatpush1.msra.mxu0 0.0
        %4221 = vmatprep.subr.mxu0 0.0
        %4222 = vmatpush1.msra.mxu0 0.0
        %4223 = vmatprep.subr.mxu0 0.0
        %4224 = vmatpush1.msra.mxu0 0.0
        %4225 = vmatprep.subr.mxu0 0.0
        %4226 = vmatpush1.msra.mxu0 0.0
        %4227 = vmatprep.subr.mxu0 0.0
        %4228 = vmatpush1.msra.mxu0 0.0
        %4229 = vmatprep.subr.mxu0 0.0
        %4230 = vmatpush1.msra.mxu0 0.0
        %4231 = vmatprep.subr.mxu0 0.0
        %4232 = vmatpush1.msra.mxu0 0.0
        %4233 = vmatprep.subr.mxu0 0.0
        %4234 = vmatpush1.msra.mxu0 0.0
        %4235 = vmatprep.subr.mxu0 0.0
        %4236 = vmatpush1.msra.mxu0 0.0
        %4237 = vmatprep.subr.mxu0 0.0
        %4238 = vmatpush1.msra.mxu0 0.0
        %4239 = vmatprep.subr.mxu0 0.0
        %4240 = vmatpush1.msra.mxu0 0.0
        %4241 = vmatprep.subr.mxu0 0.0
        %4242 = vmatpush1.msra.mxu0 0.0
        %4243 = vmatprep.subr.mxu0 0.0
        %4244 = vmatpush1.msra.mxu0 0.0
        %4245 = vmatprep.subr.mxu0 0.0
        %4246 = vmatpush1.msra.mxu0 0.0
        %4247 = vmatprep.subr.mxu0 0.0
        %4248 = vmatpush1.msra.mxu0 0.0
        %4249 = vmatprep.subr.mxu0 0.0
        %4250 = vmatpush1.msra.mxu0 0.0
        %4251 = vmatprep.subr.mxu0 0.0
        %4252 = vmatpush1.msra.mxu0 0.0
        %4253 = vmatprep.subr.mxu0 0.0
        %4254 = vmatpush1.msra.mxu0 0.0
        %4255 = vmatprep.subr.mxu0 0.0
        %4256 = vmatpush1.msra.mxu0 0.0
        %4257 = vmatprep.subr.mxu0 0.0
        %4258 = vmatpush1.msra.mxu0 0.0
        %4259 = vmatprep.subr.mxu0 0.0
        %4260 = vmatpush1.msra.mxu0 0.0
        %4261 = vmatprep.subr.mxu0 0.0
        %4262 = vmatpush1.msra.mxu0 0.0
        %4263 = vmatprep.subr.mxu0 0.0
        %4264 = vmatpush1.msra.mxu0 0.0
        %4265 = vmatprep.mubr.f32.mxu0 0.0
        %4266 = vmatmul.mubr.f32.gmra.mrb[0].mxu0 %v4199
        %v4267 = vpop.f32.mrb[0].mxu0
        %v4268 = vadd.f32 0.0, %v4267
        %v4269 = vpop.f32.mrb[0].mxu0
        %4270 = vdwg.mxu0
        %4272 = vrot.lane.b32.xlu0 %v4268, 127
        %v4273 = vpop.permute.xlu0 %4272
        %4275 = vrot.lane.b32.xlu0 %v4268, 126
        %v4276 = vpop.permute.xlu0 %4275
        %v4278 = vld [vmem:[%s75] sm:$0xff]
        %v4279 = vld [vmem:[%s77] sm:$0xff]
        %4281 = vset.pattern.permute.xlu0 0
        %4282 = vperm.xlu0 %4281, %v4279
        %v4283 = vpop.permute.xlu0 %4282
        %vm4285 = vcmask 195584
        %v4287 = vsel %vm4285, %v4278, 0
        %4289 = vmatprep.subr.mxu0 0.0
        %4290 = vmatpush1.msra.mxu0 %v4268
        %4291 = vmatprep.subr.mxu0 0.0
        %4292 = vmatpush1.msra.mxu0 %v4273
        %4293 = vmatprep.subr.mxu0 0.0
        %4294 = vmatpush1.msra.mxu0 %v4276
        %4295 = vmatprep.subr.mxu0 0.0
        %4296 = vmatpush1.msra.mxu0 0.0
        %4297 = vmatprep.subr.mxu0 0.0
        %4298 = vmatpush1.msra.mxu0 0.0
        %4299 = vmatprep.subr.mxu0 0.0
        %4300 = vmatpush1.msra.mxu0 0.0
        %4301 = vmatprep.subr.mxu0 0.0
        %4302 = vmatpush1.msra.mxu0 0.0
        %4303 = vmatprep.subr.mxu0 0.0
        %4304 = vmatpush1.msra.mxu0 0.0
        %4305 = vmatprep.subr.mxu0 0.0
        %4306 = vmatpush1.msra.mxu0 0.0
        %4307 = vmatprep.subr.mxu0 0.0
        %4308 = vmatpush1.msra.mxu0 0.0
        %4309 = vmatprep.subr.mxu0 0.0
        %4310 = vmatpush1.msra.mxu0 0.0
        %4311 = vmatprep.subr.mxu0 0.0
        %4312 = vmatpush1.msra.mxu0 0.0
        %4313 = vmatprep.subr.mxu0 0.0
        %4314 = vmatpush1.msra.mxu0 0.0
        %4315 = vmatprep.subr.mxu0 0.0
        %4316 = vmatpush1.msra.mxu0 0.0
        %4317 = vmatprep.subr.mxu0 0.0
        %4318 = vmatpush1.msra.mxu0 0.0
        %4319 = vmatprep.subr.mxu0 0.0
        %4320 = vmatpush1.msra.mxu0 0.0
        %4321 = vmatprep.subr.mxu0 0.0
        %4322 = vmatpush1.msra.mxu0 0.0
        %4323 = vmatprep.subr.mxu0 0.0
        %4324 = vmatpush1.msra.mxu0 0.0
        %4325 = vmatprep.subr.mxu0 0.0
        %4326 = vmatpush1.msra.mxu0 0.0
        %4327 = vmatprep.subr.mxu0 0.0
        %4328 = vmatpush1.msra.mxu0 0.0
        %4329 = vmatprep.subr.mxu0 0.0
        %4330 = vmatpush1.msra.mxu0 0.0
        %4331 = vmatprep.subr.mxu0 0.0
        %4332 = vmatpush1.msra.mxu0 0.0
        %4333 = vmatprep.subr.mxu0 0.0
        %4334 = vmatpush1.msra.mxu0 0.0
        %4335 = vmatprep.subr.mxu0 0.0
        %4336 = vmatpush1.msra.mxu0 0.0
        %4337 = vmatprep.subr.mxu0 0.0
        %4338 = vmatpush1.msra.mxu0 0.0
        %4339 = vmatprep.subr.mxu0 0.0
        %4340 = vmatpush1.msra.mxu0 0.0
        %4341 = vmatprep.subr.mxu0 0.0
        %4342 = vmatpush1.msra.mxu0 0.0
        %4343 = vmatprep.subr.mxu0 0.0
        %4344 = vmatpush1.msra.mxu0 0.0
        %4345 = vmatprep.subr.mxu0 0.0
        %4346 = vmatpush1.msra.mxu0 0.0
        %4347 = vmatprep.subr.mxu0 0.0
        %4348 = vmatpush1.msra.mxu0 0.0
        %4349 = vmatprep.subr.mxu0 0.0
        %4350 = vmatpush1.msra.mxu0 0.0
        %4351 = vmatprep.subr.mxu0 0.0
        %4352 = vmatpush1.msra.mxu0 0.0
        %4353 = vmatprep.mubr.f32.mxu0 0.0
        %4354 = vmatmul.mubr.f32.gmra.mrb[0].mxu0 %v4287
        %v4355 = vpop.f32.mrb[0].mxu0
        %v4356 = vadd.f32 %v4283, %v4355
        %v4357 = vpop.f32.mrb[0].mxu0
        %4358 = vdwg.mxu0
        %vm4359 = vcmp.ge.f32.partialorder %v4356, 0.0
        %v4360 = vmul.f32 %v4356, 0.1
        %v4361 = vsel %vm4359, %v4356, %v4360
        %v4363 = vsel %vm4113, %v4361, 0
        %4365 = vmatprep.subr.mxu0 0.0
        %4366 = vmatpush1.msra.mxu0 %v4190
        %4367 = vmatprep.subr.mxu0 0.0
        %4368 = vmatpush1.msra.mxu0 %v4191
        %4369 = vmatprep.subr.mxu0 0.0
        %4370 = vmatpush1.msra.mxu0 %v4192
        %4371 = vmatprep.subr.mxu0 0.0
        %4372 = vmatpush1.msra.mxu0 %v4193
        %4373 = vmatprep.subr.mxu0 0.0
        %4374 = vmatpush1.msra.mxu0 %v4194
        %4375 = vmatprep.subr.mxu0 0.0
        %4376 = vmatpush1.msra.mxu0 %v4195
        %4377 = vmatprep.subr.mxu0 0.0
        %4378 = vmatpush1.msra.mxu0 %v4196
        %4379 = vmatprep.subr.mxu0 0.0
        %4380 = vmatpush1.msra.mxu0 %v4197
        %4381 = vmatprep.subr.mxu0 0.0
        %4382 = vmatpush1.msra.mxu0 0.0
        %4383 = vmatprep.subr.mxu0 0.0
        %4384 = vmatpush1.msra.mxu0 0.0
        %4385 = vmatprep.subr.mxu0 0.0
        %4386 = vmatpush1.msra.mxu0 0.0
        %4387 = vmatprep.subr.mxu0 0.0
        %4388 = vmatpush1.msra.mxu0 0.0
        %4389 = vmatprep.subr.mxu0 0.0
        %4390 = vmatpush1.msra.mxu0 0.0
        %4391 = vmatprep.subr.mxu0 0.0
        %4392 = vmatpush1.msra.mxu0 0.0
        %4393 = vmatprep.subr.mxu0 0.0
        %4394 = vmatpush1.msra.mxu0 0.0
        %4395 = vmatprep.subr.mxu0 0.0
        %4396 = vmatpush1.msra.mxu0 0.0
        %4397 = vmatprep.subr.mxu0 0.0
        %4398 = vmatpush1.msra.mxu0 0.0
        %4399 = vmatprep.subr.mxu0 0.0
        %4400 = vmatpush1.msra.mxu0 0.0
        %4401 = vmatprep.subr.mxu0 0.0
        %4402 = vmatpush1.msra.mxu0 0.0
        %4403 = vmatprep.subr.mxu0 0.0
        %4404 = vmatpush1.msra.mxu0 0.0
        %4405 = vmatprep.subr.mxu0 0.0
        %4406 = vmatpush1.msra.mxu0 0.0
        %4407 = vmatprep.subr.mxu0 0.0
        %4408 = vmatpush1.msra.mxu0 0.0
        %4409 = vmatprep.subr.mxu0 0.0
        %4410 = vmatpush1.msra.mxu0 0.0
        %4411 = vmatprep.subr.mxu0 0.0
        %4412 = vmatpush1.msra.mxu0 0.0
        %4413 = vmatprep.subr.mxu0 0.0
        %4414 = vmatpush1.msra.mxu0 0.0
        %4415 = vmatprep.subr.mxu0 0.0
        %4416 = vmatpush1.msra.mxu0 0.0
        %4417 = vmatprep.subr.mxu0 0.0
        %4418 = vmatpush1.msra.mxu0 0.0
        %4419 = vmatprep.subr.mxu0 0.0
        %4420 = vmatpush1.msra.mxu0 0.0
        %4421 = vmatprep.subr.mxu0 0.0
        %4422 = vmatpush1.msra.mxu0 0.0
        %4423 = vmatprep.subr.mxu0 0.0
        %4424 = vmatpush1.msra.mxu0 0.0
        %4425 = vmatprep.subr.mxu0 0.0
        %4426 = vmatpush1.msra.mxu0 0.0
        %4427 = vmatprep.subr.mxu0 0.0
        %4428 = vmatpush1.msra.mxu0 0.0
        %4429 = vmatprep.mubr.f32.mxu0 0.0
        %4430 = vmatmul.mubr.f32.gmra.mrb[0].mxu0 %v4363
        %v4431 = vpop.f32.mrb[0].mxu0
        %v4432 = vadd.f32 0.0, %v4431
        %v4433 = vpop.f32.mrb[0].mxu0
        %4434 = vdwg.mxu0
        %4436 = vrot.lane.b32.xlu0 %v4432, 127
        %v4437 = vpop.permute.xlu0 %4436
        %4439 = vrot.lane.b32.xlu0 %v4432, 126
        %v4440 = vpop.permute.xlu0 %4439
        %v4442 = vld [vmem:[%s79] sm:$0xff]
        %v4443 = vld [vmem:[%s81] sm:$0xff]
        %4445 = vset.pattern.permute.xlu0 0
        %4446 = vperm.xlu0 %4445, %v4443
        %v4447 = vpop.permute.xlu0 %4446
        %v4450 = vsel %vm4285, %v4442, 0
        %4452 = vmatprep.subr.mxu0 0.0
        %4453 = vmatpush1.msra.mxu0 %v4432
        %4454 = vmatprep.subr.mxu0 0.0
        %4455 = vmatpush1.msra.mxu0 %v4437
        %4456 = vmatprep.subr.mxu0 0.0
        %4457 = vmatpush1.msra.mxu0 %v4440
        %4458 = vmatprep.subr.mxu0 0.0
        %4459 = vmatpush1.msra.mxu0 0.0
        %4460 = vmatprep.subr.mxu0 0.0
        %4461 = vmatpush1.msra.mxu0 0.0
        %4462 = vmatprep.subr.mxu0 0.0
        %4463 = vmatpush1.msra.mxu0 0.0
        %4464 = vmatprep.subr.mxu0 0.0
        %4465 = vmatpush1.msra.mxu0 0.0
        %4466 = vmatprep.subr.mxu0 0.0
        %4467 = vmatpush1.msra.mxu0 0.0
        %4468 = vmatprep.subr.mxu0 0.0
        %4469 = vmatpush1.msra.mxu0 0.0
        %4470 = vmatprep.subr.mxu0 0.0
        %4471 = vmatpush1.msra.mxu0 0.0
        %4472 = vmatprep.subr.mxu0 0.0
        %4473 = vmatpush1.msra.mxu0 0.0
        %4474 = vmatprep.subr.mxu0 0.0
        %4475 = vmatpush1.msra.mxu0 0.0
        %4476 = vmatprep.subr.mxu0 0.0
        %4477 = vmatpush1.msra.mxu0 0.0
        %4478 = vmatprep.subr.mxu0 0.0
        %4479 = vmatpush1.msra.mxu0 0.0
        %4480 = vmatprep.subr.mxu0 0.0
        %4481 = vmatpush1.msra.mxu0 0.0
        %4482 = vmatprep.subr.mxu0 0.0
        %4483 = vmatpush1.msra.mxu0 0.0
        %4484 = vmatprep.subr.mxu0 0.0
        %4485 = vmatpush1.msra.mxu0 0.0
        %4486 = vmatprep.subr.mxu0 0.0
        %4487 = vmatpush1.msra.mxu0 0.0
        %4488 = vmatprep.subr.mxu0 0.0
        %4489 = vmatpush1.msra.mxu0 0.0
        %4490 = vmatprep.subr.mxu0 0.0
        %4491 = vmatpush1.msra.mxu0 0.0
        %4492 = vmatprep.subr.mxu0 0.0
        %4493 = vmatpush1.msra.mxu0 0.0
        %4494 = vmatprep.subr.mxu0 0.0
        %4495 = vmatpush1.msra.mxu0 0.0
        %4496 = vmatprep.subr.mxu0 0.0
        %4497 = vmatpush1.msra.mxu0 0.0
        %4498 = vmatprep.subr.mxu0 0.0
        %4499 = vmatpush1.msra.mxu0 0.0
        %4500 = vmatprep.subr.mxu0 0.0
        %4501 = vmatpush1.msra.mxu0 0.0
        %4502 = vmatprep.subr.mxu0 0.0
        %4503 = vmatpush1.msra.mxu0 0.0
        %4504 = vmatprep.subr.mxu0 0.0
        %4505 = vmatpush1.msra.mxu0 0.0
        %4506 = vmatprep.subr.mxu0 0.0
        %4507 = vmatpush1.msra.mxu0 0.0
        %4508 = vmatprep.subr.mxu0 0.0
        %4509 = vmatpush1.msra.mxu0 0.0
        %4510 = vmatprep.subr.mxu0 0.0
        %4511 = vmatpush1.msra.mxu0 0.0
        %4512 = vmatprep.subr.mxu0 0.0
        %4513 = vmatpush1.msra.mxu0 0.0
        %4514 = vmatprep.subr.mxu0 0.0
        %4515 = vmatpush1.msra.mxu0 0.0
        %4516 = vmatprep.mubr.f32.mxu0 0.0
        %4517 = vmatmul.mubr.f32.gmra.mrb[0].mxu0 %v4450
        %v4518 = vpop.f32.mrb[0].mxu0
        %v4519 = vadd.f32 %v4447, %v4518
        %v4520 = vpop.f32.mrb[0].mxu0
        %4521 = vdwg.mxu0
        %v4522 = vadd.f32 %v4184, %v4519
        %vm4523 = vcmp.ge.f32.partialorder %v4522, 0.0
        %v4524 = vmul.f32 %v4522, 0.1
        %v4525 = vsel %vm4523, %v4522, %v4524
        %v4526 = vld [vmem:[%s17] sm:$0xff]
        %v4527 = vld [vmem:[%s17 + $0x8] sm:$0xff]
        %v4528 = vld [vmem:[%s17 + $0x10] sm:$0xff]
        %v4529 = vld [vmem:[%s17 + $0x18] sm:$0xff]
        %v4530 = vld [vmem:[%s17 + $0x20] sm:$0xff]
        %v4531 = vld [vmem:[%s17 + $0x28] sm:$0xff]
        %v4532 = vld [vmem:[%s17 + $0x30] sm:$0xff]
        %v4533 = vld [vmem:[%s17 + $0x38] sm:$0xff]
        %v4535 = vsel %vm4113, %v4525, 0
        %4537 = vmatprep.subr.mxu0 0.0
        %4538 = vmatpush1.msra.mxu0 %v4526
        %4539 = vmatprep.subr.mxu0 0.0
        %4540 = vmatpush1.msra.mxu0 %v4527
        %4541 = vmatprep.subr.mxu0 0.0
        %4542 = vmatpush1.msra.mxu0 %v4528
        %4543 = vmatprep.subr.mxu0 0.0
        %4544 = vmatpush1.msra.mxu0 %v4529
        %4545 = vmatprep.subr.mxu0 0.0
        %4546 = vmatpush1.msra.mxu0 %v4530
        %4547 = vmatprep.subr.mxu0 0.0
        %4548 = vmatpush1.msra.mxu0 %v4531
        %4549 = vmatprep.subr.mxu0 0.0
        %4550 = vmatpush1.msra.mxu0 %v4532
        %4551 = vmatprep.subr.mxu0 0.0
        %4552 = vmatpush1.msra.mxu0 %v4533
        %4553 = vmatprep.subr.mxu0 0.0
        %4554 = vmatpush1.msra.mxu0 0.0
        %4555 = vmatprep.subr.mxu0 0.0
        %4556 = vmatpush1.msra.mxu0 0.0
        %4557 = vmatprep.subr.mxu0 0.0
        %4558 = vmatpush1.msra.mxu0 0.0
        %4559 = vmatprep.subr.mxu0 0.0
        %4560 = vmatpush1.msra.mxu0 0.0
        %4561 = vmatprep.subr.mxu0 0.0
        %4562 = vmatpush1.msra.mxu0 0.0
        %4563 = vmatprep.subr.mxu0 0.0
        %4564 = vmatpush1.msra.mxu0 0.0
        %4565 = vmatprep.subr.mxu0 0.0
        %4566 = vmatpush1.msra.mxu0 0.0
        %4567 = vmatprep.subr.mxu0 0.0
        %4568 = vmatpush1.msra.mxu0 0.0
        %4569 = vmatprep.subr.mxu0 0.0
        %4570 = vmatpush1.msra.mxu0 0.0
        %4571 = vmatprep.subr.mxu0 0.0
        %4572 = vmatpush1.msra.mxu0 0.0
        %4573 = vmatprep.subr.mxu0 0.0
        %4574 = vmatpush1.msra.mxu0 0.0
        %4575 = vmatprep.subr.mxu0 0.0
        %4576 = vmatpush1.msra.mxu0 0.0
        %4577 = vmatprep.subr.mxu0 0.0
        %4578 = vmatpush1.msra.mxu0 0.0
        %4579 = vmatprep.subr.mxu0 0.0
        %4580 = vmatpush1.msra.mxu0 0.0
        %4581 = vmatprep.subr.mxu0 0.0
        %4582 = vmatpush1.msra.mxu0 0.0
        %4583 = vmatprep.subr.mxu0 0.0
        %4584 = vmatpush1.msra.mxu0 0.0
        %4585 = vmatprep.subr.mxu0 0.0
        %4586 = vmatpush1.msra.mxu0 0.0
        %4587 = vmatprep.subr.mxu0 0.0
        %4588 = vmatpush1.msra.mxu0 0.0
        %4589 = vmatprep.subr.mxu0 0.0
        %4590 = vmatpush1.msra.mxu0 0.0
        %4591 = vmatprep.subr.mxu0 0.0
        %4592 = vmatpush1.msra.mxu0 0.0
        %4593 = vmatprep.subr.mxu0 0.0
        %4594 = vmatpush1.msra.mxu0 0.0
        %4595 = vmatprep.subr.mxu0 0.0
        %4596 = vmatpush1.msra.mxu0 0.0
        %4597 = vmatprep.subr.mxu0 0.0
        %4598 = vmatpush1.msra.mxu0 0.0
        %4599 = vmatprep.subr.mxu0 0.0
        %4600 = vmatpush1.msra.mxu0 0.0
        %4601 = vmatprep.mubr.f32.mxu0 0.0
        %4602 = vmatmul.mubr.f32.gmra.mrb[0].mxu0 %v4535
        %v4603 = vpop.f32.mrb[0].mxu0
        %v4604 = vadd.f32 0.0, %v4603
        %v4605 = vpop.f32.mrb[0].mxu0
        %4606 = vdwg.mxu0
        %4608 = vrot.lane.b32.xlu0 %v4604, 125
        %v4609 = vpop.permute.xlu0 %4608
        %4611 = vrot.lane.b32.xlu0 %v4604, 122
        %v4612 = vpop.permute.xlu0 %4611
        %v4614 = vld [vmem:[%s83] sm:$0xff]
        %v4615 = vld [vmem:[%s85] sm:$0xff]
        %4617 = vset.pattern.permute.xlu0 0
        %4618 = vperm.xlu0 %4617, %v4615
        %v4619 = vpop.permute.xlu0 %4618
        %v4622 = vsel %vm4285, %v4614, 0
        %4624 = vmatprep.subr.mxu0 0.0
        %4625 = vmatpush1.msra.mxu0 %v4604
        %4626 = vmatprep.subr.mxu0 0.0
        %4627 = vmatpush1.msra.mxu0 %v4609
        %4628 = vmatprep.subr.mxu0 0.0
        %4629 = vmatpush1.msra.mxu0 %v4612
        %4630 = vmatprep.subr.mxu0 0.0
        %4631 = vmatpush1.msra.mxu0 0.0
        %4632 = vmatprep.subr.mxu0 0.0
        %4633 = vmatpush1.msra.mxu0 0.0
        %4634 = vmatprep.subr.mxu0 0.0
        %4635 = vmatpush1.msra.mxu0 0.0
        %4636 = vmatprep.subr.mxu0 0.0
        %4637 = vmatpush1.msra.mxu0 0.0
        %4638 = vmatprep.subr.mxu0 0.0
        %4639 = vmatpush1.msra.mxu0 0.0
        %4640 = vmatprep.subr.mxu0 0.0
        %4641 = vmatpush1.msra.mxu0 0.0
        %4642 = vmatprep.subr.mxu0 0.0
        %4643 = vmatpush1.msra.mxu0 0.0
        %4644 = vmatprep.subr.mxu0 0.0
        %4645 = vmatpush1.msra.mxu0 0.0
        %4646 = vmatprep.subr.mxu0 0.0
        %4647 = vmatpush1.msra.mxu0 0.0
        %4648 = vmatprep.subr.mxu0 0.0
        %4649 = vmatpush1.msra.mxu0 0.0
        %4650 = vmatprep.subr.mxu0 0.0
        %4651 = vmatpush1.msra.mxu0 0.0
        %4652 = vmatprep.subr.mxu0 0.0
        %4653 = vmatpush1.msra.mxu0 0.0
        %4654 = vmatprep.subr.mxu0 0.0
        %4655 = vmatpush1.msra.mxu0 0.0
        %4656 = vmatprep.subr.mxu0 0.0
        %4657 = vmatpush1.msra.mxu0 0.0
        %4658 = vmatprep.subr.mxu0 0.0
        %4659 = vmatpush1.msra.mxu0 0.0
        %4660 = vmatprep.subr.mxu0 0.0
        %4661 = vmatpush1.msra.mxu0 0.0
        %4662 = vmatprep.subr.mxu0 0.0
        %4663 = vmatpush1.msra.mxu0 0.0
        %4664 = vmatprep.subr.mxu0 0.0
        %4665 = vmatpush1.msra.mxu0 0.0
        %4666 = vmatprep.subr.mxu0 0.0
        %4667 = vmatpush1.msra.mxu0 0.0
        %4668 = vmatprep.subr.mxu0 0.0
        %4669 = vmatpush1.msra.mxu0 0.0
        %4670 = vmatprep.subr.mxu0 0.0
        %4671 = vmatpush1.msra.mxu0 0.0
        %4672 = vmatprep.subr.mxu0 0.0
        %4673 = vmatpush1.msra.mxu0 0.0
        %4674 = vmatprep.subr.mxu0 0.0
        %4675 = vmatpush1.msra.mxu0 0.0
        %4676 = vmatprep.subr.mxu0 0.0
        %4677 = vmatpush1.msra.mxu0 0.0
        %4678 = vmatprep.subr.mxu0 0.0
        %4679 = vmatpush1.msra.mxu0 0.0
        %4680 = vmatprep.subr.mxu0 0.0
        %4681 = vmatpush1.msra.mxu0 0.0
        %4682 = vmatprep.subr.mxu0 0.0
        %4683 = vmatpush1.msra.mxu0 0.0
        %4684 = vmatprep.subr.mxu0 0.0
        %4685 = vmatpush1.msra.mxu0 0.0
        %4686 = vmatprep.subr.mxu0 0.0
        %4687 = vmatpush1.msra.mxu0 0.0
        %4688 = vmatprep.mubr.f32.mxu0 0.0
        %4689 = vmatmul.mubr.f32.gmra.mrb[0].mxu0 %v4622
        %v4690 = vpop.f32.mrb[0].mxu0
        %v4691 = vadd.f32 %v4619, %v4690
        %v4692 = vpop.f32.mrb[0].mxu0
        %4693 = vdwg.mxu0
        %vm4694 = vcmp.ge.f32.partialorder %v4691, 0.0
        %v4695 = vmul.f32 %v4691, 0.1
        %v4696 = vsel %vm4694, %v4691, %v4695
        %v4698 = vsel %vm4113, %v4696, 0
        %4700 = vmatprep.subr.mxu0 0.0
        %4701 = vmatpush1.msra.mxu0 %v4190
        %4702 = vmatprep.subr.mxu0 0.0
        %4703 = vmatpush1.msra.mxu0 %v4191
        %4704 = vmatprep.subr.mxu0 0.0
        %4705 = vmatpush1.msra.mxu0 %v4192
        %4706 = vmatprep.subr.mxu0 0.0
        %4707 = vmatpush1.msra.mxu0 %v4193
        %4708 = vmatprep.subr.mxu0 0.0
        %4709 = vmatpush1.msra.mxu0 %v4194
        %4710 = vmatprep.subr.mxu0 0.0
        %4711 = vmatpush1.msra.mxu0 %v4195
        %4712 = vmatprep.subr.mxu0 0.0
        %4713 = vmatpush1.msra.mxu0 %v4196
        %4714 = vmatprep.subr.mxu0 0.0
        %4715 = vmatpush1.msra.mxu0 %v4197
        %4716 = vmatprep.subr.mxu0 0.0
        %4717 = vmatpush1.msra.mxu0 0.0
        %4718 = vmatprep.subr.mxu0 0.0
        %4719 = vmatpush1.msra.mxu0 0.0
        %4720 = vmatprep.subr.mxu0 0.0
        %4721 = vmatpush1.msra.mxu0 0.0
        %4722 = vmatprep.subr.mxu0 0.0
        %4723 = vmatpush1.msra.mxu0 0.0
        %4724 = vmatprep.subr.mxu0 0.0
        %4725 = vmatpush1.msra.mxu0 0.0
        %4726 = vmatprep.subr.mxu0 0.0
        %4727 = vmatpush1.msra.mxu0 0.0
        %4728 = vmatprep.subr.mxu0 0.0
        %4729 = vmatpush1.msra.mxu0 0.0
        %4730 = vmatprep.subr.mxu0 0.0
        %4731 = vmatpush1.msra.mxu0 0.0
        %4732 = vmatprep.subr.mxu0 0.0
        %4733 = vmatpush1.msra.mxu0 0.0
        %4734 = vmatprep.subr.mxu0 0.0
        %4735 = vmatpush1.msra.mxu0 0.0
        %4736 = vmatprep.subr.mxu0 0.0
        %4737 = vmatpush1.msra.mxu0 0.0
        %4738 = vmatprep.subr.mxu0 0.0
        %4739 = vmatpush1.msra.mxu0 0.0
        %4740 = vmatprep.subr.mxu0 0.0
        %4741 = vmatpush1.msra.mxu0 0.0
        %4742 = vmatprep.subr.mxu0 0.0
        %4743 = vmatpush1.msra.mxu0 0.0
        %4744 = vmatprep.subr.mxu0 0.0
        %4745 = vmatpush1.msra.mxu0 0.0
        %4746 = vmatprep.subr.mxu0 0.0
        %4747 = vmatpush1.msra.mxu0 0.0
        %4748 = vmatprep.subr.mxu0 0.0
        %4749 = vmatpush1.msra.mxu0 0.0
        %4750 = vmatprep.subr.mxu0 0.0
        %4751 = vmatpush1.msra.mxu0 0.0
        %4752 = vmatprep.subr.mxu0 0.0
        %4753 = vmatpush1.msra.mxu0 0.0
        %4754 = vmatprep.subr.mxu0 0.0
        %4755 = vmatpush1.msra.mxu0 0.0
        %4756 = vmatprep.subr.mxu0 0.0
        %4757 = vmatpush1.msra.mxu0 0.0
        %4758 = vmatprep.subr.mxu0 0.0
        %4759 = vmatpush1.msra.mxu0 0.0
        %4760 = vmatprep.subr.mxu0 0.0
        %4761 = vmatpush1.msra.mxu0 0.0
        %4762 = vmatprep.subr.mxu0 0.0
        %4763 = vmatpush1.msra.mxu0 0.0
        %4764 = vmatprep.mubr.f32.mxu0 0.0
        %4765 = vmatmul.mubr.f32.gmra.mrb[0].mxu0 %v4698
        %v4766 = vpop.f32.mrb[0].mxu0
        %v4767 = vadd.f32 0.0, %v4766
        %v4768 = vpop.f32.mrb[0].mxu0
        %4769 = vdwg.mxu0
        %4771 = vrot.lane.b32.xlu0 %v4767, 127
        %v4772 = vpop.permute.xlu0 %4771
        %4774 = vrot.lane.b32.xlu0 %v4767, 126
        %v4775 = vpop.permute.xlu0 %4774
        %v4777 = vld [vmem:[%s87] sm:$0xff]
        %v4778 = vld [vmem:[%s89] sm:$0xff]
        %4780 = vset.pattern.permute.xlu0 0
        %4781 = vperm.xlu0 %4780, %v4778
        %v4782 = vpop.permute.xlu0 %4781
        %v4785 = vsel %vm4285, %v4777, 0
        %4787 = vmatprep.subr.mxu0 0.0
        %4788 = vmatpush1.msra.mxu0 %v4767
        %4789 = vmatprep.subr.mxu0 0.0
        %4790 = vmatpush1.msra.mxu0 %v4772
        %4791 = vmatprep.subr.mxu0 0.0
        %4792 = vmatpush1.msra.mxu0 %v4775
        %4793 = vmatprep.subr.mxu0 0.0
        %4794 = vmatpush1.msra.mxu0 0.0
        %4795 = vmatprep.subr.mxu0 0.0
        %4796 = vmatpush1.msra.mxu0 0.0
        %4797 = vmatprep.subr.mxu0 0.0
        %4798 = vmatpush1.msra.mxu0 0.0
        %4799 = vmatprep.subr.mxu0 0.0
        %4800 = vmatpush1.msra.mxu0 0.0
        %4801 = vmatprep.subr.mxu0 0.0
        %4802 = vmatpush1.msra.mxu0 0.0
        %4803 = vmatprep.subr.mxu0 0.0
        %4804 = vmatpush1.msra.mxu0 0.0
        %4805 = vmatprep.subr.mxu0 0.0
        %4806 = vmatpush1.msra.mxu0 0.0
        %4807 = vmatprep.subr.mxu0 0.0
        %4808 = vmatpush1.msra.mxu0 0.0
        %4809 = vmatprep.subr.mxu0 0.0
        %4810 = vmatpush1.msra.mxu0 0.0
        %4811 = vmatprep.subr.mxu0 0.0
        %4812 = vmatpush1.msra.mxu0 0.0
        %4813 = vmatprep.subr.mxu0 0.0
        %4814 = vmatpush1.msra.mxu0 0.0
        %4815 = vmatprep.subr.mxu0 0.0
        %4816 = vmatpush1.msra.mxu0 0.0
        %4817 = vmatprep.subr.mxu0 0.0
        %4818 = vmatpush1.msra.mxu0 0.0
        %4819 = vmatprep.subr.mxu0 0.0
        %4820 = vmatpush1.msra.mxu0 0.0
        %4821 = vmatprep.subr.mxu0 0.0
        %4822 = vmatpush1.msra.mxu0 0.0
        %4823 = vmatprep.subr.mxu0 0.0
        %4824 = vmatpush1.msra.mxu0 0.0
        %4825 = vmatprep.subr.mxu0 0.0
        %4826 = vmatpush1.msra.mxu0 0.0
        %4827 = vmatprep.subr.mxu0 0.0
        %4828 = vmatpush1.msra.mxu0 0.0
        %4829 = vmatprep.subr.mxu0 0.0
        %4830 = vmatpush1.msra.mxu0 0.0
        %4831 = vmatprep.subr.mxu0 0.0
        %4832 = vmatpush1.msra.mxu0 0.0
        %4833 = vmatprep.subr.mxu0 0.0
        %4834 = vmatpush1.msra.mxu0 0.0
        %4835 = vmatprep.subr.mxu0 0.0
        %4836 = vmatpush1.msra.mxu0 0.0
        %4837 = vmatprep.subr.mxu0 0.0
        %4838 = vmatpush1.msra.mxu0 0.0
        %4839 = vmatprep.subr.mxu0 0.0
        %4840 = vmatpush1.msra.mxu0 0.0
        %4841 = vmatprep.subr.mxu0 0.0
        %4842 = vmatpush1.msra.mxu0 0.0
        %4843 = vmatprep.subr.mxu0 0.0
        %4844 = vmatpush1.msra.mxu0 0.0
        %4845 = vmatprep.subr.mxu0 0.0
        %4846 = vmatpush1.msra.mxu0 0.0
        %4847 = vmatprep.subr.mxu0 0.0
        %4848 = vmatpush1.msra.mxu0 0.0
        %4849 = vmatprep.subr.mxu0 0.0
        %4850 = vmatpush1.msra.mxu0 0.0
        %4851 = vmatprep.mubr.f32.mxu0 0.0
        %4852 = vmatmul.mubr.f32.gmra.mrb[0].mxu0 %v4785
        %v4853 = vpop.f32.mrb[0].mxu0
        %v4854 = vadd.f32 %v4782, %v4853
        %v4855 = vpop.f32.mrb[0].mxu0
        %4856 = vdwg.mxu0
        %v4857 = vadd.f32 %v4522, %v4854
        %v4858 = vld [vmem:[%s19] sm:$0xff]
        %v4859 = vld [vmem:[%s19 + $0x8] sm:$0xff]
        %v4860 = vld [vmem:[%s19 + $0x10] sm:$0xff]
        %v4861 = vld [vmem:[%s19 + $0x18] sm:$0xff]
        %v4862 = vld [vmem:[%s19 + $0x20] sm:$0xff]
        %v4863 = vld [vmem:[%s19 + $0x28] sm:$0xff]
        %v4864 = vld [vmem:[%s19 + $0x30] sm:$0xff]
        %v4865 = vld [vmem:[%s19 + $0x38] sm:$0xff]
        %4866 = vmatprep.subr.mxu0 0.0
        %4867 = vmatpush1.msra.mxu0 %v4858
        %4868 = vmatprep.subr.mxu0 0.0
        %4869 = vmatpush1.msra.mxu0 %v4859
        %4870 = vmatprep.subr.mxu0 0.0
        %4871 = vmatpush1.msra.mxu0 %v4860
        %4872 = vmatprep.subr.mxu0 0.0
        %4873 = vmatpush1.msra.mxu0 %v4861
        %4874 = vmatprep.subr.mxu0 0.0
        %4875 = vmatpush1.msra.mxu0 %v4862
        %4876 = vmatprep.subr.mxu0 0.0
        %4877 = vmatpush1.msra.mxu0 %v4863
        %4878 = vmatprep.subr.mxu0 0.0
        %4879 = vmatpush1.msra.mxu0 %v4864
        %4880 = vmatprep.subr.mxu0 0.0
        %4881 = vmatpush1.msra.mxu0 %v4865
        %4882 = vmatprep.subr.mxu0 0.0
        %4883 = vmatpush1.msra.mxu0 0.0
        %4884 = vmatprep.subr.mxu0 0.0
        %4885 = vmatpush1.msra.mxu0 0.0
        %4886 = vmatprep.subr.mxu0 0.0
        %4887 = vmatpush1.msra.mxu0 0.0
        %4888 = vmatprep.subr.mxu0 0.0
        %4889 = vmatpush1.msra.mxu0 0.0
        %4890 = vmatprep.subr.mxu0 0.0
        %4891 = vmatpush1.msra.mxu0 0.0
        %4892 = vmatprep.subr.mxu0 0.0
        %4893 = vmatpush1.msra.mxu0 0.0
        %4894 = vmatprep.subr.mxu0 0.0
        %4895 = vmatpush1.msra.mxu0 0.0
        %4896 = vmatprep.subr.mxu0 0.0
        %4897 = vmatpush1.msra.mxu0 0.0
        %4898 = vmatprep.subr.mxu0 0.0
        %4899 = vmatpush1.msra.mxu0 0.0
        %4900 = vmatprep.subr.mxu0 0.0
        %4901 = vmatpush1.msra.mxu0 0.0
        %4902 = vmatprep.subr.mxu0 0.0
        %4903 = vmatpush1.msra.mxu0 0.0
        %4904 = vmatprep.subr.mxu0 0.0
        %4905 = vmatpush1.msra.mxu0 0.0
        %4906 = vmatprep.subr.mxu0 0.0
        %4907 = vmatpush1.msra.mxu0 0.0
        %4908 = vmatprep.subr.mxu0 0.0
        %4909 = vmatpush1.msra.mxu0 0.0
        %4910 = vmatprep.subr.mxu0 0.0
        %4911 = vmatpush1.msra.mxu0 0.0
        %4912 = vmatprep.subr.mxu0 0.0
        %4913 = vmatpush1.msra.mxu0 0.0
        %4914 = vmatprep.subr.mxu0 0.0
        %4915 = vmatpush1.msra.mxu0 0.0
        %4916 = vmatprep.subr.mxu0 0.0
        %4917 = vmatpush1.msra.mxu0 0.0
        %4918 = vmatprep.subr.mxu0 0.0
        %4919 = vmatpush1.msra.mxu0 0.0
        %4920 = vmatprep.subr.mxu0 0.0
        %4921 = vmatpush1.msra.mxu0 0.0
        %4922 = vmatprep.subr.mxu0 0.0
        %4923 = vmatpush1.msra.mxu0 0.0
        %4924 = vmatprep.subr.mxu0 0.0
        %4925 = vmatpush1.msra.mxu0 0.0
        %4926 = vmatprep.subr.mxu0 0.0
        %4927 = vmatpush1.msra.mxu0 0.0
        %4928 = vmatprep.subr.mxu0 0.0
        %4929 = vmatpush1.msra.mxu0 0.0
        %4930 = vmatprep.mubr.f32.mxu0 0.0
        %4931 = vmatmul.mubr.f32.gmra.mrb[0].mxu0 %v4199
        %v4932 = vpop.f32.mrb[0].mxu0
        %v4933 = vadd.f32 0.0, %v4932
        %v4934 = vpop.f32.mrb[0].mxu0
        %4935 = vdwg.mxu0
        %4937 = vrot.lane.b32.xlu0 %v4933, 127
        %v4938 = vpop.permute.xlu0 %4937
        %4940 = vrot.lane.b32.xlu0 %v4933, 126
        %v4941 = vpop.permute.xlu0 %4940
        %4943 = vrot.lane.b32.xlu0 %v4933, 125
        %v4944 = vpop.permute.xlu0 %4943
        %4946 = vrot.lane.b32.xlu0 %v4933, 124
        %v4947 = vpop.permute.xlu0 %4946
        %v4949 = vld [vmem:[%s91] sm:$0xff]
        %v4950 = vld [vmem:[%s93] sm:$0xff]
        %4952 = vset.pattern.permute.xlu0 0
        %4953 = vperm.xlu0 %4952, %v4950
        %v4954 = vpop.permute.xlu0 %4953
        %vm4956 = vcmask 326656
        %v4958 = vsel %vm4956, %v4949, 0
        %4960 = vmatprep.subr.mxu0 0.0
        %4961 = vmatpush1.msra.mxu0 %v4933
        %4962 = vmatprep.subr.mxu0 0.0
        %4963 = vmatpush1.msra.mxu0 %v4938
        %4964 = vmatprep.subr.mxu0 0.0
        %4965 = vmatpush1.msra.mxu0 %v4941
        %4966 = vmatprep.subr.mxu0 0.0
        %4967 = vmatpush1.msra.mxu0 %v4944
        %4968 = vmatprep.subr.mxu0 0.0
        %4969 = vmatpush1.msra.mxu0 %v4947
        %4970 = vmatprep.subr.mxu0 0.0
        %4971 = vmatpush1.msra.mxu0 0.0
        %4972 = vmatprep.subr.mxu0 0.0
        %4973 = vmatpush1.msra.mxu0 0.0
        %4974 = vmatprep.subr.mxu0 0.0
        %4975 = vmatpush1.msra.mxu0 0.0
        %4976 = vmatprep.subr.mxu0 0.0
        %4977 = vmatpush1.msra.mxu0 0.0
        %4978 = vmatprep.subr.mxu0 0.0
        %4979 = vmatpush1.msra.mxu0 0.0
        %4980 = vmatprep.subr.mxu0 0.0
        %4981 = vmatpush1.msra.mxu0 0.0
        %4982 = vmatprep.subr.mxu0 0.0
        %4983 = vmatpush1.msra.mxu0 0.0
        %4984 = vmatprep.subr.mxu0 0.0
        %4985 = vmatpush1.msra.mxu0 0.0
        %4986 = vmatprep.subr.mxu0 0.0
        %4987 = vmatpush1.msra.mxu0 0.0
        %4988 = vmatprep.subr.mxu0 0.0
        %4989 = vmatpush1.msra.mxu0 0.0
        %4990 = vmatprep.subr.mxu0 0.0
        %4991 = vmatpush1.msra.mxu0 0.0
        %4992 = vmatprep.subr.mxu0 0.0
        %4993 = vmatpush1.msra.mxu0 0.0
        %4994 = vmatprep.subr.mxu0 0.0
        %4995 = vmatpush1.msra.mxu0 0.0
        %4996 = vmatprep.subr.mxu0 0.0
        %4997 = vmatpush1.msra.mxu0 0.0
        %4998 = vmatprep.subr.mxu0 0.0
        %4999 = vmatpush1.msra.mxu0 0.0
        %5000 = vmatprep.subr.mxu0 0.0
        %5001 = vmatpush1.msra.mxu0 0.0
        %5002 = vmatprep.subr.mxu0 0.0
        %5003 = vmatpush1.msra.mxu0 0.0
        %5004 = vmatprep.subr.mxu0 0.0
        %5005 = vmatpush1.msra.mxu0 0.0
        %5006 = vmatprep.subr.mxu0 0.0
        %5007 = vmatpush1.msra.mxu0 0.0
        %5008 = vmatprep.subr.mxu0 0.0
        %5009 = vmatpush1.msra.mxu0 0.0
        %5010 = vmatprep.subr.mxu0 0.0
        %5011 = vmatpush1.msra.mxu0 0.0
        %5012 = vmatprep.subr.mxu0 0.0
        %5013 = vmatpush1.msra.mxu0 0.0
        %5014 = vmatprep.subr.mxu0 0.0
        %5015 = vmatpush1.msra.mxu0 0.0
        %5016 = vmatprep.subr.mxu0 0.0
        %5017 = vmatpush1.msra.mxu0 0.0
        %5018 = vmatprep.subr.mxu0 0.0
        %5019 = vmatpush1.msra.mxu0 0.0
        %5020 = vmatprep.subr.mxu0 0.0
        %5021 = vmatpush1.msra.mxu0 0.0
        %5022 = vmatprep.subr.mxu0 0.0
        %5023 = vmatpush1.msra.mxu0 0.0
        %5024 = vmatprep.mubr.f32.mxu0 0.0
        %5025 = vmatmul.mubr.f32.gmra.mrb[0].mxu0 %v4958
        %v5026 = vpop.f32.mrb[0].mxu0
        %v5027 = vadd.f32 %v4954, %v5026
        %v5028 = vpop.f32.mrb[0].mxu0
        %5029 = vdwg.mxu0
        %vm5030 = vcmp.ge.f32.partialorder %v5027, 0.0
        %v5031 = vmul.f32 %v5027, 0.1
        %v5032 = vsel %vm5030, %v5027, %v5031
        %v5034 = vsel %vm4113, %v5032, 0
        %5036 = vmatprep.subr.mxu0 0.0
        %5037 = vmatpush1.msra.mxu0 %v4858
        %5038 = vmatprep.subr.mxu0 0.0
        %5039 = vmatpush1.msra.mxu0 %v4859
        %5040 = vmatprep.subr.mxu0 0.0
        %5041 = vmatpush1.msra.mxu0 %v4860
        %5042 = vmatprep.subr.mxu0 0.0
        %5043 = vmatpush1.msra.mxu0 %v4861
        %5044 = vmatprep.subr.mxu0 0.0
        %5045 = vmatpush1.msra.mxu0 %v4862
        %5046 = vmatprep.subr.mxu0 0.0
        %5047 = vmatpush1.msra.mxu0 %v4863
        %5048 = vmatprep.subr.mxu0 0.0
        %5049 = vmatpush1.msra.mxu0 %v4864
        %5050 = vmatprep.subr.mxu0 0.0
        %5051 = vmatpush1.msra.mxu0 %v4865
        %5052 = vmatprep.subr.mxu0 0.0
        %5053 = vmatpush1.msra.mxu0 0.0
        %5054 = vmatprep.subr.mxu0 0.0
        %5055 = vmatpush1.msra.mxu0 0.0
        %5056 = vmatprep.subr.mxu0 0.0
        %5057 = vmatpush1.msra.mxu0 0.0
        %5058 = vmatprep.subr.mxu0 0.0
        %5059 = vmatpush1.msra.mxu0 0.0
        %5060 = vmatprep.subr.mxu0 0.0
        %5061 = vmatpush1.msra.mxu0 0.0
        %5062 = vmatprep.subr.mxu0 0.0
        %5063 = vmatpush1.msra.mxu0 0.0
        %5064 = vmatprep.subr.mxu0 0.0
        %5065 = vmatpush1.msra.mxu0 0.0
        %5066 = vmatprep.subr.mxu0 0.0
        %5067 = vmatpush1.msra.mxu0 0.0
        %5068 = vmatprep.subr.mxu0 0.0
        %5069 = vmatpush1.msra.mxu0 0.0
        %5070 = vmatprep.subr.mxu0 0.0
        %5071 = vmatpush1.msra.mxu0 0.0
        %5072 = vmatprep.subr.mxu0 0.0
        %5073 = vmatpush1.msra.mxu0 0.0
        %5074 = vmatprep.subr.mxu0 0.0
        %5075 = vmatpush1.msra.mxu0 0.0
        %5076 = vmatprep.subr.mxu0 0.0
        %5077 = vmatpush1.msra.mxu0 0.0
        %5078 = vmatprep.subr.mxu0 0.0
        %5079 = vmatpush1.msra.mxu0 0.0
        %5080 = vmatprep.subr.mxu0 0.0
        %5081 = vmatpush1.msra.mxu0 0.0
        %5082 = vmatprep.subr.mxu0 0.0
        %5083 = vmatpush1.msra.mxu0 0.0
        %5084 = vmatprep.subr.mxu0 0.0
        %5085 = vmatpush1.msra.mxu0 0.0
        %5086 = vmatprep.subr.mxu0 0.0
        %5087 = vmatpush1.msra.mxu0 0.0
        %5088 = vmatprep.subr.mxu0 0.0
        %5089 = vmatpush1.msra.mxu0 0.0
        %5090 = vmatprep.subr.mxu0 0.0
        %5091 = vmatpush1.msra.mxu0 0.0
        %5092 = vmatprep.subr.mxu0 0.0
        %5093 = vmatpush1.msra.mxu0 0.0
        %5094 = vmatprep.subr.mxu0 0.0
        %5095 = vmatpush1.msra.mxu0 0.0
        %5096 = vmatprep.subr.mxu0 0.0
        %5097 = vmatpush1.msra.mxu0 0.0
        %5098 = vmatprep.subr.mxu0 0.0
        %5099 = vmatpush1.msra.mxu0 0.0
        %5100 = vmatprep.mubr.f32.mxu0 0.0
        %5101 = vmatmul.mubr.f32.gmra.mrb[0].mxu0 %v5034
        %v5102 = vpop.f32.mrb[0].mxu0
        %v5103 = vadd.f32 0.0, %v5102
        %v5104 = vpop.f32.mrb[0].mxu0
        %5105 = vdwg.mxu0
        %5107 = vrot.lane.b32.xlu0 %v5103, 127
        %v5108 = vpop.permute.xlu0 %5107
        %5110 = vrot.lane.b32.xlu0 %v5103, 126
        %v5111 = vpop.permute.xlu0 %5110
        %5113 = vrot.lane.b32.xlu0 %v5103, 125
        %v5114 = vpop.permute.xlu0 %5113
        %5116 = vrot.lane.b32.xlu0 %v5103, 124
        %v5117 = vpop.permute.xlu0 %5116
        %v5119 = vld [vmem:[%s95] sm:$0xff]
        %v5120 = vld [vmem:[%s97] sm:$0xff]
        %5122 = vset.pattern.permute.xlu0 0
        %5123 = vperm.xlu0 %5122, %v5120
        %v5124 = vpop.permute.xlu0 %5123
        %v5127 = vsel %vm4956, %v5119, 0
        %5129 = vmatprep.subr.mxu0 0.0
        %5130 = vmatpush1.msra.mxu0 %v5103
        %5131 = vmatprep.subr.mxu0 0.0
        %5132 = vmatpush1.msra.mxu0 %v5108
        %5133 = vmatprep.subr.mxu0 0.0
        %5134 = vmatpush1.msra.mxu0 %v5111
        %5135 = vmatprep.subr.mxu0 0.0
        %5136 = vmatpush1.msra.mxu0 %v5114
        %5137 = vmatprep.subr.mxu0 0.0
        %5138 = vmatpush1.msra.mxu0 %v5117
        %5139 = vmatprep.subr.mxu0 0.0
        %5140 = vmatpush1.msra.mxu0 0.0
        %5141 = vmatprep.subr.mxu0 0.0
        %5142 = vmatpush1.msra.mxu0 0.0
        %5143 = vmatprep.subr.mxu0 0.0
        %5144 = vmatpush1.msra.mxu0 0.0
        %5145 = vmatprep.subr.mxu0 0.0
        %5146 = vmatpush1.msra.mxu0 0.0
        %5147 = vmatprep.subr.mxu0 0.0
        %5148 = vmatpush1.msra.mxu0 0.0
        %5149 = vmatprep.subr.mxu0 0.0
        %5150 = vmatpush1.msra.mxu0 0.0
        %5151 = vmatprep.subr.mxu0 0.0
        %5152 = vmatpush1.msra.mxu0 0.0
        %5153 = vmatprep.subr.mxu0 0.0
        %5154 = vmatpush1.msra.mxu0 0.0
        %5155 = vmatprep.subr.mxu0 0.0
        %5156 = vmatpush1.msra.mxu0 0.0
        %5157 = vmatprep.subr.mxu0 0.0
        %5158 = vmatpush1.msra.mxu0 0.0
        %5159 = vmatprep.subr.mxu0 0.0
        %5160 = vmatpush1.msra.mxu0 0.0
        %5161 = vmatprep.subr.mxu0 0.0
        %5162 = vmatpush1.msra.mxu0 0.0
        %5163 = vmatprep.subr.mxu0 0.0
        %5164 = vmatpush1.msra.mxu0 0.0
        %5165 = vmatprep.subr.mxu0 0.0
        %5166 = vmatpush1.msra.mxu0 0.0
        %5167 = vmatprep.subr.mxu0 0.0
        %5168 = vmatpush1.msra.mxu0 0.0
        %5169 = vmatprep.subr.mxu0 0.0
        %5170 = vmatpush1.msra.mxu0 0.0
        %5171 = vmatprep.subr.mxu0 0.0
        %5172 = vmatpush1.msra.mxu0 0.0
        %5173 = vmatprep.subr.mxu0 0.0
        %5174 = vmatpush1.msra.mxu0 0.0
        %5175 = vmatprep.subr.mxu0 0.0
        %5176 = vmatpush1.msra.mxu0 0.0
        %5177 = vmatprep.subr.mxu0 0.0
        %5178 = vmatpush1.msra.mxu0 0.0
        %5179 = vmatprep.subr.mxu0 0.0
        %5180 = vmatpush1.msra.mxu0 0.0
        %5181 = vmatprep.subr.mxu0 0.0
        %5182 = vmatpush1.msra.mxu0 0.0
        %5183 = vmatprep.subr.mxu0 0.0
        %5184 = vmatpush1.msra.mxu0 0.0
        %5185 = vmatprep.subr.mxu0 0.0
        %5186 = vmatpush1.msra.mxu0 0.0
        %5187 = vmatprep.subr.mxu0 0.0
        %5188 = vmatpush1.msra.mxu0 0.0
        %5189 = vmatprep.subr.mxu0 0.0
        %5190 = vmatpush1.msra.mxu0 0.0
        %5191 = vmatprep.subr.mxu0 0.0
        %5192 = vmatpush1.msra.mxu0 0.0
        %5193 = vmatprep.mubr.f32.mxu0 0.0
        %5194 = vmatmul.mubr.f32.gmra.mrb[0].mxu0 %v5127
        %v5195 = vpop.f32.mrb[0].mxu0
        %v5196 = vadd.f32 %v5124, %v5195
        %v5197 = vpop.f32.mrb[0].mxu0
        %5198 = vdwg.mxu0
        %v5199 = vadd.f32 %v4184, %v5196
        %vm5200 = vcmp.ge.f32.partialorder %v5199, 0.0
        %v5201 = vmul.f32 %v5199, 0.1
        %v5202 = vsel %vm5200, %v5199, %v5201
        %v5203 = vld [vmem:[%s21] sm:$0xff]
        %v5204 = vld [vmem:[%s21 + $0x8] sm:$0xff]
        %v5205 = vld [vmem:[%s21 + $0x10] sm:$0xff]
        %v5206 = vld [vmem:[%s21 + $0x18] sm:$0xff]
        %v5207 = vld [vmem:[%s21 + $0x20] sm:$0xff]
        %v5208 = vld [vmem:[%s21 + $0x28] sm:$0xff]
        %v5209 = vld [vmem:[%s21 + $0x30] sm:$0xff]
        %v5210 = vld [vmem:[%s21 + $0x38] sm:$0xff]
        %v5212 = vsel %vm4113, %v5202, 0
        %5214 = vmatprep.subr.mxu0 0.0
        %5215 = vmatpush1.msra.mxu0 %v5203
        %5216 = vmatprep.subr.mxu0 0.0
        %5217 = vmatpush1.msra.mxu0 %v5204
        %5218 = vmatprep.subr.mxu0 0.0
        %5219 = vmatpush1.msra.mxu0 %v5205
        %5220 = vmatprep.subr.mxu0 0.0
        %5221 = vmatpush1.msra.mxu0 %v5206
        %5222 = vmatprep.subr.mxu0 0.0
        %5223 = vmatpush1.msra.mxu0 %v5207
        %5224 = vmatprep.subr.mxu0 0.0
        %5225 = vmatpush1.msra.mxu0 %v5208
        %5226 = vmatprep.subr.mxu0 0.0
        %5227 = vmatpush1.msra.mxu0 %v5209
        %5228 = vmatprep.subr.mxu0 0.0
        %5229 = vmatpush1.msra.mxu0 %v5210
        %5230 = vmatprep.subr.mxu0 0.0
        %5231 = vmatpush1.msra.mxu0 0.0
        %5232 = vmatprep.subr.mxu0 0.0
        %5233 = vmatpush1.msra.mxu0 0.0
        %5234 = vmatprep.subr.mxu0 0.0
        %5235 = vmatpush1.msra.mxu0 0.0
        %5236 = vmatprep.subr.mxu0 0.0
        %5237 = vmatpush1.msra.mxu0 0.0
        %5238 = vmatprep.subr.mxu0 0.0
        %5239 = vmatpush1.msra.mxu0 0.0
        %5240 = vmatprep.subr.mxu0 0.0
        %5241 = vmatpush1.msra.mxu0 0.0
        %5242 = vmatprep.subr.mxu0 0.0
        %5243 = vmatpush1.msra.mxu0 0.0
        %5244 = vmatprep.subr.mxu0 0.0
        %5245 = vmatpush1.msra.mxu0 0.0
        %5246 = vmatprep.subr.mxu0 0.0
        %5247 = vmatpush1.msra.mxu0 0.0
        %5248 = vmatprep.subr.mxu0 0.0
        %5249 = vmatpush1.msra.mxu0 0.0
        %5250 = vmatprep.subr.mxu0 0.0
        %5251 = vmatpush1.msra.mxu0 0.0
        %5252 = vmatprep.subr.mxu0 0.0
        %5253 = vmatpush1.msra.mxu0 0.0
        %5254 = vmatprep.subr.mxu0 0.0
        %5255 = vmatpush1.msra.mxu0 0.0
        %5256 = vmatprep.subr.mxu0 0.0
        %5257 = vmatpush1.msra.mxu0 0.0
        %5258 = vmatprep.subr.mxu0 0.0
        %5259 = vmatpush1.msra.mxu0 0.0
        %5260 = vmatprep.subr.mxu0 0.0
        %5261 = vmatpush1.msra.mxu0 0.0
        %5262 = vmatprep.subr.mxu0 0.0
        %5263 = vmatpush1.msra.mxu0 0.0
        %5264 = vmatprep.subr.mxu0 0.0
        %5265 = vmatpush1.msra.mxu0 0.0
        %5266 = vmatprep.subr.mxu0 0.0
        %5267 = vmatpush1.msra.mxu0 0.0
        %5268 = vmatprep.subr.mxu0 0.0
        %5269 = vmatpush1.msra.mxu0 0.0
        %5270 = vmatprep.subr.mxu0 0.0
        %5271 = vmatpush1.msra.mxu0 0.0
        %5272 = vmatprep.subr.mxu0 0.0
        %5273 = vmatpush1.msra.mxu0 0.0
        %5274 = vmatprep.subr.mxu0 0.0
        %5275 = vmatpush1.msra.mxu0 0.0
        %5276 = vmatprep.subr.mxu0 0.0
        %5277 = vmatpush1.msra.mxu0 0.0
        %5278 = vmatprep.mubr.f32.mxu0 0.0
        %5279 = vmatmul.mubr.f32.gmra.mrb[0].mxu0 %v5212
        %v5280 = vpop.f32.mrb[0].mxu0
        %v5281 = vadd.f32 0.0, %v5280
        %v5282 = vpop.f32.mrb[0].mxu0
        %5283 = vdwg.mxu0
        %5285 = vrot.lane.b32.xlu0 %v5281, 125
        %v5286 = vpop.permute.xlu0 %5285
        %5288 = vrot.lane.b32.xlu0 %v5281, 122
        %v5289 = vpop.permute.xlu0 %5288
        %5291 = vrot.lane.b32.xlu0 %v5281, 119
        %v5292 = vpop.permute.xlu0 %5291
        %5294 = vrot.lane.b32.xlu0 %v5281, 116
        %v5295 = vpop.permute.xlu0 %5294
        %v5297 = vld [vmem:[#allocation17] sm:$0xff]
        %v5298 = vld [vmem:[%s101] sm:$0xff]
        %5300 = vset.pattern.permute.xlu0 0
        %5301 = vperm.xlu0 %5300, %v5298
        %v5302 = vpop.permute.xlu0 %5301
        %v5305 = vsel %vm4956, %v5297, 0
        %5307 = vmatprep.subr.mxu0 0.0
        %5308 = vmatpush1.msra.mxu0 %v5281
        %5309 = vmatprep.subr.mxu0 0.0
        %5310 = vmatpush1.msra.mxu0 %v5286
        %5311 = vmatprep.subr.mxu0 0.0
        %5312 = vmatpush1.msra.mxu0 %v5289
        %5313 = vmatprep.subr.mxu0 0.0
        %5314 = vmatpush1.msra.mxu0 %v5292
        %5315 = vmatprep.subr.mxu0 0.0
        %5316 = vmatpush1.msra.mxu0 %v5295
        %5317 = vmatprep.subr.mxu0 0.0
        %5318 = vmatpush1.msra.mxu0 0.0
        %5319 = vmatprep.subr.mxu0 0.0
        %5320 = vmatpush1.msra.mxu0 0.0
        %5321 = vmatprep.subr.mxu0 0.0
        %5322 = vmatpush1.msra.mxu0 0.0
        %5323 = vmatprep.subr.mxu0 0.0
        %5324 = vmatpush1.msra.mxu0 0.0
        %5325 = vmatprep.subr.mxu0 0.0
        %5326 = vmatpush1.msra.mxu0 0.0
        %5327 = vmatprep.subr.mxu0 0.0
        %5328 = vmatpush1.msra.mxu0 0.0
        %5329 = vmatprep.subr.mxu0 0.0
        %5330 = vmatpush1.msra.mxu0 0.0
        %5331 = vmatprep.subr.mxu0 0.0
        %5332 = vmatpush1.msra.mxu0 0.0
        %5333 = vmatprep.subr.mxu0 0.0
        %5334 = vmatpush1.msra.mxu0 0.0
        %5335 = vmatprep.subr.mxu0 0.0
        %5336 = vmatpush1.msra.mxu0 0.0
        %5337 = vmatprep.subr.mxu0 0.0
        %5338 = vmatpush1.msra.mxu0 0.0
        %5339 = vmatprep.subr.mxu0 0.0
        %5340 = vmatpush1.msra.mxu0 0.0
        %5341 = vmatprep.subr.mxu0 0.0
        %5342 = vmatpush1.msra.mxu0 0.0
        %5343 = vmatprep.subr.mxu0 0.0
        %5344 = vmatpush1.msra.mxu0 0.0
        %5345 = vmatprep.subr.mxu0 0.0
        %5346 = vmatpush1.msra.mxu0 0.0
        %5347 = vmatprep.subr.mxu0 0.0
        %5348 = vmatpush1.msra.mxu0 0.0
        %5349 = vmatprep.subr.mxu0 0.0
        %5350 = vmatpush1.msra.mxu0 0.0
        %5351 = vmatprep.subr.mxu0 0.0
        %5352 = vmatpush1.msra.mxu0 0.0
        %5353 = vmatprep.subr.mxu0 0.0
        %5354 = vmatpush1.msra.mxu0 0.0
        %5355 = vmatprep.subr.mxu0 0.0
        %5356 = vmatpush1.msra.mxu0 0.0
        %5357 = vmatprep.subr.mxu0 0.0
        %5358 = vmatpush1.msra.mxu0 0.0
        %5359 = vmatprep.subr.mxu0 0.0
        %5360 = vmatpush1.msra.mxu0 0.0
        %5361 = vmatprep.subr.mxu0 0.0
        %5362 = vmatpush1.msra.mxu0 0.0
        %5363 = vmatprep.subr.mxu0 0.0
        %5364 = vmatpush1.msra.mxu0 0.0
        %5365 = vmatprep.subr.mxu0 0.0
        %5366 = vmatpush1.msra.mxu0 0.0
        %5367 = vmatprep.subr.mxu0 0.0
        %5368 = vmatpush1.msra.mxu0 0.0
        %5369 = vmatprep.subr.mxu0 0.0
        %5370 = vmatpush1.msra.mxu0 0.0
        %5371 = vmatprep.mubr.f32.mxu0 0.0
        %5372 = vmatmul.mubr.f32.gmra.mrb[0].mxu0 %v5305
        %v5373 = vpop.f32.mrb[0].mxu0
        %v5374 = vadd.f32 %v5302, %v5373
        %v5375 = vpop.f32.mrb[0].mxu0
        %5376 = vdwg.mxu0
        %vm5377 = vcmp.ge.f32.partialorder %v5374, 0.0
        %v5378 = vmul.f32 %v5374, 0.1
        %v5379 = vsel %vm5377, %v5374, %v5378
        %v5381 = vsel %vm4113, %v5379, 0
        %5383 = vmatprep.subr.mxu0 0.0
        %5384 = vmatpush1.msra.mxu0 %v4858
        %5385 = vmatprep.subr.mxu0 0.0
        %5386 = vmatpush1.msra.mxu0 %v4859
        %5387 = vmatprep.subr.mxu0 0.0
        %5388 = vmatpush1.msra.mxu0 %v4860
        %5389 = vmatprep.subr.mxu0 0.0
        %5390 = vmatpush1.msra.mxu0 %v4861
        %5391 = vmatprep.subr.mxu0 0.0
        %5392 = vmatpush1.msra.mxu0 %v4862
        %5393 = vmatprep.subr.mxu0 0.0
        %5394 = vmatpush1.msra.mxu0 %v4863
        %5395 = vmatprep.subr.mxu0 0.0
        %5396 = vmatpush1.msra.mxu0 %v4864
        %5397 = vmatprep.subr.mxu0 0.0
        %5398 = vmatpush1.msra.mxu0 %v4865
        %5399 = vmatprep.subr.mxu0 0.0
        %5400 = vmatpush1.msra.mxu0 0.0
        %5401 = vmatprep.subr.mxu0 0.0
        %5402 = vmatpush1.msra.mxu0 0.0
        %5403 = vmatprep.subr.mxu0 0.0
        %5404 = vmatpush1.msra.mxu0 0.0
        %5405 = vmatprep.subr.mxu0 0.0
        %5406 = vmatpush1.msra.mxu0 0.0
        %5407 = vmatprep.subr.mxu0 0.0
        %5408 = vmatpush1.msra.mxu0 0.0
        %5409 = vmatprep.subr.mxu0 0.0
        %5410 = vmatpush1.msra.mxu0 0.0
        %5411 = vmatprep.subr.mxu0 0.0
        %5412 = vmatpush1.msra.mxu0 0.0
        %5413 = vmatprep.subr.mxu0 0.0
        %5414 = vmatpush1.msra.mxu0 0.0
        %5415 = vmatprep.subr.mxu0 0.0
        %5416 = vmatpush1.msra.mxu0 0.0
        %5417 = vmatprep.subr.mxu0 0.0
        %5418 = vmatpush1.msra.mxu0 0.0
        %5419 = vmatprep.subr.mxu0 0.0
        %5420 = vmatpush1.msra.mxu0 0.0
        %5421 = vmatprep.subr.mxu0 0.0
        %5422 = vmatpush1.msra.mxu0 0.0
        %5423 = vmatprep.subr.mxu0 0.0
        %5424 = vmatpush1.msra.mxu0 0.0
        %5425 = vmatprep.subr.mxu0 0.0
        %5426 = vmatpush1.msra.mxu0 0.0
        %5427 = vmatprep.subr.mxu0 0.0
        %5428 = vmatpush1.msra.mxu0 0.0
        %5429 = vmatprep.subr.mxu0 0.0
        %5430 = vmatpush1.msra.mxu0 0.0
        %5431 = vmatprep.subr.mxu0 0.0
        %5432 = vmatpush1.msra.mxu0 0.0
        %5433 = vmatprep.subr.mxu0 0.0
        %5434 = vmatpush1.msra.mxu0 0.0
        %5435 = vmatprep.subr.mxu0 0.0
        %5436 = vmatpush1.msra.mxu0 0.0
        %5437 = vmatprep.subr.mxu0 0.0
        %5438 = vmatpush1.msra.mxu0 0.0
        %5439 = vmatprep.subr.mxu0 0.0
        %5440 = vmatpush1.msra.mxu0 0.0
        %5441 = vmatprep.subr.mxu0 0.0
        %5442 = vmatpush1.msra.mxu0 0.0
        %5443 = vmatprep.subr.mxu0 0.0
        %5444 = vmatpush1.msra.mxu0 0.0
        %5445 = vmatprep.subr.mxu0 0.0
        %5446 = vmatpush1.msra.mxu0 0.0
        %5447 = vmatprep.mubr.f32.mxu0 0.0
        %5448 = vmatmul.mubr.f32.gmra.mrb[0].mxu0 %v5381
        %v5449 = vpop.f32.mrb[0].mxu0
        %v5450 = vadd.f32 0.0, %v5449
        %v5451 = vpop.f32.mrb[0].mxu0
        %5452 = vdwg.mxu0
        %5454 = vrot.lane.b32.xlu0 %v5450, 127
        %v5455 = vpop.permute.xlu0 %5454
        %5457 = vrot.lane.b32.xlu0 %v5450, 126
        %v5458 = vpop.permute.xlu0 %5457
        %5460 = vrot.lane.b32.xlu0 %v5450, 125
        %v5461 = vpop.permute.xlu0 %5460
        %5463 = vrot.lane.b32.xlu0 %v5450, 124
        %v5464 = vpop.permute.xlu0 %5463
        %v5466 = vld [vmem:[%s103] sm:$0xff]
        %v5467 = vld [vmem:[%s105] sm:$0xff]
        %5469 = vset.pattern.permute.xlu0 0
        %5470 = vperm.xlu0 %5469, %v5467
        %v5471 = vpop.permute.xlu0 %5470
        %v5474 = vsel %vm4956, %v5466, 0
        %5476 = vmatprep.subr.mxu0 0.0
        %5477 = vmatpush1.msra.mxu0 %v5450
        %5478 = vmatprep.subr.mxu0 0.0
        %5479 = vmatpush1.msra.mxu0 %v5455
        %5480 = vmatprep.subr.mxu0 0.0
        %5481 = vmatpush1.msra.mxu0 %v5458
        %5482 = vmatprep.subr.mxu0 0.0
        %5483 = vmatpush1.msra.mxu0 %v5461
        %5484 = vmatprep.subr.mxu0 0.0
        %5485 = vmatpush1.msra.mxu0 %v5464
        %5486 = vmatprep.subr.mxu0 0.0
        %5487 = vmatpush1.msra.mxu0 0.0
        %5488 = vmatprep.subr.mxu0 0.0
        %5489 = vmatpush1.msra.mxu0 0.0
        %5490 = vmatprep.subr.mxu0 0.0
        %5491 = vmatpush1.msra.mxu0 0.0
        %5492 = vmatprep.subr.mxu0 0.0
        %5493 = vmatpush1.msra.mxu0 0.0
        %5494 = vmatprep.subr.mxu0 0.0
        %5495 = vmatpush1.msra.mxu0 0.0
        %5496 = vmatprep.subr.mxu0 0.0
        %5497 = vmatpush1.msra.mxu0 0.0
        %5498 = vmatprep.subr.mxu0 0.0
        %5499 = vmatpush1.msra.mxu0 0.0
        %5500 = vmatprep.subr.mxu0 0.0
        %5501 = vmatpush1.msra.mxu0 0.0
        %5502 = vmatprep.subr.mxu0 0.0
        %5503 = vmatpush1.msra.mxu0 0.0
        %5504 = vmatprep.subr.mxu0 0.0
        %5505 = vmatpush1.msra.mxu0 0.0
        %5506 = vmatprep.subr.mxu0 0.0
        %5507 = vmatpush1.msra.mxu0 0.0
        %5508 = vmatprep.subr.mxu0 0.0
        %5509 = vmatpush1.msra.mxu0 0.0
        %5510 = vmatprep.subr.mxu0 0.0
        %5511 = vmatpush1.msra.mxu0 0.0
        %5512 = vmatprep.subr.mxu0 0.0
        %5513 = vmatpush1.msra.mxu0 0.0
        %5514 = vmatprep.subr.mxu0 0.0
        %5515 = vmatpush1.msra.mxu0 0.0
        %5516 = vmatprep.subr.mxu0 0.0
        %5517 = vmatpush1.msra.mxu0 0.0
        %5518 = vmatprep.subr.mxu0 0.0
        %5519 = vmatpush1.msra.mxu0 0.0
        %5520 = vmatprep.subr.mxu0 0.0
        %5521 = vmatpush1.msra.mxu0 0.0
        %5522 = vmatprep.subr.mxu0 0.0
        %5523 = vmatpush1.msra.mxu0 0.0
        %5524 = vmatprep.subr.mxu0 0.0
        %5525 = vmatpush1.msra.mxu0 0.0
        %5526 = vmatprep.subr.mxu0 0.0
        %5527 = vmatpush1.msra.mxu0 0.0
        %5528 = vmatprep.subr.mxu0 0.0
        %5529 = vmatpush1.msra.mxu0 0.0
        %5530 = vmatprep.subr.mxu0 0.0
        %5531 = vmatpush1.msra.mxu0 0.0
        %5532 = vmatprep.subr.mxu0 0.0
        %5533 = vmatpush1.msra.mxu0 0.0
        %5534 = vmatprep.subr.mxu0 0.0
        %5535 = vmatpush1.msra.mxu0 0.0
        %5536 = vmatprep.subr.mxu0 0.0
        %5537 = vmatpush1.msra.mxu0 0.0
        %5538 = vmatprep.subr.mxu0 0.0
        %5539 = vmatpush1.msra.mxu0 0.0
        %5540 = vmatprep.mubr.f32.mxu0 0.0
        %5541 = vmatmul.mubr.f32.gmra.mrb[0].mxu0 %v5474
        %v5542 = vpop.f32.mrb[0].mxu0
        %v5543 = vadd.f32 %v5471, %v5542
        %v5544 = vpop.f32.mrb[0].mxu0
        %5545 = vdwg.mxu0
        %v5546 = vadd.f32 %v5199, %v5543
        %v5547 = vadd.f32 %v4857, %v5546
        %v5548 = vmul.f32 %v5547, 0.5
        %vm5549 = vcmp.ge.f32.partialorder %v5548, 0.0
        %v5550 = vmul.f32 %v5548, 0.01
        %v5551 = vsel %vm5549, %v5548, %v5550
        %v5553 = vsel %vm4113, %v5551, 0
        %5555 = vmatprep.subr.mxu0 0.0
        %5556 = vmatpush1.msra.mxu0 %v4526
        %5557 = vmatprep.subr.mxu0 0.0
        %5558 = vmatpush1.msra.mxu0 %v4527
        %5559 = vmatprep.subr.mxu0 0.0
        %5560 = vmatpush1.msra.mxu0 %v4528
        %5561 = vmatprep.subr.mxu0 0.0
        %5562 = vmatpush1.msra.mxu0 %v4529
        %5563 = vmatprep.subr.mxu0 0.0
        %5564 = vmatpush1.msra.mxu0 %v4530
        %5565 = vmatprep.subr.mxu0 0.0
        %5566 = vmatpush1.msra.mxu0 %v4531
        %5567 = vmatprep.subr.mxu0 0.0
        %5568 = vmatpush1.msra.mxu0 %v4532
        %5569 = vmatprep.subr.mxu0 0.0
        %5570 = vmatpush1.msra.mxu0 %v4533
        %5571 = vmatprep.subr.mxu0 0.0
        %5572 = vmatpush1.msra.mxu0 0.0
        %5573 = vmatprep.subr.mxu0 0.0
        %5574 = vmatpush1.msra.mxu0 0.0
        %5575 = vmatprep.subr.mxu0 0.0
        %5576 = vmatpush1.msra.mxu0 0.0
        %5577 = vmatprep.subr.mxu0 0.0
        %5578 = vmatpush1.msra.mxu0 0.0
        %5579 = vmatprep.subr.mxu0 0.0
        %5580 = vmatpush1.msra.mxu0 0.0
        %5581 = vmatprep.subr.mxu0 0.0
        %5582 = vmatpush1.msra.mxu0 0.0
        %5583 = vmatprep.subr.mxu0 0.0
        %5584 = vmatpush1.msra.mxu0 0.0
        %5585 = vmatprep.subr.mxu0 0.0
        %5586 = vmatpush1.msra.mxu0 0.0
        %5587 = vmatprep.subr.mxu0 0.0
        %5588 = vmatpush1.msra.mxu0 0.0
        %5589 = vmatprep.subr.mxu0 0.0
        %5590 = vmatpush1.msra.mxu0 0.0
        %5591 = vmatprep.subr.mxu0 0.0
        %5592 = vmatpush1.msra.mxu0 0.0
        %5593 = vmatprep.subr.mxu0 0.0
        %5594 = vmatpush1.msra.mxu0 0.0
        %5595 = vmatprep.subr.mxu0 0.0
        %5596 = vmatpush1.msra.mxu0 0.0
        %5597 = vmatprep.subr.mxu0 0.0
        %5598 = vmatpush1.msra.mxu0 0.0
        %5599 = vmatprep.subr.mxu0 0.0
        %5600 = vmatpush1.msra.mxu0 0.0
        %5601 = vmatprep.subr.mxu0 0.0
        %5602 = vmatpush1.msra.mxu0 0.0
        %5603 = vmatprep.subr.mxu0 0.0
        %5604 = vmatpush1.msra.mxu0 0.0
        %5605 = vmatprep.subr.mxu0 0.0
        %5606 = vmatpush1.msra.mxu0 0.0
        %5607 = vmatprep.subr.mxu0 0.0
        %5608 = vmatpush1.msra.mxu0 0.0
        %5609 = vmatprep.subr.mxu0 0.0
        %5610 = vmatpush1.msra.mxu0 0.0
        %5611 = vmatprep.subr.mxu0 0.0
        %5612 = vmatpush1.msra.mxu0 0.0
        %5613 = vmatprep.subr.mxu0 0.0
        %5614 = vmatpush1.msra.mxu0 0.0
        %5615 = vmatprep.subr.mxu0 0.0
        %5616 = vmatpush1.msra.mxu0 0.0
        %5617 = vmatprep.subr.mxu0 0.0
        %5618 = vmatpush1.msra.mxu0 0.0
        %5619 = vmatprep.mubr.f32.mxu0 0.0
        %5620 = vmatmul.mubr.f32.gmra.mrb[0].mxu0 %v5553
        %v5621 = vpop.f32.mrb[0].mxu0
        %v5622 = vadd.f32 0.0, %v5621
        %v5623 = vpop.f32.mrb[0].mxu0
        %5624 = vdwg.mxu0
        %5626 = vrot.lane.b32.xlu0 %v5622, 127
        %v5627 = vpop.permute.xlu0 %5626
        %5629 = vrot.lane.b32.xlu0 %v5622, 126
        %v5630 = vpop.permute.xlu0 %5629
        %5632 = vrot.lane.b32.xlu0 %v5622, 125
        %v5633 = vpop.permute.xlu0 %5632
        %5635 = vrot.lane.b32.xlu0 %v5622, 124
        %v5636 = vpop.permute.xlu0 %5635
        %5638 = vrot.lane.b32.xlu0 %v5622, 123
        %v5639 = vpop.permute.xlu0 %5638
        %5641 = vrot.lane.b32.xlu0 %v5622, 122
        %v5642 = vpop.permute.xlu0 %5641
        %v5644 = vld [vmem:[%s107] sm:$0x1]
        %v5646 = vsel %vm1887, %v5644, 0
        %5648 = vmatprep.subr.mxu0 0.0
        %5649 = vmatpush1.msra.mxu0 %v5622
        %5650 = vmatprep.subr.mxu0 0.0
        %5651 = vmatpush1.msra.mxu0 %v5627
        %5652 = vmatprep.subr.mxu0 0.0
        %5653 = vmatpush1.msra.mxu0 %v5630
        %5654 = vmatprep.subr.mxu0 0.0
        %5655 = vmatpush1.msra.mxu0 %v5633
        %5656 = vmatprep.subr.mxu0 0.0
        %5657 = vmatpush1.msra.mxu0 %v5636
        %5658 = vmatprep.subr.mxu0 0.0
        %5659 = vmatpush1.msra.mxu0 %v5639
        %5660 = vmatprep.subr.mxu0 0.0
        %5661 = vmatpush1.msra.mxu0 %v5642
        %5662 = vmatprep.subr.mxu0 0.0
        %5663 = vmatpush1.msra.mxu0 0.0
        %5664 = vmatprep.subr.mxu0 0.0
        %5665 = vmatpush1.msra.mxu0 0.0
        %5666 = vmatprep.subr.mxu0 0.0
        %5667 = vmatpush1.msra.mxu0 0.0
        %5668 = vmatprep.subr.mxu0 0.0
        %5669 = vmatpush1.msra.mxu0 0.0
        %5670 = vmatprep.subr.mxu0 0.0
        %5671 = vmatpush1.msra.mxu0 0.0
        %5672 = vmatprep.subr.mxu0 0.0
        %5673 = vmatpush1.msra.mxu0 0.0
        %5674 = vmatprep.subr.mxu0 0.0
        %5675 = vmatpush1.msra.mxu0 0.0
        %5676 = vmatprep.subr.mxu0 0.0
        %5677 = vmatpush1.msra.mxu0 0.0
        %5678 = vmatprep.subr.mxu0 0.0
        %5679 = vmatpush1.msra.mxu0 0.0
        %5680 = vmatprep.subr.mxu0 0.0
        %5681 = vmatpush1.msra.mxu0 0.0
        %5682 = vmatprep.subr.mxu0 0.0
        %5683 = vmatpush1.msra.mxu0 0.0
        %5684 = vmatprep.subr.mxu0 0.0
        %5685 = vmatpush1.msra.mxu0 0.0
        %5686 = vmatprep.subr.mxu0 0.0
        %5687 = vmatpush1.msra.mxu0 0.0
        %5688 = vmatprep.subr.mxu0 0.0
        %5689 = vmatpush1.msra.mxu0 0.0
        %5690 = vmatprep.subr.mxu0 0.0
        %5691 = vmatpush1.msra.mxu0 0.0
        %5692 = vmatprep.subr.mxu0 0.0
        %5693 = vmatpush1.msra.mxu0 0.0
        %5694 = vmatprep.subr.mxu0 0.0
        %5695 = vmatpush1.msra.mxu0 0.0
        %5696 = vmatprep.subr.mxu0 0.0
        %5697 = vmatpush1.msra.mxu0 0.0
        %5698 = vmatprep.subr.mxu0 0.0
        %5699 = vmatpush1.msra.mxu0 0.0
        %5700 = vmatprep.subr.mxu0 0.0
        %5701 = vmatpush1.msra.mxu0 0.0
        %5702 = vmatprep.subr.mxu0 0.0
        %5703 = vmatpush1.msra.mxu0 0.0
        %5704 = vmatprep.subr.mxu0 0.0
        %5705 = vmatpush1.msra.mxu0 0.0
        %5706 = vmatprep.subr.mxu0 0.0
        %5707 = vmatpush1.msra.mxu0 0.0
        %5708 = vmatprep.subr.mxu0 0.0
        %5709 = vmatpush1.msra.mxu0 0.0
        %5710 = vmatprep.subr.mxu0 0.0
        %5711 = vmatpush1.msra.mxu0 0.0
        %5712 = vmatprep.mubr.f32.mxu0 0.0
        %5713 = vmatmul.mubr.f32.gmra.mrb[0].mxu0 %v5646
        %v5714 = vpop.f32.mrb[0].mxu0
        %v5715 = vadd.f32 0.0, %v5714
        %v5716 = vpop.f32.mrb[0].mxu0
        %5717 = vdwg.mxu0
        %v5718 = vtanh.pop %v5715
        %vm5719 = vcmask 516096
        %5720 = vst.msk [vmem:[%s1758] sm:$0x1] %vm5719, %v5718
        %s5721 = sand.u32 %s1283, 1
        %s5722 = scalar_lea.sflag [#allocation4], %s5721
        %s5723 = sand.u32 %s1283, 1
        %s5724 = scalar_lea.vmem [#allocation19], %s5723
        // Predicated region
        $region277: #{tpu_custom_call.1} parent=235 // pred_check
          %p5725 = pneg %p1293
        $region278: #{tpu_custom_call.1} parent=235 // pred_check_branch
          %5727 = sbr.rel (%p5725) target = $region280
        $region279: #{tpu_custom_call.1} parent=235 // pred_region
          %s5729 = ssub.s32 16, 16
          %5730 = vsyncadd %s5722, %s5729
          %s5731 = smul.addr %s131, 16
          %s5732 = scalar_lea.hbm %s109, %s5731
          %s5734 = sshll.u32 %s5724, 4
          %s5735 = int_to_ptr.vmem [resolvable:$true] %s5734
          %5737 = dma.vmem_to_hbm [thread:$0]  %s5735, 16, %s5732, %s5722
        $region280: #{tpu_custom_call.1} parent=235 // pred_fallthru
          _
      $region236: #{tpu_custom_call.1} parent=5 // pred_fallthru
        _
      %p5738 = scmp.le.s32.totalorder 2, %s126
      // Predicated region
      $region281: #{tpu_custom_call.1} parent=5 // pred_check
        %p5739 = pneg %p5738
      $region282: #{tpu_custom_call.1} parent=5 // pred_check_branch
        %5741 = sbr.rel (%p5739) target = $region284
      $region283: #{tpu_custom_call.1} parent=5 // pred_region
        %s5742 = ssub.s32 %s126, 2
        // Predicated region
        $region285: #{tpu_custom_call.1} parent=283 // pred_check
          %p5743 = pneg %p1299
        $region286: #{tpu_custom_call.1} parent=283 // pred_check_branch
          %5745 = sbr.rel (%p5743) target = $region288
        $region287: #{tpu_custom_call.1} parent=283 // pred_region
          %s5746 = sand.u32 %s1284, 1
          %s5747 = scalar_lea.sflag [#allocation4], %s5746
          %s5748 = sand.u32 %s1284, 1
          %s5749 = scalar_lea.vmem [#allocation19], %s5748
          %5750 = dma.done %s5747, 16
        $region288: #{tpu_custom_call.1} parent=283 // pred_fallthru
          _
      $region284: #{tpu_custom_call.1} parent=5 // pred_fallthru
        _
    $region6: #{tpu_custom_call.1} parent=1 // loop_footer
      %s130 = sadd.s32 1, %s126
    $region7: #{tpu_custom_call.1} parent=1 // loop_footer_branch
      %125 = sbr.rel target = $region3
    $region8: #{tpu_custom_call.1} parent=1 // loop_exit
      _
    %5751 = vsyncpa [#allocation3], 1
    %s5752 = scalar_lea.sflag [#allocation3], 1
    %5753 = vsyncpa %s5752, 1
    %5754 = vsyncpa [#allocation6], 1
    %5755 = vsyncpa [#allocation9], 1
    %5756 = vsyncpa [#allocation12], 1
    %5757 = vsyncpa [#allocation15], 1
    %5758 = vsyncpa [#allocation18], 1
    %5759 = vsyncpa [#allocation4], 1
    %s5760 = scalar_lea.sflag [#allocation4], 1
    %5761 = vsyncpa %s5760, 1

</llo_original>
